<compile_context>
chip_gen: v7x
topology: tpu7x:2x2x1
jax: 0.10.0
libtpu: 0.0.40
codegen_flags: <defaults>
</compile_context>

<pallas_src>
import math
import datetime
import functools

import numpy as np
import jax
import jax.numpy as jnp
from jax import lax
from jax.experimental import pallas as pl
from jax.experimental.pallas import tpu as pltpu

LN_EPS = 1e-5
REVIN_EPS = 1e-5


# ----------------------------- in-kernel helpers (traced inside the fused kernel) ----

def _layer_norm(x, g, b):
    mu = jnp.mean(x, axis=-1, keepdims=True)
    xc = x - mu
    var = jnp.mean(xc * xc, axis=-1, keepdims=True)
    return xc * lax.rsqrt(var + LN_EPS) * g + b


def _mamba_branch(x_in, z, xw, a_t, vec, shift_mat, ys_scr, Bb, ntok, d_state, reverse):
    """One Mamba branch over token-major rows: (M, d_inner) -> (M, d_inner) (gated).

    `shift_mat` is the constant (M, M) neighbour-selection matrix (prev token for the
    forward branch, next token for the reverse branch).  The reverse branch is
    mathematically identical to flip -> mamba -> flip but needs no flips.
    """
    M, d_inner = x_in.shape
    w0, w1, cb, dtb, Dp = vec[0:1], vec[1:2], vec[2:3], vec[3:4], vec[4:5]

    # causal depthwise conv (k=2): neighbour rows via one tiny MXU dot, no scratch.
    neighbor = jnp.dot(shift_mat, x_in, preferred_element_type=jnp.float32)   # (M, Din)
    c = neighbor * w0 + x_in * w1 + cb
    u = c * jax.nn.sigmoid(c)                                                 # SiLU

    # fused x_proj (dt_proj pre-composed) -> one dot, slice lanes afterwards.
    x_dbl = jnp.dot(u, xw, preferred_element_type=jnp.float32)                # (M, Din+2S)
    dt = jax.nn.softplus(x_dbl[:, :d_inner] + dtb)                            # (M, Din)
    Bm = x_dbl[:, d_inner:d_inner + d_state]                                  # (M, S)
    Cm = x_dbl[:, d_inner + d_state:d_inner + 2 * d_state]                    # (M, S)

    # hoist all EUP/VPU work out of the sequential recurrence.
    dA_all = jnp.exp(dt[:, None, :] * a_t[None, :, :])                        # (M, S, Din)
    dBu_all = Bm[:, :, None] * (dt * u)[:, None, :]                           # (M, S, Din)

    h = jnp.zeros((Bb, d_state, d_inner), jnp.float32)
    steps = range(ntok - 1, -1, -1) if reverse else range(ntok)
    for t in steps:                              # static unroll; L = ntok is small
        lo = t * Bb
        # only these 2 VPU ops are on the serial chain
        h = dA_all[lo:lo + Bb] * h + dBu_all[lo:lo + Bb]                      # (Bb, S, Din)
        # C-readout: VPU mul + sublane reduce; off the recurrence chain, read back once.
        ys_scr[lo:lo + Bb, :] = jnp.sum(h * Cm[lo:lo + Bb, :, None], axis=1)  # (Bb, Din)

    y = ys_scr[...] + Dp * u                                                  # (M, Din)
    return y * (z * jax.nn.sigmoid(z))                                        # gate


def _fused_forward_kernel(tok_ref,
                          emb_w_ref, glob_vec_ref, proj_w_ref, proj_b_ref,
                          in_w_ref, xw_ref, a_t_ref, out_w_ref, mvec_ref,
                          ffn_w1_ref, ffn_w2_ref, evec_ref, ffn_b1_ref,
                          o_ref, ys_scr, *, batch_block):
    Bb = batch_block
    M = tok_ref.shape[0]
    ntok = M // Bb
    d_state = a_t_ref.shape[1]
    d_inner = a_t_ref.shape[2]
    n_layers = in_w_ref.shape[0]

    # constant neighbour-selection matrices (hoisted out of the layer loop):
    # prev-token rows for the forward branch, next-token rows for the reverse branch.
    ridx = lax.broadcasted_iota(jnp.int32, (M, M), 0)
    cidx = lax.broadcasted_iota(jnp.int32, (M, M), 1)
    shift_prev = jnp.where(cidx == ridx - Bb, 1.0, 0.0)
    shift_next = jnp.where(cidx == ridx + Bb, 1.0, 0.0)

    gv = glob_vec_ref[...]                            # (3, d_model): emb_b, ln_g, ln_b

    # ---------- inverted embedding on the batch-folded, token-major token matrix ----
    tok = tok_ref[...]                                # (M, seq_len)
    enc = jnp.dot(tok, emb_w_ref[...], preferred_element_type=jnp.float32) + gv[0:1]

    # ---------- encoder layers (bidirectional Mamba + FFN), statically unrolled -----
    for l in range(n_layers):
        # single lane-filling in-projection for both branches (x_f | z_f | x_r | z_r)
        xz = jnp.dot(enc, in_w_ref[l], preferred_element_type=jnp.float32)    # (M, 4*Din)
        y_f = _mamba_branch(xz[:, 0 * d_inner:1 * d_inner], xz[:, 1 * d_inner:2 * d_inner],
                            xw_ref[2 * l], a_t_ref[2 * l], mvec_ref[2 * l],
                            shift_prev, ys_scr, Bb, ntok, d_state, reverse=False)
        y_r = _mamba_branch(xz[:, 2 * d_inner:3 * d_inner], xz[:, 3 * d_inner:4 * d_inner],
                            xw_ref[2 * l + 1], a_t_ref[2 * l + 1], mvec_ref[2 * l + 1],
                            shift_next, ys_scr, Bb, ntok, d_state, reverse=True)
        # fused out-projection of both branches (= fwd_out + rev_out)
        new_x = jnp.dot(jnp.concatenate([y_f, y_r], axis=1), out_w_ref[l],
                        preferred_element_type=jnp.float32)                   # (M, d_model)

        ev = evec_ref[l]                              # (5, d_model): ln1_g/b, ln2_g/b, ffn_b2
        x1 = _layer_norm(enc + new_x, ev[0:1], ev[1:2])
        y = jnp.maximum(jnp.dot(x1, ffn_w1_ref[l], preferred_element_type=jnp.float32)
                        + ffn_b1_ref[l], 0.0)
        y = jnp.dot(y, ffn_w2_ref[l], preferred_element_type=jnp.float32) + ev[4:5]
        enc = _layer_norm(x1 + y, ev[2:3], ev[3:4])

    enc = _layer_norm(enc, gv[1:2], gv[2:3])

    # ---------- projection to pred_len ----------
    dec = jnp.dot(enc, proj_w_ref[...], preferred_element_type=jnp.float32) + proj_b_ref[...]
    o_ref[...] = dec.astype(o_ref.dtype)


# ----------------------------- parameter preparation (call ONCE, outside jit loop) ---

def prepare_params(params):
    """Fuse / split / stack PyTorch-style params into kernel-friendly operands."""
    HIGH = lax.Precision.HIGHEST

    def branch(mp):
        d_inner, d_state = mp["A_log"].shape
        dt_rank = mp["x_proj_w"].shape[1] - 2 * d_state
        # compose dt_proj into x_proj: u @ xw_dt @ dt_w == u @ (xw_dt @ dt_w)
        w_dt = jnp.dot(mp["x_proj_w"][:, :dt_rank], mp["dt_proj_w"], precision=HIGH)
        xw = jnp.concatenate([w_dt, mp["x_proj_w"][:, dt_rank:]], axis=1)     # (Din, Din+2S)
        at = jnp.transpose(-jnp.exp(mp["A_log"]))                             # (S, Din)
        vec = jnp.stack([mp["conv_w0"].reshape(-1), mp["conv_w1"].reshape(-1),
                         mp["conv_b"].reshape(-1), mp["dt_proj_b"].reshape(-1),
                         mp["D"].reshape(-1)], axis=0)                        # (5, Din)
        return xw, at, vec

    in_w, x_w, a_t, out_w, mvec = [], [], [], [], []
    ffn_w1, ffn_w2, evec, ffn_b1 = [], [], [], []
    for lp in params["layers"]:
        f, r = lp["mamba_f"], lp["mamba_r"]
        in_w.append(jnp.concatenate([f["in_proj_w"], r["in_proj_w"]], axis=1))   # (d_model, 4*Din)
        for mp in (f, r):
            xw, at, vec = branch(mp)
            x_w.append(xw); a_t.append(at); mvec.append(vec)
        out_w.append(jnp.concatenate([f["out_proj_w"], r["out_proj_w"]], axis=0))  # (2*Din, d_model)
        ffn_w1.append(lp["conv1_w"]); ffn_w2.append(lp["conv2_w"])
        ffn_b1.append(lp["conv1_b"].reshape(1, -1))
        evec.append(jnp.stack([lp["ln1_g"].reshape(-1), lp["ln1_b"].reshape(-1),
                               lp["ln2_g"].reshape(-1), lp["ln2_b"].reshape(-1),
                               lp["conv2_b"].reshape(-1)], axis=0))               # (5, d_model)

    glob_vec = jnp.stack([params["emb_b"].reshape(-1), params["ln_g"].reshape(-1),
                          params["ln_b"].reshape(-1)], axis=0)                    # (3, d_model)
    return dict(
        emb_w=params["emb_w"], glob_vec=glob_vec,
        proj_w=params["proj_w"], proj_b=params["proj_b"].reshape(1, -1),
        in_w=jnp.stack(in_w), x_w=jnp.stack(x_w), a_t=jnp.stack(a_t),
        out_w=jnp.stack(out_w), mamba_vec=jnp.stack(mvec),
        ffn_w1=jnp.stack(ffn_w1), ffn_w2=jnp.stack(ffn_w2),
        enc_vec=jnp.stack(evec), ffn_b1=jnp.stack(ffn_b1),
    )


_WEIGHT_ORDER = ("emb_w", "glob_vec", "proj_w", "proj_b", "in_w", "x_w", "a_t",
                 "out_w", "mamba_vec", "ffn_w1", "ffn_w2", "enc_vec", "ffn_b1")


# ----------------------------- wrapper ------------------------------

def model_forward(prepped, x_enc, x_mark_enc, *, pred_len, batch_block=None):
    B, seq_len, N = x_enc.shape
    n_marks = x_mark_enc.shape[-1]
    ntok = N + n_marks
    d_inner = prepped["a_t"].shape[2]

    # batch folding: default = whole batch in one grid step (v5e/v6e);
    # pass batch_block=ceil(B/2) on v7x to split the batch over both TensorCores.
    B_blk = B if batch_block is None else max(1, min(int(batch_block), B))
    n_blocks = -(-B // B_blk)
    B_pad = n_blocks * B_blk
    M_blk = ntok * B_blk

    # ---------- RevIN statistics (de-normalization happens after the kernel) ----------
    mean = jnp.mean(x_enc, axis=1, keepdims=True)                    # (B, 1, N)
    xc = x_enc - mean
    std = jnp.sqrt(jnp.mean(xc * xc, axis=1, keepdims=True) + REVIN_EPS)
    xn = xc / std                                                     # (B, seq, N)

    # ---------- batch-folded, token-major token matrix per block ----------
    tok = jnp.concatenate([jnp.transpose(xn, (0, 2, 1)),
                           jnp.transpose(x_mark_enc, (0, 2, 1))], axis=1)   # (B, ntok, seq)
    if B_pad != B:
        tok = jnp.concatenate(
            [tok, jnp.zeros((B_pad - B, ntok, seq_len), tok.dtype)], axis=0)
    tok = tok.reshape(n_blocks, B_blk, ntok, seq_len)
    tok = jnp.transpose(tok, (0, 2, 1, 3)).reshape(n_blocks, M_blk, seq_len)
    tok = tok.astype(jnp.float32)

    weights = [prepped[k] for k in _WEIGHT_ORDER]

    def _const_spec(a):
        zeros = (0,) * a.ndim
        return pl.BlockSpec(a.shape, lambda i, _z=zeros: _z)

    kernel = functools.partial(_fused_forward_kernel, batch_block=B_blk)

    dec = pl.pallas_call(
        kernel,
        grid=(n_blocks,),
        in_specs=[pl.BlockSpec((None, M_blk, seq_len), lambda i: (i, 0, 0))]
                 + [_const_spec(a) for a in weights],
        out_specs=pl.BlockSpec((None, M_blk, pred_len), lambda i: (i, 0, 0)),
        out_shape=jax.ShapeDtypeStruct((n_blocks, M_blk, pred_len), jnp.float32),
        scratch_shapes=[pltpu.VMEM((M_blk, d_inner), jnp.float32)],   # scan read-out rows
        compiler_params=pltpu.CompilerParams(
            dimension_semantics=("parallel",),
            vmem_limit_bytes=64 * 1024 * 1024),
    )(tok, *weights)

    # ---------- keep variate tokens, restore (B, pred_len, N), de-normalize ----------
    dec = dec.reshape(n_blocks, ntok, B_blk, pred_len)
    dec = jnp.transpose(dec, (0, 2, 1, 3)).reshape(B_pad, ntok, pred_len)[:B, :N, :]
    out = jnp.transpose(dec, (0, 2, 1))                               # (B, pred, N)
    out = out * std + mean
    return out.astype(x_enc.dtype)


# ----------------------------- pure-JAX reference (mirrors the PyTorch module) ----------

def _reference_forward(params, x_enc, x_mark_enc, pred_len):
    B, L, N = x_enc.shape
    mean = jnp.mean(x_enc, axis=1, keepdims=True)
    xc = x_enc - mean
    std = jnp.sqrt(jnp.var(xc, axis=1, keepdims=True) + REVIN_EPS)
    xn = xc / std

    def ln(x, g, b):
        mu = x.mean(-1, keepdims=True)
        v = ((x - mu) ** 2).mean(-1, keepdims=True)
        return (x - mu) / jnp.sqrt(v + LN_EPS) * g + b

    def mamba_ref(mp, x):
        Bb, Ll, Dm = x.shape
        d_inner, S = mp["A_log"].shape
        dt_rank = mp["x_proj_w"].shape[1] - 2 * S
        xz = x @ mp["in_proj_w"]
        x_in, z = xz[..., :d_inner], xz[..., d_inner:]
        x_prev = jnp.concatenate([jnp.zeros_like(x_in[:, :1, :]), x_in[:, :-1, :]], axis=1)
        c = x_prev * mp["conv_w0"][None] + x_in * mp["conv_w1"][None] + mp["conv_b"][None]
        u = c * jax.nn.sigmoid(c)
        x_dbl = u @ mp["x_proj_w"]
        dt = jax.nn.softplus(x_dbl[..., :dt_rank] @ mp["dt_proj_w"] + mp["dt_proj_b"])
        Bm = x_dbl[..., dt_rank:dt_rank + S]
        Cm = x_dbl[..., dt_rank + S:]
        A = -jnp.exp(mp["A_log"])                      # (Din, S)
        h = jnp.zeros((Bb, d_inner, S), jnp.float32)
        ys = []
        for t in range(Ll):
            dA = jnp.exp(dt[:, t, :, None] * A[None])
            dBu = (dt[:, t, :] * u[:, t, :])[:, :, None] * Bm[:, t, None, :]
            h = dA * h + dBu
            ys.append(jnp.sum(h * Cm[:, t, None, :], axis=-1) + mp["D"][0] * u[:, t, :])
        y = jnp.stack(ys, axis=1)
        y = y * (z * jax.nn.sigmoid(z))
        return y @ mp["out_proj_w"]

    tok = jnp.concatenate([jnp.transpose(xn, (0, 2, 1)),
                           jnp.transpose(x_mark_enc, (0, 2, 1))], axis=1)
    enc = tok @ params["emb_w"] + params["emb_b"]

    for lp in params["layers"]:
        fwd = mamba_ref(lp["mamba_f"], enc)
        rev = jnp.flip(mamba_ref(lp["mamba_r"], jnp.flip(enc, axis=1)), axis=1)
        enc = ln(enc + fwd + rev, lp["ln1_g"], lp["ln1_b"])
        y = jnp.maximum(enc @ lp["conv1_w"] + lp["conv1_b"], 0.0)
        y = y @ lp["conv2_w"] + lp["conv2_b"]
        enc = ln(enc + y, lp["ln2_g"], lp["ln2_b"])
    enc = ln(enc, params["ln_g"], params["ln_b"])

    dec = enc @ params["proj_w"] + params["proj_b"]
    dec = jnp.transpose(dec, (0, 2, 1))[:, :, :N]
    return dec * std + mean


# ----------------------------- parameters & inputs ------------------------------

def init_params(key, *, seq_len, pred_len, d_model, d_state, d_ff, e_layers):
    d_inner = d_model                       # expand = 1
    dt_rank = math.ceil(d_model / 16)
    keys = iter(jax.random.split(key, 256))

    def nrm(shape, scale=0.1):
        return jax.random.normal(next(keys), shape, jnp.float32) * scale

    def mamba_params():
        return dict(
            in_proj_w=nrm((d_model, 2 * d_inner)),
            conv_w0=nrm((1, d_inner), 0.3),
            conv_w1=nrm((1, d_inner), 0.3),
            conv_b=nrm((1, d_inner), 0.05),
            x_proj_w=nrm((d_inner, dt_rank + 2 * d_state)),
            dt_proj_w=nrm((dt_rank, d_inner), 0.5),
            dt_proj_b=nrm((d_inner,), 0.05) + 0.5,
            A_log=jnp.log(jnp.tile(jnp.arange(1, d_state + 1, dtype=jnp.float32)[None, :],
                                   (d_inner, 1))),
            D=jnp.ones((1, d_inner), jnp.float32),
            out_proj_w=nrm((d_inner, d_model)),
        )

    layers = []
    for _ in range(e_layers):
        layers.append(dict(
            mamba_f=mamba_params(),
            mamba_r=mamba_params(),
            ln1_g=jnp.ones((1, d_model), jnp.float32), ln1_b=jnp.zeros((1, d_model), jnp.float32),
            ln2_g=jnp.ones((1, d_model), jnp.float32), ln2_b=jnp.zeros((1, d_model), jnp.float32),
            conv1_w=nrm((d_model, d_ff)), conv1_b=nrm((d_ff,), 0.05),
            conv2_w=nrm((d_ff, d_model)), conv2_b=nrm((d_model,), 0.05),
        ))

    return dict(
        emb_w=nrm((seq_len, d_model)), emb_b=nrm((d_model,), 0.05),
        layers=layers,
        ln_g=jnp.ones((1, d_model), jnp.float32), ln_b=jnp.zeros((1, d_model), jnp.float32),
        proj_w=nrm((d_model, pred_len)), proj_b=nrm((pred_len,), 0.05),
    )


def time_encoding(date_str):
    year = int(date_str[:4]); month = int(date_str[4:6]); day = int(date_str[6:8])
    weekday = datetime.datetime(year, month, day).weekday()
    day_of_year = datetime.datetime(year, month, day).timetuple().tm_yday
    return [
        math.sin(2 * np.pi * month / 12), math.cos(2 * np.pi * month / 12),
        math.sin(2 * np.pi * weekday / 7), math.cos(2 * np.pi * weekday / 7),
        math.sin(2 * np.pi * day_of_year / 366), math.cos(2 * np.pi * day_of_year / 366),
    ]


if __name__ == "__main__":
    B, seq_len, pred_len, n_vars = 2, 8, 4, 4
    d_model, d_state, d_ff, e_layers = 32, 8, 32, 2

    key = jax.random.PRNGKey(0)
    kx, kp = jax.random.split(key)

    x_enc = jax.random.normal(kx, (B, seq_len, n_vars), jnp.float32)
    target_date = ["20240115", "20240321"]
    marks = np.asarray([time_encoding(d) for d in target_date], dtype=np.float32)   # (B, 6)
    x_mark_enc = jnp.tile(jnp.asarray(marks)[:, None, :], (1, seq_len, 1))           # (B, seq_len, 6)

    params = init_params(kp, seq_len=seq_len, pred_len=pred_len, d_model=d_model,
                         d_state=d_state, d_ff=d_ff, e_layers=e_layers)

    # hoisted out of the per-call path (perf feedback): fuse/stack weights once.
    prepped = prepare_params(params)
    prepped = jax.tree_util.tree_map(jax.block_until_ready, prepped)

    fwd = jax.jit(functools.partial(model_forward, pred_len=pred_len))
    dec_out = jax.block_until_ready(fwd(prepped, x_enc, x_mark_enc))

    assert dec_out.shape == (B, pred_len, n_vars)
    assert bool(jnp.all(jnp.isfinite(dec_out)))

    # Cross-check the fused kernel against a pure-JAX transcription of the PyTorch forward.
    with jax.default_matmul_precision("highest"):
        ref = _reference_forward(params, x_enc, x_mark_enc, pred_len)
    ref = jax.block_until_ready(ref)
    np.testing.assert_allclose(np.asarray(dec_out), np.asarray(ref), rtol=2e-3, atol=2e-3)

    print("KERNEL_OK")
</pallas_src>

<mosaic_0001>
module attributes {stable_mosaic.version = 11 : i64} {
  func.func @_fused_forward_kernel(%arg0: i32, %arg1: memref<1x20x8xf32, #tpu.memory_space<vmem>>, %arg2: memref<8x32xf32, #tpu.memory_space<vmem>>, %arg3: memref<3x32xf32, #tpu.memory_space<vmem>>, %arg4: memref<32x4xf32, #tpu.memory_space<vmem>>, %arg5: memref<1x4xf32, #tpu.memory_space<vmem>>, %arg6: memref<2x32x128xf32, #tpu.memory_space<vmem>>, %arg7: memref<4x32x48xf32, #tpu.memory_space<vmem>>, %arg8: memref<4x8x32xf32, #tpu.memory_space<vmem>>, %arg9: memref<2x64x32xf32, #tpu.memory_space<vmem>>, %arg10: memref<4x5x32xf32, #tpu.memory_space<vmem>>, %arg11: memref<2x32x32xf32, #tpu.memory_space<vmem>>, %arg12: memref<2x32x32xf32, #tpu.memory_space<vmem>>, %arg13: memref<2x5x32xf32, #tpu.memory_space<vmem>>, %arg14: memref<2x1x32xf32, #tpu.memory_space<vmem>>, %arg15: memref<1x20x4xf32, #tpu.memory_space<vmem>>, %arg16: memref<20x32xf32, #tpu.memory_space<vmem>>) attributes {dimension_semantics = [#tpu.dimension_semantics<parallel>], iteration_bounds = array<i64: 1>, scalar_prefetch = 0 : i64, scratch_operands = 1 : i64, tpu.core_type = #tpu.core_type<tc>, window_params = [{transform_indices = @transform_0, window_bounds = array<i64: 1, 20, 8>}, {pipeline_mode = #tpu.pipeline_mode<synchronous>, transform_indices = @transform_1, window_bounds = array<i64: 8, 32>}, {pipeline_mode = #tpu.pipeline_mode<synchronous>, transform_indices = @transform_2, window_bounds = array<i64: 3, 32>}, {pipeline_mode = #tpu.pipeline_mode<synchronous>, transform_indices = @transform_3, window_bounds = array<i64: 32, 4>}, {pipeline_mode = #tpu.pipeline_mode<synchronous>, transform_indices = @transform_4, window_bounds = array<i64: 1, 4>}, {pipeline_mode = #tpu.pipeline_mode<synchronous>, transform_indices = @transform_5, window_bounds = array<i64: 2, 32, 128>}, {pipeline_mode = #tpu.pipeline_mode<synchronous>, transform_indices = @transform_6, window_bounds = array<i64: 4, 32, 48>}, {pipeline_mode = #tpu.pipeline_mode<synchronous>, transform_indices = @transform_7, window_bounds = array<i64: 4, 8, 32>}, {pipeline_mode = #tpu.pipeline_mode<synchronous>, transform_indices = @transform_8, window_bounds = array<i64: 2, 64, 32>}, {pipeline_mode = #tpu.pipeline_mode<synchronous>, transform_indices = @transform_9, window_bounds = array<i64: 4, 5, 32>}, {pipeline_mode = #tpu.pipeline_mode<synchronous>, transform_indices = @transform_10, window_bounds = array<i64: 2, 32, 32>}, {pipeline_mode = #tpu.pipeline_mode<synchronous>, transform_indices = @transform_11, window_bounds = array<i64: 2, 32, 32>}, {pipeline_mode = #tpu.pipeline_mode<synchronous>, transform_indices = @transform_12, window_bounds = array<i64: 2, 5, 32>}, {pipeline_mode = #tpu.pipeline_mode<synchronous>, transform_indices = @transform_13, window_bounds = array<i64: 2, 1, 32>}, {transform_indices = @transform_14, window_bounds = array<i64: 1, 20, 4>}]} {
    %0 = tpu.iota {dimensions = array<i32: 0>} : vector<20x20xi32>
    %1 = tpu.iota {dimensions = array<i32: 1>} : vector<20x20xi32>
    %c2_i32 = arith.constant 2 : i32
    %2 = vector.broadcast %c2_i32 : i32 to vector<20x20xi32>
    %3 = arith.subi %0, %2 : vector<20x20xi32>
    %4 = arith.cmpi eq, %1, %3 : vector<20x20xi32>
    %cst = arith.constant 1.000000e+00 : f32
    %cst_0 = arith.constant 0.000000e+00 : f32
    %5 = vector.broadcast %cst : f32 to vector<20x20xf32>
    %6 = vector.broadcast %cst_0 : f32 to vector<20x20xf32>
    %7 = arith.select %4, %5, %6 : vector<20x20xi1>, vector<20x20xf32>
    %c2_i32_1 = arith.constant 2 : i32
    %8 = vector.broadcast %c2_i32_1 : i32 to vector<20x20xi32>
    %9 = arith.addi %0, %8 : vector<20x20xi32>
    %10 = arith.cmpi eq, %1, %9 : vector<20x20xi32>
    %cst_2 = arith.constant 1.000000e+00 : f32
    %cst_3 = arith.constant 0.000000e+00 : f32
    %11 = vector.broadcast %cst_2 : f32 to vector<20x20xf32>
    %12 = vector.broadcast %cst_3 : f32 to vector<20x20xf32>
    %13 = arith.select %10, %11, %12 : vector<20x20xi1>, vector<20x20xf32>
    %c0 = arith.constant 0 : index
    %c0_4 = arith.constant 0 : index
    %14 = vector.load %arg3[%c0, %c0_4] : memref<3x32xf32, #tpu.memory_space<vmem>>, vector<3x32xf32>
    %c0_5 = arith.constant 0 : index
    %c0_6 = arith.constant 0 : index
    %c0_7 = arith.constant 0 : index
    %15 = vector.load %arg1[%c0_5, %c0_6, %c0_7] : memref<1x20x8xf32, #tpu.memory_space<vmem>>, vector<1x20x8xf32>
    %16 = vector.shape_cast %15 : vector<1x20x8xf32> to vector<20x8xf32>
    %c0_8 = arith.constant 0 : index
    %c0_9 = arith.constant 0 : index
    %17 = vector.load %arg2[%c0_8, %c0_9] : memref<8x32xf32, #tpu.memory_space<vmem>>, vector<8x32xf32>
    %cst_10 = arith.constant dense<0.000000e+00> : vector<20x32xf32>
    %18 = tpu.matmul %16, %17, %cst_10 {dimension_numbers = #tpu.dot_dimension_numbers<[1], [0], [0], [1], [0, 0, 1, 1], [], []>} : vector<20x8xf32>, vector<8x32xf32>, vector<20x32xf32> -> vector<20x32xf32>
    %19 = vector.extract_strided_slice %14 {offsets = [0, 0], sizes = [1, 32], strides = [1, 1]} : vector<3x32xf32> to vector<1x32xf32>
    %20 = vector.broadcast %19 : vector<1x32xf32> to vector<20x32xf32>
    %21 = arith.addf %18, %20 : vector<20x32xf32>
    %c0_11 = arith.constant 0 : index
    %c0_12 = arith.constant 0 : index
    %c0_13 = arith.constant 0 : index
    %22 = vector.load %arg6[%c0_11, %c0_12, %c0_13] : memref<2x32x128xf32, #tpu.memory_space<vmem>>, vector<1x32x128xf32>
    %23 = vector.shape_cast %22 : vector<1x32x128xf32> to vector<32x128xf32>
    %cst_14 = arith.constant dense<0.000000e+00> : vector<20x128xf32>
    %24 = tpu.matmul %21, %23, %cst_14 {dimension_numbers = #tpu.dot_dimension_numbers<[1], [0], [0], [1], [0, 0, 1, 1], [], []>} : vector<20x32xf32>, vector<32x128xf32>, vector<20x128xf32> -> vector<20x128xf32>
    %25 = vector.extract_strided_slice %24 {offsets = [0, 0], sizes = [20, 32], strides = [1, 1]} : vector<20x128xf32> to vector<20x32xf32>
    %26 = vector.extract_strided_slice %24 {offsets = [0, 32], sizes = [20, 32], strides = [1, 1]} : vector<20x128xf32> to vector<20x32xf32>
    %c0_15 = arith.constant 0 : index
    %c0_16 = arith.constant 0 : index
    %c0_17 = arith.constant 0 : index
    %27 = vector.load %arg7[%c0_15, %c0_16, %c0_17] : memref<4x32x48xf32, #tpu.memory_space<vmem>>, vector<1x32x48xf32>
    %28 = vector.shape_cast %27 : vector<1x32x48xf32> to vector<32x48xf32>
    %c0_18 = arith.constant 0 : index
    %c0_19 = arith.constant 0 : index
    %c0_20 = arith.constant 0 : index
    %29 = vector.load %arg8[%c0_18, %c0_19, %c0_20] : memref<4x8x32xf32, #tpu.memory_space<vmem>>, vector<1x8x32xf32>
    %30 = vector.shape_cast %29 : vector<1x8x32xf32> to vector<8x32xf32>
    %c0_21 = arith.constant 0 : index
    %c0_22 = arith.constant 0 : index
    %c0_23 = arith.constant 0 : index
    %31 = vector.load %arg10[%c0_21, %c0_22, %c0_23] : memref<4x5x32xf32, #tpu.memory_space<vmem>>, vector<1x5x32xf32>
    %32 = vector.shape_cast %31 : vector<1x5x32xf32> to vector<5x32xf32>
    %33 = vector.extract_strided_slice %32 {offsets = [0, 0], sizes = [1, 32], strides = [1, 1]} : vector<5x32xf32> to vector<1x32xf32>
    %34 = vector.extract_strided_slice %32 {offsets = [1, 0], sizes = [1, 32], strides = [1, 1]} : vector<5x32xf32> to vector<1x32xf32>
    %35 = vector.extract_strided_slice %32 {offsets = [2, 0], sizes = [1, 32], strides = [1, 1]} : vector<5x32xf32> to vector<1x32xf32>
    %36 = vector.extract_strided_slice %32 {offsets = [3, 0], sizes = [1, 32], strides = [1, 1]} : vector<5x32xf32> to vector<1x32xf32>
    %37 = vector.extract_strided_slice %32 {offsets = [4, 0], sizes = [1, 32], strides = [1, 1]} : vector<5x32xf32> to vector<1x32xf32>
    %cst_24 = arith.constant dense<0.000000e+00> : vector<20x32xf32>
    %38 = tpu.matmul %7, %25, %cst_24 {dimension_numbers = #tpu.dot_dimension_numbers<[1], [0], [0], [1], [0, 0, 1, 1], [], []>} : vector<20x20xf32>, vector<20x32xf32>, vector<20x32xf32> -> vector<20x32xf32>
    %39 = vector.broadcast %33 : vector<1x32xf32> to vector<20x32xf32>
    %40 = arith.mulf %38, %39 : vector<20x32xf32>
    %41 = vector.broadcast %34 : vector<1x32xf32> to vector<20x32xf32>
    %42 = arith.mulf %25, %41 : vector<20x32xf32>
    %43 = arith.addf %40, %42 : vector<20x32xf32>
    %44 = vector.broadcast %35 : vector<1x32xf32> to vector<20x32xf32>
    %45 = arith.addf %43, %44 : vector<20x32xf32>
    %46 = arith.negf %45 : vector<20x32xf32>
    %47 = math.exp %46 : vector<20x32xf32>
    %cst_25 = arith.constant 1.000000e+00 : f32
    %48 = vector.broadcast %cst_25 : f32 to vector<20x32xf32>
    %49 = arith.addf %48, %47 : vector<20x32xf32>
    %50 = arith.divf %48, %49 : vector<20x32xf32>
    %51 = arith.mulf %45, %50 : vector<20x32xf32>
    %cst_26 = arith.constant dense<0.000000e+00> : vector<20x48xf32>
    %52 = tpu.matmul %51, %28, %cst_26 {dimension_numbers = #tpu.dot_dimension_numbers<[1], [0], [0], [1], [0, 0, 1, 1], [], []>} : vector<20x32xf32>, vector<32x48xf32>, vector<20x48xf32> -> vector<20x48xf32>
    %53 = vector.extract_strided_slice %52 {offsets = [0, 0], sizes = [20, 32], strides = [1, 1]} : vector<20x48xf32> to vector<20x32xf32>
    %54 = vector.broadcast %36 : vector<1x32xf32> to vector<20x32xf32>
    %55 = arith.addf %53, %54 : vector<20x32xf32>
    %cst_27 = arith.constant 0.000000e+00 : f32
    %56 = vector.broadcast %cst_27 : f32 to vector<20x32xf32>
    %57 = arith.maximumf %55, %56 : vector<20x32xf32>
    %58 = vector.broadcast %cst_27 : f32 to vector<20x32xf32>
    %59 = arith.subf %55, %58 : vector<20x32xf32>
    %60 = arith.cmpf one, %59, %59 : vector<20x32xf32>
    %61 = vector.broadcast %cst_27 : f32 to vector<20x32xf32>
    %62 = arith.addf %55, %61 : vector<20x32xf32>
    %63 = math.absf %59 : vector<20x32xf32>
    %cst_28 = arith.constant 0.000000e+00 : f32
    %64 = vector.broadcast %cst_28 : f32 to vector<20x32xf32>
    %65 = arith.subf %64, %63 : vector<20x32xf32>
    %66 = math.exp %65 : vector<20x32xf32>
    %67 = math.log1p %66 : vector<20x32xf32>
    %68 = arith.addf %57, %67 : vector<20x32xf32>
    %69 = arith.select %60, %62, %68 : vector<20x32xi1>, vector<20x32xf32>
    %70 = vector.extract_strided_slice %52 {offsets = [0, 32], sizes = [20, 8], strides = [1, 1]} : vector<20x48xf32> to vector<20x8xf32>
    %71 = vector.extract_strided_slice %52 {offsets = [0, 40], sizes = [20, 8], strides = [1, 1]} : vector<20x48xf32> to vector<20x8xf32>
    %72 = vector.shape_cast %69 : vector<20x32xf32> to vector<20x1x32xf32>
    %73 = vector.shape_cast %30 : vector<8x32xf32> to vector<1x8x32xf32>
    %74 = vector.broadcast %72 : vector<20x1x32xf32> to vector<20x8x32xf32>
    %75 = vector.broadcast %73 : vector<1x8x32xf32> to vector<20x8x32xf32>
    %76 = arith.mulf %74, %75 : vector<20x8x32xf32>
    %77 = math.exp %76 : vector<20x8x32xf32>
    %78 = vector.shape_cast %70 : vector<20x8xf32> to vector<20x8x1xf32>
    %79 = arith.mulf %69, %51 : vector<20x32xf32>
    %80 = vector.shape_cast %79 : vector<20x32xf32> to vector<20x1x32xf32>
    %81 = vector.broadcast %78 : vector<20x8x1xf32> to vector<20x8x32xf32>
    %82 = vector.broadcast %80 : vector<20x1x32xf32> to vector<20x8x32xf32>
    %83 = arith.mulf %81, %82 : vector<20x8x32xf32>
    %cst_29 = arith.constant 0.000000e+00 : f32
    %84 = vector.broadcast %cst_29 : f32 to vector<2x8x32xf32>
    %85 = vector.extract_strided_slice %77 {offsets = [0, 0, 0], sizes = [2, 8, 32], strides = [1, 1, 1]} : vector<20x8x32xf32> to vector<2x8x32xf32>
    %86 = arith.mulf %85, %84 : vector<2x8x32xf32>
    %87 = vector.extract_strided_slice %83 {offsets = [0, 0, 0], sizes = [2, 8, 32], strides = [1, 1, 1]} : vector<20x8x32xf32> to vector<2x8x32xf32>
    %88 = arith.addf %86, %87 : vector<2x8x32xf32>
    %89 = vector.extract_strided_slice %71 {offsets = [0, 0], sizes = [2, 8], strides = [1, 1]} : vector<20x8xf32> to vector<2x8xf32>
    %90 = vector.shape_cast %89 : vector<2x8xf32> to vector<2x8x1xf32>
    %91 = vector.broadcast %90 : vector<2x8x1xf32> to vector<2x8x32xf32>
    %92 = arith.mulf %88, %91 : vector<2x8x32xf32>
    %cst_30 = arith.constant dense<0.000000e+00> : vector<2x32xf32>
    %93 = vector.multi_reduction <add>, %92, %cst_30 [1] : vector<2x8x32xf32> to vector<2x32xf32>
    %c0_31 = arith.constant 0 : index
    %c0_32 = arith.constant 0 : index
    %94 = vector.load %arg16[%c0_31, %c0_32] : memref<20x32xf32, #tpu.memory_space<vmem>>, vector<2x32xf32>
    tpu.vector_store %arg16[%c0_31, %c0_32], %93 {strides = array<i32>} : memref<20x32xf32, #tpu.memory_space<vmem>>, vector<2x32xf32>,
    %95 = vector.extract_strided_slice %77 {offsets = [2, 0, 0], sizes = [2, 8, 32], strides = [1, 1, 1]} : vector<20x8x32xf32> to vector<2x8x32xf32>
    %96 = arith.mulf %95, %88 : vector<2x8x32xf32>
    %97 = vector.extract_strided_slice %83 {offsets = [2, 0, 0], sizes = [2, 8, 32], strides = [1, 1, 1]} : vector<20x8x32xf32> to vector<2x8x32xf32>
    %98 = arith.addf %96, %97 : vector<2x8x32xf32>
    %99 = vector.extract_strided_slice %71 {offsets = [2, 0], sizes = [2, 8], strides = [1, 1]} : vector<20x8xf32> to vector<2x8xf32>
    %100 = vector.shape_cast %99 : vector<2x8xf32> to vector<2x8x1xf32>
    %101 = vector.broadcast %100 : vector<2x8x1xf32> to vector<2x8x32xf32>
    %102 = arith.mulf %98, %101 : vector<2x8x32xf32>
    %cst_33 = arith.constant dense<0.000000e+00> : vector<2x32xf32>
    %103 = vector.multi_reduction <add>, %102, %cst_33 [1] : vector<2x8x32xf32> to vector<2x32xf32>
    %c2 = arith.constant 2 : index
    %c0_34 = arith.constant 0 : index
    %104 = vector.load %arg16[%c2, %c0_34] : memref<20x32xf32, #tpu.memory_space<vmem>>, vector<2x32xf32>
    tpu.vector_store %arg16[%c2, %c0_34], %103 {strides = array<i32>} : memref<20x32xf32, #tpu.memory_space<vmem>>, vector<2x32xf32>,
    %105 = vector.extract_strided_slice %77 {offsets = [4, 0, 0], sizes = [2, 8, 32], strides = [1, 1, 1]} : vector<20x8x32xf32> to vector<2x8x32xf32>
    %106 = arith.mulf %105, %98 : vector<2x8x32xf32>
    %107 = vector.extract_strided_slice %83 {offsets = [4, 0, 0], sizes = [2, 8, 32], strides = [1, 1, 1]} : vector<20x8x32xf32> to vector<2x8x32xf32>
    %108 = arith.addf %106, %107 : vector<2x8x32xf32>
    %109 = vector.extract_strided_slice %71 {offsets = [4, 0], sizes = [2, 8], strides = [1, 1]} : vector<20x8xf32> to vector<2x8xf32>
    %110 = vector.shape_cast %109 : vector<2x8xf32> to vector<2x8x1xf32>
    %111 = vector.broadcast %110 : vector<2x8x1xf32> to vector<2x8x32xf32>
    %112 = arith.mulf %108, %111 : vector<2x8x32xf32>
    %cst_35 = arith.constant dense<0.000000e+00> : vector<2x32xf32>
    %113 = vector.multi_reduction <add>, %112, %cst_35 [1] : vector<2x8x32xf32> to vector<2x32xf32>
    %c4 = arith.constant 4 : index
    %c0_36 = arith.constant 0 : index
    %114 = vector.load %arg16[%c4, %c0_36] : memref<20x32xf32, #tpu.memory_space<vmem>>, vector<2x32xf32>
    tpu.vector_store %arg16[%c4, %c0_36], %113 {strides = array<i32>} : memref<20x32xf32, #tpu.memory_space<vmem>>, vector<2x32xf32>,
    %115 = vector.extract_strided_slice %77 {offsets = [6, 0, 0], sizes = [2, 8, 32], strides = [1, 1, 1]} : vector<20x8x32xf32> to vector<2x8x32xf32>
    %116 = arith.mulf %115, %108 : vector<2x8x32xf32>
    %117 = vector.extract_strided_slice %83 {offsets = [6, 0, 0], sizes = [2, 8, 32], strides = [1, 1, 1]} : vector<20x8x32xf32> to vector<2x8x32xf32>
    %118 = arith.addf %116, %117 : vector<2x8x32xf32>
    %119 = vector.extract_strided_slice %71 {offsets = [6, 0], sizes = [2, 8], strides = [1, 1]} : vector<20x8xf32> to vector<2x8xf32>
    %120 = vector.shape_cast %119 : vector<2x8xf32> to vector<2x8x1xf32>
    %121 = vector.broadcast %120 : vector<2x8x1xf32> to vector<2x8x32xf32>
    %122 = arith.mulf %118, %121 : vector<2x8x32xf32>
    %cst_37 = arith.constant dense<0.000000e+00> : vector<2x32xf32>
    %123 = vector.multi_reduction <add>, %122, %cst_37 [1] : vector<2x8x32xf32> to vector<2x32xf32>
    %c6 = arith.constant 6 : index
    %c0_38 = arith.constant 0 : index
    %124 = vector.load %arg16[%c6, %c0_38] : memref<20x32xf32, #tpu.memory_space<vmem>>, vector<2x32xf32>
    tpu.vector_store %arg16[%c6, %c0_38], %123 {strides = array<i32>} : memref<20x32xf32, #tpu.memory_space<vmem>>, vector<2x32xf32>,
    %125 = vector.extract_strided_slice %77 {offsets = [8, 0, 0], sizes = [2, 8, 32], strides = [1, 1, 1]} : vector<20x8x32xf32> to vector<2x8x32xf32>
    %126 = arith.mulf %125, %118 : vector<2x8x32xf32>
    %127 = vector.extract_strided_slice %83 {offsets = [8, 0, 0], sizes = [2, 8, 32], strides = [1, 1, 1]} : vector<20x8x32xf32> to vector<2x8x32xf32>
    %128 = arith.addf %126, %127 : vector<2x8x32xf32>
    %129 = vector.extract_strided_slice %71 {offsets = [8, 0], sizes = [2, 8], strides = [1, 1]} : vector<20x8xf32> to vector<2x8xf32>
    %130 = vector.shape_cast %129 : vector<2x8xf32> to vector<2x8x1xf32>
    %131 = vector.broadcast %130 : vector<2x8x1xf32> to vector<2x8x32xf32>
    %132 = arith.mulf %128, %131 : vector<2x8x32xf32>
    %cst_39 = arith.constant dense<0.000000e+00> : vector<2x32xf32>
    %133 = vector.multi_reduction <add>, %132, %cst_39 [1] : vector<2x8x32xf32> to vector<2x32xf32>
    %c8 = arith.constant 8 : index
    %c0_40 = arith.constant 0 : index
    %134 = vector.load %arg16[%c8, %c0_40] : memref<20x32xf32, #tpu.memory_space<vmem>>, vector<2x32xf32>
    tpu.vector_store %arg16[%c8, %c0_40], %133 {strides = array<i32>} : memref<20x32xf32, #tpu.memory_space<vmem>>, vector<2x32xf32>,
    %135 = vector.extract_strided_slice %77 {offsets = [10, 0, 0], sizes = [2, 8, 32], strides = [1, 1, 1]} : vector<20x8x32xf32> to vector<2x8x32xf32>
    %136 = arith.mulf %135, %128 : vector<2x8x32xf32>
    %137 = vector.extract_strided_slice %83 {offsets = [10, 0, 0], sizes = [2, 8, 32], strides = [1, 1, 1]} : vector<20x8x32xf32> to vector<2x8x32xf32>
    %138 = arith.addf %136, %137 : vector<2x8x32xf32>
    %139 = vector.extract_strided_slice %71 {offsets = [10, 0], sizes = [2, 8], strides = [1, 1]} : vector<20x8xf32> to vector<2x8xf32>
    %140 = vector.shape_cast %139 : vector<2x8xf32> to vector<2x8x1xf32>
    %141 = vector.broadcast %140 : vector<2x8x1xf32> to vector<2x8x32xf32>
    %142 = arith.mulf %138, %141 : vector<2x8x32xf32>
    %cst_41 = arith.constant dense<0.000000e+00> : vector<2x32xf32>
    %143 = vector.multi_reduction <add>, %142, %cst_41 [1] : vector<2x8x32xf32> to vector<2x32xf32>
    %c10 = arith.constant 10 : index
    %c0_42 = arith.constant 0 : index
    %144 = vector.load %arg16[%c10, %c0_42] : memref<20x32xf32, #tpu.memory_space<vmem>>, vector<2x32xf32>
    tpu.vector_store %arg16[%c10, %c0_42], %143 {strides = array<i32>} : memref<20x32xf32, #tpu.memory_space<vmem>>, vector<2x32xf32>,
    %145 = vector.extract_strided_slice %77 {offsets = [12, 0, 0], sizes = [2, 8, 32], strides = [1, 1, 1]} : vector<20x8x32xf32> to vector<2x8x32xf32>
    %146 = arith.mulf %145, %138 : vector<2x8x32xf32>
    %147 = vector.extract_strided_slice %83 {offsets = [12, 0, 0], sizes = [2, 8, 32], strides = [1, 1, 1]} : vector<20x8x32xf32> to vector<2x8x32xf32>
    %148 = arith.addf %146, %147 : vector<2x8x32xf32>
    %149 = vector.extract_strided_slice %71 {offsets = [12, 0], sizes = [2, 8], strides = [1, 1]} : vector<20x8xf32> to vector<2x8xf32>
    %150 = vector.shape_cast %149 : vector<2x8xf32> to vector<2x8x1xf32>
    %151 = vector.broadcast %150 : vector<2x8x1xf32> to vector<2x8x32xf32>
    %152 = arith.mulf %148, %151 : vector<2x8x32xf32>
    %cst_43 = arith.constant dense<0.000000e+00> : vector<2x32xf32>
    %153 = vector.multi_reduction <add>, %152, %cst_43 [1] : vector<2x8x32xf32> to vector<2x32xf32>
    %c12 = arith.constant 12 : index
    %c0_44 = arith.constant 0 : index
    %154 = vector.load %arg16[%c12, %c0_44] : memref<20x32xf32, #tpu.memory_space<vmem>>, vector<2x32xf32>
    tpu.vector_store %arg16[%c12, %c0_44], %153 {strides = array<i32>} : memref<20x32xf32, #tpu.memory_space<vmem>>, vector<2x32xf32>,
    %155 = vector.extract_strided_slice %77 {offsets = [14, 0, 0], sizes = [2, 8, 32], strides = [1, 1, 1]} : vector<20x8x32xf32> to vector<2x8x32xf32>
    %156 = arith.mulf %155, %148 : vector<2x8x32xf32>
    %157 = vector.extract_strided_slice %83 {offsets = [14, 0, 0], sizes = [2, 8, 32], strides = [1, 1, 1]} : vector<20x8x32xf32> to vector<2x8x32xf32>
    %158 = arith.addf %156, %157 : vector<2x8x32xf32>
    %159 = vector.extract_strided_slice %71 {offsets = [14, 0], sizes = [2, 8], strides = [1, 1]} : vector<20x8xf32> to vector<2x8xf32>
    %160 = vector.shape_cast %159 : vector<2x8xf32> to vector<2x8x1xf32>
    %161 = vector.broadcast %160 : vector<2x8x1xf32> to vector<2x8x32xf32>
    %162 = arith.mulf %158, %161 : vector<2x8x32xf32>
    %cst_45 = arith.constant dense<0.000000e+00> : vector<2x32xf32>
    %163 = vector.multi_reduction <add>, %162, %cst_45 [1] : vector<2x8x32xf32> to vector<2x32xf32>
    %c14 = arith.constant 14 : index
    %c0_46 = arith.constant 0 : index
    %164 = vector.load %arg16[%c14, %c0_46] : memref<20x32xf32, #tpu.memory_space<vmem>>, vector<2x32xf32>
    tpu.vector_store %arg16[%c14, %c0_46], %163 {strides = array<i32>} : memref<20x32xf32, #tpu.memory_space<vmem>>, vector<2x32xf32>,
    %165 = vector.extract_strided_slice %77 {offsets = [16, 0, 0], sizes = [2, 8, 32], strides = [1, 1, 1]} : vector<20x8x32xf32> to vector<2x8x32xf32>
    %166 = arith.mulf %165, %158 : vector<2x8x32xf32>
    %167 = vector.extract_strided_slice %83 {offsets = [16, 0, 0], sizes = [2, 8, 32], strides = [1, 1, 1]} : vector<20x8x32xf32> to vector<2x8x32xf32>
    %168 = arith.addf %166, %167 : vector<2x8x32xf32>
    %169 = vector.extract_strided_slice %71 {offsets = [16, 0], sizes = [2, 8], strides = [1, 1]} : vector<20x8xf32> to vector<2x8xf32>
    %170 = vector.shape_cast %169 : vector<2x8xf32> to vector<2x8x1xf32>
    %171 = vector.broadcast %170 : vector<2x8x1xf32> to vector<2x8x32xf32>
    %172 = arith.mulf %168, %171 : vector<2x8x32xf32>
    %cst_47 = arith.constant dense<0.000000e+00> : vector<2x32xf32>
    %173 = vector.multi_reduction <add>, %172, %cst_47 [1] : vector<2x8x32xf32> to vector<2x32xf32>
    %c16 = arith.constant 16 : index
    %c0_48 = arith.constant 0 : index
    %174 = vector.load %arg16[%c16, %c0_48] : memref<20x32xf32, #tpu.memory_space<vmem>>, vector<2x32xf32>
    tpu.vector_store %arg16[%c16, %c0_48], %173 {strides = array<i32>} : memref<20x32xf32, #tpu.memory_space<vmem>>, vector<2x32xf32>,
    %175 = vector.extract_strided_slice %77 {offsets = [18, 0, 0], sizes = [2, 8, 32], strides = [1, 1, 1]} : vector<20x8x32xf32> to vector<2x8x32xf32>
    %176 = arith.mulf %175, %168 : vector<2x8x32xf32>
    %177 = vector.extract_strided_slice %83 {offsets = [18, 0, 0], sizes = [2, 8, 32], strides = [1, 1, 1]} : vector<20x8x32xf32> to vector<2x8x32xf32>
    %178 = arith.addf %176, %177 : vector<2x8x32xf32>
    %179 = vector.extract_strided_slice %71 {offsets = [18, 0], sizes = [2, 8], strides = [1, 1]} : vector<20x8xf32> to vector<2x8xf32>
    %180 = vector.shape_cast %179 : vector<2x8xf32> to vector<2x8x1xf32>
    %181 = vector.broadcast %180 : vector<2x8x1xf32> to vector<2x8x32xf32>
    %182 = arith.mulf %178, %181 : vector<2x8x32xf32>
    %cst_49 = arith.constant dense<0.000000e+00> : vector<2x32xf32>
    %183 = vector.multi_reduction <add>, %182, %cst_49 [1] : vector<2x8x32xf32> to vector<2x32xf32>
    %c18 = arith.constant 18 : index
    %c0_50 = arith.constant 0 : index
    %184 = vector.load %arg16[%c18, %c0_50] : memref<20x32xf32, #tpu.memory_space<vmem>>, vector<2x32xf32>
    tpu.vector_store %arg16[%c18, %c0_50], %183 {strides = array<i32>} : memref<20x32xf32, #tpu.memory_space<vmem>>, vector<2x32xf32>,
    %c0_51 = arith.constant 0 : index
    %c0_52 = arith.constant 0 : index
    %185 = vector.load %arg16[%c0_51, %c0_52] : memref<20x32xf32, #tpu.memory_space<vmem>>, vector<20x32xf32>
    %186 = vector.broadcast %37 : vector<1x32xf32> to vector<20x32xf32>
    %187 = arith.mulf %186, %51 : vector<20x32xf32>
    %188 = arith.addf %185, %187 : vector<20x32xf32>
    %189 = arith.negf %26 : vector<20x32xf32>
    %190 = math.exp %189 : vector<20x32xf32>
    %cst_53 = arith.constant 1.000000e+00 : f32
    %191 = vector.broadcast %cst_53 : f32 to vector<20x32xf32>
    %192 = arith.addf %191, %190 : vector<20x32xf32>
    %193 = arith.divf %191, %192 : vector<20x32xf32>
    %194 = arith.mulf %26, %193 : vector<20x32xf32>
    %195 = arith.mulf %188, %194 : vector<20x32xf32>
    %196 = vector.extract_strided_slice %24 {offsets = [0, 64], sizes = [20, 32], strides = [1, 1]} : vector<20x128xf32> to vector<20x32xf32>
    %197 = vector.extract_strided_slice %24 {offsets = [0, 96], sizes = [20, 32], strides = [1, 1]} : vector<20x128xf32> to vector<20x32xf32>
    %c1 = arith.constant 1 : index
    %c0_54 = arith.constant 0 : index
    %c0_55 = arith.constant 0 : index
    %198 = vector.load %arg7[%c1, %c0_54, %c0_55] : memref<4x32x48xf32, #tpu.memory_space<vmem>>, vector<1x32x48xf32>
    %199 = vector.shape_cast %198 : vector<1x32x48xf32> to vector<32x48xf32>
    %c1_56 = arith.constant 1 : index
    %c0_57 = arith.constant 0 : index
    %c0_58 = arith.constant 0 : index
    %200 = vector.load %arg8[%c1_56, %c0_57, %c0_58] : memref<4x8x32xf32, #tpu.memory_space<vmem>>, vector<1x8x32xf32>
    %201 = vector.shape_cast %200 : vector<1x8x32xf32> to vector<8x32xf32>
    %c1_59 = arith.constant 1 : index
    %c0_60 = arith.constant 0 : index
    %c0_61 = arith.constant 0 : index
    %202 = vector.load %arg10[%c1_59, %c0_60, %c0_61] : memref<4x5x32xf32, #tpu.memory_space<vmem>>, vector<1x5x32xf32>
    %203 = vector.shape_cast %202 : vector<1x5x32xf32> to vector<5x32xf32>
    %204 = vector.extract_strided_slice %203 {offsets = [0, 0], sizes = [1, 32], strides = [1, 1]} : vector<5x32xf32> to vector<1x32xf32>
    %205 = vector.extract_strided_slice %203 {offsets = [1, 0], sizes = [1, 32], strides = [1, 1]} : vector<5x32xf32> to vector<1x32xf32>
    %206 = vector.extract_strided_slice %203 {offsets = [2, 0], sizes = [1, 32], strides = [1, 1]} : vector<5x32xf32> to vector<1x32xf32>
    %207 = vector.extract_strided_slice %203 {offsets = [3, 0], sizes = [1, 32], strides = [1, 1]} : vector<5x32xf32> to vector<1x32xf32>
    %208 = vector.extract_strided_slice %203 {offsets = [4, 0], sizes = [1, 32], strides = [1, 1]} : vector<5x32xf32> to vector<1x32xf32>
    %cst_62 = arith.constant dense<0.000000e+00> : vector<20x32xf32>
    %209 = tpu.matmul %13, %196, %cst_62 {dimension_numbers = #tpu.dot_dimension_numbers<[1], [0], [0], [1], [0, 0, 1, 1], [], []>} : vector<20x20xf32>, vector<20x32xf32>, vector<20x32xf32> -> vector<20x32xf32>
    %210 = vector.broadcast %204 : vector<1x32xf32> to vector<20x32xf32>
    %211 = arith.mulf %209, %210 : vector<20x32xf32>
    %212 = vector.broadcast %205 : vector<1x32xf32> to vector<20x32xf32>
    %213 = arith.mulf %196, %212 : vector<20x32xf32>
    %214 = arith.addf %211, %213 : vector<20x32xf32>
    %215 = vector.broadcast %206 : vector<1x32xf32> to vector<20x32xf32>
    %216 = arith.addf %214, %215 : vector<20x32xf32>
    %217 = arith.negf %216 : vector<20x32xf32>
    %218 = math.exp %217 : vector<20x32xf32>
    %cst_63 = arith.constant 1.000000e+00 : f32
    %219 = vector.broadcast %cst_63 : f32 to vector<20x32xf32>
    %220 = arith.addf %219, %218 : vector<20x32xf32>
    %221 = arith.divf %219, %220 : vector<20x32xf32>
    %222 = arith.mulf %216, %221 : vector<20x32xf32>
    %cst_64 = arith.constant dense<0.000000e+00> : vector<20x48xf32>
    %223 = tpu.matmul %222, %199, %cst_64 {dimension_numbers = #tpu.dot_dimension_numbers<[1], [0], [0], [1], [0, 0, 1, 1], [], []>} : vector<20x32xf32>, vector<32x48xf32>, vector<20x48xf32> -> vector<20x48xf32>
    %224 = vector.extract_strided_slice %223 {offsets = [0, 0], sizes = [20, 32], strides = [1, 1]} : vector<20x48xf32> to vector<20x32xf32>
    %225 = vector.broadcast %207 : vector<1x32xf32> to vector<20x32xf32>
    %226 = arith.addf %224, %225 : vector<20x32xf32>
    %cst_65 = arith.constant 0.000000e+00 : f32
    %227 = vector.broadcast %cst_65 : f32 to vector<20x32xf32>
    %228 = arith.maximumf %226, %227 : vector<20x32xf32>
    %229 = vector.broadcast %cst_65 : f32 to vector<20x32xf32>
    %230 = arith.subf %226, %229 : vector<20x32xf32>
    %231 = arith.cmpf one, %230, %230 : vector<20x32xf32>
    %232 = vector.broadcast %cst_65 : f32 to vector<20x32xf32>
    %233 = arith.addf %226, %232 : vector<20x32xf32>
    %234 = math.absf %230 : vector<20x32xf32>
    %cst_66 = arith.constant 0.000000e+00 : f32
    %235 = vector.broadcast %cst_66 : f32 to vector<20x32xf32>
    %236 = arith.subf %235, %234 : vector<20x32xf32>
    %237 = math.exp %236 : vector<20x32xf32>
    %238 = math.log1p %237 : vector<20x32xf32>
    %239 = arith.addf %228, %238 : vector<20x32xf32>
    %240 = arith.select %231, %233, %239 : vector<20x32xi1>, vector<20x32xf32>
    %241 = vector.extract_strided_slice %223 {offsets = [0, 32], sizes = [20, 8], strides = [1, 1]} : vector<20x48xf32> to vector<20x8xf32>
    %242 = vector.extract_strided_slice %223 {offsets = [0, 40], sizes = [20, 8], strides = [1, 1]} : vector<20x48xf32> to vector<20x8xf32>
    %243 = vector.shape_cast %240 : vector<20x32xf32> to vector<20x1x32xf32>
    %244 = vector.shape_cast %201 : vector<8x32xf32> to vector<1x8x32xf32>
    %245 = vector.broadcast %243 : vector<20x1x32xf32> to vector<20x8x32xf32>
    %246 = vector.broadcast %244 : vector<1x8x32xf32> to vector<20x8x32xf32>
    %247 = arith.mulf %245, %246 : vector<20x8x32xf32>
    %248 = math.exp %247 : vector<20x8x32xf32>
    %249 = vector.shape_cast %241 : vector<20x8xf32> to vector<20x8x1xf32>
    %250 = arith.mulf %240, %222 : vector<20x32xf32>
    %251 = vector.shape_cast %250 : vector<20x32xf32> to vector<20x1x32xf32>
    %252 = vector.broadcast %249 : vector<20x8x1xf32> to vector<20x8x32xf32>
    %253 = vector.broadcast %251 : vector<20x1x32xf32> to vector<20x8x32xf32>
    %254 = arith.mulf %252, %253 : vector<20x8x32xf32>
    %cst_67 = arith.constant 0.000000e+00 : f32
    %255 = vector.broadcast %cst_67 : f32 to vector<2x8x32xf32>
    %256 = vector.extract_strided_slice %248 {offsets = [18, 0, 0], sizes = [2, 8, 32], strides = [1, 1, 1]} : vector<20x8x32xf32> to vector<2x8x32xf32>
    %257 = arith.mulf %256, %255 : vector<2x8x32xf32>
    %258 = vector.extract_strided_slice %254 {offsets = [18, 0, 0], sizes = [2, 8, 32], strides = [1, 1, 1]} : vector<20x8x32xf32> to vector<2x8x32xf32>
    %259 = arith.addf %257, %258 : vector<2x8x32xf32>
    %260 = vector.extract_strided_slice %242 {offsets = [18, 0], sizes = [2, 8], strides = [1, 1]} : vector<20x8xf32> to vector<2x8xf32>
    %261 = vector.shape_cast %260 : vector<2x8xf32> to vector<2x8x1xf32>
    %262 = vector.broadcast %261 : vector<2x8x1xf32> to vector<2x8x32xf32>
    %263 = arith.mulf %259, %262 : vector<2x8x32xf32>
    %cst_68 = arith.constant dense<0.000000e+00> : vector<2x32xf32>
    %264 = vector.multi_reduction <add>, %263, %cst_68 [1] : vector<2x8x32xf32> to vector<2x32xf32>
    %c18_69 = arith.constant 18 : index
    %c0_70 = arith.constant 0 : index
    %265 = vector.load %arg16[%c18_69, %c0_70] : memref<20x32xf32, #tpu.memory_space<vmem>>, vector<2x32xf32>
    tpu.vector_store %arg16[%c18_69, %c0_70], %264 {strides = array<i32>} : memref<20x32xf32, #tpu.memory_space<vmem>>, vector<2x32xf32>,
    %266 = vector.extract_strided_slice %248 {offsets = [16, 0, 0], sizes = [2, 8, 32], strides = [1, 1, 1]} : vector<20x8x32xf32> to vector<2x8x32xf32>
    %267 = arith.mulf %266, %259 : vector<2x8x32xf32>
    %268 = vector.extract_strided_slice %254 {offsets = [16, 0, 0], sizes = [2, 8, 32], strides = [1, 1, 1]} : vector<20x8x32xf32> to vector<2x8x32xf32>
    %269 = arith.addf %267, %268 : vector<2x8x32xf32>
    %270 = vector.extract_strided_slice %242 {offsets = [16, 0], sizes = [2, 8], strides = [1, 1]} : vector<20x8xf32> to vector<2x8xf32>
    %271 = vector.shape_cast %270 : vector<2x8xf32> to vector<2x8x1xf32>
    %272 = vector.broadcast %271 : vector<2x8x1xf32> to vector<2x8x32xf32>
    %273 = arith.mulf %269, %272 : vector<2x8x32xf32>
    %cst_71 = arith.constant dense<0.000000e+00> : vector<2x32xf32>
    %274 = vector.multi_reduction <add>, %273, %cst_71 [1] : vector<2x8x32xf32> to vector<2x32xf32>
    %c16_72 = arith.constant 16 : index
    %c0_73 = arith.constant 0 : index
    %275 = vector.load %arg16[%c16_72, %c0_73] : memref<20x32xf32, #tpu.memory_space<vmem>>, vector<2x32xf32>
    tpu.vector_store %arg16[%c16_72, %c0_73], %274 {strides = array<i32>} : memref<20x32xf32, #tpu.memory_space<vmem>>, vector<2x32xf32>,
    %276 = vector.extract_strided_slice %248 {offsets = [14, 0, 0], sizes = [2, 8, 32], strides = [1, 1, 1]} : vector<20x8x32xf32> to vector<2x8x32xf32>
    %277 = arith.mulf %276, %269 : vector<2x8x32xf32>
    %278 = vector.extract_strided_slice %254 {offsets = [14, 0, 0], sizes = [2, 8, 32], strides = [1, 1, 1]} : vector<20x8x32xf32> to vector<2x8x32xf32>
    %279 = arith.addf %277, %278 : vector<2x8x32xf32>
    %280 = vector.extract_strided_slice %242 {offsets = [14, 0], sizes = [2, 8], strides = [1, 1]} : vector<20x8xf32> to vector<2x8xf32>
    %281 = vector.shape_cast %280 : vector<2x8xf32> to vector<2x8x1xf32>
    %282 = vector.broadcast %281 : vector<2x8x1xf32> to vector<2x8x32xf32>
    %283 = arith.mulf %279, %282 : vector<2x8x32xf32>
    %cst_74 = arith.constant dense<0.000000e+00> : vector<2x32xf32>
    %284 = vector.multi_reduction <add>, %283, %cst_74 [1] : vector<2x8x32xf32> to vector<2x32xf32>
    %c14_75 = arith.constant 14 : index
    %c0_76 = arith.constant 0 : index
    %285 = vector.load %arg16[%c14_75, %c0_76] : memref<20x32xf32, #tpu.memory_space<vmem>>, vector<2x32xf32>
    tpu.vector_store %arg16[%c14_75, %c0_76], %284 {strides = array<i32>} : memref<20x32xf32, #tpu.memory_space<vmem>>, vector<2x32xf32>,
    %286 = vector.extract_strided_slice %248 {offsets = [12, 0, 0], sizes = [2, 8, 32], strides = [1, 1, 1]} : vector<20x8x32xf32> to vector<2x8x32xf32>
    %287 = arith.mulf %286, %279 : vector<2x8x32xf32>
    %288 = vector.extract_strided_slice %254 {offsets = [12, 0, 0], sizes = [2, 8, 32], strides = [1, 1, 1]} : vector<20x8x32xf32> to vector<2x8x32xf32>
    %289 = arith.addf %287, %288 : vector<2x8x32xf32>
    %290 = vector.extract_strided_slice %242 {offsets = [12, 0], sizes = [2, 8], strides = [1, 1]} : vector<20x8xf32> to vector<2x8xf32>
    %291 = vector.shape_cast %290 : vector<2x8xf32> to vector<2x8x1xf32>
    %292 = vector.broadcast %291 : vector<2x8x1xf32> to vector<2x8x32xf32>
    %293 = arith.mulf %289, %292 : vector<2x8x32xf32>
    %cst_77 = arith.constant dense<0.000000e+00> : vector<2x32xf32>
    %294 = vector.multi_reduction <add>, %293, %cst_77 [1] : vector<2x8x32xf32> to vector<2x32xf32>
    %c12_78 = arith.constant 12 : index
    %c0_79 = arith.constant 0 : index
    %295 = vector.load %arg16[%c12_78, %c0_79] : memref<20x32xf32, #tpu.memory_space<vmem>>, vector<2x32xf32>
    tpu.vector_store %arg16[%c12_78, %c0_79], %294 {strides = array<i32>} : memref<20x32xf32, #tpu.memory_space<vmem>>, vector<2x32xf32>,
    %296 = vector.extract_strided_slice %248 {offsets = [10, 0, 0], sizes = [2, 8, 32], strides = [1, 1, 1]} : vector<20x8x32xf32> to vector<2x8x32xf32>
    %297 = arith.mulf %296, %289 : vector<2x8x32xf32>
    %298 = vector.extract_strided_slice %254 {offsets = [10, 0, 0], sizes = [2, 8, 32], strides = [1, 1, 1]} : vector<20x8x32xf32> to vector<2x8x32xf32>
    %299 = arith.addf %297, %298 : vector<2x8x32xf32>
    %300 = vector.extract_strided_slice %242 {offsets = [10, 0], sizes = [2, 8], strides = [1, 1]} : vector<20x8xf32> to vector<2x8xf32>
    %301 = vector.shape_cast %300 : vector<2x8xf32> to vector<2x8x1xf32>
    %302 = vector.broadcast %301 : vector<2x8x1xf32> to vector<2x8x32xf32>
    %303 = arith.mulf %299, %302 : vector<2x8x32xf32>
    %cst_80 = arith.constant dense<0.000000e+00> : vector<2x32xf32>
    %304 = vector.multi_reduction <add>, %303, %cst_80 [1] : vector<2x8x32xf32> to vector<2x32xf32>
    %c10_81 = arith.constant 10 : index
    %c0_82 = arith.constant 0 : index
    %305 = vector.load %arg16[%c10_81, %c0_82] : memref<20x32xf32, #tpu.memory_space<vmem>>, vector<2x32xf32>
    tpu.vector_store %arg16[%c10_81, %c0_82], %304 {strides = array<i32>} : memref<20x32xf32, #tpu.memory_space<vmem>>, vector<2x32xf32>,
    %306 = vector.extract_strided_slice %248 {offsets = [8, 0, 0], sizes = [2, 8, 32], strides = [1, 1, 1]} : vector<20x8x32xf32> to vector<2x8x32xf32>
    %307 = arith.mulf %306, %299 : vector<2x8x32xf32>
    %308 = vector.extract_strided_slice %254 {offsets = [8, 0, 0], sizes = [2, 8, 32], strides = [1, 1, 1]} : vector<20x8x32xf32> to vector<2x8x32xf32>
    %309 = arith.addf %307, %308 : vector<2x8x32xf32>
    %310 = vector.extract_strided_slice %242 {offsets = [8, 0], sizes = [2, 8], strides = [1, 1]} : vector<20x8xf32> to vector<2x8xf32>
    %311 = vector.shape_cast %310 : vector<2x8xf32> to vector<2x8x1xf32>
    %312 = vector.broadcast %311 : vector<2x8x1xf32> to vector<2x8x32xf32>
    %313 = arith.mulf %309, %312 : vector<2x8x32xf32>
    %cst_83 = arith.constant dense<0.000000e+00> : vector<2x32xf32>
    %314 = vector.multi_reduction <add>, %313, %cst_83 [1] : vector<2x8x32xf32> to vector<2x32xf32>
    %c8_84 = arith.constant 8 : index
    %c0_85 = arith.constant 0 : index
    %315 = vector.load %arg16[%c8_84, %c0_85] : memref<20x32xf32, #tpu.memory_space<vmem>>, vector<2x32xf32>
    tpu.vector_store %arg16[%c8_84, %c0_85], %314 {strides = array<i32>} : memref<20x32xf32, #tpu.memory_space<vmem>>, vector<2x32xf32>,
    %316 = vector.extract_strided_slice %248 {offsets = [6, 0, 0], sizes = [2, 8, 32], strides = [1, 1, 1]} : vector<20x8x32xf32> to vector<2x8x32xf32>
    %317 = arith.mulf %316, %309 : vector<2x8x32xf32>
    %318 = vector.extract_strided_slice %254 {offsets = [6, 0, 0], sizes = [2, 8, 32], strides = [1, 1, 1]} : vector<20x8x32xf32> to vector<2x8x32xf32>
    %319 = arith.addf %317, %318 : vector<2x8x32xf32>
    %320 = vector.extract_strided_slice %242 {offsets = [6, 0], sizes = [2, 8], strides = [1, 1]} : vector<20x8xf32> to vector<2x8xf32>
    %321 = vector.shape_cast %320 : vector<2x8xf32> to vector<2x8x1xf32>
    %322 = vector.broadcast %321 : vector<2x8x1xf32> to vector<2x8x32xf32>
    %323 = arith.mulf %319, %322 : vector<2x8x32xf32>
    %cst_86 = arith.constant dense<0.000000e+00> : vector<2x32xf32>
    %324 = vector.multi_reduction <add>, %323, %cst_86 [1] : vector<2x8x32xf32> to vector<2x32xf32>
    %c6_87 = arith.constant 6 : index
    %c0_88 = arith.constant 0 : index
    %325 = vector.load %arg16[%c6_87, %c0_88] : memref<20x32xf32, #tpu.memory_space<vmem>>, vector<2x32xf32>
    tpu.vector_store %arg16[%c6_87, %c0_88], %324 {strides = array<i32>} : memref<20x32xf32, #tpu.memory_space<vmem>>, vector<2x32xf32>,
    %326 = vector.extract_strided_slice %248 {offsets = [4, 0, 0], sizes = [2, 8, 32], strides = [1, 1, 1]} : vector<20x8x32xf32> to vector<2x8x32xf32>
    %327 = arith.mulf %326, %319 : vector<2x8x32xf32>
    %328 = vector.extract_strided_slice %254 {offsets = [4, 0, 0], sizes = [2, 8, 32], strides = [1, 1, 1]} : vector<20x8x32xf32> to vector<2x8x32xf32>
    %329 = arith.addf %327, %328 : vector<2x8x32xf32>
    %330 = vector.extract_strided_slice %242 {offsets = [4, 0], sizes = [2, 8], strides = [1, 1]} : vector<20x8xf32> to vector<2x8xf32>
    %331 = vector.shape_cast %330 : vector<2x8xf32> to vector<2x8x1xf32>
    %332 = vector.broadcast %331 : vector<2x8x1xf32> to vector<2x8x32xf32>
    %333 = arith.mulf %329, %332 : vector<2x8x32xf32>
    %cst_89 = arith.constant dense<0.000000e+00> : vector<2x32xf32>
    %334 = vector.multi_reduction <add>, %333, %cst_89 [1] : vector<2x8x32xf32> to vector<2x32xf32>
    %c4_90 = arith.constant 4 : index
    %c0_91 = arith.constant 0 : index
    %335 = vector.load %arg16[%c4_90, %c0_91] : memref<20x32xf32, #tpu.memory_space<vmem>>, vector<2x32xf32>
    tpu.vector_store %arg16[%c4_90, %c0_91], %334 {strides = array<i32>} : memref<20x32xf32, #tpu.memory_space<vmem>>, vector<2x32xf32>,
    %336 = vector.extract_strided_slice %248 {offsets = [2, 0, 0], sizes = [2, 8, 32], strides = [1, 1, 1]} : vector<20x8x32xf32> to vector<2x8x32xf32>
    %337 = arith.mulf %336, %329 : vector<2x8x32xf32>
    %338 = vector.extract_strided_slice %254 {offsets = [2, 0, 0], sizes = [2, 8, 32], strides = [1, 1, 1]} : vector<20x8x32xf32> to vector<2x8x32xf32>
    %339 = arith.addf %337, %338 : vector<2x8x32xf32>
    %340 = vector.extract_strided_slice %242 {offsets = [2, 0], sizes = [2, 8], strides = [1, 1]} : vector<20x8xf32> to vector<2x8xf32>
    %341 = vector.shape_cast %340 : vector<2x8xf32> to vector<2x8x1xf32>
    %342 = vector.broadcast %341 : vector<2x8x1xf32> to vector<2x8x32xf32>
    %343 = arith.mulf %339, %342 : vector<2x8x32xf32>
    %cst_92 = arith.constant dense<0.000000e+00> : vector<2x32xf32>
    %344 = vector.multi_reduction <add>, %343, %cst_92 [1] : vector<2x8x32xf32> to vector<2x32xf32>
    %c2_93 = arith.constant 2 : index
    %c0_94 = arith.constant 0 : index
    %345 = vector.load %arg16[%c2_93, %c0_94] : memref<20x32xf32, #tpu.memory_space<vmem>>, vector<2x32xf32>
    tpu.vector_store %arg16[%c2_93, %c0_94], %344 {strides = array<i32>} : memref<20x32xf32, #tpu.memory_space<vmem>>, vector<2x32xf32>,
    %346 = vector.extract_strided_slice %248 {offsets = [0, 0, 0], sizes = [2, 8, 32], strides = [1, 1, 1]} : vector<20x8x32xf32> to vector<2x8x32xf32>
    %347 = arith.mulf %346, %339 : vector<2x8x32xf32>
    %348 = vector.extract_strided_slice %254 {offsets = [0, 0, 0], sizes = [2, 8, 32], strides = [1, 1, 1]} : vector<20x8x32xf32> to vector<2x8x32xf32>
    %349 = arith.addf %347, %348 : vector<2x8x32xf32>
    %350 = vector.extract_strided_slice %242 {offsets = [0, 0], sizes = [2, 8], strides = [1, 1]} : vector<20x8xf32> to vector<2x8xf32>
    %351 = vector.shape_cast %350 : vector<2x8xf32> to vector<2x8x1xf32>
    %352 = vector.broadcast %351 : vector<2x8x1xf32> to vector<2x8x32xf32>
    %353 = arith.mulf %349, %352 : vector<2x8x32xf32>
    %cst_95 = arith.constant dense<0.000000e+00> : vector<2x32xf32>
    %354 = vector.multi_reduction <add>, %353, %cst_95 [1] : vector<2x8x32xf32> to vector<2x32xf32>
    %c0_96 = arith.constant 0 : index
    %c0_97 = arith.constant 0 : index
    %355 = vector.load %arg16[%c0_96, %c0_97] : memref<20x32xf32, #tpu.memory_space<vmem>>, vector<2x32xf32>
    tpu.vector_store %arg16[%c0_96, %c0_97], %354 {strides = array<i32>} : memref<20x32xf32, #tpu.memory_space<vmem>>, vector<2x32xf32>,
    %c0_98 = arith.constant 0 : index
    %c0_99 = arith.constant 0 : index
    %356 = vector.load %arg16[%c0_98, %c0_99] : memref<20x32xf32, #tpu.memory_space<vmem>>, vector<20x32xf32>
    %357 = vector.broadcast %208 : vector<1x32xf32> to vector<20x32xf32>
    %358 = arith.mulf %357, %222 : vector<20x32xf32>
    %359 = arith.addf %356, %358 : vector<20x32xf32>
    %360 = arith.negf %197 : vector<20x32xf32>
    %361 = math.exp %360 : vector<20x32xf32>
    %cst_100 = arith.constant 1.000000e+00 : f32
    %362 = vector.broadcast %cst_100 : f32 to vector<20x32xf32>
    %363 = arith.addf %362, %361 : vector<20x32xf32>
    %364 = arith.divf %362, %363 : vector<20x32xf32>
    %365 = arith.mulf %197, %364 : vector<20x32xf32>
    %366 = arith.mulf %359, %365 : vector<20x32xf32>
    %367 = tpu.concatenate %195, %366 in 1 : vector<20x32xf32>, vector<20x32xf32> -> vector<20x64xf32>
    %c0_101 = arith.constant 0 : index
    %c0_102 = arith.constant 0 : index
    %c0_103 = arith.constant 0 : index
    %368 = vector.load %arg9[%c0_101, %c0_102, %c0_103] : memref<2x64x32xf32, #tpu.memory_space<vmem>>, vector<1x64x32xf32>
    %369 = vector.shape_cast %368 : vector<1x64x32xf32> to vector<64x32xf32>
    %cst_104 = arith.constant dense<0.000000e+00> : vector<20x32xf32>
    %370 = tpu.matmul %367, %369, %cst_104 {dimension_numbers = #tpu.dot_dimension_numbers<[1], [0], [0], [1], [0, 0, 1, 1], [], []>} : vector<20x64xf32>, vector<64x32xf32>, vector<20x32xf32> -> vector<20x32xf32>
    %c0_105 = arith.constant 0 : index
    %c0_106 = arith.constant 0 : index
    %c0_107 = arith.constant 0 : index
    %371 = vector.load %arg13[%c0_105, %c0_106, %c0_107] : memref<2x5x32xf32, #tpu.memory_space<vmem>>, vector<1x5x32xf32>
    %372 = vector.shape_cast %371 : vector<1x5x32xf32> to vector<5x32xf32>
    %373 = arith.addf %21, %370 : vector<20x32xf32>
    %374 = vector.extract_strided_slice %372 {offsets = [0, 0], sizes = [1, 32], strides = [1, 1]} : vector<5x32xf32> to vector<1x32xf32>
    %375 = vector.extract_strided_slice %372 {offsets = [1, 0], sizes = [1, 32], strides = [1, 1]} : vector<5x32xf32> to vector<1x32xf32>
    %cst_108 = arith.constant dense<0.000000e+00> : vector<20xf32>
    %376 = vector.multi_reduction <add>, %373, %cst_108 [1] : vector<20x32xf32> to vector<20xf32>
    %377 = vector.shape_cast %376 : vector<20xf32> to vector<20x1xf32>
    %cst_109 = arith.constant 3.200000e+01 : f32
    %378 = vector.broadcast %cst_109 : f32 to vector<20x1xf32>
    %379 = arith.divf %377, %378 : vector<20x1xf32>
    %380 = vector.broadcast %379 : vector<20x1xf32> to vector<20x32xf32>
    %381 = arith.subf %373, %380 : vector<20x32xf32>
    %382 = arith.mulf %381, %381 : vector<20x32xf32>
    %cst_110 = arith.constant dense<0.000000e+00> : vector<20xf32>
    %383 = vector.multi_reduction <add>, %382, %cst_110 [1] : vector<20x32xf32> to vector<20xf32>
    %384 = vector.shape_cast %383 : vector<20xf32> to vector<20x1xf32>
    %cst_111 = arith.constant 3.200000e+01 : f32
    %385 = vector.broadcast %cst_111 : f32 to vector<20x1xf32>
    %386 = arith.divf %384, %385 : vector<20x1xf32>
    %cst_112 = arith.constant 9.99999974E-6 : f32
    %387 = vector.broadcast %cst_112 : f32 to vector<20x1xf32>
    %388 = arith.addf %386, %387 : vector<20x1xf32>
    %389 = math.rsqrt %388 : vector<20x1xf32>
    %390 = vector.broadcast %389 : vector<20x1xf32> to vector<20x32xf32>
    %391 = arith.mulf %381, %390 : vector<20x32xf32>
    %392 = vector.broadcast %374 : vector<1x32xf32> to vector<20x32xf32>
    %393 = arith.mulf %391, %392 : vector<20x32xf32>
    %394 = vector.broadcast %375 : vector<1x32xf32> to vector<20x32xf32>
    %395 = arith.addf %393, %394 : vector<20x32xf32>
    %c0_113 = arith.constant 0 : index
    %c0_114 = arith.constant 0 : index
    %c0_115 = arith.constant 0 : index
    %396 = vector.load %arg11[%c0_113, %c0_114, %c0_115] : memref<2x32x32xf32, #tpu.memory_space<vmem>>, vector<1x32x32xf32>
    %397 = vector.shape_cast %396 : vector<1x32x32xf32> to vector<32x32xf32>
    %cst_116 = arith.constant dense<0.000000e+00> : vector<20x32xf32>
    %398 = tpu.matmul %395, %397, %cst_116 {dimension_numbers = #tpu.dot_dimension_numbers<[1], [0], [0], [1], [0, 0, 1, 1], [], []>} : vector<20x32xf32>, vector<32x32xf32>, vector<20x32xf32> -> vector<20x32xf32>
    %c0_117 = arith.constant 0 : index
    %c0_118 = arith.constant 0 : index
    %c0_119 = arith.constant 0 : index
    %399 = vector.load %arg14[%c0_117, %c0_118, %c0_119] : memref<2x1x32xf32, #tpu.memory_space<vmem>>, vector<1x1x32xf32>
    %400 = vector.shape_cast %399 : vector<1x1x32xf32> to vector<1x32xf32>
    %401 = vector.broadcast %400 : vector<1x32xf32> to vector<20x32xf32>
    %402 = arith.addf %398, %401 : vector<20x32xf32>
    %cst_120 = arith.constant 0.000000e+00 : f32
    %403 = vector.broadcast %cst_120 : f32 to vector<20x32xf32>
    %404 = arith.maximumf %402, %403 : vector<20x32xf32>
    %c0_121 = arith.constant 0 : index
    %c0_122 = arith.constant 0 : index
    %c0_123 = arith.constant 0 : index
    %405 = vector.load %arg12[%c0_121, %c0_122, %c0_123] : memref<2x32x32xf32, #tpu.memory_space<vmem>>, vector<1x32x32xf32>
    %406 = vector.shape_cast %405 : vector<1x32x32xf32> to vector<32x32xf32>
    %cst_124 = arith.constant dense<0.000000e+00> : vector<20x32xf32>
    %407 = tpu.matmul %404, %406, %cst_124 {dimension_numbers = #tpu.dot_dimension_numbers<[1], [0], [0], [1], [0, 0, 1, 1], [], []>} : vector<20x32xf32>, vector<32x32xf32>, vector<20x32xf32> -> vector<20x32xf32>
    %408 = vector.extract_strided_slice %372 {offsets = [4, 0], sizes = [1, 32], strides = [1, 1]} : vector<5x32xf32> to vector<1x32xf32>
    %409 = vector.broadcast %408 : vector<1x32xf32> to vector<20x32xf32>
    %410 = arith.addf %407, %409 : vector<20x32xf32>
    %411 = arith.addf %395, %410 : vector<20x32xf32>
    %412 = vector.extract_strided_slice %372 {offsets = [2, 0], sizes = [1, 32], strides = [1, 1]} : vector<5x32xf32> to vector<1x32xf32>
    %413 = vector.extract_strided_slice %372 {offsets = [3, 0], sizes = [1, 32], strides = [1, 1]} : vector<5x32xf32> to vector<1x32xf32>
    %cst_125 = arith.constant dense<0.000000e+00> : vector<20xf32>
    %414 = vector.multi_reduction <add>, %411, %cst_125 [1] : vector<20x32xf32> to vector<20xf32>
    %415 = vector.shape_cast %414 : vector<20xf32> to vector<20x1xf32>
    %cst_126 = arith.constant 3.200000e+01 : f32
    %416 = vector.broadcast %cst_126 : f32 to vector<20x1xf32>
    %417 = arith.divf %415, %416 : vector<20x1xf32>
    %418 = vector.broadcast %417 : vector<20x1xf32> to vector<20x32xf32>
    %419 = arith.subf %411, %418 : vector<20x32xf32>
    %420 = arith.mulf %419, %419 : vector<20x32xf32>
    %cst_127 = arith.constant dense<0.000000e+00> : vector<20xf32>
    %421 = vector.multi_reduction <add>, %420, %cst_127 [1] : vector<20x32xf32> to vector<20xf32>
    %422 = vector.shape_cast %421 : vector<20xf32> to vector<20x1xf32>
    %cst_128 = arith.constant 3.200000e+01 : f32
    %423 = vector.broadcast %cst_128 : f32 to vector<20x1xf32>
    %424 = arith.divf %422, %423 : vector<20x1xf32>
    %cst_129 = arith.constant 9.99999974E-6 : f32
    %425 = vector.broadcast %cst_129 : f32 to vector<20x1xf32>
    %426 = arith.addf %424, %425 : vector<20x1xf32>
    %427 = math.rsqrt %426 : vector<20x1xf32>
    %428 = vector.broadcast %427 : vector<20x1xf32> to vector<20x32xf32>
    %429 = arith.mulf %419, %428 : vector<20x32xf32>
    %430 = vector.broadcast %412 : vector<1x32xf32> to vector<20x32xf32>
    %431 = arith.mulf %429, %430 : vector<20x32xf32>
    %432 = vector.broadcast %413 : vector<1x32xf32> to vector<20x32xf32>
    %433 = arith.addf %431, %432 : vector<20x32xf32>
    %c1_130 = arith.constant 1 : index
    %c0_131 = arith.constant 0 : index
    %c0_132 = arith.constant 0 : index
    %434 = vector.load %arg6[%c1_130, %c0_131, %c0_132] : memref<2x32x128xf32, #tpu.memory_space<vmem>>, vector<1x32x128xf32>
    %435 = vector.shape_cast %434 : vector<1x32x128xf32> to vector<32x128xf32>
    %cst_133 = arith.constant dense<0.000000e+00> : vector<20x128xf32>
    %436 = tpu.matmul %433, %435, %cst_133 {dimension_numbers = #tpu.dot_dimension_numbers<[1], [0], [0], [1], [0, 0, 1, 1], [], []>} : vector<20x32xf32>, vector<32x128xf32>, vector<20x128xf32> -> vector<20x128xf32>
    %437 = vector.extract_strided_slice %436 {offsets = [0, 0], sizes = [20, 32], strides = [1, 1]} : vector<20x128xf32> to vector<20x32xf32>
    %438 = vector.extract_strided_slice %436 {offsets = [0, 32], sizes = [20, 32], strides = [1, 1]} : vector<20x128xf32> to vector<20x32xf32>
    %c2_134 = arith.constant 2 : index
    %c0_135 = arith.constant 0 : index
    %c0_136 = arith.constant 0 : index
    %439 = vector.load %arg7[%c2_134, %c0_135, %c0_136] : memref<4x32x48xf32, #tpu.memory_space<vmem>>, vector<1x32x48xf32>
    %440 = vector.shape_cast %439 : vector<1x32x48xf32> to vector<32x48xf32>
    %c2_137 = arith.constant 2 : index
    %c0_138 = arith.constant 0 : index
    %c0_139 = arith.constant 0 : index
    %441 = vector.load %arg8[%c2_137, %c0_138, %c0_139] : memref<4x8x32xf32, #tpu.memory_space<vmem>>, vector<1x8x32xf32>
    %442 = vector.shape_cast %441 : vector<1x8x32xf32> to vector<8x32xf32>
    %c2_140 = arith.constant 2 : index
    %c0_141 = arith.constant 0 : index
    %c0_142 = arith.constant 0 : index
    %443 = vector.load %arg10[%c2_140, %c0_141, %c0_142] : memref<4x5x32xf32, #tpu.memory_space<vmem>>, vector<1x5x32xf32>
    %444 = vector.shape_cast %443 : vector<1x5x32xf32> to vector<5x32xf32>
    %445 = vector.extract_strided_slice %444 {offsets = [0, 0], sizes = [1, 32], strides = [1, 1]} : vector<5x32xf32> to vector<1x32xf32>
    %446 = vector.extract_strided_slice %444 {offsets = [1, 0], sizes = [1, 32], strides = [1, 1]} : vector<5x32xf32> to vector<1x32xf32>
    %447 = vector.extract_strided_slice %444 {offsets = [2, 0], sizes = [1, 32], strides = [1, 1]} : vector<5x32xf32> to vector<1x32xf32>
    %448 = vector.extract_strided_slice %444 {offsets = [3, 0], sizes = [1, 32], strides = [1, 1]} : vector<5x32xf32> to vector<1x32xf32>
    %449 = vector.extract_strided_slice %444 {offsets = [4, 0], sizes = [1, 32], strides = [1, 1]} : vector<5x32xf32> to vector<1x32xf32>
    %cst_143 = arith.constant dense<0.000000e+00> : vector<20x32xf32>
    %450 = tpu.matmul %7, %437, %cst_143 {dimension_numbers = #tpu.dot_dimension_numbers<[1], [0], [0], [1], [0, 0, 1, 1], [], []>} : vector<20x20xf32>, vector<20x32xf32>, vector<20x32xf32> -> vector<20x32xf32>
    %451 = vector.broadcast %445 : vector<1x32xf32> to vector<20x32xf32>
    %452 = arith.mulf %450, %451 : vector<20x32xf32>
    %453 = vector.broadcast %446 : vector<1x32xf32> to vector<20x32xf32>
    %454 = arith.mulf %437, %453 : vector<20x32xf32>
    %455 = arith.addf %452, %454 : vector<20x32xf32>
    %456 = vector.broadcast %447 : vector<1x32xf32> to vector<20x32xf32>
    %457 = arith.addf %455, %456 : vector<20x32xf32>
    %458 = arith.negf %457 : vector<20x32xf32>
    %459 = math.exp %458 : vector<20x32xf32>
    %cst_144 = arith.constant 1.000000e+00 : f32
    %460 = vector.broadcast %cst_144 : f32 to vector<20x32xf32>
    %461 = arith.addf %460, %459 : vector<20x32xf32>
    %462 = arith.divf %460, %461 : vector<20x32xf32>
    %463 = arith.mulf %457, %462 : vector<20x32xf32>
    %cst_145 = arith.constant dense<0.000000e+00> : vector<20x48xf32>
    %464 = tpu.matmul %463, %440, %cst_145 {dimension_numbers = #tpu.dot_dimension_numbers<[1], [0], [0], [1], [0, 0, 1, 1], [], []>} : vector<20x32xf32>, vector<32x48xf32>, vector<20x48xf32> -> vector<20x48xf32>
    %465 = vector.extract_strided_slice %464 {offsets = [0, 0], sizes = [20, 32], strides = [1, 1]} : vector<20x48xf32> to vector<20x32xf32>
    %466 = vector.broadcast %448 : vector<1x32xf32> to vector<20x32xf32>
    %467 = arith.addf %465, %466 : vector<20x32xf32>
    %cst_146 = arith.constant 0.000000e+00 : f32
    %468 = vector.broadcast %cst_146 : f32 to vector<20x32xf32>
    %469 = arith.maximumf %467, %468 : vector<20x32xf32>
    %470 = vector.broadcast %cst_146 : f32 to vector<20x32xf32>
    %471 = arith.subf %467, %470 : vector<20x32xf32>
    %472 = arith.cmpf one, %471, %471 : vector<20x32xf32>
    %473 = vector.broadcast %cst_146 : f32 to vector<20x32xf32>
    %474 = arith.addf %467, %473 : vector<20x32xf32>
    %475 = math.absf %471 : vector<20x32xf32>
    %cst_147 = arith.constant 0.000000e+00 : f32
    %476 = vector.broadcast %cst_147 : f32 to vector<20x32xf32>
    %477 = arith.subf %476, %475 : vector<20x32xf32>
    %478 = math.exp %477 : vector<20x32xf32>
    %479 = math.log1p %478 : vector<20x32xf32>
    %480 = arith.addf %469, %479 : vector<20x32xf32>
    %481 = arith.select %472, %474, %480 : vector<20x32xi1>, vector<20x32xf32>
    %482 = vector.extract_strided_slice %464 {offsets = [0, 32], sizes = [20, 8], strides = [1, 1]} : vector<20x48xf32> to vector<20x8xf32>
    %483 = vector.extract_strided_slice %464 {offsets = [0, 40], sizes = [20, 8], strides = [1, 1]} : vector<20x48xf32> to vector<20x8xf32>
    %484 = vector.shape_cast %481 : vector<20x32xf32> to vector<20x1x32xf32>
    %485 = vector.shape_cast %442 : vector<8x32xf32> to vector<1x8x32xf32>
    %486 = vector.broadcast %484 : vector<20x1x32xf32> to vector<20x8x32xf32>
    %487 = vector.broadcast %485 : vector<1x8x32xf32> to vector<20x8x32xf32>
    %488 = arith.mulf %486, %487 : vector<20x8x32xf32>
    %489 = math.exp %488 : vector<20x8x32xf32>
    %490 = vector.shape_cast %482 : vector<20x8xf32> to vector<20x8x1xf32>
    %491 = arith.mulf %481, %463 : vector<20x32xf32>
    %492 = vector.shape_cast %491 : vector<20x32xf32> to vector<20x1x32xf32>
    %493 = vector.broadcast %490 : vector<20x8x1xf32> to vector<20x8x32xf32>
    %494 = vector.broadcast %492 : vector<20x1x32xf32> to vector<20x8x32xf32>
    %495 = arith.mulf %493, %494 : vector<20x8x32xf32>
    %cst_148 = arith.constant 0.000000e+00 : f32
    %496 = vector.broadcast %cst_148 : f32 to vector<2x8x32xf32>
    %497 = vector.extract_strided_slice %489 {offsets = [0, 0, 0], sizes = [2, 8, 32], strides = [1, 1, 1]} : vector<20x8x32xf32> to vector<2x8x32xf32>
    %498 = arith.mulf %497, %496 : vector<2x8x32xf32>
    %499 = vector.extract_strided_slice %495 {offsets = [0, 0, 0], sizes = [2, 8, 32], strides = [1, 1, 1]} : vector<20x8x32xf32> to vector<2x8x32xf32>
    %500 = arith.addf %498, %499 : vector<2x8x32xf32>
    %501 = vector.extract_strided_slice %483 {offsets = [0, 0], sizes = [2, 8], strides = [1, 1]} : vector<20x8xf32> to vector<2x8xf32>
    %502 = vector.shape_cast %501 : vector<2x8xf32> to vector<2x8x1xf32>
    %503 = vector.broadcast %502 : vector<2x8x1xf32> to vector<2x8x32xf32>
    %504 = arith.mulf %500, %503 : vector<2x8x32xf32>
    %cst_149 = arith.constant dense<0.000000e+00> : vector<2x32xf32>
    %505 = vector.multi_reduction <add>, %504, %cst_149 [1] : vector<2x8x32xf32> to vector<2x32xf32>
    %c0_150 = arith.constant 0 : index
    %c0_151 = arith.constant 0 : index
    %506 = vector.load %arg16[%c0_150, %c0_151] : memref<20x32xf32, #tpu.memory_space<vmem>>, vector<2x32xf32>
    tpu.vector_store %arg16[%c0_150, %c0_151], %505 {strides = array<i32>} : memref<20x32xf32, #tpu.memory_space<vmem>>, vector<2x32xf32>,
    %507 = vector.extract_strided_slice %489 {offsets = [2, 0, 0], sizes = [2, 8, 32], strides = [1, 1, 1]} : vector<20x8x32xf32> to vector<2x8x32xf32>
    %508 = arith.mulf %507, %500 : vector<2x8x32xf32>
    %509 = vector.extract_strided_slice %495 {offsets = [2, 0, 0], sizes = [2, 8, 32], strides = [1, 1, 1]} : vector<20x8x32xf32> to vector<2x8x32xf32>
    %510 = arith.addf %508, %509 : vector<2x8x32xf32>
    %511 = vector.extract_strided_slice %483 {offsets = [2, 0], sizes = [2, 8], strides = [1, 1]} : vector<20x8xf32> to vector<2x8xf32>
    %512 = vector.shape_cast %511 : vector<2x8xf32> to vector<2x8x1xf32>
    %513 = vector.broadcast %512 : vector<2x8x1xf32> to vector<2x8x32xf32>
    %514 = arith.mulf %510, %513 : vector<2x8x32xf32>
    %cst_152 = arith.constant dense<0.000000e+00> : vector<2x32xf32>
    %515 = vector.multi_reduction <add>, %514, %cst_152 [1] : vector<2x8x32xf32> to vector<2x32xf32>
    %c2_153 = arith.constant 2 : index
    %c0_154 = arith.constant 0 : index
    %516 = vector.load %arg16[%c2_153, %c0_154] : memref<20x32xf32, #tpu.memory_space<vmem>>, vector<2x32xf32>
    tpu.vector_store %arg16[%c2_153, %c0_154], %515 {strides = array<i32>} : memref<20x32xf32, #tpu.memory_space<vmem>>, vector<2x32xf32>,
    %517 = vector.extract_strided_slice %489 {offsets = [4, 0, 0], sizes = [2, 8, 32], strides = [1, 1, 1]} : vector<20x8x32xf32> to vector<2x8x32xf32>
    %518 = arith.mulf %517, %510 : vector<2x8x32xf32>
    %519 = vector.extract_strided_slice %495 {offsets = [4, 0, 0], sizes = [2, 8, 32], strides = [1, 1, 1]} : vector<20x8x32xf32> to vector<2x8x32xf32>
    %520 = arith.addf %518, %519 : vector<2x8x32xf32>
    %521 = vector.extract_strided_slice %483 {offsets = [4, 0], sizes = [2, 8], strides = [1, 1]} : vector<20x8xf32> to vector<2x8xf32>
    %522 = vector.shape_cast %521 : vector<2x8xf32> to vector<2x8x1xf32>
    %523 = vector.broadcast %522 : vector<2x8x1xf32> to vector<2x8x32xf32>
    %524 = arith.mulf %520, %523 : vector<2x8x32xf32>
    %cst_155 = arith.constant dense<0.000000e+00> : vector<2x32xf32>
    %525 = vector.multi_reduction <add>, %524, %cst_155 [1] : vector<2x8x32xf32> to vector<2x32xf32>
    %c4_156 = arith.constant 4 : index
    %c0_157 = arith.constant 0 : index
    %526 = vector.load %arg16[%c4_156, %c0_157] : memref<20x32xf32, #tpu.memory_space<vmem>>, vector<2x32xf32>
    tpu.vector_store %arg16[%c4_156, %c0_157], %525 {strides = array<i32>} : memref<20x32xf32, #tpu.memory_space<vmem>>, vector<2x32xf32>,
    %527 = vector.extract_strided_slice %489 {offsets = [6, 0, 0], sizes = [2, 8, 32], strides = [1, 1, 1]} : vector<20x8x32xf32> to vector<2x8x32xf32>
    %528 = arith.mulf %527, %520 : vector<2x8x32xf32>
    %529 = vector.extract_strided_slice %495 {offsets = [6, 0, 0], sizes = [2, 8, 32], strides = [1, 1, 1]} : vector<20x8x32xf32> to vector<2x8x32xf32>
    %530 = arith.addf %528, %529 : vector<2x8x32xf32>
    %531 = vector.extract_strided_slice %483 {offsets = [6, 0], sizes = [2, 8], strides = [1, 1]} : vector<20x8xf32> to vector<2x8xf32>
    %532 = vector.shape_cast %531 : vector<2x8xf32> to vector<2x8x1xf32>
    %533 = vector.broadcast %532 : vector<2x8x1xf32> to vector<2x8x32xf32>
    %534 = arith.mulf %530, %533 : vector<2x8x32xf32>
    %cst_158 = arith.constant dense<0.000000e+00> : vector<2x32xf32>
    %535 = vector.multi_reduction <add>, %534, %cst_158 [1] : vector<2x8x32xf32> to vector<2x32xf32>
    %c6_159 = arith.constant 6 : index
    %c0_160 = arith.constant 0 : index
    %536 = vector.load %arg16[%c6_159, %c0_160] : memref<20x32xf32, #tpu.memory_space<vmem>>, vector<2x32xf32>
    tpu.vector_store %arg16[%c6_159, %c0_160], %535 {strides = array<i32>} : memref<20x32xf32, #tpu.memory_space<vmem>>, vector<2x32xf32>,
    %537 = vector.extract_strided_slice %489 {offsets = [8, 0, 0], sizes = [2, 8, 32], strides = [1, 1, 1]} : vector<20x8x32xf32> to vector<2x8x32xf32>
    %538 = arith.mulf %537, %530 : vector<2x8x32xf32>
    %539 = vector.extract_strided_slice %495 {offsets = [8, 0, 0], sizes = [2, 8, 32], strides = [1, 1, 1]} : vector<20x8x32xf32> to vector<2x8x32xf32>
    %540 = arith.addf %538, %539 : vector<2x8x32xf32>
    %541 = vector.extract_strided_slice %483 {offsets = [8, 0], sizes = [2, 8], strides = [1, 1]} : vector<20x8xf32> to vector<2x8xf32>
    %542 = vector.shape_cast %541 : vector<2x8xf32> to vector<2x8x1xf32>
    %543 = vector.broadcast %542 : vector<2x8x1xf32> to vector<2x8x32xf32>
    %544 = arith.mulf %540, %543 : vector<2x8x32xf32>
    %cst_161 = arith.constant dense<0.000000e+00> : vector<2x32xf32>
    %545 = vector.multi_reduction <add>, %544, %cst_161 [1] : vector<2x8x32xf32> to vector<2x32xf32>
    %c8_162 = arith.constant 8 : index
    %c0_163 = arith.constant 0 : index
    %546 = vector.load %arg16[%c8_162, %c0_163] : memref<20x32xf32, #tpu.memory_space<vmem>>, vector<2x32xf32>
    tpu.vector_store %arg16[%c8_162, %c0_163], %545 {strides = array<i32>} : memref<20x32xf32, #tpu.memory_space<vmem>>, vector<2x32xf32>,
    %547 = vector.extract_strided_slice %489 {offsets = [10, 0, 0], sizes = [2, 8, 32], strides = [1, 1, 1]} : vector<20x8x32xf32> to vector<2x8x32xf32>
    %548 = arith.mulf %547, %540 : vector<2x8x32xf32>
    %549 = vector.extract_strided_slice %495 {offsets = [10, 0, 0], sizes = [2, 8, 32], strides = [1, 1, 1]} : vector<20x8x32xf32> to vector<2x8x32xf32>
    %550 = arith.addf %548, %549 : vector<2x8x32xf32>
    %551 = vector.extract_strided_slice %483 {offsets = [10, 0], sizes = [2, 8], strides = [1, 1]} : vector<20x8xf32> to vector<2x8xf32>
    %552 = vector.shape_cast %551 : vector<2x8xf32> to vector<2x8x1xf32>
    %553 = vector.broadcast %552 : vector<2x8x1xf32> to vector<2x8x32xf32>
    %554 = arith.mulf %550, %553 : vector<2x8x32xf32>
    %cst_164 = arith.constant dense<0.000000e+00> : vector<2x32xf32>
    %555 = vector.multi_reduction <add>, %554, %cst_164 [1] : vector<2x8x32xf32> to vector<2x32xf32>
    %c10_165 = arith.constant 10 : index
    %c0_166 = arith.constant 0 : index
    %556 = vector.load %arg16[%c10_165, %c0_166] : memref<20x32xf32, #tpu.memory_space<vmem>>, vector<2x32xf32>
    tpu.vector_store %arg16[%c10_165, %c0_166], %555 {strides = array<i32>} : memref<20x32xf32, #tpu.memory_space<vmem>>, vector<2x32xf32>,
    %557 = vector.extract_strided_slice %489 {offsets = [12, 0, 0], sizes = [2, 8, 32], strides = [1, 1, 1]} : vector<20x8x32xf32> to vector<2x8x32xf32>
    %558 = arith.mulf %557, %550 : vector<2x8x32xf32>
    %559 = vector.extract_strided_slice %495 {offsets = [12, 0, 0], sizes = [2, 8, 32], strides = [1, 1, 1]} : vector<20x8x32xf32> to vector<2x8x32xf32>
    %560 = arith.addf %558, %559 : vector<2x8x32xf32>
    %561 = vector.extract_strided_slice %483 {offsets = [12, 0], sizes = [2, 8], strides = [1, 1]} : vector<20x8xf32> to vector<2x8xf32>
    %562 = vector.shape_cast %561 : vector<2x8xf32> to vector<2x8x1xf32>
    %563 = vector.broadcast %562 : vector<2x8x1xf32> to vector<2x8x32xf32>
    %564 = arith.mulf %560, %563 : vector<2x8x32xf32>
    %cst_167 = arith.constant dense<0.000000e+00> : vector<2x32xf32>
    %565 = vector.multi_reduction <add>, %564, %cst_167 [1] : vector<2x8x32xf32> to vector<2x32xf32>
    %c12_168 = arith.constant 12 : index
    %c0_169 = arith.constant 0 : index
    %566 = vector.load %arg16[%c12_168, %c0_169] : memref<20x32xf32, #tpu.memory_space<vmem>>, vector<2x32xf32>
    tpu.vector_store %arg16[%c12_168, %c0_169], %565 {strides = array<i32>} : memref<20x32xf32, #tpu.memory_space<vmem>>, vector<2x32xf32>,
    %567 = vector.extract_strided_slice %489 {offsets = [14, 0, 0], sizes = [2, 8, 32], strides = [1, 1, 1]} : vector<20x8x32xf32> to vector<2x8x32xf32>
    %568 = arith.mulf %567, %560 : vector<2x8x32xf32>
    %569 = vector.extract_strided_slice %495 {offsets = [14, 0, 0], sizes = [2, 8, 32], strides = [1, 1, 1]} : vector<20x8x32xf32> to vector<2x8x32xf32>
    %570 = arith.addf %568, %569 : vector<2x8x32xf32>
    %571 = vector.extract_strided_slice %483 {offsets = [14, 0], sizes = [2, 8], strides = [1, 1]} : vector<20x8xf32> to vector<2x8xf32>
    %572 = vector.shape_cast %571 : vector<2x8xf32> to vector<2x8x1xf32>
    %573 = vector.broadcast %572 : vector<2x8x1xf32> to vector<2x8x32xf32>
    %574 = arith.mulf %570, %573 : vector<2x8x32xf32>
    %cst_170 = arith.constant dense<0.000000e+00> : vector<2x32xf32>
    %575 = vector.multi_reduction <add>, %574, %cst_170 [1] : vector<2x8x32xf32> to vector<2x32xf32>
    %c14_171 = arith.constant 14 : index
    %c0_172 = arith.constant 0 : index
    %576 = vector.load %arg16[%c14_171, %c0_172] : memref<20x32xf32, #tpu.memory_space<vmem>>, vector<2x32xf32>
    tpu.vector_store %arg16[%c14_171, %c0_172], %575 {strides = array<i32>} : memref<20x32xf32, #tpu.memory_space<vmem>>, vector<2x32xf32>,
    %577 = vector.extract_strided_slice %489 {offsets = [16, 0, 0], sizes = [2, 8, 32], strides = [1, 1, 1]} : vector<20x8x32xf32> to vector<2x8x32xf32>
    %578 = arith.mulf %577, %570 : vector<2x8x32xf32>
    %579 = vector.extract_strided_slice %495 {offsets = [16, 0, 0], sizes = [2, 8, 32], strides = [1, 1, 1]} : vector<20x8x32xf32> to vector<2x8x32xf32>
    %580 = arith.addf %578, %579 : vector<2x8x32xf32>
    %581 = vector.extract_strided_slice %483 {offsets = [16, 0], sizes = [2, 8], strides = [1, 1]} : vector<20x8xf32> to vector<2x8xf32>
    %582 = vector.shape_cast %581 : vector<2x8xf32> to vector<2x8x1xf32>
    %583 = vector.broadcast %582 : vector<2x8x1xf32> to vector<2x8x32xf32>
    %584 = arith.mulf %580, %583 : vector<2x8x32xf32>
    %cst_173 = arith.constant dense<0.000000e+00> : vector<2x32xf32>
    %585 = vector.multi_reduction <add>, %584, %cst_173 [1] : vector<2x8x32xf32> to vector<2x32xf32>
    %c16_174 = arith.constant 16 : index
    %c0_175 = arith.constant 0 : index
    %586 = vector.load %arg16[%c16_174, %c0_175] : memref<20x32xf32, #tpu.memory_space<vmem>>, vector<2x32xf32>
    tpu.vector_store %arg16[%c16_174, %c0_175], %585 {strides = array<i32>} : memref<20x32xf32, #tpu.memory_space<vmem>>, vector<2x32xf32>,
    %587 = vector.extract_strided_slice %489 {offsets = [18, 0, 0], sizes = [2, 8, 32], strides = [1, 1, 1]} : vector<20x8x32xf32> to vector<2x8x32xf32>
    %588 = arith.mulf %587, %580 : vector<2x8x32xf32>
    %589 = vector.extract_strided_slice %495 {offsets = [18, 0, 0], sizes = [2, 8, 32], strides = [1, 1, 1]} : vector<20x8x32xf32> to vector<2x8x32xf32>
    %590 = arith.addf %588, %589 : vector<2x8x32xf32>
    %591 = vector.extract_strided_slice %483 {offsets = [18, 0], sizes = [2, 8], strides = [1, 1]} : vector<20x8xf32> to vector<2x8xf32>
    %592 = vector.shape_cast %591 : vector<2x8xf32> to vector<2x8x1xf32>
    %593 = vector.broadcast %592 : vector<2x8x1xf32> to vector<2x8x32xf32>
    %594 = arith.mulf %590, %593 : vector<2x8x32xf32>
    %cst_176 = arith.constant dense<0.000000e+00> : vector<2x32xf32>
    %595 = vector.multi_reduction <add>, %594, %cst_176 [1] : vector<2x8x32xf32> to vector<2x32xf32>
    %c18_177 = arith.constant 18 : index
    %c0_178 = arith.constant 0 : index
    %596 = vector.load %arg16[%c18_177, %c0_178] : memref<20x32xf32, #tpu.memory_space<vmem>>, vector<2x32xf32>
    tpu.vector_store %arg16[%c18_177, %c0_178], %595 {strides = array<i32>} : memref<20x32xf32, #tpu.memory_space<vmem>>, vector<2x32xf32>,
    %c0_179 = arith.constant 0 : index
    %c0_180 = arith.constant 0 : index
    %597 = vector.load %arg16[%c0_179, %c0_180] : memref<20x32xf32, #tpu.memory_space<vmem>>, vector<20x32xf32>
    %598 = vector.broadcast %449 : vector<1x32xf32> to vector<20x32xf32>
    %599 = arith.mulf %598, %463 : vector<20x32xf32>
    %600 = arith.addf %597, %599 : vector<20x32xf32>
    %601 = arith.negf %438 : vector<20x32xf32>
    %602 = math.exp %601 : vector<20x32xf32>
    %cst_181 = arith.constant 1.000000e+00 : f32
    %603 = vector.broadcast %cst_181 : f32 to vector<20x32xf32>
    %604 = arith.addf %603, %602 : vector<20x32xf32>
    %605 = arith.divf %603, %604 : vector<20x32xf32>
    %606 = arith.mulf %438, %605 : vector<20x32xf32>
    %607 = arith.mulf %600, %606 : vector<20x32xf32>
    %608 = vector.extract_strided_slice %436 {offsets = [0, 64], sizes = [20, 32], strides = [1, 1]} : vector<20x128xf32> to vector<20x32xf32>
    %609 = vector.extract_strided_slice %436 {offsets = [0, 96], sizes = [20, 32], strides = [1, 1]} : vector<20x128xf32> to vector<20x32xf32>
    %c3 = arith.constant 3 : index
    %c0_182 = arith.constant 0 : index
    %c0_183 = arith.constant 0 : index
    %610 = vector.load %arg7[%c3, %c0_182, %c0_183] : memref<4x32x48xf32, #tpu.memory_space<vmem>>, vector<1x32x48xf32>
    %611 = vector.shape_cast %610 : vector<1x32x48xf32> to vector<32x48xf32>
    %c3_184 = arith.constant 3 : index
    %c0_185 = arith.constant 0 : index
    %c0_186 = arith.constant 0 : index
    %612 = vector.load %arg8[%c3_184, %c0_185, %c0_186] : memref<4x8x32xf32, #tpu.memory_space<vmem>>, vector<1x8x32xf32>
    %613 = vector.shape_cast %612 : vector<1x8x32xf32> to vector<8x32xf32>
    %c3_187 = arith.constant 3 : index
    %c0_188 = arith.constant 0 : index
    %c0_189 = arith.constant 0 : index
    %614 = vector.load %arg10[%c3_187, %c0_188, %c0_189] : memref<4x5x32xf32, #tpu.memory_space<vmem>>, vector<1x5x32xf32>
    %615 = vector.shape_cast %614 : vector<1x5x32xf32> to vector<5x32xf32>
    %616 = vector.extract_strided_slice %615 {offsets = [0, 0], sizes = [1, 32], strides = [1, 1]} : vector<5x32xf32> to vector<1x32xf32>
    %617 = vector.extract_strided_slice %615 {offsets = [1, 0], sizes = [1, 32], strides = [1, 1]} : vector<5x32xf32> to vector<1x32xf32>
    %618 = vector.extract_strided_slice %615 {offsets = [2, 0], sizes = [1, 32], strides = [1, 1]} : vector<5x32xf32> to vector<1x32xf32>
    %619 = vector.extract_strided_slice %615 {offsets = [3, 0], sizes = [1, 32], strides = [1, 1]} : vector<5x32xf32> to vector<1x32xf32>
    %620 = vector.extract_strided_slice %615 {offsets = [4, 0], sizes = [1, 32], strides = [1, 1]} : vector<5x32xf32> to vector<1x32xf32>
    %cst_190 = arith.constant dense<0.000000e+00> : vector<20x32xf32>
    %621 = tpu.matmul %13, %608, %cst_190 {dimension_numbers = #tpu.dot_dimension_numbers<[1], [0], [0], [1], [0, 0, 1, 1], [], []>} : vector<20x20xf32>, vector<20x32xf32>, vector<20x32xf32> -> vector<20x32xf32>
    %622 = vector.broadcast %616 : vector<1x32xf32> to vector<20x32xf32>
    %623 = arith.mulf %621, %622 : vector<20x32xf32>
    %624 = vector.broadcast %617 : vector<1x32xf32> to vector<20x32xf32>
    %625 = arith.mulf %608, %624 : vector<20x32xf32>
    %626 = arith.addf %623, %625 : vector<20x32xf32>
    %627 = vector.broadcast %618 : vector<1x32xf32> to vector<20x32xf32>
    %628 = arith.addf %626, %627 : vector<20x32xf32>
    %629 = arith.negf %628 : vector<20x32xf32>
    %630 = math.exp %629 : vector<20x32xf32>
    %cst_191 = arith.constant 1.000000e+00 : f32
    %631 = vector.broadcast %cst_191 : f32 to vector<20x32xf32>
    %632 = arith.addf %631, %630 : vector<20x32xf32>
    %633 = arith.divf %631, %632 : vector<20x32xf32>
    %634 = arith.mulf %628, %633 : vector<20x32xf32>
    %cst_192 = arith.constant dense<0.000000e+00> : vector<20x48xf32>
    %635 = tpu.matmul %634, %611, %cst_192 {dimension_numbers = #tpu.dot_dimension_numbers<[1], [0], [0], [1], [0, 0, 1, 1], [], []>} : vector<20x32xf32>, vector<32x48xf32>, vector<20x48xf32> -> vector<20x48xf32>
    %636 = vector.extract_strided_slice %635 {offsets = [0, 0], sizes = [20, 32], strides = [1, 1]} : vector<20x48xf32> to vector<20x32xf32>
    %637 = vector.broadcast %619 : vector<1x32xf32> to vector<20x32xf32>
    %638 = arith.addf %636, %637 : vector<20x32xf32>
    %cst_193 = arith.constant 0.000000e+00 : f32
    %639 = vector.broadcast %cst_193 : f32 to vector<20x32xf32>
    %640 = arith.maximumf %638, %639 : vector<20x32xf32>
    %641 = vector.broadcast %cst_193 : f32 to vector<20x32xf32>
    %642 = arith.subf %638, %641 : vector<20x32xf32>
    %643 = arith.cmpf one, %642, %642 : vector<20x32xf32>
    %644 = vector.broadcast %cst_193 : f32 to vector<20x32xf32>
    %645 = arith.addf %638, %644 : vector<20x32xf32>
    %646 = math.absf %642 : vector<20x32xf32>
    %cst_194 = arith.constant 0.000000e+00 : f32
    %647 = vector.broadcast %cst_194 : f32 to vector<20x32xf32>
    %648 = arith.subf %647, %646 : vector<20x32xf32>
    %649 = math.exp %648 : vector<20x32xf32>
    %650 = math.log1p %649 : vector<20x32xf32>
    %651 = arith.addf %640, %650 : vector<20x32xf32>
    %652 = arith.select %643, %645, %651 : vector<20x32xi1>, vector<20x32xf32>
    %653 = vector.extract_strided_slice %635 {offsets = [0, 32], sizes = [20, 8], strides = [1, 1]} : vector<20x48xf32> to vector<20x8xf32>
    %654 = vector.extract_strided_slice %635 {offsets = [0, 40], sizes = [20, 8], strides = [1, 1]} : vector<20x48xf32> to vector<20x8xf32>
    %655 = vector.shape_cast %652 : vector<20x32xf32> to vector<20x1x32xf32>
    %656 = vector.shape_cast %613 : vector<8x32xf32> to vector<1x8x32xf32>
    %657 = vector.broadcast %655 : vector<20x1x32xf32> to vector<20x8x32xf32>
    %658 = vector.broadcast %656 : vector<1x8x32xf32> to vector<20x8x32xf32>
    %659 = arith.mulf %657, %658 : vector<20x8x32xf32>
    %660 = math.exp %659 : vector<20x8x32xf32>
    %661 = vector.shape_cast %653 : vector<20x8xf32> to vector<20x8x1xf32>
    %662 = arith.mulf %652, %634 : vector<20x32xf32>
    %663 = vector.shape_cast %662 : vector<20x32xf32> to vector<20x1x32xf32>
    %664 = vector.broadcast %661 : vector<20x8x1xf32> to vector<20x8x32xf32>
    %665 = vector.broadcast %663 : vector<20x1x32xf32> to vector<20x8x32xf32>
    %666 = arith.mulf %664, %665 : vector<20x8x32xf32>
    %cst_195 = arith.constant 0.000000e+00 : f32
    %667 = vector.broadcast %cst_195 : f32 to vector<2x8x32xf32>
    %668 = vector.extract_strided_slice %660 {offsets = [18, 0, 0], sizes = [2, 8, 32], strides = [1, 1, 1]} : vector<20x8x32xf32> to vector<2x8x32xf32>
    %669 = arith.mulf %668, %667 : vector<2x8x32xf32>
    %670 = vector.extract_strided_slice %666 {offsets = [18, 0, 0], sizes = [2, 8, 32], strides = [1, 1, 1]} : vector<20x8x32xf32> to vector<2x8x32xf32>
    %671 = arith.addf %669, %670 : vector<2x8x32xf32>
    %672 = vector.extract_strided_slice %654 {offsets = [18, 0], sizes = [2, 8], strides = [1, 1]} : vector<20x8xf32> to vector<2x8xf32>
    %673 = vector.shape_cast %672 : vector<2x8xf32> to vector<2x8x1xf32>
    %674 = vector.broadcast %673 : vector<2x8x1xf32> to vector<2x8x32xf32>
    %675 = arith.mulf %671, %674 : vector<2x8x32xf32>
    %cst_196 = arith.constant dense<0.000000e+00> : vector<2x32xf32>
    %676 = vector.multi_reduction <add>, %675, %cst_196 [1] : vector<2x8x32xf32> to vector<2x32xf32>
    %c18_197 = arith.constant 18 : index
    %c0_198 = arith.constant 0 : index
    %677 = vector.load %arg16[%c18_197, %c0_198] : memref<20x32xf32, #tpu.memory_space<vmem>>, vector<2x32xf32>
    tpu.vector_store %arg16[%c18_197, %c0_198], %676 {strides = array<i32>} : memref<20x32xf32, #tpu.memory_space<vmem>>, vector<2x32xf32>,
    %678 = vector.extract_strided_slice %660 {offsets = [16, 0, 0], sizes = [2, 8, 32], strides = [1, 1, 1]} : vector<20x8x32xf32> to vector<2x8x32xf32>
    %679 = arith.mulf %678, %671 : vector<2x8x32xf32>
    %680 = vector.extract_strided_slice %666 {offsets = [16, 0, 0], sizes = [2, 8, 32], strides = [1, 1, 1]} : vector<20x8x32xf32> to vector<2x8x32xf32>
    %681 = arith.addf %679, %680 : vector<2x8x32xf32>
    %682 = vector.extract_strided_slice %654 {offsets = [16, 0], sizes = [2, 8], strides = [1, 1]} : vector<20x8xf32> to vector<2x8xf32>
    %683 = vector.shape_cast %682 : vector<2x8xf32> to vector<2x8x1xf32>
    %684 = vector.broadcast %683 : vector<2x8x1xf32> to vector<2x8x32xf32>
    %685 = arith.mulf %681, %684 : vector<2x8x32xf32>
    %cst_199 = arith.constant dense<0.000000e+00> : vector<2x32xf32>
    %686 = vector.multi_reduction <add>, %685, %cst_199 [1] : vector<2x8x32xf32> to vector<2x32xf32>
    %c16_200 = arith.constant 16 : index
    %c0_201 = arith.constant 0 : index
    %687 = vector.load %arg16[%c16_200, %c0_201] : memref<20x32xf32, #tpu.memory_space<vmem>>, vector<2x32xf32>
    tpu.vector_store %arg16[%c16_200, %c0_201], %686 {strides = array<i32>} : memref<20x32xf32, #tpu.memory_space<vmem>>, vector<2x32xf32>,
    %688 = vector.extract_strided_slice %660 {offsets = [14, 0, 0], sizes = [2, 8, 32], strides = [1, 1, 1]} : vector<20x8x32xf32> to vector<2x8x32xf32>
    %689 = arith.mulf %688, %681 : vector<2x8x32xf32>
    %690 = vector.extract_strided_slice %666 {offsets = [14, 0, 0], sizes = [2, 8, 32], strides = [1, 1, 1]} : vector<20x8x32xf32> to vector<2x8x32xf32>
    %691 = arith.addf %689, %690 : vector<2x8x32xf32>
    %692 = vector.extract_strided_slice %654 {offsets = [14, 0], sizes = [2, 8], strides = [1, 1]} : vector<20x8xf32> to vector<2x8xf32>
    %693 = vector.shape_cast %692 : vector<2x8xf32> to vector<2x8x1xf32>
    %694 = vector.broadcast %693 : vector<2x8x1xf32> to vector<2x8x32xf32>
    %695 = arith.mulf %691, %694 : vector<2x8x32xf32>
    %cst_202 = arith.constant dense<0.000000e+00> : vector<2x32xf32>
    %696 = vector.multi_reduction <add>, %695, %cst_202 [1] : vector<2x8x32xf32> to vector<2x32xf32>
    %c14_203 = arith.constant 14 : index
    %c0_204 = arith.constant 0 : index
    %697 = vector.load %arg16[%c14_203, %c0_204] : memref<20x32xf32, #tpu.memory_space<vmem>>, vector<2x32xf32>
    tpu.vector_store %arg16[%c14_203, %c0_204], %696 {strides = array<i32>} : memref<20x32xf32, #tpu.memory_space<vmem>>, vector<2x32xf32>,
    %698 = vector.extract_strided_slice %660 {offsets = [12, 0, 0], sizes = [2, 8, 32], strides = [1, 1, 1]} : vector<20x8x32xf32> to vector<2x8x32xf32>
    %699 = arith.mulf %698, %691 : vector<2x8x32xf32>
    %700 = vector.extract_strided_slice %666 {offsets = [12, 0, 0], sizes = [2, 8, 32], strides = [1, 1, 1]} : vector<20x8x32xf32> to vector<2x8x32xf32>
    %701 = arith.addf %699, %700 : vector<2x8x32xf32>
    %702 = vector.extract_strided_slice %654 {offsets = [12, 0], sizes = [2, 8], strides = [1, 1]} : vector<20x8xf32> to vector<2x8xf32>
    %703 = vector.shape_cast %702 : vector<2x8xf32> to vector<2x8x1xf32>
    %704 = vector.broadcast %703 : vector<2x8x1xf32> to vector<2x8x32xf32>
    %705 = arith.mulf %701, %704 : vector<2x8x32xf32>
    %cst_205 = arith.constant dense<0.000000e+00> : vector<2x32xf32>
    %706 = vector.multi_reduction <add>, %705, %cst_205 [1] : vector<2x8x32xf32> to vector<2x32xf32>
    %c12_206 = arith.constant 12 : index
    %c0_207 = arith.constant 0 : index
    %707 = vector.load %arg16[%c12_206, %c0_207] : memref<20x32xf32, #tpu.memory_space<vmem>>, vector<2x32xf32>
    tpu.vector_store %arg16[%c12_206, %c0_207], %706 {strides = array<i32>} : memref<20x32xf32, #tpu.memory_space<vmem>>, vector<2x32xf32>,
    %708 = vector.extract_strided_slice %660 {offsets = [10, 0, 0], sizes = [2, 8, 32], strides = [1, 1, 1]} : vector<20x8x32xf32> to vector<2x8x32xf32>
    %709 = arith.mulf %708, %701 : vector<2x8x32xf32>
    %710 = vector.extract_strided_slice %666 {offsets = [10, 0, 0], sizes = [2, 8, 32], strides = [1, 1, 1]} : vector<20x8x32xf32> to vector<2x8x32xf32>
    %711 = arith.addf %709, %710 : vector<2x8x32xf32>
    %712 = vector.extract_strided_slice %654 {offsets = [10, 0], sizes = [2, 8], strides = [1, 1]} : vector<20x8xf32> to vector<2x8xf32>
    %713 = vector.shape_cast %712 : vector<2x8xf32> to vector<2x8x1xf32>
    %714 = vector.broadcast %713 : vector<2x8x1xf32> to vector<2x8x32xf32>
    %715 = arith.mulf %711, %714 : vector<2x8x32xf32>
    %cst_208 = arith.constant dense<0.000000e+00> : vector<2x32xf32>
    %716 = vector.multi_reduction <add>, %715, %cst_208 [1] : vector<2x8x32xf32> to vector<2x32xf32>
    %c10_209 = arith.constant 10 : index
    %c0_210 = arith.constant 0 : index
    %717 = vector.load %arg16[%c10_209, %c0_210] : memref<20x32xf32, #tpu.memory_space<vmem>>, vector<2x32xf32>
    tpu.vector_store %arg16[%c10_209, %c0_210], %716 {strides = array<i32>} : memref<20x32xf32, #tpu.memory_space<vmem>>, vector<2x32xf32>,
    %718 = vector.extract_strided_slice %660 {offsets = [8, 0, 0], sizes = [2, 8, 32], strides = [1, 1, 1]} : vector<20x8x32xf32> to vector<2x8x32xf32>
    %719 = arith.mulf %718, %711 : vector<2x8x32xf32>
    %720 = vector.extract_strided_slice %666 {offsets = [8, 0, 0], sizes = [2, 8, 32], strides = [1, 1, 1]} : vector<20x8x32xf32> to vector<2x8x32xf32>
    %721 = arith.addf %719, %720 : vector<2x8x32xf32>
    %722 = vector.extract_strided_slice %654 {offsets = [8, 0], sizes = [2, 8], strides = [1, 1]} : vector<20x8xf32> to vector<2x8xf32>
    %723 = vector.shape_cast %722 : vector<2x8xf32> to vector<2x8x1xf32>
    %724 = vector.broadcast %723 : vector<2x8x1xf32> to vector<2x8x32xf32>
    %725 = arith.mulf %721, %724 : vector<2x8x32xf32>
    %cst_211 = arith.constant dense<0.000000e+00> : vector<2x32xf32>
    %726 = vector.multi_reduction <add>, %725, %cst_211 [1] : vector<2x8x32xf32> to vector<2x32xf32>
    %c8_212 = arith.constant 8 : index
    %c0_213 = arith.constant 0 : index
    %727 = vector.load %arg16[%c8_212, %c0_213] : memref<20x32xf32, #tpu.memory_space<vmem>>, vector<2x32xf32>
    tpu.vector_store %arg16[%c8_212, %c0_213], %726 {strides = array<i32>} : memref<20x32xf32, #tpu.memory_space<vmem>>, vector<2x32xf32>,
    %728 = vector.extract_strided_slice %660 {offsets = [6, 0, 0], sizes = [2, 8, 32], strides = [1, 1, 1]} : vector<20x8x32xf32> to vector<2x8x32xf32>
    %729 = arith.mulf %728, %721 : vector<2x8x32xf32>
    %730 = vector.extract_strided_slice %666 {offsets = [6, 0, 0], sizes = [2, 8, 32], strides = [1, 1, 1]} : vector<20x8x32xf32> to vector<2x8x32xf32>
    %731 = arith.addf %729, %730 : vector<2x8x32xf32>
    %732 = vector.extract_strided_slice %654 {offsets = [6, 0], sizes = [2, 8], strides = [1, 1]} : vector<20x8xf32> to vector<2x8xf32>
    %733 = vector.shape_cast %732 : vector<2x8xf32> to vector<2x8x1xf32>
    %734 = vector.broadcast %733 : vector<2x8x1xf32> to vector<2x8x32xf32>
    %735 = arith.mulf %731, %734 : vector<2x8x32xf32>
    %cst_214 = arith.constant dense<0.000000e+00> : vector<2x32xf32>
    %736 = vector.multi_reduction <add>, %735, %cst_214 [1] : vector<2x8x32xf32> to vector<2x32xf32>
    %c6_215 = arith.constant 6 : index
    %c0_216 = arith.constant 0 : index
    %737 = vector.load %arg16[%c6_215, %c0_216] : memref<20x32xf32, #tpu.memory_space<vmem>>, vector<2x32xf32>
    tpu.vector_store %arg16[%c6_215, %c0_216], %736 {strides = array<i32>} : memref<20x32xf32, #tpu.memory_space<vmem>>, vector<2x32xf32>,
    %738 = vector.extract_strided_slice %660 {offsets = [4, 0, 0], sizes = [2, 8, 32], strides = [1, 1, 1]} : vector<20x8x32xf32> to vector<2x8x32xf32>
    %739 = arith.mulf %738, %731 : vector<2x8x32xf32>
    %740 = vector.extract_strided_slice %666 {offsets = [4, 0, 0], sizes = [2, 8, 32], strides = [1, 1, 1]} : vector<20x8x32xf32> to vector<2x8x32xf32>
    %741 = arith.addf %739, %740 : vector<2x8x32xf32>
    %742 = vector.extract_strided_slice %654 {offsets = [4, 0], sizes = [2, 8], strides = [1, 1]} : vector<20x8xf32> to vector<2x8xf32>
    %743 = vector.shape_cast %742 : vector<2x8xf32> to vector<2x8x1xf32>
    %744 = vector.broadcast %743 : vector<2x8x1xf32> to vector<2x8x32xf32>
    %745 = arith.mulf %741, %744 : vector<2x8x32xf32>
    %cst_217 = arith.constant dense<0.000000e+00> : vector<2x32xf32>
    %746 = vector.multi_reduction <add>, %745, %cst_217 [1] : vector<2x8x32xf32> to vector<2x32xf32>
    %c4_218 = arith.constant 4 : index
    %c0_219 = arith.constant 0 : index
    %747 = vector.load %arg16[%c4_218, %c0_219] : memref<20x32xf32, #tpu.memory_space<vmem>>, vector<2x32xf32>
    tpu.vector_store %arg16[%c4_218, %c0_219], %746 {strides = array<i32>} : memref<20x32xf32, #tpu.memory_space<vmem>>, vector<2x32xf32>,
    %748 = vector.extract_strided_slice %660 {offsets = [2, 0, 0], sizes = [2, 8, 32], strides = [1, 1, 1]} : vector<20x8x32xf32> to vector<2x8x32xf32>
    %749 = arith.mulf %748, %741 : vector<2x8x32xf32>
    %750 = vector.extract_strided_slice %666 {offsets = [2, 0, 0], sizes = [2, 8, 32], strides = [1, 1, 1]} : vector<20x8x32xf32> to vector<2x8x32xf32>
    %751 = arith.addf %749, %750 : vector<2x8x32xf32>
    %752 = vector.extract_strided_slice %654 {offsets = [2, 0], sizes = [2, 8], strides = [1, 1]} : vector<20x8xf32> to vector<2x8xf32>
    %753 = vector.shape_cast %752 : vector<2x8xf32> to vector<2x8x1xf32>
    %754 = vector.broadcast %753 : vector<2x8x1xf32> to vector<2x8x32xf32>
    %755 = arith.mulf %751, %754 : vector<2x8x32xf32>
    %cst_220 = arith.constant dense<0.000000e+00> : vector<2x32xf32>
    %756 = vector.multi_reduction <add>, %755, %cst_220 [1] : vector<2x8x32xf32> to vector<2x32xf32>
    %c2_221 = arith.constant 2 : index
    %c0_222 = arith.constant 0 : index
    %757 = vector.load %arg16[%c2_221, %c0_222] : memref<20x32xf32, #tpu.memory_space<vmem>>, vector<2x32xf32>
    tpu.vector_store %arg16[%c2_221, %c0_222], %756 {strides = array<i32>} : memref<20x32xf32, #tpu.memory_space<vmem>>, vector<2x32xf32>,
    %758 = vector.extract_strided_slice %660 {offsets = [0, 0, 0], sizes = [2, 8, 32], strides = [1, 1, 1]} : vector<20x8x32xf32> to vector<2x8x32xf32>
    %759 = arith.mulf %758, %751 : vector<2x8x32xf32>
    %760 = vector.extract_strided_slice %666 {offsets = [0, 0, 0], sizes = [2, 8, 32], strides = [1, 1, 1]} : vector<20x8x32xf32> to vector<2x8x32xf32>
    %761 = arith.addf %759, %760 : vector<2x8x32xf32>
    %762 = vector.extract_strided_slice %654 {offsets = [0, 0], sizes = [2, 8], strides = [1, 1]} : vector<20x8xf32> to vector<2x8xf32>
    %763 = vector.shape_cast %762 : vector<2x8xf32> to vector<2x8x1xf32>
    %764 = vector.broadcast %763 : vector<2x8x1xf32> to vector<2x8x32xf32>
    %765 = arith.mulf %761, %764 : vector<2x8x32xf32>
    %cst_223 = arith.constant dense<0.000000e+00> : vector<2x32xf32>
    %766 = vector.multi_reduction <add>, %765, %cst_223 [1] : vector<2x8x32xf32> to vector<2x32xf32>
    %c0_224 = arith.constant 0 : index
    %c0_225 = arith.constant 0 : index
    %767 = vector.load %arg16[%c0_224, %c0_225] : memref<20x32xf32, #tpu.memory_space<vmem>>, vector<2x32xf32>
    tpu.vector_store %arg16[%c0_224, %c0_225], %766 {strides = array<i32>} : memref<20x32xf32, #tpu.memory_space<vmem>>, vector<2x32xf32>,
    %c0_226 = arith.constant 0 : index
    %c0_227 = arith.constant 0 : index
    %768 = vector.load %arg16[%c0_226, %c0_227] : memref<20x32xf32, #tpu.memory_space<vmem>>, vector<20x32xf32>
    %769 = vector.broadcast %620 : vector<1x32xf32> to vector<20x32xf32>
    %770 = arith.mulf %769, %634 : vector<20x32xf32>
    %771 = arith.addf %768, %770 : vector<20x32xf32>
    %772 = arith.negf %609 : vector<20x32xf32>
    %773 = math.exp %772 : vector<20x32xf32>
    %cst_228 = arith.constant 1.000000e+00 : f32
    %774 = vector.broadcast %cst_228 : f32 to vector<20x32xf32>
    %775 = arith.addf %774, %773 : vector<20x32xf32>
    %776 = arith.divf %774, %775 : vector<20x32xf32>
    %777 = arith.mulf %609, %776 : vector<20x32xf32>
    %778 = arith.mulf %771, %777 : vector<20x32xf32>
    %779 = tpu.concatenate %607, %778 in 1 : vector<20x32xf32>, vector<20x32xf32> -> vector<20x64xf32>
    %c1_229 = arith.constant 1 : index
    %c0_230 = arith.constant 0 : index
    %c0_231 = arith.constant 0 : index
    %780 = vector.load %arg9[%c1_229, %c0_230, %c0_231] : memref<2x64x32xf32, #tpu.memory_space<vmem>>, vector<1x64x32xf32>
    %781 = vector.shape_cast %780 : vector<1x64x32xf32> to vector<64x32xf32>
    %cst_232 = arith.constant dense<0.000000e+00> : vector<20x32xf32>
    %782 = tpu.matmul %779, %781, %cst_232 {dimension_numbers = #tpu.dot_dimension_numbers<[1], [0], [0], [1], [0, 0, 1, 1], [], []>} : vector<20x64xf32>, vector<64x32xf32>, vector<20x32xf32> -> vector<20x32xf32>
    %c1_233 = arith.constant 1 : index
    %c0_234 = arith.constant 0 : index
    %c0_235 = arith.constant 0 : index
    %783 = vector.load %arg13[%c1_233, %c0_234, %c0_235] : memref<2x5x32xf32, #tpu.memory_space<vmem>>, vector<1x5x32xf32>
    %784 = vector.shape_cast %783 : vector<1x5x32xf32> to vector<5x32xf32>
    %785 = arith.addf %433, %782 : vector<20x32xf32>
    %786 = vector.extract_strided_slice %784 {offsets = [0, 0], sizes = [1, 32], strides = [1, 1]} : vector<5x32xf32> to vector<1x32xf32>
    %787 = vector.extract_strided_slice %784 {offsets = [1, 0], sizes = [1, 32], strides = [1, 1]} : vector<5x32xf32> to vector<1x32xf32>
    %cst_236 = arith.constant dense<0.000000e+00> : vector<20xf32>
    %788 = vector.multi_reduction <add>, %785, %cst_236 [1] : vector<20x32xf32> to vector<20xf32>
    %789 = vector.shape_cast %788 : vector<20xf32> to vector<20x1xf32>
    %cst_237 = arith.constant 3.200000e+01 : f32
    %790 = vector.broadcast %cst_237 : f32 to vector<20x1xf32>
    %791 = arith.divf %789, %790 : vector<20x1xf32>
    %792 = vector.broadcast %791 : vector<20x1xf32> to vector<20x32xf32>
    %793 = arith.subf %785, %792 : vector<20x32xf32>
    %794 = arith.mulf %793, %793 : vector<20x32xf32>
    %cst_238 = arith.constant dense<0.000000e+00> : vector<20xf32>
    %795 = vector.multi_reduction <add>, %794, %cst_238 [1] : vector<20x32xf32> to vector<20xf32>
    %796 = vector.shape_cast %795 : vector<20xf32> to vector<20x1xf32>
    %cst_239 = arith.constant 3.200000e+01 : f32
    %797 = vector.broadcast %cst_239 : f32 to vector<20x1xf32>
    %798 = arith.divf %796, %797 : vector<20x1xf32>
    %cst_240 = arith.constant 9.99999974E-6 : f32
    %799 = vector.broadcast %cst_240 : f32 to vector<20x1xf32>
    %800 = arith.addf %798, %799 : vector<20x1xf32>
    %801 = math.rsqrt %800 : vector<20x1xf32>
    %802 = vector.broadcast %801 : vector<20x1xf32> to vector<20x32xf32>
    %803 = arith.mulf %793, %802 : vector<20x32xf32>
    %804 = vector.broadcast %786 : vector<1x32xf32> to vector<20x32xf32>
    %805 = arith.mulf %803, %804 : vector<20x32xf32>
    %806 = vector.broadcast %787 : vector<1x32xf32> to vector<20x32xf32>
    %807 = arith.addf %805, %806 : vector<20x32xf32>
    %c1_241 = arith.constant 1 : index
    %c0_242 = arith.constant 0 : index
    %c0_243 = arith.constant 0 : index
    %808 = vector.load %arg11[%c1_241, %c0_242, %c0_243] : memref<2x32x32xf32, #tpu.memory_space<vmem>>, vector<1x32x32xf32>
    %809 = vector.shape_cast %808 : vector<1x32x32xf32> to vector<32x32xf32>
    %cst_244 = arith.constant dense<0.000000e+00> : vector<20x32xf32>
    %810 = tpu.matmul %807, %809, %cst_244 {dimension_numbers = #tpu.dot_dimension_numbers<[1], [0], [0], [1], [0, 0, 1, 1], [], []>} : vector<20x32xf32>, vector<32x32xf32>, vector<20x32xf32> -> vector<20x32xf32>
    %c1_245 = arith.constant 1 : index
    %c0_246 = arith.constant 0 : index
    %c0_247 = arith.constant 0 : index
    %811 = vector.load %arg14[%c1_245, %c0_246, %c0_247] : memref<2x1x32xf32, #tpu.memory_space<vmem>>, vector<1x1x32xf32>
    %812 = vector.shape_cast %811 : vector<1x1x32xf32> to vector<1x32xf32>
    %813 = vector.broadcast %812 : vector<1x32xf32> to vector<20x32xf32>
    %814 = arith.addf %810, %813 : vector<20x32xf32>
    %cst_248 = arith.constant 0.000000e+00 : f32
    %815 = vector.broadcast %cst_248 : f32 to vector<20x32xf32>
    %816 = arith.maximumf %814, %815 : vector<20x32xf32>
    %c1_249 = arith.constant 1 : index
    %c0_250 = arith.constant 0 : index
    %c0_251 = arith.constant 0 : index
    %817 = vector.load %arg12[%c1_249, %c0_250, %c0_251] : memref<2x32x32xf32, #tpu.memory_space<vmem>>, vector<1x32x32xf32>
    %818 = vector.shape_cast %817 : vector<1x32x32xf32> to vector<32x32xf32>
    %cst_252 = arith.constant dense<0.000000e+00> : vector<20x32xf32>
    %819 = tpu.matmul %816, %818, %cst_252 {dimension_numbers = #tpu.dot_dimension_numbers<[1], [0], [0], [1], [0, 0, 1, 1], [], []>} : vector<20x32xf32>, vector<32x32xf32>, vector<20x32xf32> -> vector<20x32xf32>
    %820 = vector.extract_strided_slice %784 {offsets = [4, 0], sizes = [1, 32], strides = [1, 1]} : vector<5x32xf32> to vector<1x32xf32>
    %821 = vector.broadcast %820 : vector<1x32xf32> to vector<20x32xf32>
    %822 = arith.addf %819, %821 : vector<20x32xf32>
    %823 = arith.addf %807, %822 : vector<20x32xf32>
    %824 = vector.extract_strided_slice %784 {offsets = [2, 0], sizes = [1, 32], strides = [1, 1]} : vector<5x32xf32> to vector<1x32xf32>
    %825 = vector.extract_strided_slice %784 {offsets = [3, 0], sizes = [1, 32], strides = [1, 1]} : vector<5x32xf32> to vector<1x32xf32>
    %cst_253 = arith.constant dense<0.000000e+00> : vector<20xf32>
    %826 = vector.multi_reduction <add>, %823, %cst_253 [1] : vector<20x32xf32> to vector<20xf32>
    %827 = vector.shape_cast %826 : vector<20xf32> to vector<20x1xf32>
    %cst_254 = arith.constant 3.200000e+01 : f32
    %828 = vector.broadcast %cst_254 : f32 to vector<20x1xf32>
    %829 = arith.divf %827, %828 : vector<20x1xf32>
    %830 = vector.broadcast %829 : vector<20x1xf32> to vector<20x32xf32>
    %831 = arith.subf %823, %830 : vector<20x32xf32>
    %832 = arith.mulf %831, %831 : vector<20x32xf32>
    %cst_255 = arith.constant dense<0.000000e+00> : vector<20xf32>
    %833 = vector.multi_reduction <add>, %832, %cst_255 [1] : vector<20x32xf32> to vector<20xf32>
    %834 = vector.shape_cast %833 : vector<20xf32> to vector<20x1xf32>
    %cst_256 = arith.constant 3.200000e+01 : f32
    %835 = vector.broadcast %cst_256 : f32 to vector<20x1xf32>
    %836 = arith.divf %834, %835 : vector<20x1xf32>
    %cst_257 = arith.constant 9.99999974E-6 : f32
    %837 = vector.broadcast %cst_257 : f32 to vector<20x1xf32>
    %838 = arith.addf %836, %837 : vector<20x1xf32>
    %839 = math.rsqrt %838 : vector<20x1xf32>
    %840 = vector.broadcast %839 : vector<20x1xf32> to vector<20x32xf32>
    %841 = arith.mulf %831, %840 : vector<20x32xf32>
    %842 = vector.broadcast %824 : vector<1x32xf32> to vector<20x32xf32>
    %843 = arith.mulf %841, %842 : vector<20x32xf32>
    %844 = vector.broadcast %825 : vector<1x32xf32> to vector<20x32xf32>
    %845 = arith.addf %843, %844 : vector<20x32xf32>
    %846 = vector.extract_strided_slice %14 {offsets = [1, 0], sizes = [1, 32], strides = [1, 1]} : vector<3x32xf32> to vector<1x32xf32>
    %847 = vector.extract_strided_slice %14 {offsets = [2, 0], sizes = [1, 32], strides = [1, 1]} : vector<3x32xf32> to vector<1x32xf32>
    %cst_258 = arith.constant dense<0.000000e+00> : vector<20xf32>
    %848 = vector.multi_reduction <add>, %845, %cst_258 [1] : vector<20x32xf32> to vector<20xf32>
    %849 = vector.shape_cast %848 : vector<20xf32> to vector<20x1xf32>
    %cst_259 = arith.constant 3.200000e+01 : f32
    %850 = vector.broadcast %cst_259 : f32 to vector<20x1xf32>
    %851 = arith.divf %849, %850 : vector<20x1xf32>
    %852 = vector.broadcast %851 : vector<20x1xf32> to vector<20x32xf32>
    %853 = arith.subf %845, %852 : vector<20x32xf32>
    %854 = arith.mulf %853, %853 : vector<20x32xf32>
    %cst_260 = arith.constant dense<0.000000e+00> : vector<20xf32>
    %855 = vector.multi_reduction <add>, %854, %cst_260 [1] : vector<20x32xf32> to vector<20xf32>
    %856 = vector.shape_cast %855 : vector<20xf32> to vector<20x1xf32>
    %cst_261 = arith.constant 3.200000e+01 : f32
    %857 = vector.broadcast %cst_261 : f32 to vector<20x1xf32>
    %858 = arith.divf %856, %857 : vector<20x1xf32>
    %cst_262 = arith.constant 9.99999974E-6 : f32
    %859 = vector.broadcast %cst_262 : f32 to vector<20x1xf32>
    %860 = arith.addf %858, %859 : vector<20x1xf32>
    %861 = math.rsqrt %860 : vector<20x1xf32>
    %862 = vector.broadcast %861 : vector<20x1xf32> to vector<20x32xf32>
    %863 = arith.mulf %853, %862 : vector<20x32xf32>
    %864 = vector.broadcast %846 : vector<1x32xf32> to vector<20x32xf32>
    %865 = arith.mulf %863, %864 : vector<20x32xf32>
    %866 = vector.broadcast %847 : vector<1x32xf32> to vector<20x32xf32>
    %867 = arith.addf %865, %866 : vector<20x32xf32>
    %c0_263 = arith.constant 0 : index
    %c0_264 = arith.constant 0 : index
    %868 = vector.load %arg4[%c0_263, %c0_264] : memref<32x4xf32, #tpu.memory_space<vmem>>, vector<32x4xf32>
    %cst_265 = arith.constant dense<0.000000e+00> : vector<20x4xf32>
    %869 = tpu.matmul %867, %868, %cst_265 {dimension_numbers = #tpu.dot_dimension_numbers<[1], [0], [0], [1], [0, 0, 1, 1], [], []>} : vector<20x32xf32>, vector<32x4xf32>, vector<20x4xf32> -> vector<20x4xf32>
    %c0_266 = arith.constant 0 : index
    %c0_267 = arith.constant 0 : index
    %870 = vector.load %arg5[%c0_266, %c0_267] : memref<1x4xf32, #tpu.memory_space<vmem>>, vector<1x4xf32>
    %871 = vector.broadcast %870 : vector<1x4xf32> to vector<20x4xf32>
    %872 = arith.addf %869, %871 : vector<20x4xf32>
    %c0_268 = arith.constant 0 : index
    %c0_269 = arith.constant 0 : index
    %c0_270 = arith.constant 0 : index
    %873 = vector.load %arg15[%c0_268, %c0_269, %c0_270] : memref<1x20x4xf32, #tpu.memory_space<vmem>>, vector<1x20x4xf32>
    %874 = vector.shape_cast %873 : vector<1x20x4xf32> to vector<20x4xf32>
    %875 = vector.shape_cast %872 : vector<20x4xf32> to vector<1x20x4xf32>
    tpu.vector_store %arg15[%c0_268, %c0_269, %c0_270], %875 {strides = array<i32>} : memref<1x20x4xf32, #tpu.memory_space<vmem>>, vector<1x20x4xf32>,
    return
  }
  func.func @transform_0(%arg0: i32) -> (i32, i32, i32) {
    %c0_i32 = arith.constant 0 : i32
    %c0_i32_0 = arith.constant 0 : i32
    %c0_i32_1 = arith.constant 0 : i32
    return %arg0, %c0_i32, %c0_i32_0 : i32, i32, i32
  }
  func.func @transform_1(%arg0: i32) -> (i32, i32) {
    %c0_i32 = arith.constant 0 : i32
    %c0_i32_0 = arith.constant 0 : i32
    %c0_i32_1 = arith.constant 0 : i32
    return %c0_i32, %c0_i32_0 : i32, i32
  }
  func.func @transform_2(%arg0: i32) -> (i32, i32) {
    %c0_i32 = arith.constant 0 : i32
    %c0_i32_0 = arith.constant 0 : i32
    %c0_i32_1 = arith.constant 0 : i32
    return %c0_i32, %c0_i32_0 : i32, i32
  }
  func.func @transform_3(%arg0: i32) -> (i32, i32) {
    %c0_i32 = arith.constant 0 : i32
    %c0_i32_0 = arith.constant 0 : i32
    %c0_i32_1 = arith.constant 0 : i32
    return %c0_i32, %c0_i32_0 : i32, i32
  }
  func.func @transform_4(%arg0: i32) -> (i32, i32) {
    %c0_i32 = arith.constant 0 : i32
    %c0_i32_0 = arith.constant 0 : i32
    %c0_i32_1 = arith.constant 0 : i32
    return %c0_i32, %c0_i32_0 : i32, i32
  }
  func.func @transform_5(%arg0: i32) -> (i32, i32, i32) {
    %c0_i32 = arith.constant 0 : i32
    %c0_i32_0 = arith.constant 0 : i32
    %c0_i32_1 = arith.constant 0 : i32
    %c0_i32_2 = arith.constant 0 : i32
    return %c0_i32, %c0_i32_0, %c0_i32_1 : i32, i32, i32
  }
  func.func @transform_6(%arg0: i32) -> (i32, i32, i32) {
    %c0_i32 = arith.constant 0 : i32
    %c0_i32_0 = arith.constant 0 : i32
    %c0_i32_1 = arith.constant 0 : i32
    %c0_i32_2 = arith.constant 0 : i32
    return %c0_i32, %c0_i32_0, %c0_i32_1 : i32, i32, i32
  }
  func.func @transform_7(%arg0: i32) -> (i32, i32, i32) {
    %c0_i32 = arith.constant 0 : i32
    %c0_i32_0 = arith.constant 0 : i32
    %c0_i32_1 = arith.constant 0 : i32
    %c0_i32_2 = arith.constant 0 : i32
    return %c0_i32, %c0_i32_0, %c0_i32_1 : i32, i32, i32
  }
  func.func @transform_8(%arg0: i32) -> (i32, i32, i32) {
    %c0_i32 = arith.constant 0 : i32
    %c0_i32_0 = arith.constant 0 : i32
    %c0_i32_1 = arith.constant 0 : i32
    %c0_i32_2 = arith.constant 0 : i32
    return %c0_i32, %c0_i32_0, %c0_i32_1 : i32, i32, i32
  }
  func.func @transform_9(%arg0: i32) -> (i32, i32, i32) {
    %c0_i32 = arith.constant 0 : i32
    %c0_i32_0 = arith.constant 0 : i32
    %c0_i32_1 = arith.constant 0 : i32
    %c0_i32_2 = arith.constant 0 : i32
    return %c0_i32, %c0_i32_0, %c0_i32_1 : i32, i32, i32
  }
  func.func @transform_10(%arg0: i32) -> (i32, i32, i32) {
    %c0_i32 = arith.constant 0 : i32
    %c0_i32_0 = arith.constant 0 : i32
    %c0_i32_1 = arith.constant 0 : i32
    %c0_i32_2 = arith.constant 0 : i32
    return %c0_i32, %c0_i32_0, %c0_i32_1 : i32, i32, i32
  }
  func.func @transform_11(%arg0: i32) -> (i32, i32, i32) {
    %c0_i32 = arith.constant 0 : i32
    %c0_i32_0 = arith.constant 0 : i32
    %c0_i32_1 = arith.constant 0 : i32
    %c0_i32_2 = arith.constant 0 : i32
    return %c0_i32, %c0_i32_0, %c0_i32_1 : i32, i32, i32
  }
  func.func @transform_12(%arg0: i32) -> (i32, i32, i32) {
    %c0_i32 = arith.constant 0 : i32
    %c0_i32_0 = arith.constant 0 : i32
    %c0_i32_1 = arith.constant 0 : i32
    %c0_i32_2 = arith.constant 0 : i32
    return %c0_i32, %c0_i32_0, %c0_i32_1 : i32, i32, i32
  }
  func.func @transform_13(%arg0: i32) -> (i32, i32, i32) {
    %c0_i32 = arith.constant 0 : i32
    %c0_i32_0 = arith.constant 0 : i32
    %c0_i32_1 = arith.constant 0 : i32
    %c0_i32_2 = arith.constant 0 : i32
    return %c0_i32, %c0_i32_0, %c0_i32_1 : i32, i32, i32
  }
  func.func @transform_14(%arg0: i32) -> (i32, i32, i32) {
    %c0_i32 = arith.constant 0 : i32
    %c0_i32_0 = arith.constant 0 : i32
    %c0_i32_1 = arith.constant 0 : i32
    return %arg0, %c0_i32, %c0_i32_0 : i32, i32, i32
  }
}

</mosaic_0001>

<llo_original>
// kernel: model_forward.1
$region0: #{model_forward.1}
  #allocation0 [shape = 'u32[]', space=smem, size = 0x4, offset = 0x4, fixed_abs, tag = 'smem constant byte address 0x4 - core index']
  #allocation1 [shape = 'u32[144,128]{1,0:T(1,128)}', space=vmem, size = 0x12000, scoped, tag = 'internal scratch']
  #allocation2 [shape = 'f32[20,32]{1,0:T(8,128)}', space=vmem, size = 0x3000, scoped, tag = 'scratch operand']
  %s0 = inlined_call_operand.hbm [shape: f32[1,20,8], index: 0, kind: input, shape index: {}]
  %s1 = inlined_call_operand.hbm [shape: f32[8,32], index: 1, kind: input, shape index: {}]
  %s2 = inlined_call_operand.hbm [shape: f32[3,32], index: 2, kind: input, shape index: {}]
  %s3 = inlined_call_operand.hbm [shape: f32[32,4], index: 3, kind: input, shape index: {}]
  %s4 = inlined_call_operand.hbm [shape: f32[1,4], index: 4, kind: input, shape index: {}]
  %s5 = inlined_call_operand.hbm [shape: f32[2,32,128], index: 5, kind: input, shape index: {}]
  %s6 = inlined_call_operand.hbm [shape: f32[4,32,48], index: 6, kind: input, shape index: {}]
  %s7 = inlined_call_operand.hbm [shape: f32[4,8,32], index: 7, kind: input, shape index: {}]
  %s8 = inlined_call_operand.hbm [shape: f32[2,64,32], index: 8, kind: input, shape index: {}]
  %s9 = inlined_call_operand.hbm [shape: f32[4,5,32], index: 9, kind: input, shape index: {}]
  %s10 = inlined_call_operand.hbm [shape: f32[2,32,32], index: 10, kind: input, shape index: {}]
  %s11 = inlined_call_operand.hbm [shape: f32[2,32,32], index: 11, kind: input, shape index: {}]
  %s12 = inlined_call_operand.hbm [shape: f32[2,5,32], index: 12, kind: input, shape index: {}]
  %s13 = inlined_call_operand.hbm [shape: f32[2,1,32], index: 13, kind: input, shape index: {}]
  %s14 = inlined_call_operand.hbm [shape: f32[1,20,4], index: 14, kind: output, shape index: {}]
  %s15 = sld [smem:[#allocation0]]
  $region122: #{model_forward.1} parent=0
    _
  %s17 = ssub.s32 1, %s15
  %s18 = scalar_select 0, %s17, %s15
  $region1: #{model_forward.1} parent=0
    #allocation3 [shape = 'u8[12288]{0}', space=vmem, size = 0x3000, scoped, tag = 'input window, operand 0, single buffered']
    #allocation4 [shape = 's32[1]{0}', space=sflag, size = 0x4, scoped, tag = 'scoped memory for model_forward.1']
    #allocation5 [shape = 's32[1]{0}', space=sflag, size = 0x4, scoped, tag = 'scoped memory for model_forward.1']
    #allocation6 [shape = 'u8[4096]{0}', space=vmem, size = 0x1000, scoped, tag = 'input window, operand 1, single buffered']
    #allocation7 [shape = 's32[1]{0}', space=sflag, size = 0x4, scoped, tag = 'scoped memory for model_forward.1']
    #allocation8 [shape = 'u8[2048]{0}', space=vmem, size = 0x800, scoped, tag = 'input window, operand 2, single buffered']
    #allocation9 [shape = 'u8[16384]{0}', space=vmem, size = 0x4000, scoped, tag = 'input window, operand 3, single buffered']
    #allocation10 [shape = 's32[1]{0}', space=sflag, size = 0x4, scoped, tag = 'scoped memory for model_forward.1']
    #allocation11 [shape = 'u8[512]{0}', space=vmem, size = 0x400, scoped, tag = 'input window, operand 4, single buffered']
    #allocation12 [shape = 'u8[32768]{0}', space=vmem, size = 0x8000, scoped, tag = 'input window, operand 5, single buffered']
    #allocation13 [shape = 's32[1]{0}', space=sflag, size = 0x4, scoped, tag = 'scoped memory for model_forward.1']
    #allocation14 [shape = 'u8[65536]{0}', space=vmem, size = 0x10000, scoped, tag = 'input window, operand 6, single buffered']
    #allocation15 [shape = 'u8[16384]{0}', space=vmem, size = 0x4000, scoped, tag = 'input window, operand 7, single buffered']
    #allocation16 [shape = 's32[1]{0}', space=sflag, size = 0x4, scoped, tag = 'scoped memory for model_forward.1']
    #allocation17 [shape = 'u8[65536]{0}', space=vmem, size = 0x10000, scoped, tag = 'input window, operand 8, single buffered']
    #allocation18 [shape = 'u8[16384]{0}', space=vmem, size = 0x4000, scoped, tag = 'input window, operand 9, single buffered']
    #allocation19 [shape = 's32[1]{0}', space=sflag, size = 0x4, scoped, tag = 'scoped memory for model_forward.1']
    #allocation20 [shape = 'u8[32768]{0}', space=vmem, size = 0x8000, scoped, tag = 'input window, operand 10, single buffered']
    #allocation21 [shape = 'u8[32768]{0}', space=vmem, size = 0x8000, scoped, tag = 'input window, operand 11, single buffered']
    #allocation22 [shape = 's32[1]{0}', space=sflag, size = 0x4, scoped, tag = 'scoped memory for model_forward.1']
    #allocation23 [shape = 'u8[8192]{0}', space=vmem, size = 0x2000, scoped, tag = 'input window, operand 12, single buffered']
    #allocation24 [shape = 'u8[1024]{0}', space=vmem, size = 0x400, scoped, tag = 'input window, operand 13, single buffered']
    #allocation25 [shape = 's32[1]{0}', space=sflag, size = 0x4, scoped, tag = 'scoped memory for model_forward.1']
    #allocation26 [shape = 'u8[12288]{0}', space=vmem, size = 0x3000, scoped, tag = 'output window, operand 0, single buffered']
    %19 = vsyncpa [#allocation4], 0
    %20 = vsyncpa [#allocation7], 0
    %21 = vsyncpa [#allocation10], 0
    %22 = vsyncpa [#allocation13], 0
    %23 = vsyncpa [#allocation16], 0
    %24 = vsyncpa [#allocation19], 0
    %25 = vsyncpa [#allocation22], 0
    %26 = vsyncpa [#allocation25], 0
    %27 = vsyncpa [#allocation5], 0
    // Predicated region
    $region2: #{model_forward.1} parent=1 // pred_check
      _
    $region3: #{model_forward.1} parent=1 // pred_check_branch
      %29 = sbr.rel (0) target = $region5
    $region4: #{model_forward.1} parent=1 // pred_region
      %s31 = ssub.s32 384, 384
      %32 = vsyncadd [#allocation4], %s31
      %s33 = sshll.u32 [#allocation3], 4
      %s34 = int_to_ptr.vmem [resolvable:$true] %s33
      %39 = dma.hbm_to_vmem [thread:$0]  %s0, 384, %s34, [#allocation4], 128, 128, 8
    $region5: #{model_forward.1} parent=1 // pred_fallthru
      _
    // Predicated region
    $region6: #{model_forward.1} parent=1 // pred_check
      _
    $region7: #{model_forward.1} parent=1 // pred_check_branch
      %41 = sbr.rel (0) target = $region9
    $region8: #{model_forward.1} parent=1 // pred_region
      %s43 = ssub.s32 128, 128
      %44 = vsyncadd [#allocation7], %s43
      %s46 = sshll.u32 [#allocation6], 4
      %s47 = int_to_ptr.vmem [resolvable:$true] %s46
      %49 = dma.hbm_to_vmem [thread:$0]  %s1, 128, %s47, [#allocation7]
    $region9: #{model_forward.1} parent=1 // pred_fallthru
      _
    // Predicated region
    $region10: #{model_forward.1} parent=1 // pred_check
      _
    $region11: #{model_forward.1} parent=1 // pred_check_branch
      %51 = sbr.rel (0) target = $region13
    $region12: #{model_forward.1} parent=1 // pred_region
      %s53 = ssub.s32 64, 64
      %54 = vsyncadd [#allocation7], %s53
      %s56 = sshll.u32 [#allocation8], 4
      %s57 = int_to_ptr.vmem [resolvable:$true] %s56
      %59 = dma.hbm_to_vmem [thread:$0]  %s2, 64, %s57, [#allocation7]
    $region13: #{model_forward.1} parent=1 // pred_fallthru
      _
    // Predicated region
    $region14: #{model_forward.1} parent=1 // pred_check
      _
    $region15: #{model_forward.1} parent=1 // pred_check_branch
      %61 = sbr.rel (0) target = $region17
    $region16: #{model_forward.1} parent=1 // pred_region
      %s63 = ssub.s32 512, 512
      %64 = vsyncadd [#allocation10], %s63
      %s65 = sshll.u32 [#allocation9], 4
      %s66 = int_to_ptr.vmem [resolvable:$true] %s65
      %71 = dma.hbm_to_vmem [thread:$0]  %s3, 512, %s66, [#allocation10], 128, 128, 8
    $region17: #{model_forward.1} parent=1 // pred_fallthru
      _
    // Predicated region
    $region18: #{model_forward.1} parent=1 // pred_check
      _
    $region19: #{model_forward.1} parent=1 // pred_check_branch
      %73 = sbr.rel (0) target = $region21
    $region20: #{model_forward.1} parent=1 // pred_region
      %s75 = ssub.s32 16, 16
      %76 = vsyncadd [#allocation10], %s75
      %s78 = sshll.u32 [#allocation11], 4
      %s79 = int_to_ptr.vmem [resolvable:$true] %s78
      %81 = dma.hbm_to_vmem [thread:$0]  %s4, 16, %s79, [#allocation10]
    $region21: #{model_forward.1} parent=1 // pred_fallthru
      _
    // Predicated region
    $region22: #{model_forward.1} parent=1 // pred_check
      _
    $region23: #{model_forward.1} parent=1 // pred_check_branch
      %83 = sbr.rel (0) target = $region25
    $region24: #{model_forward.1} parent=1 // pred_region
      %s85 = ssub.s32 1024, 1024
      %86 = vsyncadd [#allocation13], %s85
      %s87 = sshll.u32 [#allocation12], 4
      %s88 = int_to_ptr.vmem [resolvable:$true] %s87
      %93 = dma.hbm_to_vmem [thread:$0]  %s5, 1024, %s88, [#allocation13], 128, 128, 8
    $region25: #{model_forward.1} parent=1 // pred_fallthru
      _
    // Predicated region
    $region26: #{model_forward.1} parent=1 // pred_check
      _
    $region27: #{model_forward.1} parent=1 // pred_check_branch
      %95 = sbr.rel (0) target = $region29
    $region28: #{model_forward.1} parent=1 // pred_region
      %s97 = ssub.s32 2048, 2048
      %98 = vsyncadd [#allocation13], %s97
      %s99 = sshll.u32 [#allocation14], 4
      %s100 = int_to_ptr.vmem [resolvable:$true] %s99
      %105 = dma.hbm_to_vmem [thread:$0]  %s6, 2048, %s100, [#allocation13], 128, 128, 8
    $region29: #{model_forward.1} parent=1 // pred_fallthru
      _
    // Predicated region
    $region30: #{model_forward.1} parent=1 // pred_check
      _
    $region31: #{model_forward.1} parent=1 // pred_check_branch
      %107 = sbr.rel (0) target = $region33
    $region32: #{model_forward.1} parent=1 // pred_region
      %s109 = ssub.s32 512, 512
      %110 = vsyncadd [#allocation16], %s109
      %s111 = sshll.u32 [#allocation15], 4
      %s112 = int_to_ptr.vmem [resolvable:$true] %s111
      %117 = dma.hbm_to_vmem [thread:$0]  %s7, 512, %s112, [#allocation16], 128, 128, 8
    $region33: #{model_forward.1} parent=1 // pred_fallthru
      _
    // Predicated region
    $region34: #{model_forward.1} parent=1 // pred_check
      _
    $region35: #{model_forward.1} parent=1 // pred_check_branch
      %119 = sbr.rel (0) target = $region37
    $region36: #{model_forward.1} parent=1 // pred_region
      %s121 = ssub.s32 2048, 2048
      %122 = vsyncadd [#allocation16], %s121
      %s123 = sshll.u32 [#allocation17], 4
      %s124 = int_to_ptr.vmem [resolvable:$true] %s123
      %129 = dma.hbm_to_vmem [thread:$0]  %s8, 2048, %s124, [#allocation16], 128, 128, 8
    $region37: #{model_forward.1} parent=1 // pred_fallthru
      _
    // Predicated region
    $region38: #{model_forward.1} parent=1 // pred_check
      _
    $region39: #{model_forward.1} parent=1 // pred_check_branch
      %131 = sbr.rel (0) target = $region41
    $region40: #{model_forward.1} parent=1 // pred_region
      %s133 = ssub.s32 512, 512
      %134 = vsyncadd [#allocation19], %s133
      %s135 = sshll.u32 [#allocation18], 4
      %s136 = int_to_ptr.vmem [resolvable:$true] %s135
      %141 = dma.hbm_to_vmem [thread:$0]  %s9, 512, %s136, [#allocation19], 128, 128, 8
    $region41: #{model_forward.1} parent=1 // pred_fallthru
      _
    // Predicated region
    $region42: #{model_forward.1} parent=1 // pred_check
      _
    $region43: #{model_forward.1} parent=1 // pred_check_branch
      %143 = sbr.rel (0) target = $region45
    $region44: #{model_forward.1} parent=1 // pred_region
      %s145 = ssub.s32 1024, 1024
      %146 = vsyncadd [#allocation19], %s145
      %s147 = sshll.u32 [#allocation20], 4
      %s148 = int_to_ptr.vmem [resolvable:$true] %s147
      %153 = dma.hbm_to_vmem [thread:$0]  %s10, 1024, %s148, [#allocation19], 128, 128, 8
    $region45: #{model_forward.1} parent=1 // pred_fallthru
      _
    // Predicated region
    $region46: #{model_forward.1} parent=1 // pred_check
      _
    $region47: #{model_forward.1} parent=1 // pred_check_branch
      %155 = sbr.rel (0) target = $region49
    $region48: #{model_forward.1} parent=1 // pred_region
      %s157 = ssub.s32 1024, 1024
      %158 = vsyncadd [#allocation22], %s157
      %s159 = sshll.u32 [#allocation21], 4
      %s160 = int_to_ptr.vmem [resolvable:$true] %s159
      %165 = dma.hbm_to_vmem [thread:$0]  %s11, 1024, %s160, [#allocation22], 128, 128, 8
    $region49: #{model_forward.1} parent=1 // pred_fallthru
      _
    // Predicated region
    $region50: #{model_forward.1} parent=1 // pred_check
      _
    $region51: #{model_forward.1} parent=1 // pred_check_branch
      %167 = sbr.rel (0) target = $region53
    $region52: #{model_forward.1} parent=1 // pred_region
      %s169 = ssub.s32 256, 256
      %170 = vsyncadd [#allocation22], %s169
      %s171 = sshll.u32 [#allocation23], 4
      %s172 = int_to_ptr.vmem [resolvable:$true] %s171
      %177 = dma.hbm_to_vmem [thread:$0]  %s12, 256, %s172, [#allocation22], 128, 128, 8
    $region53: #{model_forward.1} parent=1 // pred_fallthru
      _
    // Predicated region
    $region54: #{model_forward.1} parent=1 // pred_check
      _
    $region55: #{model_forward.1} parent=1 // pred_check_branch
      %179 = sbr.rel (0) target = $region57
    $region56: #{model_forward.1} parent=1 // pred_region
      %s181 = ssub.s32 32, 32
      %182 = vsyncadd [#allocation25], %s181
      %s183 = sshll.u32 [#allocation24], 4
      %s184 = int_to_ptr.vmem [resolvable:$true] %s183
      %189 = dma.hbm_to_vmem [thread:$0]  %s13, 32, %s184, [#allocation25], 16, 16, 1
    $region57: #{model_forward.1} parent=1 // pred_fallthru
      _
    // Predicated region
    $region58: #{model_forward.1} parent=1 // pred_check
      _
    $region59: #{model_forward.1} parent=1 // pred_check_branch
      %191 = sbr.rel (0) target = $region61
    $region60: #{model_forward.1} parent=1 // pred_region
      %192 = dma.done [#allocation4], 384
    $region61: #{model_forward.1} parent=1 // pred_fallthru
      _
    // Predicated region
    $region62: #{model_forward.1} parent=1 // pred_check
      _
    $region63: #{model_forward.1} parent=1 // pred_check_branch
      %194 = sbr.rel (0) target = $region65
    $region64: #{model_forward.1} parent=1 // pred_region
      %195 = dma.done [#allocation7], 128
    $region65: #{model_forward.1} parent=1 // pred_fallthru
      _
    // Predicated region
    $region66: #{model_forward.1} parent=1 // pred_check
      _
    $region67: #{model_forward.1} parent=1 // pred_check_branch
      %197 = sbr.rel (0) target = $region69
    $region68: #{model_forward.1} parent=1 // pred_region
      %198 = dma.done [#allocation7], 64
    $region69: #{model_forward.1} parent=1 // pred_fallthru
      _
    // Predicated region
    $region70: #{model_forward.1} parent=1 // pred_check
      _
    $region71: #{model_forward.1} parent=1 // pred_check_branch
      %200 = sbr.rel (0) target = $region73
    $region72: #{model_forward.1} parent=1 // pred_region
      %201 = dma.done [#allocation10], 512
    $region73: #{model_forward.1} parent=1 // pred_fallthru
      _
    // Predicated region
    $region74: #{model_forward.1} parent=1 // pred_check
      _
    $region75: #{model_forward.1} parent=1 // pred_check_branch
      %203 = sbr.rel (0) target = $region77
    $region76: #{model_forward.1} parent=1 // pred_region
      %204 = dma.done [#allocation10], 16
    $region77: #{model_forward.1} parent=1 // pred_fallthru
      _
    // Predicated region
    $region78: #{model_forward.1} parent=1 // pred_check
      _
    $region79: #{model_forward.1} parent=1 // pred_check_branch
      %206 = sbr.rel (0) target = $region81
    $region80: #{model_forward.1} parent=1 // pred_region
      %207 = dma.done [#allocation13], 1024
    $region81: #{model_forward.1} parent=1 // pred_fallthru
      _
    // Predicated region
    $region82: #{model_forward.1} parent=1 // pred_check
      _
    $region83: #{model_forward.1} parent=1 // pred_check_branch
      %209 = sbr.rel (0) target = $region85
    $region84: #{model_forward.1} parent=1 // pred_region
      %210 = dma.done [#allocation13], 2048
    $region85: #{model_forward.1} parent=1 // pred_fallthru
      _
    // Predicated region
    $region86: #{model_forward.1} parent=1 // pred_check
      _
    $region87: #{model_forward.1} parent=1 // pred_check_branch
      %212 = sbr.rel (0) target = $region89
    $region88: #{model_forward.1} parent=1 // pred_region
      %213 = dma.done [#allocation16], 512
    $region89: #{model_forward.1} parent=1 // pred_fallthru
      _
    // Predicated region
    $region90: #{model_forward.1} parent=1 // pred_check
      _
    $region91: #{model_forward.1} parent=1 // pred_check_branch
      %215 = sbr.rel (0) target = $region93
    $region92: #{model_forward.1} parent=1 // pred_region
      %216 = dma.done [#allocation16], 2048
    $region93: #{model_forward.1} parent=1 // pred_fallthru
      _
    // Predicated region
    $region94: #{model_forward.1} parent=1 // pred_check
      _
    $region95: #{model_forward.1} parent=1 // pred_check_branch
      %218 = sbr.rel (0) target = $region97
    $region96: #{model_forward.1} parent=1 // pred_region
      %219 = dma.done [#allocation19], 512
    $region97: #{model_forward.1} parent=1 // pred_fallthru
      _
    // Predicated region
    $region98: #{model_forward.1} parent=1 // pred_check
      _
    $region99: #{model_forward.1} parent=1 // pred_check_branch
      %221 = sbr.rel (0) target = $region101
    $region100: #{model_forward.1} parent=1 // pred_region
      %222 = dma.done [#allocation19], 1024
    $region101: #{model_forward.1} parent=1 // pred_fallthru
      _
    // Predicated region
    $region102: #{model_forward.1} parent=1 // pred_check
      _
    $region103: #{model_forward.1} parent=1 // pred_check_branch
      %224 = sbr.rel (0) target = $region105
    $region104: #{model_forward.1} parent=1 // pred_region
      %225 = dma.done [#allocation22], 1024
    $region105: #{model_forward.1} parent=1 // pred_fallthru
      _
    // Predicated region
    $region106: #{model_forward.1} parent=1 // pred_check
      _
    $region107: #{model_forward.1} parent=1 // pred_check_branch
      %227 = sbr.rel (0) target = $region109
    $region108: #{model_forward.1} parent=1 // pred_region
      %228 = dma.done [#allocation22], 256
    $region109: #{model_forward.1} parent=1 // pred_fallthru
      _
    // Predicated region
    $region110: #{model_forward.1} parent=1 // pred_check
      _
    $region111: #{model_forward.1} parent=1 // pred_check_branch
      %230 = sbr.rel (0) target = $region113
    $region112: #{model_forward.1} parent=1 // pred_region
      %231 = dma.done [#allocation25], 32
    $region113: #{model_forward.1} parent=1 // pred_fallthru
      _
    %v232 = vlaneseq
    %v233 = vshrl.u32 %v232, 7
    %v234 = vadd.s32 %v233, 8
    %v235 = vadd.s32 %v233, 16
    %v236 = vlaneseq
    %v237 = vand.u32 %v236, 127
    %v238 = vsub.s32 %v233, 2
    %v239 = vsub.s32 %v234, 2
    %v240 = vsub.s32 %v235, 2
    %vm241 = vcmp.eq.s32.totalorder %v237, %v238
    %vm242 = vcmp.eq.s32.totalorder %v237, %v239
    %vm243 = vcmp.eq.s32.totalorder %v237, %v240
    %v244 = vsel %vm241, 1.0, 0.0
    %v245 = vsel %vm242, 1.0, 0.0
    %v246 = vsel %vm243, 1.0, 0.0
    %v247 = vadd.s32 %v233, 2
    %v248 = vadd.s32 %v234, 2
    %v249 = vadd.s32 %v235, 2
    %vm250 = vcmp.eq.s32.totalorder %v237, %v247
    %vm251 = vcmp.eq.s32.totalorder %v237, %v248
    %vm252 = vcmp.eq.s32.totalorder %v237, %v249
    %v253 = vsel %vm250, 1.0, 0.0
    %v254 = vsel %vm251, 1.0, 0.0
    %v255 = vsel %vm252, 1.0, 0.0
    %v256 = vld [vmem:[#allocation8] sm:$0x7]
    %v257 = vld [vmem:[#allocation3] sm:$0xff]
    %v258 = vld [vmem:[#allocation3 + $0x8] sm:$0xff]
    %v259 = vld [vmem:[#allocation3 + $0x10] sm:$0xf]
    %v260 = vld [vmem:[#allocation6] sm:$0xff]
    %v261 = vlaneseq
    %v262 = vshrl.u32 %v261, 7
    %v263 = vsub.s32 0, %v262
    %v264 = vrot.slane %v256, %v263
    %vm265 = vcmask 64512
    %v267 = vsel %vm265, %v257, 0
    %v270 = vsel %vm265, %v258, 0
    %v273 = vsel %vm265, %v259, 0
    %275 = vmatprep.subr.mxu0 0.0
    %276 = vmatpush1.msra.mxu0 %v260
    %277 = vmatprep.subr.mxu0 0.0
    %278 = vmatpush1.msra.mxu0 0.0
    %279 = vmatprep.subr.mxu0 0.0
    %280 = vmatpush1.msra.mxu0 0.0
    %281 = vmatprep.subr.mxu0 0.0
    %282 = vmatpush1.msra.mxu0 0.0
    %283 = vmatprep.subr.mxu0 0.0
    %284 = vmatpush1.msra.mxu0 0.0
    %285 = vmatprep.subr.mxu0 0.0
    %286 = vmatpush1.msra.mxu0 0.0
    %287 = vmatprep.subr.mxu0 0.0
    %288 = vmatpush1.msra.mxu0 0.0
    %289 = vmatprep.subr.mxu0 0.0
    %290 = vmatpush1.msra.mxu0 0.0
    %291 = vmatprep.subr.mxu0 0.0
    %292 = vmatpush1.msra.mxu0 0.0
    %293 = vmatprep.subr.mxu0 0.0
    %294 = vmatpush1.msra.mxu0 0.0
    %295 = vmatprep.subr.mxu0 0.0
    %296 = vmatpush1.msra.mxu0 0.0
    %297 = vmatprep.subr.mxu0 0.0
    %298 = vmatpush1.msra.mxu0 0.0
    %299 = vmatprep.subr.mxu0 0.0
    %300 = vmatpush1.msra.mxu0 0.0
    %301 = vmatprep.subr.mxu0 0.0
    %302 = vmatpush1.msra.mxu0 0.0
    %303 = vmatprep.subr.mxu0 0.0
    %304 = vmatpush1.msra.mxu0 0.0
    %305 = vmatprep.subr.mxu0 0.0
    %306 = vmatpush1.msra.mxu0 0.0
    %307 = vmatprep.subr.mxu0 0.0
    %308 = vmatpush1.msra.mxu0 0.0
    %309 = vmatprep.subr.mxu0 0.0
    %310 = vmatpush1.msra.mxu0 0.0
    %311 = vmatprep.subr.mxu0 0.0
    %312 = vmatpush1.msra.mxu0 0.0
    %313 = vmatprep.subr.mxu0 0.0
    %314 = vmatpush1.msra.mxu0 0.0
    %315 = vmatprep.subr.mxu0 0.0
    %316 = vmatpush1.msra.mxu0 0.0
    %317 = vmatprep.subr.mxu0 0.0
    %318 = vmatpush1.msra.mxu0 0.0
    %319 = vmatprep.subr.mxu0 0.0
    %320 = vmatpush1.msra.mxu0 0.0
    %321 = vmatprep.subr.mxu0 0.0
    %322 = vmatpush1.msra.mxu0 0.0
    %323 = vmatprep.subr.mxu0 0.0
    %324 = vmatpush1.msra.mxu0 0.0
    %325 = vmatprep.subr.mxu0 0.0
    %326 = vmatpush1.msra.mxu0 0.0
    %327 = vmatprep.subr.mxu0 0.0
    %328 = vmatpush1.msra.mxu0 0.0
    %329 = vmatprep.subr.mxu0 0.0
    %330 = vmatpush1.msra.mxu0 0.0
    %331 = vmatprep.subr.mxu0 0.0
    %332 = vmatpush1.msra.mxu0 0.0
    %333 = vmatprep.subr.mxu0 0.0
    %334 = vmatpush1.msra.mxu0 0.0
    %335 = vmatprep.subr.mxu0 0.0
    %336 = vmatpush1.msra.mxu0 0.0
    %337 = vmatprep.subr.mxu0 0.0
    %338 = vmatpush1.msra.mxu0 0.0
    %339 = vmatprep.mubr.f32.mxu0 0.0
    %340 = vmatmul.mubr.f32.gmra.mrb[0].mxu0 %v267
    %v341 = vpop.f32.mrb[0].mxu0
    %v342 = vadd.f32 %v264, %v341
    %v343 = vpop.f32.mrb[0].mxu0
    %344 = vmatprep.mubr.f32.mxu0 0.0
    %345 = vmatmul.mubr.f32.gmra.mrb[0].mxu0 %v270
    %v346 = vpop.f32.mrb[0].mxu0
    %v347 = vadd.f32 %v264, %v346
    %v348 = vpop.f32.mrb[0].mxu0
    %349 = vmatprep.mubr.f32.mxu0 0.0
    %350 = vmatmul.mubr.f32.gmra.mrb[0].mxu0 %v273
    %v351 = vpop.f32.mrb[0].mxu0
    %v352 = vadd.f32 %v264, %v351
    %v353 = vpop.f32.mrb[0].mxu0
    %354 = vdwg.mxu0
    %v355 = vld [vmem:[#allocation12] sm:$0xff]
    %v356 = vld [vmem:[#allocation12 + $0x8] sm:$0xff]
    %v357 = vld [vmem:[#allocation12 + $0x10] sm:$0xff]
    %v358 = vld [vmem:[#allocation12 + $0x18] sm:$0xff]
    %vm359 = vcmask 261120
    %v361 = vsel %vm359, %v342, 0
    %v364 = vsel %vm359, %v347, 0
    %v367 = vsel %vm359, %v352, 0
    %369 = vmatprep.subr.mxu0 0.0
    %370 = vmatpush1.msra.mxu0 %v355
    %371 = vmatprep.subr.mxu0 0.0
    %372 = vmatpush1.msra.mxu0 %v356
    %373 = vmatprep.subr.mxu0 0.0
    %374 = vmatpush1.msra.mxu0 %v357
    %375 = vmatprep.subr.mxu0 0.0
    %376 = vmatpush1.msra.mxu0 %v358
    %377 = vmatprep.subr.mxu0 0.0
    %378 = vmatpush1.msra.mxu0 0.0
    %379 = vmatprep.subr.mxu0 0.0
    %380 = vmatpush1.msra.mxu0 0.0
    %381 = vmatprep.subr.mxu0 0.0
    %382 = vmatpush1.msra.mxu0 0.0
    %383 = vmatprep.subr.mxu0 0.0
    %384 = vmatpush1.msra.mxu0 0.0
    %385 = vmatprep.subr.mxu0 0.0
    %386 = vmatpush1.msra.mxu0 0.0
    %387 = vmatprep.subr.mxu0 0.0
    %388 = vmatpush1.msra.mxu0 0.0
    %389 = vmatprep.subr.mxu0 0.0
    %390 = vmatpush1.msra.mxu0 0.0
    %391 = vmatprep.subr.mxu0 0.0
    %392 = vmatpush1.msra.mxu0 0.0
    %393 = vmatprep.subr.mxu0 0.0
    %394 = vmatpush1.msra.mxu0 0.0
    %395 = vmatprep.subr.mxu0 0.0
    %396 = vmatpush1.msra.mxu0 0.0
    %397 = vmatprep.subr.mxu0 0.0
    %398 = vmatpush1.msra.mxu0 0.0
    %399 = vmatprep.subr.mxu0 0.0
    %400 = vmatpush1.msra.mxu0 0.0
    %401 = vmatprep.subr.mxu0 0.0
    %402 = vmatpush1.msra.mxu0 0.0
    %403 = vmatprep.subr.mxu0 0.0
    %404 = vmatpush1.msra.mxu0 0.0
    %405 = vmatprep.subr.mxu0 0.0
    %406 = vmatpush1.msra.mxu0 0.0
    %407 = vmatprep.subr.mxu0 0.0
    %408 = vmatpush1.msra.mxu0 0.0
    %409 = vmatprep.subr.mxu0 0.0
    %410 = vmatpush1.msra.mxu0 0.0
    %411 = vmatprep.subr.mxu0 0.0
    %412 = vmatpush1.msra.mxu0 0.0
    %413 = vmatprep.subr.mxu0 0.0
    %414 = vmatpush1.msra.mxu0 0.0
    %415 = vmatprep.subr.mxu0 0.0
    %416 = vmatpush1.msra.mxu0 0.0
    %417 = vmatprep.subr.mxu0 0.0
    %418 = vmatpush1.msra.mxu0 0.0
    %419 = vmatprep.subr.mxu0 0.0
    %420 = vmatpush1.msra.mxu0 0.0
    %421 = vmatprep.subr.mxu0 0.0
    %422 = vmatpush1.msra.mxu0 0.0
    %423 = vmatprep.subr.mxu0 0.0
    %424 = vmatpush1.msra.mxu0 0.0
    %425 = vmatprep.subr.mxu0 0.0
    %426 = vmatpush1.msra.mxu0 0.0
    %427 = vmatprep.subr.mxu0 0.0
    %428 = vmatpush1.msra.mxu0 0.0
    %429 = vmatprep.subr.mxu0 0.0
    %430 = vmatpush1.msra.mxu0 0.0
    %431 = vmatprep.subr.mxu0 0.0
    %432 = vmatpush1.msra.mxu0 0.0
    %433 = vmatprep.mubr.f32.mxu0 0.0
    %434 = vmatmul.mubr.f32.gmra.mrb[0].mxu0 %v361
    %v435 = vpop.f32.mrb[0].mxu0
    %v436 = vadd.f32 0.0, %v435
    %v437 = vpop.f32.mrb[0].mxu0
    %438 = vmatprep.mubr.f32.mxu0 0.0
    %439 = vmatmul.mubr.f32.gmra.mrb[0].mxu0 %v364
    %v440 = vpop.f32.mrb[0].mxu0
    %v441 = vadd.f32 0.0, %v440
    %v442 = vpop.f32.mrb[0].mxu0
    %443 = vmatprep.mubr.f32.mxu0 0.0
    %444 = vmatmul.mubr.f32.gmra.mrb[0].mxu0 %v367
    %v445 = vpop.f32.mrb[0].mxu0
    %v446 = vadd.f32 0.0, %v445
    %v447 = vpop.f32.mrb[0].mxu0
    %448 = vdwg.mxu0
    %v449 = vld [vmem:[#allocation14] sm:$0xff]
    %v450 = vld [vmem:[#allocation14 + $0x8] sm:$0xff]
    %v451 = vld [vmem:[#allocation14 + $0x10] sm:$0xff]
    %v452 = vld [vmem:[#allocation14 + $0x18] sm:$0xff]
    %v453 = vld [vmem:[#allocation15] sm:$0xff]
    %v454 = vld [vmem:[#allocation18] sm:$0x1f]
    %vm455 = vcmask 162816
    %v457 = vsel %vm455, %v244, 0
    %v460 = vsel %vm455, %v245, 0
    %v463 = vsel %vm455, %v246, 0
    %vm465 = vcmask 1043456
    %v467 = vsel %vm465, %v446, 0
    %469 = vmatprep.subr.mxu0 0.0
    %470 = vmatpush1.msra.mxu0 %v436
    %471 = vmatprep.subr.mxu0 0.0
    %472 = vmatpush1.msra.mxu0 %v441
    %473 = vmatprep.subr.mxu0 0.0
    %474 = vmatpush1.msra.mxu0 %v467
    %475 = vmatprep.subr.mxu0 0.0
    %476 = vmatpush1.msra.mxu0 0.0
    %477 = vmatprep.subr.mxu0 0.0
    %478 = vmatpush1.msra.mxu0 0.0
    %479 = vmatprep.subr.mxu0 0.0
    %480 = vmatpush1.msra.mxu0 0.0
    %481 = vmatprep.subr.mxu0 0.0
    %482 = vmatpush1.msra.mxu0 0.0
    %483 = vmatprep.subr.mxu0 0.0
    %484 = vmatpush1.msra.mxu0 0.0
    %485 = vmatprep.subr.mxu0 0.0
    %486 = vmatpush1.msra.mxu0 0.0
    %487 = vmatprep.subr.mxu0 0.0
    %488 = vmatpush1.msra.mxu0 0.0
    %489 = vmatprep.subr.mxu0 0.0
    %490 = vmatpush1.msra.mxu0 0.0
    %491 = vmatprep.subr.mxu0 0.0
    %492 = vmatpush1.msra.mxu0 0.0
    %493 = vmatprep.subr.mxu0 0.0
    %494 = vmatpush1.msra.mxu0 0.0
    %495 = vmatprep.subr.mxu0 0.0
    %496 = vmatpush1.msra.mxu0 0.0
    %497 = vmatprep.subr.mxu0 0.0
    %498 = vmatpush1.msra.mxu0 0.0
    %499 = vmatprep.subr.mxu0 0.0
    %500 = vmatpush1.msra.mxu0 0.0
    %501 = vmatprep.subr.mxu0 0.0
    %502 = vmatpush1.msra.mxu0 0.0
    %503 = vmatprep.subr.mxu0 0.0
    %504 = vmatpush1.msra.mxu0 0.0
    %505 = vmatprep.subr.mxu0 0.0
    %506 = vmatpush1.msra.mxu0 0.0
    %507 = vmatprep.subr.mxu0 0.0
    %508 = vmatpush1.msra.mxu0 0.0
    %509 = vmatprep.subr.mxu0 0.0
    %510 = vmatpush1.msra.mxu0 0.0
    %511 = vmatprep.subr.mxu0 0.0
    %512 = vmatpush1.msra.mxu0 0.0
    %513 = vmatprep.subr.mxu0 0.0
    %514 = vmatpush1.msra.mxu0 0.0
    %515 = vmatprep.subr.mxu0 0.0
    %516 = vmatpush1.msra.mxu0 0.0
    %517 = vmatprep.subr.mxu0 0.0
    %518 = vmatpush1.msra.mxu0 0.0
    %519 = vmatprep.subr.mxu0 0.0
    %520 = vmatpush1.msra.mxu0 0.0
    %521 = vmatprep.subr.mxu0 0.0
    %522 = vmatpush1.msra.mxu0 0.0
    %523 = vmatprep.subr.mxu0 0.0
    %524 = vmatpush1.msra.mxu0 0.0
    %525 = vmatprep.subr.mxu0 0.0
    %526 = vmatpush1.msra.mxu0 0.0
    %527 = vmatprep.subr.mxu0 0.0
    %528 = vmatpush1.msra.mxu0 0.0
    %529 = vmatprep.subr.mxu0 0.0
    %530 = vmatpush1.msra.mxu0 0.0
    %531 = vmatprep.subr.mxu0 0.0
    %532 = vmatpush1.msra.mxu0 0.0
    %533 = vmatprep.mubr.f32.mxu0 0.0
    %534 = vmatmul.mubr.f32.gmra.mrb[0].mxu0 %v457
    %v535 = vpop.f32.mrb[0].mxu0
    %v536 = vadd.f32 0.0, %v535
    %v537 = vpop.f32.mrb[0].mxu0
    %538 = vmatprep.mubr.f32.mxu0 0.0
    %539 = vmatmul.mubr.f32.gmra.mrb[0].mxu0 %v460
    %v540 = vpop.f32.mrb[0].mxu0
    %v541 = vadd.f32 0.0, %v540
    %v542 = vpop.f32.mrb[0].mxu0
    %543 = vmatprep.mubr.f32.mxu0 0.0
    %544 = vmatmul.mubr.f32.gmra.mrb[0].mxu0 %v463
    %v545 = vpop.f32.mrb[0].mxu0
    %v546 = vadd.f32 0.0, %v545
    %v547 = vpop.f32.mrb[0].mxu0
    %548 = vdwg.mxu0
    %v549 = vlaneseq
    %v550 = vshrl.u32 %v549, 7
    %v551 = vsub.s32 0, %v550
    %v552 = vrot.slane %v454, %v551
    %v553 = vmul.f32 %v536, %v552
    %v554 = vmul.f32 %v541, %v552
    %v555 = vmul.f32 %v546, %v552
    %v556 = vlaneseq
    %v557 = vshrl.u32 %v556, 7
    %v558 = vsub.s32 1, %v557
    %v559 = vrot.slane %v454, %v558
    %v560 = vmul.f32 %v436, %v559
    %v561 = vmul.f32 %v441, %v559
    %v562 = vmul.f32 %v446, %v559
    %v563 = vadd.f32 %v553, %v560
    %v564 = vadd.f32 %v554, %v561
    %v565 = vadd.f32 %v555, %v562
    %v566 = vlaneseq
    %v567 = vshrl.u32 %v566, 7
    %v568 = vsub.s32 2, %v567
    %v569 = vrot.slane %v454, %v568
    %v570 = vadd.f32 %v563, %v569
    %v571 = vadd.f32 %v564, %v569
    %v572 = vadd.f32 %v565, %v569
    %v573 = vxor.u32 %v570, 2147483648
    %v574 = vxor.u32 %v571, 2147483648
    %v575 = vxor.u32 %v572, 2147483648
    %v576 = vmul.f32 %v573, 1.442695
    %v577 = vpow.pop %v576
    %v578 = vmul.f32 %v574, 1.442695
    %v579 = vpow.pop %v578
    %v580 = vmul.f32 %v575, 1.442695
    %v581 = vpow.pop %v580
    %v582 = vadd.f32 %v577, 1.0
    %v583 = vadd.f32 %v579, 1.0
    %v584 = vadd.f32 %v581, 1.0
    %v585 = vrcp.pop %v582
    %v586 = vmul.f32 1.0, %v585
    %v587 = vrcp.pop %v583
    %v588 = vmul.f32 1.0, %v587
    %v589 = vrcp.pop %v584
    %v590 = vmul.f32 1.0, %v589
    %v591 = vmul.f32 %v570, %v586
    %v592 = vmul.f32 %v571, %v588
    %v593 = vmul.f32 %v572, %v590
    %v595 = vsel %vm359, %v591, 0
    %v598 = vsel %vm359, %v592, 0
    %v601 = vsel %vm359, %v593, 0
    %603 = vmatprep.subr.mxu0 0.0
    %604 = vmatpush1.msra.mxu0 %v449
    %605 = vmatprep.subr.mxu0 0.0
    %606 = vmatpush1.msra.mxu0 %v450
    %607 = vmatprep.subr.mxu0 0.0
    %608 = vmatpush1.msra.mxu0 %v451
    %609 = vmatprep.subr.mxu0 0.0
    %610 = vmatpush1.msra.mxu0 %v452
    %611 = vmatprep.subr.mxu0 0.0
    %612 = vmatpush1.msra.mxu0 0.0
    %613 = vmatprep.subr.mxu0 0.0
    %614 = vmatpush1.msra.mxu0 0.0
    %615 = vmatprep.subr.mxu0 0.0
    %616 = vmatpush1.msra.mxu0 0.0
    %617 = vmatprep.subr.mxu0 0.0
    %618 = vmatpush1.msra.mxu0 0.0
    %619 = vmatprep.subr.mxu0 0.0
    %620 = vmatpush1.msra.mxu0 0.0
    %621 = vmatprep.subr.mxu0 0.0
    %622 = vmatpush1.msra.mxu0 0.0
    %623 = vmatprep.subr.mxu0 0.0
    %624 = vmatpush1.msra.mxu0 0.0
    %625 = vmatprep.subr.mxu0 0.0
    %626 = vmatpush1.msra.mxu0 0.0
    %627 = vmatprep.subr.mxu0 0.0
    %628 = vmatpush1.msra.mxu0 0.0
    %629 = vmatprep.subr.mxu0 0.0
    %630 = vmatpush1.msra.mxu0 0.0
    %631 = vmatprep.subr.mxu0 0.0
    %632 = vmatpush1.msra.mxu0 0.0
    %633 = vmatprep.subr.mxu0 0.0
    %634 = vmatpush1.msra.mxu0 0.0
    %635 = vmatprep.subr.mxu0 0.0
    %636 = vmatpush1.msra.mxu0 0.0
    %637 = vmatprep.subr.mxu0 0.0
    %638 = vmatpush1.msra.mxu0 0.0
    %639 = vmatprep.subr.mxu0 0.0
    %640 = vmatpush1.msra.mxu0 0.0
    %641 = vmatprep.subr.mxu0 0.0
    %642 = vmatpush1.msra.mxu0 0.0
    %643 = vmatprep.subr.mxu0 0.0
    %644 = vmatpush1.msra.mxu0 0.0
    %645 = vmatprep.subr.mxu0 0.0
    %646 = vmatpush1.msra.mxu0 0.0
    %647 = vmatprep.subr.mxu0 0.0
    %648 = vmatpush1.msra.mxu0 0.0
    %649 = vmatprep.subr.mxu0 0.0
    %650 = vmatpush1.msra.mxu0 0.0
    %651 = vmatprep.subr.mxu0 0.0
    %652 = vmatpush1.msra.mxu0 0.0
    %653 = vmatprep.subr.mxu0 0.0
    %654 = vmatpush1.msra.mxu0 0.0
    %655 = vmatprep.subr.mxu0 0.0
    %656 = vmatpush1.msra.mxu0 0.0
    %657 = vmatprep.subr.mxu0 0.0
    %658 = vmatpush1.msra.mxu0 0.0
    %659 = vmatprep.subr.mxu0 0.0
    %660 = vmatpush1.msra.mxu0 0.0
    %661 = vmatprep.subr.mxu0 0.0
    %662 = vmatpush1.msra.mxu0 0.0
    %663 = vmatprep.subr.mxu0 0.0
    %664 = vmatpush1.msra.mxu0 0.0
    %665 = vmatprep.subr.mxu0 0.0
    %666 = vmatpush1.msra.mxu0 0.0
    %667 = vmatprep.mubr.f32.mxu0 0.0
    %668 = vmatmul.mubr.f32.gmra.mrb[0].mxu0 %v595
    %v669 = vpop.f32.mrb[0].mxu0
    %v670 = vadd.f32 0.0, %v669
    %v671 = vpop.f32.mrb[0].mxu0
    %672 = vmatprep.mubr.f32.mxu0 0.0
    %673 = vmatmul.mubr.f32.gmra.mrb[0].mxu0 %v598
    %v674 = vpop.f32.mrb[0].mxu0
    %v675 = vadd.f32 0.0, %v674
    %v676 = vpop.f32.mrb[0].mxu0
    %677 = vmatprep.mubr.f32.mxu0 0.0
    %678 = vmatmul.mubr.f32.gmra.mrb[0].mxu0 %v601
    %v679 = vpop.f32.mrb[0].mxu0
    %v680 = vadd.f32 0.0, %v679
    %v681 = vpop.f32.mrb[0].mxu0
    %682 = vdwg.mxu0
    %v683 = vlaneseq
    %v684 = vshrl.u32 %v683, 7
    %v685 = vsub.s32 3, %v684
    %v686 = vrot.slane %v454, %v685
    %v687 = vadd.f32 %v670, %v686
    %v688 = vadd.f32 %v675, %v686
    %v689 = vadd.f32 %v680, %v686
    %v690 = vmax.f32 %v687, 0.0
    %v691 = vmax.f32 %v688, 0.0
    %v692 = vmax.f32 %v689, 0.0
    %vm693 = vcmp.ne.f32.partialorder %v687, %v687
    %vm694 = vcmp.ne.f32.partialorder %v688, %v688
    %vm695 = vcmp.ne.f32.partialorder %v689, %v689
    %v696 = vadd.f32 %v687, 0.0
    %v697 = vadd.f32 %v688, 0.0
    %v698 = vadd.f32 %v689, 0.0
    %v699 = vand.u32 2147483647, %v687
    %v700 = vand.u32 2147483647, %v688
    %v701 = vand.u32 2147483647, %v689
    %v702 = vsub.f32 0.0, %v699
    %v703 = vsub.f32 0.0, %v700
    %v704 = vsub.f32 0.0, %v701
    %v705 = vmul.f32 %v702, 1.442695
    %v706 = vpow.pop %v705
    %v707 = vmul.f32 %v703, 1.442695
    %v708 = vpow.pop %v707
    %v709 = vmul.f32 %v704, 1.442695
    %v710 = vpow.pop %v709
    %v711 = vadd.f32 %v706, 1.0
    %v712 = vlog2.pop %v711
    %v713 = vmul.f32 %v712, 0.6931472
    %v714 = vmul.f32 -0.5, %v706
    %v715 = vadd.f32 %v714, 1.0
    %v716 = vmul.f32 %v715, %v706
    %v717 = vand.u32 2147483647, %v706
    %vm718 = vcmp.lt.f32.partialorder %v717, 0.0004427343
    %v719 = vsel %vm718, %v716, %v713
    %v720 = vadd.f32 %v708, 1.0
    %v721 = vlog2.pop %v720
    %v722 = vmul.f32 %v721, 0.6931472
    %v723 = vmul.f32 -0.5, %v708
    %v724 = vadd.f32 %v723, 1.0
    %v725 = vmul.f32 %v724, %v708
    %v726 = vand.u32 2147483647, %v708
    %vm727 = vcmp.lt.f32.partialorder %v726, 0.0004427343
    %v728 = vsel %vm727, %v725, %v722
    %v729 = vadd.f32 %v710, 1.0
    %v730 = vlog2.pop %v729
    %v731 = vmul.f32 %v730, 0.6931472
    %v732 = vmul.f32 -0.5, %v710
    %v733 = vadd.f32 %v732, 1.0
    %v734 = vmul.f32 %v733, %v710
    %v735 = vand.u32 2147483647, %v710
    %vm736 = vcmp.lt.f32.partialorder %v735, 0.0004427343
    %v737 = vsel %vm736, %v734, %v731
    %v738 = vadd.f32 %v690, %v719
    %v739 = vadd.f32 %v691, %v728
    %v740 = vadd.f32 %v692, %v737
    %v741 = vsel %vm693, %v696, %v738
    %v742 = vsel %vm694, %v697, %v739
    %v743 = vsel %vm695, %v698, %v740
    %v747 = vcombine.high %v741, %v741
    %v749 = vunpack.c.l.s4 1966171168
    %v750 = vunpack.c.0.s8 %v749
    %v751 = vlaneseq
    %v752 = vshrl.u32 %v751, 7
    %v753 = vsub.s32 %v750, %v752
    %v754 = vrot.slane %v741, %v753
    %v756 = vunpack.c.l.s4 1966171168
    %v757 = vunpack.c.0.s8 %v756
    %v758 = vlaneseq
    %v759 = vshrl.u32 %v758, 7
    %v760 = vsub.s32 %v757, %v759
    %v761 = vrot.slane %v747, %v760
    %v762 = vcombine.high %v754, %v754
    %v763 = vcombine.high %v761, %v761
    %v765 = vunpack.c.l.s4 1966171168
    %v766 = vunpack.c.0.s8 %v765
    %v767 = vlaneseq
    %v768 = vshrl.u32 %v767, 7
    %v769 = vsub.s32 %v766, %v768
    %v770 = vrot.slane %v754, %v769
    %v772 = vunpack.c.l.s4 1966171168
    %v773 = vunpack.c.0.s8 %v772
    %v774 = vlaneseq
    %v775 = vshrl.u32 %v774, 7
    %v776 = vsub.s32 %v773, %v775
    %v777 = vrot.slane %v761, %v776
    %v779 = vunpack.c.l.s4 1966171168
    %v780 = vunpack.c.0.s8 %v779
    %v781 = vlaneseq
    %v782 = vshrl.u32 %v781, 7
    %v783 = vsub.s32 %v780, %v782
    %v784 = vrot.slane %v762, %v783
    %v786 = vunpack.c.l.s4 1966171168
    %v787 = vunpack.c.0.s8 %v786
    %v788 = vlaneseq
    %v789 = vshrl.u32 %v788, 7
    %v790 = vsub.s32 %v787, %v789
    %v791 = vrot.slane %v763, %v790
    %v792 = vcombine.high %v770, %v770
    %v793 = vcombine.high %v777, %v777
    %v794 = vcombine.high %v784, %v784
    %v795 = vcombine.high %v791, %v791
    %v796 = vcombine.high %v742, %v742
    %v798 = vunpack.c.l.s4 1966171168
    %v799 = vunpack.c.0.s8 %v798
    %v800 = vlaneseq
    %v801 = vshrl.u32 %v800, 7
    %v802 = vsub.s32 %v799, %v801
    %v803 = vrot.slane %v742, %v802
    %v805 = vunpack.c.l.s4 1966171168
    %v806 = vunpack.c.0.s8 %v805
    %v807 = vlaneseq
    %v808 = vshrl.u32 %v807, 7
    %v809 = vsub.s32 %v806, %v808
    %v810 = vrot.slane %v796, %v809
    %v811 = vcombine.high %v803, %v803
    %v812 = vcombine.high %v810, %v810
    %v814 = vunpack.c.l.s4 1966171168
    %v815 = vunpack.c.0.s8 %v814
    %v816 = vlaneseq
    %v817 = vshrl.u32 %v816, 7
    %v818 = vsub.s32 %v815, %v817
    %v819 = vrot.slane %v803, %v818
    %v821 = vunpack.c.l.s4 1966171168
    %v822 = vunpack.c.0.s8 %v821
    %v823 = vlaneseq
    %v824 = vshrl.u32 %v823, 7
    %v825 = vsub.s32 %v822, %v824
    %v826 = vrot.slane %v810, %v825
    %v828 = vunpack.c.l.s4 1966171168
    %v829 = vunpack.c.0.s8 %v828
    %v830 = vlaneseq
    %v831 = vshrl.u32 %v830, 7
    %v832 = vsub.s32 %v829, %v831
    %v833 = vrot.slane %v811, %v832
    %v835 = vunpack.c.l.s4 1966171168
    %v836 = vunpack.c.0.s8 %v835
    %v837 = vlaneseq
    %v838 = vshrl.u32 %v837, 7
    %v839 = vsub.s32 %v836, %v838
    %v840 = vrot.slane %v812, %v839
    %v841 = vcombine.high %v819, %v819
    %v842 = vcombine.high %v826, %v826
    %v843 = vcombine.high %v833, %v833
    %v844 = vcombine.high %v840, %v840
    %v846 = vunpack.c.l.s4 1966171168
    %v847 = vunpack.c.0.s8 %v846
    %v848 = vlaneseq
    %v849 = vshrl.u32 %v848, 7
    %v850 = vsub.s32 %v847, %v849
    %v851 = vrot.slane %v743, %v850
    %v852 = vcombine.high %v851, %v851
    %v854 = vunpack.c.l.s4 1966171168
    %v855 = vunpack.c.0.s8 %v854
    %v856 = vlaneseq
    %v857 = vshrl.u32 %v856, 7
    %v858 = vsub.s32 %v855, %v857
    %v859 = vrot.slane %v851, %v858
    %v861 = vunpack.c.l.s4 1966171168
    %v862 = vunpack.c.0.s8 %v861
    %v863 = vlaneseq
    %v864 = vshrl.u32 %v863, 7
    %v865 = vsub.s32 %v862, %v864
    %v866 = vrot.slane %v852, %v865
    %v867 = vcombine.high %v859, %v859
    %v868 = vcombine.high %v866, %v866
    %v869 = vlaneseq
    %v870 = vshrl.u32 %v869, 7
    %v871 = vsub.s32 0, %v870
    %v872 = vrot.slane %v770, %v871
    %v873 = vlaneseq
    %v874 = vshrl.u32 %v873, 7
    %v875 = vsub.s32 0, %v874
    %v876 = vrot.slane %v784, %v875
    %v877 = vlaneseq
    %v878 = vshrl.u32 %v877, 7
    %v879 = vsub.s32 0, %v878
    %v880 = vrot.slane %v792, %v879
    %v881 = vlaneseq
    %v882 = vshrl.u32 %v881, 7
    %v883 = vsub.s32 0, %v882
    %v884 = vrot.slane %v794, %v883
    %v885 = vlaneseq
    %v886 = vshrl.u32 %v885, 7
    %v887 = vsub.s32 0, %v886
    %v888 = vrot.slane %v777, %v887
    %v889 = vlaneseq
    %v890 = vshrl.u32 %v889, 7
    %v891 = vsub.s32 0, %v890
    %v892 = vrot.slane %v791, %v891
    %v893 = vlaneseq
    %v894 = vshrl.u32 %v893, 7
    %v895 = vsub.s32 0, %v894
    %v896 = vrot.slane %v793, %v895
    %v897 = vlaneseq
    %v898 = vshrl.u32 %v897, 7
    %v899 = vsub.s32 0, %v898
    %v900 = vrot.slane %v795, %v899
    %v901 = vlaneseq
    %v902 = vshrl.u32 %v901, 7
    %v903 = vsub.s32 0, %v902
    %v904 = vrot.slane %v819, %v903
    %v905 = vlaneseq
    %v906 = vshrl.u32 %v905, 7
    %v907 = vsub.s32 0, %v906
    %v908 = vrot.slane %v833, %v907
    %v909 = vlaneseq
    %v910 = vshrl.u32 %v909, 7
    %v911 = vsub.s32 0, %v910
    %v912 = vrot.slane %v841, %v911
    %v913 = vlaneseq
    %v914 = vshrl.u32 %v913, 7
    %v915 = vsub.s32 0, %v914
    %v916 = vrot.slane %v843, %v915
    %v917 = vlaneseq
    %v918 = vshrl.u32 %v917, 7
    %v919 = vsub.s32 0, %v918
    %v920 = vrot.slane %v826, %v919
    %v921 = vlaneseq
    %v922 = vshrl.u32 %v921, 7
    %v923 = vsub.s32 0, %v922
    %v924 = vrot.slane %v840, %v923
    %v925 = vlaneseq
    %v926 = vshrl.u32 %v925, 7
    %v927 = vsub.s32 0, %v926
    %v928 = vrot.slane %v842, %v927
    %v929 = vlaneseq
    %v930 = vshrl.u32 %v929, 7
    %v931 = vsub.s32 0, %v930
    %v932 = vrot.slane %v844, %v931
    %v933 = vlaneseq
    %v934 = vshrl.u32 %v933, 7
    %v935 = vsub.s32 0, %v934
    %v936 = vrot.slane %v859, %v935
    %v937 = vlaneseq
    %v938 = vshrl.u32 %v937, 7
    %v939 = vsub.s32 0, %v938
    %v940 = vrot.slane %v866, %v939
    %v941 = vlaneseq
    %v942 = vshrl.u32 %v941, 7
    %v943 = vsub.s32 0, %v942
    %v944 = vrot.slane %v867, %v943
    %v945 = vlaneseq
    %v946 = vshrl.u32 %v945, 7
    %v947 = vsub.s32 0, %v946
    %v948 = vrot.slane %v868, %v947
    %v969 = vmul.f32 %v872, %v453
    %v970 = vmul.f32 %v876, %v453
    %v971 = vmul.f32 %v880, %v453
    %v972 = vmul.f32 %v884, %v453
    %v973 = vmul.f32 %v888, %v453
    %v974 = vmul.f32 %v892, %v453
    %v975 = vmul.f32 %v896, %v453
    %v976 = vmul.f32 %v900, %v453
    %v977 = vmul.f32 %v904, %v453
    %v978 = vmul.f32 %v908, %v453
    %v979 = vmul.f32 %v912, %v453
    %v980 = vmul.f32 %v916, %v453
    %v981 = vmul.f32 %v920, %v453
    %v982 = vmul.f32 %v924, %v453
    %v983 = vmul.f32 %v928, %v453
    %v984 = vmul.f32 %v932, %v453
    %v985 = vmul.f32 %v936, %v453
    %v986 = vmul.f32 %v940, %v453
    %v987 = vmul.f32 %v944, %v453
    %v988 = vmul.f32 %v948, %v453
    %v989 = vmul.f32 %v969, 1.442695
    %v990 = vpow.pop %v989
    %v991 = vmul.f32 %v970, 1.442695
    %v992 = vpow.pop %v991
    %v993 = vmul.f32 %v971, 1.442695
    %v994 = vpow.pop %v993
    %v995 = vmul.f32 %v972, 1.442695
    %v996 = vpow.pop %v995
    %v997 = vmul.f32 %v973, 1.442695
    %v998 = vpow.pop %v997
    %v999 = vmul.f32 %v974, 1.442695
    %v1000 = vpow.pop %v999
    %v1001 = vmul.f32 %v975, 1.442695
    %v1002 = vpow.pop %v1001
    %v1003 = vmul.f32 %v976, 1.442695
    %v1004 = vpow.pop %v1003
    %v1005 = vmul.f32 %v977, 1.442695
    %v1006 = vpow.pop %v1005
    %v1007 = vmul.f32 %v978, 1.442695
    %v1008 = vpow.pop %v1007
    %v1009 = vmul.f32 %v979, 1.442695
    %v1010 = vpow.pop %v1009
    %v1011 = vmul.f32 %v980, 1.442695
    %v1012 = vpow.pop %v1011
    %v1013 = vmul.f32 %v981, 1.442695
    %v1014 = vpow.pop %v1013
    %v1015 = vmul.f32 %v982, 1.442695
    %v1016 = vpow.pop %v1015
    %v1017 = vmul.f32 %v983, 1.442695
    %v1018 = vpow.pop %v1017
    %v1019 = vmul.f32 %v984, 1.442695
    %v1020 = vpow.pop %v1019
    %v1021 = vmul.f32 %v985, 1.442695
    %v1022 = vpow.pop %v1021
    %v1023 = vmul.f32 %v986, 1.442695
    %v1024 = vpow.pop %v1023
    %v1025 = vmul.f32 %v987, 1.442695
    %v1026 = vpow.pop %v1025
    %v1027 = vmul.f32 %v988, 1.442695
    %v1028 = vpow.pop %v1027
    %v1029 = vlaneseq
    %v1030 = vshrl.u32 %v1029, 7
    %v1031 = vsub.s32 0, %v1030
    %v1032 = vrot.slane %v670, %v1031
    %s1034 = sor.u32 256, 32
    %1035 = vbcast.lane.b32.xlu0 %v1032, %s1034
    %v1036 = vpop.permute.xlu0 %1035
    %v1037 = vlaneseq
    %v1038 = vshrl.u32 %v1037, 7
    %v1039 = vsub.s32 1, %v1038
    %v1040 = vrot.slane %v670, %v1039
    %s1042 = sor.u32 256, 32
    %1043 = vbcast.lane.b32.xlu0 %v1040, %s1042
    %v1044 = vpop.permute.xlu0 %1043
    %v1045 = vlaneseq
    %v1046 = vshrl.u32 %v1045, 7
    %v1047 = vsub.s32 2, %v1046
    %v1048 = vrot.slane %v670, %v1047
    %s1050 = sor.u32 256, 32
    %1051 = vbcast.lane.b32.xlu0 %v1048, %s1050
    %v1052 = vpop.permute.xlu0 %1051
    %v1053 = vlaneseq
    %v1054 = vshrl.u32 %v1053, 7
    %v1055 = vsub.s32 3, %v1054
    %v1056 = vrot.slane %v670, %v1055
    %s1058 = sor.u32 256, 32
    %1059 = vbcast.lane.b32.xlu0 %v1056, %s1058
    %v1060 = vpop.permute.xlu0 %1059
    %v1061 = vlaneseq
    %v1062 = vshrl.u32 %v1061, 7
    %v1063 = vsub.s32 4, %v1062
    %v1064 = vrot.slane %v670, %v1063
    %s1066 = sor.u32 256, 32
    %1067 = vbcast.lane.b32.xlu0 %v1064, %s1066
    %v1068 = vpop.permute.xlu0 %1067
    %v1069 = vlaneseq
    %v1070 = vshrl.u32 %v1069, 7
    %v1071 = vsub.s32 5, %v1070
    %v1072 = vrot.slane %v670, %v1071
    %s1074 = sor.u32 256, 32
    %1075 = vbcast.lane.b32.xlu0 %v1072, %s1074
    %v1076 = vpop.permute.xlu0 %1075
    %v1077 = vlaneseq
    %v1078 = vshrl.u32 %v1077, 7
    %v1079 = vsub.s32 6, %v1078
    %v1080 = vrot.slane %v670, %v1079
    %s1082 = sor.u32 256, 32
    %1083 = vbcast.lane.b32.xlu0 %v1080, %s1082
    %v1084 = vpop.permute.xlu0 %1083
    %v1085 = vlaneseq
    %v1086 = vshrl.u32 %v1085, 7
    %v1087 = vsub.s32 7, %v1086
    %v1088 = vrot.slane %v670, %v1087
    %s1090 = sor.u32 256, 32
    %1091 = vbcast.lane.b32.xlu0 %v1088, %s1090
    %v1092 = vpop.permute.xlu0 %1091
    %v1093 = vlaneseq
    %v1094 = vshrl.u32 %v1093, 7
    %v1095 = vsub.s32 0, %v1094
    %v1096 = vrot.slane %v675, %v1095
    %s1098 = sor.u32 256, 32
    %1099 = vbcast.lane.b32.xlu0 %v1096, %s1098
    %v1100 = vpop.permute.xlu0 %1099
    %v1101 = vlaneseq
    %v1102 = vshrl.u32 %v1101, 7
    %v1103 = vsub.s32 1, %v1102
    %v1104 = vrot.slane %v675, %v1103
    %s1106 = sor.u32 256, 32
    %1107 = vbcast.lane.b32.xlu0 %v1104, %s1106
    %v1108 = vpop.permute.xlu0 %1107
    %v1109 = vlaneseq
    %v1110 = vshrl.u32 %v1109, 7
    %v1111 = vsub.s32 2, %v1110
    %v1112 = vrot.slane %v675, %v1111
    %s1114 = sor.u32 256, 32
    %1115 = vbcast.lane.b32.xlu0 %v1112, %s1114
    %v1116 = vpop.permute.xlu0 %1115
    %v1117 = vlaneseq
    %v1118 = vshrl.u32 %v1117, 7
    %v1119 = vsub.s32 3, %v1118
    %v1120 = vrot.slane %v675, %v1119
    %s1122 = sor.u32 256, 32
    %1123 = vbcast.lane.b32.xlu0 %v1120, %s1122
    %v1124 = vpop.permute.xlu0 %1123
    %v1125 = vlaneseq
    %v1126 = vshrl.u32 %v1125, 7
    %v1127 = vsub.s32 4, %v1126
    %v1128 = vrot.slane %v675, %v1127
    %s1130 = sor.u32 256, 32
    %1131 = vbcast.lane.b32.xlu0 %v1128, %s1130
    %v1132 = vpop.permute.xlu0 %1131
    %v1133 = vlaneseq
    %v1134 = vshrl.u32 %v1133, 7
    %v1135 = vsub.s32 5, %v1134
    %v1136 = vrot.slane %v675, %v1135
    %s1138 = sor.u32 256, 32
    %1139 = vbcast.lane.b32.xlu0 %v1136, %s1138
    %v1140 = vpop.permute.xlu0 %1139
    %v1141 = vlaneseq
    %v1142 = vshrl.u32 %v1141, 7
    %v1143 = vsub.s32 6, %v1142
    %v1144 = vrot.slane %v675, %v1143
    %s1146 = sor.u32 256, 32
    %1147 = vbcast.lane.b32.xlu0 %v1144, %s1146
    %v1148 = vpop.permute.xlu0 %1147
    %v1149 = vlaneseq
    %v1150 = vshrl.u32 %v1149, 7
    %v1151 = vsub.s32 7, %v1150
    %v1152 = vrot.slane %v675, %v1151
    %s1154 = sor.u32 256, 32
    %1155 = vbcast.lane.b32.xlu0 %v1152, %s1154
    %v1156 = vpop.permute.xlu0 %1155
    %v1157 = vlaneseq
    %v1158 = vshrl.u32 %v1157, 7
    %v1159 = vsub.s32 0, %v1158
    %v1160 = vrot.slane %v680, %v1159
    %s1162 = sor.u32 256, 32
    %1163 = vbcast.lane.b32.xlu0 %v1160, %s1162
    %v1164 = vpop.permute.xlu0 %1163
    %v1165 = vlaneseq
    %v1166 = vshrl.u32 %v1165, 7
    %v1167 = vsub.s32 1, %v1166
    %v1168 = vrot.slane %v680, %v1167
    %s1170 = sor.u32 256, 32
    %1171 = vbcast.lane.b32.xlu0 %v1168, %s1170
    %v1172 = vpop.permute.xlu0 %1171
    %v1173 = vlaneseq
    %v1174 = vshrl.u32 %v1173, 7
    %v1175 = vsub.s32 2, %v1174
    %v1176 = vrot.slane %v680, %v1175
    %s1178 = sor.u32 256, 32
    %1179 = vbcast.lane.b32.xlu0 %v1176, %s1178
    %v1180 = vpop.permute.xlu0 %1179
    %v1181 = vlaneseq
    %v1182 = vshrl.u32 %v1181, 7
    %v1183 = vsub.s32 3, %v1182
    %v1184 = vrot.slane %v680, %v1183
    %s1186 = sor.u32 256, 32
    %1187 = vbcast.lane.b32.xlu0 %v1184, %s1186
    %v1188 = vpop.permute.xlu0 %1187
    %v1189 = vmul.f32 %v741, %v591
    %v1190 = vmul.f32 %v742, %v592
    %v1191 = vmul.f32 %v743, %v593
    %v1195 = vcombine.high %v1189, %v1189
    %v1197 = vunpack.c.l.s4 1966171168
    %v1198 = vunpack.c.0.s8 %v1197
    %v1199 = vlaneseq
    %v1200 = vshrl.u32 %v1199, 7
    %v1201 = vsub.s32 %v1198, %v1200
    %v1202 = vrot.slane %v1189, %v1201
    %v1204 = vunpack.c.l.s4 1966171168
    %v1205 = vunpack.c.0.s8 %v1204
    %v1206 = vlaneseq
    %v1207 = vshrl.u32 %v1206, 7
    %v1208 = vsub.s32 %v1205, %v1207
    %v1209 = vrot.slane %v1195, %v1208
    %v1210 = vcombine.high %v1202, %v1202
    %v1211 = vcombine.high %v1209, %v1209
    %v1213 = vunpack.c.l.s4 1966171168
    %v1214 = vunpack.c.0.s8 %v1213
    %v1215 = vlaneseq
    %v1216 = vshrl.u32 %v1215, 7
    %v1217 = vsub.s32 %v1214, %v1216
    %v1218 = vrot.slane %v1202, %v1217
    %v1220 = vunpack.c.l.s4 1966171168
    %v1221 = vunpack.c.0.s8 %v1220
    %v1222 = vlaneseq
    %v1223 = vshrl.u32 %v1222, 7
    %v1224 = vsub.s32 %v1221, %v1223
    %v1225 = vrot.slane %v1209, %v1224
    %v1227 = vunpack.c.l.s4 1966171168
    %v1228 = vunpack.c.0.s8 %v1227
    %v1229 = vlaneseq
    %v1230 = vshrl.u32 %v1229, 7
    %v1231 = vsub.s32 %v1228, %v1230
    %v1232 = vrot.slane %v1210, %v1231
    %v1234 = vunpack.c.l.s4 1966171168
    %v1235 = vunpack.c.0.s8 %v1234
    %v1236 = vlaneseq
    %v1237 = vshrl.u32 %v1236, 7
    %v1238 = vsub.s32 %v1235, %v1237
    %v1239 = vrot.slane %v1211, %v1238
    %v1240 = vcombine.high %v1218, %v1218
    %v1241 = vcombine.high %v1225, %v1225
    %v1242 = vcombine.high %v1232, %v1232
    %v1243 = vcombine.high %v1239, %v1239
    %v1244 = vcombine.high %v1190, %v1190
    %v1246 = vunpack.c.l.s4 1966171168
    %v1247 = vunpack.c.0.s8 %v1246
    %v1248 = vlaneseq
    %v1249 = vshrl.u32 %v1248, 7
    %v1250 = vsub.s32 %v1247, %v1249
    %v1251 = vrot.slane %v1190, %v1250
    %v1253 = vunpack.c.l.s4 1966171168
    %v1254 = vunpack.c.0.s8 %v1253
    %v1255 = vlaneseq
    %v1256 = vshrl.u32 %v1255, 7
    %v1257 = vsub.s32 %v1254, %v1256
    %v1258 = vrot.slane %v1244, %v1257
    %v1259 = vcombine.high %v1251, %v1251
    %v1260 = vcombine.high %v1258, %v1258
    %v1262 = vunpack.c.l.s4 1966171168
    %v1263 = vunpack.c.0.s8 %v1262
    %v1264 = vlaneseq
    %v1265 = vshrl.u32 %v1264, 7
    %v1266 = vsub.s32 %v1263, %v1265
    %v1267 = vrot.slane %v1251, %v1266
    %v1269 = vunpack.c.l.s4 1966171168
    %v1270 = vunpack.c.0.s8 %v1269
    %v1271 = vlaneseq
    %v1272 = vshrl.u32 %v1271, 7
    %v1273 = vsub.s32 %v1270, %v1272
    %v1274 = vrot.slane %v1258, %v1273
    %v1276 = vunpack.c.l.s4 1966171168
    %v1277 = vunpack.c.0.s8 %v1276
    %v1278 = vlaneseq
    %v1279 = vshrl.u32 %v1278, 7
    %v1280 = vsub.s32 %v1277, %v1279
    %v1281 = vrot.slane %v1259, %v1280
    %v1283 = vunpack.c.l.s4 1966171168
    %v1284 = vunpack.c.0.s8 %v1283
    %v1285 = vlaneseq
    %v1286 = vshrl.u32 %v1285, 7
    %v1287 = vsub.s32 %v1284, %v1286
    %v1288 = vrot.slane %v1260, %v1287
    %v1289 = vcombine.high %v1267, %v1267
    %v1290 = vcombine.high %v1274, %v1274
    %v1291 = vcombine.high %v1281, %v1281
    %v1292 = vcombine.high %v1288, %v1288
    %v1294 = vunpack.c.l.s4 1966171168
    %v1295 = vunpack.c.0.s8 %v1294
    %v1296 = vlaneseq
    %v1297 = vshrl.u32 %v1296, 7
    %v1298 = vsub.s32 %v1295, %v1297
    %v1299 = vrot.slane %v1191, %v1298
    %v1300 = vcombine.high %v1299, %v1299
    %v1302 = vunpack.c.l.s4 1966171168
    %v1303 = vunpack.c.0.s8 %v1302
    %v1304 = vlaneseq
    %v1305 = vshrl.u32 %v1304, 7
    %v1306 = vsub.s32 %v1303, %v1305
    %v1307 = vrot.slane %v1299, %v1306
    %v1309 = vunpack.c.l.s4 1966171168
    %v1310 = vunpack.c.0.s8 %v1309
    %v1311 = vlaneseq
    %v1312 = vshrl.u32 %v1311, 7
    %v1313 = vsub.s32 %v1310, %v1312
    %v1314 = vrot.slane %v1300, %v1313
    %v1315 = vcombine.high %v1307, %v1307
    %v1316 = vcombine.high %v1314, %v1314
    %v1317 = vlaneseq
    %v1318 = vshrl.u32 %v1317, 7
    %v1319 = vsub.s32 0, %v1318
    %v1320 = vrot.slane %v1218, %v1319
    %v1321 = vlaneseq
    %v1322 = vshrl.u32 %v1321, 7
    %v1323 = vsub.s32 0, %v1322
    %v1324 = vrot.slane %v1232, %v1323
    %v1325 = vlaneseq
    %v1326 = vshrl.u32 %v1325, 7
    %v1327 = vsub.s32 0, %v1326
    %v1328 = vrot.slane %v1240, %v1327
    %v1329 = vlaneseq
    %v1330 = vshrl.u32 %v1329, 7
    %v1331 = vsub.s32 0, %v1330
    %v1332 = vrot.slane %v1242, %v1331
    %v1333 = vlaneseq
    %v1334 = vshrl.u32 %v1333, 7
    %v1335 = vsub.s32 0, %v1334
    %v1336 = vrot.slane %v1225, %v1335
    %v1337 = vlaneseq
    %v1338 = vshrl.u32 %v1337, 7
    %v1339 = vsub.s32 0, %v1338
    %v1340 = vrot.slane %v1239, %v1339
    %v1341 = vlaneseq
    %v1342 = vshrl.u32 %v1341, 7
    %v1343 = vsub.s32 0, %v1342
    %v1344 = vrot.slane %v1241, %v1343
    %v1345 = vlaneseq
    %v1346 = vshrl.u32 %v1345, 7
    %v1347 = vsub.s32 0, %v1346
    %v1348 = vrot.slane %v1243, %v1347
    %v1349 = vlaneseq
    %v1350 = vshrl.u32 %v1349, 7
    %v1351 = vsub.s32 0, %v1350
    %v1352 = vrot.slane %v1267, %v1351
    %v1353 = vlaneseq
    %v1354 = vshrl.u32 %v1353, 7
    %v1355 = vsub.s32 0, %v1354
    %v1356 = vrot.slane %v1281, %v1355
    %v1357 = vlaneseq
    %v1358 = vshrl.u32 %v1357, 7
    %v1359 = vsub.s32 0, %v1358
    %v1360 = vrot.slane %v1289, %v1359
    %v1361 = vlaneseq
    %v1362 = vshrl.u32 %v1361, 7
    %v1363 = vsub.s32 0, %v1362
    %v1364 = vrot.slane %v1291, %v1363
    %v1365 = vlaneseq
    %v1366 = vshrl.u32 %v1365, 7
    %v1367 = vsub.s32 0, %v1366
    %v1368 = vrot.slane %v1274, %v1367
    %v1369 = vlaneseq
    %v1370 = vshrl.u32 %v1369, 7
    %v1371 = vsub.s32 0, %v1370
    %v1372 = vrot.slane %v1288, %v1371
    %v1373 = vlaneseq
    %v1374 = vshrl.u32 %v1373, 7
    %v1375 = vsub.s32 0, %v1374
    %v1376 = vrot.slane %v1290, %v1375
    %v1377 = vlaneseq
    %v1378 = vshrl.u32 %v1377, 7
    %v1379 = vsub.s32 0, %v1378
    %v1380 = vrot.slane %v1292, %v1379
    %v1381 = vlaneseq
    %v1382 = vshrl.u32 %v1381, 7
    %v1383 = vsub.s32 0, %v1382
    %v1384 = vrot.slane %v1307, %v1383
    %v1385 = vlaneseq
    %v1386 = vshrl.u32 %v1385, 7
    %v1387 = vsub.s32 0, %v1386
    %v1388 = vrot.slane %v1314, %v1387
    %v1389 = vlaneseq
    %v1390 = vshrl.u32 %v1389, 7
    %v1391 = vsub.s32 0, %v1390
    %v1392 = vrot.slane %v1315, %v1391
    %v1393 = vlaneseq
    %v1394 = vshrl.u32 %v1393, 7
    %v1395 = vsub.s32 0, %v1394
    %v1396 = vrot.slane %v1316, %v1395
    %v1417 = vmul.f32 %v1036, %v1320
    %v1418 = vmul.f32 %v1044, %v1324
    %v1419 = vmul.f32 %v1052, %v1328
    %v1420 = vmul.f32 %v1060, %v1332
    %v1421 = vmul.f32 %v1068, %v1336
    %v1422 = vmul.f32 %v1076, %v1340
    %v1423 = vmul.f32 %v1084, %v1344
    %v1424 = vmul.f32 %v1092, %v1348
    %v1425 = vmul.f32 %v1100, %v1352
    %v1426 = vmul.f32 %v1108, %v1356
    %v1427 = vmul.f32 %v1116, %v1360
    %v1428 = vmul.f32 %v1124, %v1364
    %v1429 = vmul.f32 %v1132, %v1368
    %v1430 = vmul.f32 %v1140, %v1372
    %v1431 = vmul.f32 %v1148, %v1376
    %v1432 = vmul.f32 %v1156, %v1380
    %v1433 = vmul.f32 %v1164, %v1384
    %v1434 = vmul.f32 %v1172, %v1388
    %v1435 = vmul.f32 %v1180, %v1392
    %v1436 = vmul.f32 %v1188, %v1396
    %v1437 = vmul.f32 %v990, 0.0
    %v1438 = vmul.f32 %v992, 0.0
    %v1439 = vadd.f32 %v1437, %v1417
    %v1440 = vadd.f32 %v1438, %v1418
    %s1442 = sor.u32 256, 40
    %1443 = vbcast.lane.b32.xlu0 %v1032, %s1442
    %v1444 = vpop.permute.xlu0 %1443
    %s1446 = sor.u32 256, 40
    %1447 = vbcast.lane.b32.xlu0 %v1040, %s1446
    %v1448 = vpop.permute.xlu0 %1447
    %v1449 = vmul.f32 %v1439, %v1444
    %v1450 = vmul.f32 %v1440, %v1448
    %v1451 = vsel %vm359, %v1449, 0.0
    %v1452 = vrot.slane %v1451, 4
    %v1453 = vadd.f32 %v1451, %v1452
    %v1454 = vrot.slane %v1453, 2
    %v1455 = vadd.f32 %v1453, %v1454
    %v1456 = vrot.slane %v1455, 1
    %v1457 = vadd.f32 %v1455, %v1456
    %v1458 = vsel %vm359, %v1450, 0.0
    %v1459 = vrot.slane %v1458, 4
    %v1460 = vadd.f32 %v1458, %v1459
    %v1461 = vrot.slane %v1460, 2
    %v1462 = vadd.f32 %v1460, %v1461
    %v1463 = vrot.slane %v1462, 1
    %v1464 = vadd.f32 %v1462, %v1463
    %vm1467 = vcmask 1041409
    %v1468 = vsel %vm1467, %v1464, %v1457
    %vm1470 = vcmask 254976
    %1471 = vst.msk [vmem:[#allocation2] sm:$0x3] %vm1470, %v1468
    %v1472 = vmul.f32 %v994, %v1439
    %v1473 = vmul.f32 %v996, %v1440
    %v1474 = vadd.f32 %v1472, %v1419
    %v1475 = vadd.f32 %v1473, %v1420
    %s1477 = sor.u32 256, 40
    %1478 = vbcast.lane.b32.xlu0 %v1048, %s1477
    %v1479 = vpop.permute.xlu0 %1478
    %s1481 = sor.u32 256, 40
    %1482 = vbcast.lane.b32.xlu0 %v1056, %s1481
    %v1483 = vpop.permute.xlu0 %1482
    %v1484 = vmul.f32 %v1474, %v1479
    %v1485 = vmul.f32 %v1475, %v1483
    %v1486 = vsel %vm359, %v1484, 0.0
    %v1487 = vrot.slane %v1486, 4
    %v1488 = vadd.f32 %v1486, %v1487
    %v1489 = vrot.slane %v1488, 2
    %v1490 = vadd.f32 %v1488, %v1489
    %v1491 = vrot.slane %v1490, 1
    %v1492 = vadd.f32 %v1490, %v1491
    %v1493 = vsel %vm359, %v1485, 0.0
    %v1494 = vrot.slane %v1493, 4
    %v1495 = vadd.f32 %v1493, %v1494
    %v1496 = vrot.slane %v1495, 2
    %v1497 = vadd.f32 %v1495, %v1496
    %v1498 = vrot.slane %v1497, 1
    %v1499 = vadd.f32 %v1497, %v1498
    %v1502 = vsel %vm1467, %v1499, %v1492
    %1504 = vst.msk [vmem:[#allocation2 + $0x2] sm:$0x3] %vm1470, %v1502
    %v1505 = vmul.f32 %v998, %v1474
    %v1506 = vmul.f32 %v1000, %v1475
    %v1507 = vadd.f32 %v1505, %v1421
    %v1508 = vadd.f32 %v1506, %v1422
    %s1510 = sor.u32 256, 40
    %1511 = vbcast.lane.b32.xlu0 %v1064, %s1510
    %v1512 = vpop.permute.xlu0 %1511
    %s1514 = sor.u32 256, 40
    %1515 = vbcast.lane.b32.xlu0 %v1072, %s1514
    %v1516 = vpop.permute.xlu0 %1515
    %v1517 = vmul.f32 %v1507, %v1512
    %v1518 = vmul.f32 %v1508, %v1516
    %v1519 = vsel %vm359, %v1517, 0.0
    %v1520 = vrot.slane %v1519, 4
    %v1521 = vadd.f32 %v1519, %v1520
    %v1522 = vrot.slane %v1521, 2
    %v1523 = vadd.f32 %v1521, %v1522
    %v1524 = vrot.slane %v1523, 1
    %v1525 = vadd.f32 %v1523, %v1524
    %v1526 = vsel %vm359, %v1518, 0.0
    %v1527 = vrot.slane %v1526, 4
    %v1528 = vadd.f32 %v1526, %v1527
    %v1529 = vrot.slane %v1528, 2
    %v1530 = vadd.f32 %v1528, %v1529
    %v1531 = vrot.slane %v1530, 1
    %v1532 = vadd.f32 %v1530, %v1531
    %v1535 = vsel %vm1467, %v1532, %v1525
    %1537 = vst.msk [vmem:[#allocation2 + $0x4] sm:$0x3] %vm1470, %v1535
    %v1538 = vmul.f32 %v1002, %v1507
    %v1539 = vmul.f32 %v1004, %v1508
    %v1540 = vadd.f32 %v1538, %v1423
    %v1541 = vadd.f32 %v1539, %v1424
    %s1543 = sor.u32 256, 40
    %1544 = vbcast.lane.b32.xlu0 %v1080, %s1543
    %v1545 = vpop.permute.xlu0 %1544
    %s1547 = sor.u32 256, 40
    %1548 = vbcast.lane.b32.xlu0 %v1088, %s1547
    %v1549 = vpop.permute.xlu0 %1548
    %v1550 = vmul.f32 %v1540, %v1545
    %v1551 = vmul.f32 %v1541, %v1549
    %v1552 = vsel %vm359, %v1550, 0.0
    %v1553 = vrot.slane %v1552, 4
    %v1554 = vadd.f32 %v1552, %v1553
    %v1555 = vrot.slane %v1554, 2
    %v1556 = vadd.f32 %v1554, %v1555
    %v1557 = vrot.slane %v1556, 1
    %v1558 = vadd.f32 %v1556, %v1557
    %v1559 = vsel %vm359, %v1551, 0.0
    %v1560 = vrot.slane %v1559, 4
    %v1561 = vadd.f32 %v1559, %v1560
    %v1562 = vrot.slane %v1561, 2
    %v1563 = vadd.f32 %v1561, %v1562
    %v1564 = vrot.slane %v1563, 1
    %v1565 = vadd.f32 %v1563, %v1564
    %v1568 = vsel %vm1467, %v1565, %v1558
    %1570 = vst.msk [vmem:[#allocation2 + $0x6] sm:$0x3] %vm1470, %v1568
    %v1571 = vmul.f32 %v1006, %v1540
    %v1572 = vmul.f32 %v1008, %v1541
    %v1573 = vadd.f32 %v1571, %v1425
    %v1574 = vadd.f32 %v1572, %v1426
    %s1576 = sor.u32 256, 40
    %1577 = vbcast.lane.b32.xlu0 %v1096, %s1576
    %v1578 = vpop.permute.xlu0 %1577
    %s1580 = sor.u32 256, 40
    %1581 = vbcast.lane.b32.xlu0 %v1104, %s1580
    %v1582 = vpop.permute.xlu0 %1581
    %v1583 = vmul.f32 %v1573, %v1578
    %v1584 = vmul.f32 %v1574, %v1582
    %v1585 = vsel %vm359, %v1583, 0.0
    %v1586 = vrot.slane %v1585, 4
    %v1587 = vadd.f32 %v1585, %v1586
    %v1588 = vrot.slane %v1587, 2
    %v1589 = vadd.f32 %v1587, %v1588
    %v1590 = vrot.slane %v1589, 1
    %v1591 = vadd.f32 %v1589, %v1590
    %v1592 = vsel %vm359, %v1584, 0.0
    %v1593 = vrot.slane %v1592, 4
    %v1594 = vadd.f32 %v1592, %v1593
    %v1595 = vrot.slane %v1594, 2
    %v1596 = vadd.f32 %v1594, %v1595
    %v1597 = vrot.slane %v1596, 1
    %v1598 = vadd.f32 %v1596, %v1597
    %v1601 = vsel %vm1467, %v1598, %v1591
    %1603 = vst.msk [vmem:[#allocation2 + $0x8] sm:$0x3] %vm1470, %v1601
    %v1604 = vmul.f32 %v1010, %v1573
    %v1605 = vmul.f32 %v1012, %v1574
    %v1606 = vadd.f32 %v1604, %v1427
    %v1607 = vadd.f32 %v1605, %v1428
    %s1609 = sor.u32 256, 40
    %1610 = vbcast.lane.b32.xlu0 %v1112, %s1609
    %v1611 = vpop.permute.xlu0 %1610
    %s1613 = sor.u32 256, 40
    %1614 = vbcast.lane.b32.xlu0 %v1120, %s1613
    %v1615 = vpop.permute.xlu0 %1614
    %v1616 = vmul.f32 %v1606, %v1611
    %v1617 = vmul.f32 %v1607, %v1615
    %v1618 = vsel %vm359, %v1616, 0.0
    %v1619 = vrot.slane %v1618, 4
    %v1620 = vadd.f32 %v1618, %v1619
    %v1621 = vrot.slane %v1620, 2
    %v1622 = vadd.f32 %v1620, %v1621
    %v1623 = vrot.slane %v1622, 1
    %v1624 = vadd.f32 %v1622, %v1623
    %v1625 = vsel %vm359, %v1617, 0.0
    %v1626 = vrot.slane %v1625, 4
    %v1627 = vadd.f32 %v1625, %v1626
    %v1628 = vrot.slane %v1627, 2
    %v1629 = vadd.f32 %v1627, %v1628
    %v1630 = vrot.slane %v1629, 1
    %v1631 = vadd.f32 %v1629, %v1630
    %v1634 = vsel %vm1467, %v1631, %v1624
    %1636 = vst.msk [vmem:[#allocation2 + $0xa] sm:$0x3] %vm1470, %v1634
    %v1637 = vmul.f32 %v1014, %v1606
    %v1638 = vmul.f32 %v1016, %v1607
    %v1639 = vadd.f32 %v1637, %v1429
    %v1640 = vadd.f32 %v1638, %v1430
    %s1642 = sor.u32 256, 40
    %1643 = vbcast.lane.b32.xlu0 %v1128, %s1642
    %v1644 = vpop.permute.xlu0 %1643
    %s1646 = sor.u32 256, 40
    %1647 = vbcast.lane.b32.xlu0 %v1136, %s1646
    %v1648 = vpop.permute.xlu0 %1647
    %v1649 = vmul.f32 %v1639, %v1644
    %v1650 = vmul.f32 %v1640, %v1648
    %v1651 = vsel %vm359, %v1649, 0.0
    %v1652 = vrot.slane %v1651, 4
    %v1653 = vadd.f32 %v1651, %v1652
    %v1654 = vrot.slane %v1653, 2
    %v1655 = vadd.f32 %v1653, %v1654
    %v1656 = vrot.slane %v1655, 1
    %v1657 = vadd.f32 %v1655, %v1656
    %v1658 = vsel %vm359, %v1650, 0.0
    %v1659 = vrot.slane %v1658, 4
    %v1660 = vadd.f32 %v1658, %v1659
    %v1661 = vrot.slane %v1660, 2
    %v1662 = vadd.f32 %v1660, %v1661
    %v1663 = vrot.slane %v1662, 1
    %v1664 = vadd.f32 %v1662, %v1663
    %v1667 = vsel %vm1467, %v1664, %v1657
    %1669 = vst.msk [vmem:[#allocation2 + $0xc] sm:$0x3] %vm1470, %v1667
    %v1670 = vmul.f32 %v1018, %v1639
    %v1671 = vmul.f32 %v1020, %v1640
    %v1672 = vadd.f32 %v1670, %v1431
    %v1673 = vadd.f32 %v1671, %v1432
    %s1675 = sor.u32 256, 40
    %1676 = vbcast.lane.b32.xlu0 %v1144, %s1675
    %v1677 = vpop.permute.xlu0 %1676
    %s1679 = sor.u32 256, 40
    %1680 = vbcast.lane.b32.xlu0 %v1152, %s1679
    %v1681 = vpop.permute.xlu0 %1680
    %v1682 = vmul.f32 %v1672, %v1677
    %v1683 = vmul.f32 %v1673, %v1681
    %v1684 = vsel %vm359, %v1682, 0.0
    %v1685 = vrot.slane %v1684, 4
    %v1686 = vadd.f32 %v1684, %v1685
    %v1687 = vrot.slane %v1686, 2
    %v1688 = vadd.f32 %v1686, %v1687
    %v1689 = vrot.slane %v1688, 1
    %v1690 = vadd.f32 %v1688, %v1689
    %v1691 = vsel %vm359, %v1683, 0.0
    %v1692 = vrot.slane %v1691, 4
    %v1693 = vadd.f32 %v1691, %v1692
    %v1694 = vrot.slane %v1693, 2
    %v1695 = vadd.f32 %v1693, %v1694
    %v1696 = vrot.slane %v1695, 1
    %v1697 = vadd.f32 %v1695, %v1696
    %v1700 = vsel %vm1467, %v1697, %v1690
    %1702 = vst.msk [vmem:[#allocation2 + $0xe] sm:$0x3] %vm1470, %v1700
    %v1703 = vmul.f32 %v1022, %v1672
    %v1704 = vmul.f32 %v1024, %v1673
    %v1705 = vadd.f32 %v1703, %v1433
    %v1706 = vadd.f32 %v1704, %v1434
    %s1708 = sor.u32 256, 40
    %1709 = vbcast.lane.b32.xlu0 %v1160, %s1708
    %v1710 = vpop.permute.xlu0 %1709
    %s1712 = sor.u32 256, 40
    %1713 = vbcast.lane.b32.xlu0 %v1168, %s1712
    %v1714 = vpop.permute.xlu0 %1713
    %v1715 = vmul.f32 %v1705, %v1710
    %v1716 = vmul.f32 %v1706, %v1714
    %v1717 = vsel %vm359, %v1715, 0.0
    %v1718 = vrot.slane %v1717, 4
    %v1719 = vadd.f32 %v1717, %v1718
    %v1720 = vrot.slane %v1719, 2
    %v1721 = vadd.f32 %v1719, %v1720
    %v1722 = vrot.slane %v1721, 1
    %v1723 = vadd.f32 %v1721, %v1722
    %v1724 = vsel %vm359, %v1716, 0.0
    %v1725 = vrot.slane %v1724, 4
    %v1726 = vadd.f32 %v1724, %v1725
    %v1727 = vrot.slane %v1726, 2
    %v1728 = vadd.f32 %v1726, %v1727
    %v1729 = vrot.slane %v1728, 1
    %v1730 = vadd.f32 %v1728, %v1729
    %v1733 = vsel %vm1467, %v1730, %v1723
    %1735 = vst.msk [vmem:[#allocation2 + $0x10] sm:$0x3] %vm1470, %v1733
    %v1736 = vmul.f32 %v1026, %v1705
    %v1737 = vmul.f32 %v1028, %v1706
    %v1738 = vadd.f32 %v1736, %v1435
    %v1739 = vadd.f32 %v1737, %v1436
    %s1741 = sor.u32 256, 40
    %1742 = vbcast.lane.b32.xlu0 %v1176, %s1741
    %v1743 = vpop.permute.xlu0 %1742
    %s1745 = sor.u32 256, 40
    %1746 = vbcast.lane.b32.xlu0 %v1184, %s1745
    %v1747 = vpop.permute.xlu0 %1746
    %v1748 = vmul.f32 %v1738, %v1743
    %v1749 = vmul.f32 %v1739, %v1747
    %v1750 = vsel %vm359, %v1748, 0.0
    %v1751 = vrot.slane %v1750, 4
    %v1752 = vadd.f32 %v1750, %v1751
    %v1753 = vrot.slane %v1752, 2
    %v1754 = vadd.f32 %v1752, %v1753
    %v1755 = vrot.slane %v1754, 1
    %v1756 = vadd.f32 %v1754, %v1755
    %v1757 = vsel %vm359, %v1749, 0.0
    %v1758 = vrot.slane %v1757, 4
    %v1759 = vadd.f32 %v1757, %v1758
    %v1760 = vrot.slane %v1759, 2
    %v1761 = vadd.f32 %v1759, %v1760
    %v1762 = vrot.slane %v1761, 1
    %v1763 = vadd.f32 %v1761, %v1762
    %v1766 = vsel %vm1467, %v1763, %v1756
    %1768 = vst.msk [vmem:[#allocation2 + $0x12] sm:$0x3] %vm1470, %v1766
    %v1769 = vld [vmem:[#allocation2] sm:$0xff]
    %v1770 = vld [vmem:[#allocation2 + $0x8] sm:$0xff]
    %v1771 = vld [vmem:[#allocation2 + $0x10] sm:$0xf]
    %v1772 = vlaneseq
    %v1773 = vshrl.u32 %v1772, 7
    %v1774 = vsub.s32 4, %v1773
    %v1775 = vrot.slane %v454, %v1774
    %v1776 = vmul.f32 %v1775, %v591
    %v1777 = vmul.f32 %v1775, %v592
    %v1778 = vmul.f32 %v1775, %v593
    %v1779 = vadd.f32 %v1769, %v1776
    %v1780 = vadd.f32 %v1770, %v1777
    %v1781 = vadd.f32 %v1771, %v1778
    %v1782 = vxor.u32 %v436, 2147483648
    %v1783 = vxor.u32 %v441, 2147483648
    %v1784 = vxor.u32 %v446, 2147483648
    %v1785 = vmul.f32 %v1782, 1.442695
    %v1786 = vpow.pop %v1785
    %v1787 = vmul.f32 %v1783, 1.442695
    %v1788 = vpow.pop %v1787
    %v1789 = vmul.f32 %v1784, 1.442695
    %v1790 = vpow.pop %v1789
    %v1791 = vadd.f32 %v1786, 1.0
    %v1792 = vadd.f32 %v1788, 1.0
    %v1793 = vadd.f32 %v1790, 1.0
    %v1794 = vrcp.pop %v1791
    %v1795 = vmul.f32 1.0, %v1794
    %v1796 = vrcp.pop %v1792
    %v1797 = vmul.f32 1.0, %v1796
    %v1798 = vrcp.pop %v1793
    %v1799 = vmul.f32 1.0, %v1798
    %v1800 = vmul.f32 %v436, %v1795
    %v1801 = vmul.f32 %v441, %v1797
    %v1802 = vmul.f32 %v446, %v1799
    %1806 = vrot.lane.b32.xlu0 %v1800, 96
    %v1807 = vpop.permute.xlu0 %1806
    %1808 = vrot.lane.b32.xlu0 %v1801, 96
    %v1809 = vpop.permute.xlu0 %1808
    %1810 = vrot.lane.b32.xlu0 %v1802, 96
    %v1811 = vpop.permute.xlu0 %1810
    %v1815 = vmul.f32 %v1779, %v1807
    %v1816 = vmul.f32 %v1780, %v1809
    %v1817 = vmul.f32 %v1781, %v1811
    %s1818 = scalar_lea.vmem [#allocation14], 32
    %v1819 = vld [vmem:[%s1818] sm:$0xff]
    %v1820 = vld [vmem:[%s1818 + $0x8] sm:$0xff]
    %v1821 = vld [vmem:[%s1818 + $0x10] sm:$0xff]
    %v1822 = vld [vmem:[%s1818 + $0x18] sm:$0xff]
    %s1823 = scalar_lea.vmem [#allocation15], 8
    %v1824 = vld [vmem:[%s1823] sm:$0xff]
    %s1825 = scalar_lea.vmem [#allocation18], 8
    %v1826 = vld [vmem:[%s1825] sm:$0x1f]
    %1829 = vrot.lane.b32.xlu0 %v436, 64
    %v1830 = vpop.permute.xlu0 %1829
    %1831 = vrot.lane.b32.xlu0 %v441, 64
    %v1832 = vpop.permute.xlu0 %1831
    %1833 = vrot.lane.b32.xlu0 %v446, 64
    %v1834 = vpop.permute.xlu0 %1833
    %v1838 = vsel %vm455, %v253, 0
    %v1841 = vsel %vm455, %v254, 0
    %v1844 = vsel %vm455, %v255, 0
    %v1846 = vsel %vm465, %v1834, 0
    %1848 = vmatprep.subr.mxu0 0.0
    %1849 = vmatpush1.msra.mxu0 %v1830
    %1850 = vmatprep.subr.mxu0 0.0
    %1851 = vmatpush1.msra.mxu0 %v1832
    %1852 = vmatprep.subr.mxu0 0.0
    %1853 = vmatpush1.msra.mxu0 %v1846
    %1854 = vmatprep.subr.mxu0 0.0
    %1855 = vmatpush1.msra.mxu0 0.0
    %1856 = vmatprep.subr.mxu0 0.0
    %1857 = vmatpush1.msra.mxu0 0.0
    %1858 = vmatprep.subr.mxu0 0.0
    %1859 = vmatpush1.msra.mxu0 0.0
    %1860 = vmatprep.subr.mxu0 0.0
    %1861 = vmatpush1.msra.mxu0 0.0
    %1862 = vmatprep.subr.mxu0 0.0
    %1863 = vmatpush1.msra.mxu0 0.0
    %1864 = vmatprep.subr.mxu0 0.0
    %1865 = vmatpush1.msra.mxu0 0.0
    %1866 = vmatprep.subr.mxu0 0.0
    %1867 = vmatpush1.msra.mxu0 0.0
    %1868 = vmatprep.subr.mxu0 0.0
    %1869 = vmatpush1.msra.mxu0 0.0
    %1870 = vmatprep.subr.mxu0 0.0
    %1871 = vmatpush1.msra.mxu0 0.0
    %1872 = vmatprep.subr.mxu0 0.0
    %1873 = vmatpush1.msra.mxu0 0.0
    %1874 = vmatprep.subr.mxu0 0.0
    %1875 = vmatpush1.msra.mxu0 0.0
    %1876 = vmatprep.subr.mxu0 0.0
    %1877 = vmatpush1.msra.mxu0 0.0
    %1878 = vmatprep.subr.mxu0 0.0
    %1879 = vmatpush1.msra.mxu0 0.0
    %1880 = vmatprep.subr.mxu0 0.0
    %1881 = vmatpush1.msra.mxu0 0.0
    %1882 = vmatprep.subr.mxu0 0.0
    %1883 = vmatpush1.msra.mxu0 0.0
    %1884 = vmatprep.subr.mxu0 0.0
    %1885 = vmatpush1.msra.mxu0 0.0
    %1886 = vmatprep.subr.mxu0 0.0
    %1887 = vmatpush1.msra.mxu0 0.0
    %1888 = vmatprep.subr.mxu0 0.0
    %1889 = vmatpush1.msra.mxu0 0.0
    %1890 = vmatprep.subr.mxu0 0.0
    %1891 = vmatpush1.msra.mxu0 0.0
    %1892 = vmatprep.subr.mxu0 0.0
    %1893 = vmatpush1.msra.mxu0 0.0
    %1894 = vmatprep.subr.mxu0 0.0
    %1895 = vmatpush1.msra.mxu0 0.0
    %1896 = vmatprep.subr.mxu0 0.0
    %1897 = vmatpush1.msra.mxu0 0.0
    %1898 = vmatprep.subr.mxu0 0.0
    %1899 = vmatpush1.msra.mxu0 0.0
    %1900 = vmatprep.subr.mxu0 0.0
    %1901 = vmatpush1.msra.mxu0 0.0
    %1902 = vmatprep.subr.mxu0 0.0
    %1903 = vmatpush1.msra.mxu0 0.0
    %1904 = vmatprep.subr.mxu0 0.0
    %1905 = vmatpush1.msra.mxu0 0.0
    %1906 = vmatprep.subr.mxu0 0.0
    %1907 = vmatpush1.msra.mxu0 0.0
    %1908 = vmatprep.subr.mxu0 0.0
    %1909 = vmatpush1.msra.mxu0 0.0
    %1910 = vmatprep.subr.mxu0 0.0
    %1911 = vmatpush1.msra.mxu0 0.0
    %1912 = vmatprep.mubr.f32.mxu0 0.0
    %1913 = vmatmul.mubr.f32.gmra.mrb[0].mxu0 %v1838
    %v1914 = vpop.f32.mrb[0].mxu0
    %v1915 = vadd.f32 0.0, %v1914
    %v1916 = vpop.f32.mrb[0].mxu0
    %1917 = vmatprep.mubr.f32.mxu0 0.0
    %1918 = vmatmul.mubr.f32.gmra.mrb[0].mxu0 %v1841
    %v1919 = vpop.f32.mrb[0].mxu0
    %v1920 = vadd.f32 0.0, %v1919
    %v1921 = vpop.f32.mrb[0].mxu0
    %1922 = vmatprep.mubr.f32.mxu0 0.0
    %1923 = vmatmul.mubr.f32.gmra.mrb[0].mxu0 %v1844
    %v1924 = vpop.f32.mrb[0].mxu0
    %v1925 = vadd.f32 0.0, %v1924
    %v1926 = vpop.f32.mrb[0].mxu0
    %1927 = vdwg.mxu0
    %v1928 = vlaneseq
    %v1929 = vshrl.u32 %v1928, 7
    %v1930 = vsub.s32 0, %v1929
    %v1931 = vrot.slane %v1826, %v1930
    %v1932 = vmul.f32 %v1915, %v1931
    %v1933 = vmul.f32 %v1920, %v1931
    %v1934 = vmul.f32 %v1925, %v1931
    %v1935 = vlaneseq
    %v1936 = vshrl.u32 %v1935, 7
    %v1937 = vsub.s32 1, %v1936
    %v1938 = vrot.slane %v1826, %v1937
    %1940 = vrot.lane.b32.xlu0 %v1938, 64
    %v1941 = vpop.permute.xlu0 %1940
    %v1943 = vmul.f32 %v436, %v1941
    %v1944 = vmul.f32 %v441, %v1941
    %v1945 = vmul.f32 %v446, %v1941
    %1949 = vrot.lane.b32.xlu0 %v1943, 64
    %v1950 = vpop.permute.xlu0 %1949
    %1951 = vrot.lane.b32.xlu0 %v1944, 64
    %v1952 = vpop.permute.xlu0 %1951
    %1953 = vrot.lane.b32.xlu0 %v1945, 64
    %v1954 = vpop.permute.xlu0 %1953
    %v1958 = vadd.f32 %v1932, %v1950
    %v1959 = vadd.f32 %v1933, %v1952
    %v1960 = vadd.f32 %v1934, %v1954
    %v1961 = vlaneseq
    %v1962 = vshrl.u32 %v1961, 7
    %v1963 = vsub.s32 2, %v1962
    %v1964 = vrot.slane %v1826, %v1963
    %v1965 = vadd.f32 %v1958, %v1964
    %v1966 = vadd.f32 %v1959, %v1964
    %v1967 = vadd.f32 %v1960, %v1964
    %v1968 = vxor.u32 %v1965, 2147483648
    %v1969 = vxor.u32 %v1966, 2147483648
    %v1970 = vxor.u32 %v1967, 2147483648
    %v1971 = vmul.f32 %v1968, 1.442695
    %v1972 = vpow.pop %v1971
    %v1973 = vmul.f32 %v1969, 1.442695
    %v1974 = vpow.pop %v1973
    %v1975 = vmul.f32 %v1970, 1.442695
    %v1976 = vpow.pop %v1975
    %v1977 = vadd.f32 %v1972, 1.0
    %v1978 = vadd.f32 %v1974, 1.0
    %v1979 = vadd.f32 %v1976, 1.0
    %v1980 = vrcp.pop %v1977
    %v1981 = vmul.f32 1.0, %v1980
    %v1982 = vrcp.pop %v1978
    %v1983 = vmul.f32 1.0, %v1982
    %v1984 = vrcp.pop %v1979
    %v1985 = vmul.f32 1.0, %v1984
    %v1986 = vmul.f32 %v1965, %v1981
    %v1987 = vmul.f32 %v1966, %v1983
    %v1988 = vmul.f32 %v1967, %v1985
    %v1990 = vsel %vm359, %v1986, 0
    %v1993 = vsel %vm359, %v1987, 0
    %v1996 = vsel %vm359, %v1988, 0
    %1998 = vmatprep.subr.mxu0 0.0
    %1999 = vmatpush1.msra.mxu0 %v1819
    %2000 = vmatprep.subr.mxu0 0.0
    %2001 = vmatpush1.msra.mxu0 %v1820
    %2002 = vmatprep.subr.mxu0 0.0
    %2003 = vmatpush1.msra.mxu0 %v1821
    %2004 = vmatprep.subr.mxu0 0.0
    %2005 = vmatpush1.msra.mxu0 %v1822
    %2006 = vmatprep.subr.mxu0 0.0
    %2007 = vmatpush1.msra.mxu0 0.0
    %2008 = vmatprep.subr.mxu0 0.0
    %2009 = vmatpush1.msra.mxu0 0.0
    %2010 = vmatprep.subr.mxu0 0.0
    %2011 = vmatpush1.msra.mxu0 0.0
    %2012 = vmatprep.subr.mxu0 0.0
    %2013 = vmatpush1.msra.mxu0 0.0
    %2014 = vmatprep.subr.mxu0 0.0
    %2015 = vmatpush1.msra.mxu0 0.0
    %2016 = vmatprep.subr.mxu0 0.0
    %2017 = vmatpush1.msra.mxu0 0.0
    %2018 = vmatprep.subr.mxu0 0.0
    %2019 = vmatpush1.msra.mxu0 0.0
    %2020 = vmatprep.subr.mxu0 0.0
    %2021 = vmatpush1.msra.mxu0 0.0
    %2022 = vmatprep.subr.mxu0 0.0
    %2023 = vmatpush1.msra.mxu0 0.0
    %2024 = vmatprep.subr.mxu0 0.0
    %2025 = vmatpush1.msra.mxu0 0.0
    %2026 = vmatprep.subr.mxu0 0.0
    %2027 = vmatpush1.msra.mxu0 0.0
    %2028 = vmatprep.subr.mxu0 0.0
    %2029 = vmatpush1.msra.mxu0 0.0
    %2030 = vmatprep.subr.mxu0 0.0
    %2031 = vmatpush1.msra.mxu0 0.0
    %2032 = vmatprep.subr.mxu0 0.0
    %2033 = vmatpush1.msra.mxu0 0.0
    %2034 = vmatprep.subr.mxu0 0.0
    %2035 = vmatpush1.msra.mxu0 0.0
    %2036 = vmatprep.subr.mxu0 0.0
    %2037 = vmatpush1.msra.mxu0 0.0
    %2038 = vmatprep.subr.mxu0 0.0
    %2039 = vmatpush1.msra.mxu0 0.0
    %2040 = vmatprep.subr.mxu0 0.0
    %2041 = vmatpush1.msra.mxu0 0.0
    %2042 = vmatprep.subr.mxu0 0.0
    %2043 = vmatpush1.msra.mxu0 0.0
    %2044 = vmatprep.subr.mxu0 0.0
    %2045 = vmatpush1.msra.mxu0 0.0
    %2046 = vmatprep.subr.mxu0 0.0
    %2047 = vmatpush1.msra.mxu0 0.0
    %2048 = vmatprep.subr.mxu0 0.0
    %2049 = vmatpush1.msra.mxu0 0.0
    %2050 = vmatprep.subr.mxu0 0.0
    %2051 = vmatpush1.msra.mxu0 0.0
    %2052 = vmatprep.subr.mxu0 0.0
    %2053 = vmatpush1.msra.mxu0 0.0
    %2054 = vmatprep.subr.mxu0 0.0
    %2055 = vmatpush1.msra.mxu0 0.0
    %2056 = vmatprep.subr.mxu0 0.0
    %2057 = vmatpush1.msra.mxu0 0.0
    %2058 = vmatprep.subr.mxu0 0.0
    %2059 = vmatpush1.msra.mxu0 0.0
    %2060 = vmatprep.subr.mxu0 0.0
    %2061 = vmatpush1.msra.mxu0 0.0
    %2062 = vmatprep.mubr.f32.mxu0 0.0
    %2063 = vmatmul.mubr.f32.gmra.mrb[0].mxu0 %v1990
    %v2064 = vpop.f32.mrb[0].mxu0
    %v2065 = vadd.f32 0.0, %v2064
    %v2066 = vpop.f32.mrb[0].mxu0
    %2067 = vmatprep.mubr.f32.mxu0 0.0
    %2068 = vmatmul.mubr.f32.gmra.mrb[0].mxu0 %v1993
    %v2069 = vpop.f32.mrb[0].mxu0
    %v2070 = vadd.f32 0.0, %v2069
    %v2071 = vpop.f32.mrb[0].mxu0
    %2072 = vmatprep.mubr.f32.mxu0 0.0
    %2073 = vmatmul.mubr.f32.gmra.mrb[0].mxu0 %v1996
    %v2074 = vpop.f32.mrb[0].mxu0
    %v2075 = vadd.f32 0.0, %v2074
    %v2076 = vpop.f32.mrb[0].mxu0
    %2077 = vdwg.mxu0
    %v2078 = vlaneseq
    %v2079 = vshrl.u32 %v2078, 7
    %v2080 = vsub.s32 3, %v2079
    %v2081 = vrot.slane %v1826, %v2080
    %v2082 = vadd.f32 %v2065, %v2081
    %v2083 = vadd.f32 %v2070, %v2081
    %v2084 = vadd.f32 %v2075, %v2081
    %v2085 = vmax.f32 %v2082, 0.0
    %v2086 = vmax.f32 %v2083, 0.0
    %v2087 = vmax.f32 %v2084, 0.0
    %vm2088 = vcmp.ne.f32.partialorder %v2082, %v2082
    %vm2089 = vcmp.ne.f32.partialorder %v2083, %v2083
    %vm2090 = vcmp.ne.f32.partialorder %v2084, %v2084
    %v2091 = vadd.f32 %v2082, 0.0
    %v2092 = vadd.f32 %v2083, 0.0
    %v2093 = vadd.f32 %v2084, 0.0
    %v2094 = vand.u32 2147483647, %v2082
    %v2095 = vand.u32 2147483647, %v2083
    %v2096 = vand.u32 2147483647, %v2084
    %v2097 = vsub.f32 0.0, %v2094
    %v2098 = vsub.f32 0.0, %v2095
    %v2099 = vsub.f32 0.0, %v2096
    %v2100 = vmul.f32 %v2097, 1.442695
    %v2101 = vpow.pop %v2100
    %v2102 = vmul.f32 %v2098, 1.442695
    %v2103 = vpow.pop %v2102
    %v2104 = vmul.f32 %v2099, 1.442695
    %v2105 = vpow.pop %v2104
    %v2106 = vadd.f32 %v2101, 1.0
    %v2107 = vlog2.pop %v2106
    %v2108 = vmul.f32 %v2107, 0.6931472
    %v2109 = vmul.f32 -0.5, %v2101
    %v2110 = vadd.f32 %v2109, 1.0
    %v2111 = vmul.f32 %v2110, %v2101
    %v2112 = vand.u32 2147483647, %v2101
    %vm2113 = vcmp.lt.f32.partialorder %v2112, 0.0004427343
    %v2114 = vsel %vm2113, %v2111, %v2108
    %v2115 = vadd.f32 %v2103, 1.0
    %v2116 = vlog2.pop %v2115
    %v2117 = vmul.f32 %v2116, 0.6931472
    %v2118 = vmul.f32 -0.5, %v2103
    %v2119 = vadd.f32 %v2118, 1.0
    %v2120 = vmul.f32 %v2119, %v2103
    %v2121 = vand.u32 2147483647, %v2103
    %vm2122 = vcmp.lt.f32.partialorder %v2121, 0.0004427343
    %v2123 = vsel %vm2122, %v2120, %v2117
    %v2124 = vadd.f32 %v2105, 1.0
    %v2125 = vlog2.pop %v2124
    %v2126 = vmul.f32 %v2125, 0.6931472
    %v2127 = vmul.f32 -0.5, %v2105
    %v2128 = vadd.f32 %v2127, 1.0
    %v2129 = vmul.f32 %v2128, %v2105
    %v2130 = vand.u32 2147483647, %v2105
    %vm2131 = vcmp.lt.f32.partialorder %v2130, 0.0004427343
    %v2132 = vsel %vm2131, %v2129, %v2126
    %v2133 = vadd.f32 %v2085, %v2114
    %v2134 = vadd.f32 %v2086, %v2123
    %v2135 = vadd.f32 %v2087, %v2132
    %v2136 = vsel %vm2088, %v2091, %v2133
    %v2137 = vsel %vm2089, %v2092, %v2134
    %v2138 = vsel %vm2090, %v2093, %v2135
    %v2142 = vcombine.high %v2136, %v2136
    %v2144 = vunpack.c.l.s4 1966171168
    %v2145 = vunpack.c.0.s8 %v2144
    %v2146 = vlaneseq
    %v2147 = vshrl.u32 %v2146, 7
    %v2148 = vsub.s32 %v2145, %v2147
    %v2149 = vrot.slane %v2136, %v2148
    %v2151 = vunpack.c.l.s4 1966171168
    %v2152 = vunpack.c.0.s8 %v2151
    %v2153 = vlaneseq
    %v2154 = vshrl.u32 %v2153, 7
    %v2155 = vsub.s32 %v2152, %v2154
    %v2156 = vrot.slane %v2142, %v2155
    %v2157 = vcombine.high %v2149, %v2149
    %v2158 = vcombine.high %v2156, %v2156
    %v2160 = vunpack.c.l.s4 1966171168
    %v2161 = vunpack.c.0.s8 %v2160
    %v2162 = vlaneseq
    %v2163 = vshrl.u32 %v2162, 7
    %v2164 = vsub.s32 %v2161, %v2163
    %v2165 = vrot.slane %v2149, %v2164
    %v2167 = vunpack.c.l.s4 1966171168
    %v2168 = vunpack.c.0.s8 %v2167
    %v2169 = vlaneseq
    %v2170 = vshrl.u32 %v2169, 7
    %v2171 = vsub.s32 %v2168, %v2170
    %v2172 = vrot.slane %v2156, %v2171
    %v2174 = vunpack.c.l.s4 1966171168
    %v2175 = vunpack.c.0.s8 %v2174
    %v2176 = vlaneseq
    %v2177 = vshrl.u32 %v2176, 7
    %v2178 = vsub.s32 %v2175, %v2177
    %v2179 = vrot.slane %v2157, %v2178
    %v2181 = vunpack.c.l.s4 1966171168
    %v2182 = vunpack.c.0.s8 %v2181
    %v2183 = vlaneseq
    %v2184 = vshrl.u32 %v2183, 7
    %v2185 = vsub.s32 %v2182, %v2184
    %v2186 = vrot.slane %v2158, %v2185
    %v2187 = vcombine.high %v2165, %v2165
    %v2188 = vcombine.high %v2172, %v2172
    %v2189 = vcombine.high %v2179, %v2179
    %v2190 = vcombine.high %v2186, %v2186
    %v2191 = vcombine.high %v2137, %v2137
    %v2193 = vunpack.c.l.s4 1966171168
    %v2194 = vunpack.c.0.s8 %v2193
    %v2195 = vlaneseq
    %v2196 = vshrl.u32 %v2195, 7
    %v2197 = vsub.s32 %v2194, %v2196
    %v2198 = vrot.slane %v2137, %v2197
    %v2200 = vunpack.c.l.s4 1966171168
    %v2201 = vunpack.c.0.s8 %v2200
    %v2202 = vlaneseq
    %v2203 = vshrl.u32 %v2202, 7
    %v2204 = vsub.s32 %v2201, %v2203
    %v2205 = vrot.slane %v2191, %v2204
    %v2206 = vcombine.high %v2198, %v2198
    %v2207 = vcombine.high %v2205, %v2205
    %v2209 = vunpack.c.l.s4 1966171168
    %v2210 = vunpack.c.0.s8 %v2209
    %v2211 = vlaneseq
    %v2212 = vshrl.u32 %v2211, 7
    %v2213 = vsub.s32 %v2210, %v2212
    %v2214 = vrot.slane %v2198, %v2213
    %v2216 = vunpack.c.l.s4 1966171168
    %v2217 = vunpack.c.0.s8 %v2216
    %v2218 = vlaneseq
    %v2219 = vshrl.u32 %v2218, 7
    %v2220 = vsub.s32 %v2217, %v2219
    %v2221 = vrot.slane %v2205, %v2220
    %v2223 = vunpack.c.l.s4 1966171168
    %v2224 = vunpack.c.0.s8 %v2223
    %v2225 = vlaneseq
    %v2226 = vshrl.u32 %v2225, 7
    %v2227 = vsub.s32 %v2224, %v2226
    %v2228 = vrot.slane %v2206, %v2227
    %v2230 = vunpack.c.l.s4 1966171168
    %v2231 = vunpack.c.0.s8 %v2230
    %v2232 = vlaneseq
    %v2233 = vshrl.u32 %v2232, 7
    %v2234 = vsub.s32 %v2231, %v2233
    %v2235 = vrot.slane %v2207, %v2234
    %v2236 = vcombine.high %v2214, %v2214
    %v2237 = vcombine.high %v2221, %v2221
    %v2238 = vcombine.high %v2228, %v2228
    %v2239 = vcombine.high %v2235, %v2235
    %v2241 = vunpack.c.l.s4 1966171168
    %v2242 = vunpack.c.0.s8 %v2241
    %v2243 = vlaneseq
    %v2244 = vshrl.u32 %v2243, 7
    %v2245 = vsub.s32 %v2242, %v2244
    %v2246 = vrot.slane %v2138, %v2245
    %v2247 = vcombine.high %v2246, %v2246
    %v2249 = vunpack.c.l.s4 1966171168
    %v2250 = vunpack.c.0.s8 %v2249
    %v2251 = vlaneseq
    %v2252 = vshrl.u32 %v2251, 7
    %v2253 = vsub.s32 %v2250, %v2252
    %v2254 = vrot.slane %v2246, %v2253
    %v2256 = vunpack.c.l.s4 1966171168
    %v2257 = vunpack.c.0.s8 %v2256
    %v2258 = vlaneseq
    %v2259 = vshrl.u32 %v2258, 7
    %v2260 = vsub.s32 %v2257, %v2259
    %v2261 = vrot.slane %v2247, %v2260
    %v2262 = vcombine.high %v2254, %v2254
    %v2263 = vcombine.high %v2261, %v2261
    %v2264 = vlaneseq
    %v2265 = vshrl.u32 %v2264, 7
    %v2266 = vsub.s32 0, %v2265
    %v2267 = vrot.slane %v2165, %v2266
    %v2268 = vlaneseq
    %v2269 = vshrl.u32 %v2268, 7
    %v2270 = vsub.s32 0, %v2269
    %v2271 = vrot.slane %v2179, %v2270
    %v2272 = vlaneseq
    %v2273 = vshrl.u32 %v2272, 7
    %v2274 = vsub.s32 0, %v2273
    %v2275 = vrot.slane %v2187, %v2274
    %v2276 = vlaneseq
    %v2277 = vshrl.u32 %v2276, 7
    %v2278 = vsub.s32 0, %v2277
    %v2279 = vrot.slane %v2189, %v2278
    %v2280 = vlaneseq
    %v2281 = vshrl.u32 %v2280, 7
    %v2282 = vsub.s32 0, %v2281
    %v2283 = vrot.slane %v2172, %v2282
    %v2284 = vlaneseq
    %v2285 = vshrl.u32 %v2284, 7
    %v2286 = vsub.s32 0, %v2285
    %v2287 = vrot.slane %v2186, %v2286
    %v2288 = vlaneseq
    %v2289 = vshrl.u32 %v2288, 7
    %v2290 = vsub.s32 0, %v2289
    %v2291 = vrot.slane %v2188, %v2290
    %v2292 = vlaneseq
    %v2293 = vshrl.u32 %v2292, 7
    %v2294 = vsub.s32 0, %v2293
    %v2295 = vrot.slane %v2190, %v2294
    %v2296 = vlaneseq
    %v2297 = vshrl.u32 %v2296, 7
    %v2298 = vsub.s32 0, %v2297
    %v2299 = vrot.slane %v2214, %v2298
    %v2300 = vlaneseq
    %v2301 = vshrl.u32 %v2300, 7
    %v2302 = vsub.s32 0, %v2301
    %v2303 = vrot.slane %v2228, %v2302
    %v2304 = vlaneseq
    %v2305 = vshrl.u32 %v2304, 7
    %v2306 = vsub.s32 0, %v2305
    %v2307 = vrot.slane %v2236, %v2306
    %v2308 = vlaneseq
    %v2309 = vshrl.u32 %v2308, 7
    %v2310 = vsub.s32 0, %v2309
    %v2311 = vrot.slane %v2238, %v2310
    %v2312 = vlaneseq
    %v2313 = vshrl.u32 %v2312, 7
    %v2314 = vsub.s32 0, %v2313
    %v2315 = vrot.slane %v2221, %v2314
    %v2316 = vlaneseq
    %v2317 = vshrl.u32 %v2316, 7
    %v2318 = vsub.s32 0, %v2317
    %v2319 = vrot.slane %v2235, %v2318
    %v2320 = vlaneseq
    %v2321 = vshrl.u32 %v2320, 7
    %v2322 = vsub.s32 0, %v2321
    %v2323 = vrot.slane %v2237, %v2322
    %v2324 = vlaneseq
    %v2325 = vshrl.u32 %v2324, 7
    %v2326 = vsub.s32 0, %v2325
    %v2327 = vrot.slane %v2239, %v2326
    %v2328 = vlaneseq
    %v2329 = vshrl.u32 %v2328, 7
    %v2330 = vsub.s32 0, %v2329
    %v2331 = vrot.slane %v2254, %v2330
    %v2332 = vlaneseq
    %v2333 = vshrl.u32 %v2332, 7
    %v2334 = vsub.s32 0, %v2333
    %v2335 = vrot.slane %v2261, %v2334
    %v2336 = vlaneseq
    %v2337 = vshrl.u32 %v2336, 7
    %v2338 = vsub.s32 0, %v2337
    %v2339 = vrot.slane %v2262, %v2338
    %v2340 = vlaneseq
    %v2341 = vshrl.u32 %v2340, 7
    %v2342 = vsub.s32 0, %v2341
    %v2343 = vrot.slane %v2263, %v2342
    %v2364 = vmul.f32 %v2267, %v1824
    %v2365 = vmul.f32 %v2271, %v1824
    %v2366 = vmul.f32 %v2275, %v1824
    %v2367 = vmul.f32 %v2279, %v1824
    %v2368 = vmul.f32 %v2283, %v1824
    %v2369 = vmul.f32 %v2287, %v1824
    %v2370 = vmul.f32 %v2291, %v1824
    %v2371 = vmul.f32 %v2295, %v1824
    %v2372 = vmul.f32 %v2299, %v1824
    %v2373 = vmul.f32 %v2303, %v1824
    %v2374 = vmul.f32 %v2307, %v1824
    %v2375 = vmul.f32 %v2311, %v1824
    %v2376 = vmul.f32 %v2315, %v1824
    %v2377 = vmul.f32 %v2319, %v1824
    %v2378 = vmul.f32 %v2323, %v1824
    %v2379 = vmul.f32 %v2327, %v1824
    %v2380 = vmul.f32 %v2331, %v1824
    %v2381 = vmul.f32 %v2335, %v1824
    %v2382 = vmul.f32 %v2339, %v1824
    %v2383 = vmul.f32 %v2343, %v1824
    %v2384 = vmul.f32 %v2364, 1.442695
    %v2385 = vpow.pop %v2384
    %v2386 = vmul.f32 %v2365, 1.442695
    %v2387 = vpow.pop %v2386
    %v2388 = vmul.f32 %v2366, 1.442695
    %v2389 = vpow.pop %v2388
    %v2390 = vmul.f32 %v2367, 1.442695
    %v2391 = vpow.pop %v2390
    %v2392 = vmul.f32 %v2368, 1.442695
    %v2393 = vpow.pop %v2392
    %v2394 = vmul.f32 %v2369, 1.442695
    %v2395 = vpow.pop %v2394
    %v2396 = vmul.f32 %v2370, 1.442695
    %v2397 = vpow.pop %v2396
    %v2398 = vmul.f32 %v2371, 1.442695
    %v2399 = vpow.pop %v2398
    %v2400 = vmul.f32 %v2372, 1.442695
    %v2401 = vpow.pop %v2400
    %v2402 = vmul.f32 %v2373, 1.442695
    %v2403 = vpow.pop %v2402
    %v2404 = vmul.f32 %v2374, 1.442695
    %v2405 = vpow.pop %v2404
    %v2406 = vmul.f32 %v2375, 1.442695
    %v2407 = vpow.pop %v2406
    %v2408 = vmul.f32 %v2376, 1.442695
    %v2409 = vpow.pop %v2408
    %v2410 = vmul.f32 %v2377, 1.442695
    %v2411 = vpow.pop %v2410
    %v2412 = vmul.f32 %v2378, 1.442695
    %v2413 = vpow.pop %v2412
    %v2414 = vmul.f32 %v2379, 1.442695
    %v2415 = vpow.pop %v2414
    %v2416 = vmul.f32 %v2380, 1.442695
    %v2417 = vpow.pop %v2416
    %v2418 = vmul.f32 %v2381, 1.442695
    %v2419 = vpow.pop %v2418
    %v2420 = vmul.f32 %v2382, 1.442695
    %v2421 = vpow.pop %v2420
    %v2422 = vmul.f32 %v2383, 1.442695
    %v2423 = vpow.pop %v2422
    %v2424 = vlaneseq
    %v2425 = vshrl.u32 %v2424, 7
    %v2426 = vsub.s32 0, %v2425
    %v2427 = vrot.slane %v2065, %v2426
    %s2429 = sor.u32 256, 32
    %2430 = vbcast.lane.b32.xlu0 %v2427, %s2429
    %v2431 = vpop.permute.xlu0 %2430
    %v2432 = vlaneseq
    %v2433 = vshrl.u32 %v2432, 7
    %v2434 = vsub.s32 1, %v2433
    %v2435 = vrot.slane %v2065, %v2434
    %s2437 = sor.u32 256, 32
    %2438 = vbcast.lane.b32.xlu0 %v2435, %s2437
    %v2439 = vpop.permute.xlu0 %2438
    %v2440 = vlaneseq
    %v2441 = vshrl.u32 %v2440, 7
    %v2442 = vsub.s32 2, %v2441
    %v2443 = vrot.slane %v2065, %v2442
    %s2445 = sor.u32 256, 32
    %2446 = vbcast.lane.b32.xlu0 %v2443, %s2445
    %v2447 = vpop.permute.xlu0 %2446
    %v2448 = vlaneseq
    %v2449 = vshrl.u32 %v2448, 7
    %v2450 = vsub.s32 3, %v2449
    %v2451 = vrot.slane %v2065, %v2450
    %s2453 = sor.u32 256, 32
    %2454 = vbcast.lane.b32.xlu0 %v2451, %s2453
    %v2455 = vpop.permute.xlu0 %2454
    %v2456 = vlaneseq
    %v2457 = vshrl.u32 %v2456, 7
    %v2458 = vsub.s32 4, %v2457
    %v2459 = vrot.slane %v2065, %v2458
    %s2461 = sor.u32 256, 32
    %2462 = vbcast.lane.b32.xlu0 %v2459, %s2461
    %v2463 = vpop.permute.xlu0 %2462
    %v2464 = vlaneseq
    %v2465 = vshrl.u32 %v2464, 7
    %v2466 = vsub.s32 5, %v2465
    %v2467 = vrot.slane %v2065, %v2466
    %s2469 = sor.u32 256, 32
    %2470 = vbcast.lane.b32.xlu0 %v2467, %s2469
    %v2471 = vpop.permute.xlu0 %2470
    %v2472 = vlaneseq
    %v2473 = vshrl.u32 %v2472, 7
    %v2474 = vsub.s32 6, %v2473
    %v2475 = vrot.slane %v2065, %v2474
    %s2477 = sor.u32 256, 32
    %2478 = vbcast.lane.b32.xlu0 %v2475, %s2477
    %v2479 = vpop.permute.xlu0 %2478
    %v2480 = vlaneseq
    %v2481 = vshrl.u32 %v2480, 7
    %v2482 = vsub.s32 7, %v2481
    %v2483 = vrot.slane %v2065, %v2482
    %s2485 = sor.u32 256, 32
    %2486 = vbcast.lane.b32.xlu0 %v2483, %s2485
    %v2487 = vpop.permute.xlu0 %2486
    %v2488 = vlaneseq
    %v2489 = vshrl.u32 %v2488, 7
    %v2490 = vsub.s32 0, %v2489
    %v2491 = vrot.slane %v2070, %v2490
    %s2493 = sor.u32 256, 32
    %2494 = vbcast.lane.b32.xlu0 %v2491, %s2493
    %v2495 = vpop.permute.xlu0 %2494
    %v2496 = vlaneseq
    %v2497 = vshrl.u32 %v2496, 7
    %v2498 = vsub.s32 1, %v2497
    %v2499 = vrot.slane %v2070, %v2498
    %s2501 = sor.u32 256, 32
    %2502 = vbcast.lane.b32.xlu0 %v2499, %s2501
    %v2503 = vpop.permute.xlu0 %2502
    %v2504 = vlaneseq
    %v2505 = vshrl.u32 %v2504, 7
    %v2506 = vsub.s32 2, %v2505
    %v2507 = vrot.slane %v2070, %v2506
    %s2509 = sor.u32 256, 32
    %2510 = vbcast.lane.b32.xlu0 %v2507, %s2509
    %v2511 = vpop.permute.xlu0 %2510
    %v2512 = vlaneseq
    %v2513 = vshrl.u32 %v2512, 7
    %v2514 = vsub.s32 3, %v2513
    %v2515 = vrot.slane %v2070, %v2514
    %s2517 = sor.u32 256, 32
    %2518 = vbcast.lane.b32.xlu0 %v2515, %s2517
    %v2519 = vpop.permute.xlu0 %2518
    %v2520 = vlaneseq
    %v2521 = vshrl.u32 %v2520, 7
    %v2522 = vsub.s32 4, %v2521
    %v2523 = vrot.slane %v2070, %v2522
    %s2525 = sor.u32 256, 32
    %2526 = vbcast.lane.b32.xlu0 %v2523, %s2525
    %v2527 = vpop.permute.xlu0 %2526
    %v2528 = vlaneseq
    %v2529 = vshrl.u32 %v2528, 7
    %v2530 = vsub.s32 5, %v2529
    %v2531 = vrot.slane %v2070, %v2530
    %s2533 = sor.u32 256, 32
    %2534 = vbcast.lane.b32.xlu0 %v2531, %s2533
    %v2535 = vpop.permute.xlu0 %2534
    %v2536 = vlaneseq
    %v2537 = vshrl.u32 %v2536, 7
    %v2538 = vsub.s32 6, %v2537
    %v2539 = vrot.slane %v2070, %v2538
    %s2541 = sor.u32 256, 32
    %2542 = vbcast.lane.b32.xlu0 %v2539, %s2541
    %v2543 = vpop.permute.xlu0 %2542
    %v2544 = vlaneseq
    %v2545 = vshrl.u32 %v2544, 7
    %v2546 = vsub.s32 7, %v2545
    %v2547 = vrot.slane %v2070, %v2546
    %s2549 = sor.u32 256, 32
    %2550 = vbcast.lane.b32.xlu0 %v2547, %s2549
    %v2551 = vpop.permute.xlu0 %2550
    %v2552 = vlaneseq
    %v2553 = vshrl.u32 %v2552, 7
    %v2554 = vsub.s32 0, %v2553
    %v2555 = vrot.slane %v2075, %v2554
    %s2557 = sor.u32 256, 32
    %2558 = vbcast.lane.b32.xlu0 %v2555, %s2557
    %v2559 = vpop.permute.xlu0 %2558
    %v2560 = vlaneseq
    %v2561 = vshrl.u32 %v2560, 7
    %v2562 = vsub.s32 1, %v2561
    %v2563 = vrot.slane %v2075, %v2562
    %s2565 = sor.u32 256, 32
    %2566 = vbcast.lane.b32.xlu0 %v2563, %s2565
    %v2567 = vpop.permute.xlu0 %2566
    %v2568 = vlaneseq
    %v2569 = vshrl.u32 %v2568, 7
    %v2570 = vsub.s32 2, %v2569
    %v2571 = vrot.slane %v2075, %v2570
    %s2573 = sor.u32 256, 32
    %2574 = vbcast.lane.b32.xlu0 %v2571, %s2573
    %v2575 = vpop.permute.xlu0 %2574
    %v2576 = vlaneseq
    %v2577 = vshrl.u32 %v2576, 7
    %v2578 = vsub.s32 3, %v2577
    %v2579 = vrot.slane %v2075, %v2578
    %s2581 = sor.u32 256, 32
    %2582 = vbcast.lane.b32.xlu0 %v2579, %s2581
    %v2583 = vpop.permute.xlu0 %2582
    %v2584 = vmul.f32 %v2136, %v1986
    %v2585 = vmul.f32 %v2137, %v1987
    %v2586 = vmul.f32 %v2138, %v1988
    %v2590 = vcombine.high %v2584, %v2584
    %v2592 = vunpack.c.l.s4 1966171168
    %v2593 = vunpack.c.0.s8 %v2592
    %v2594 = vlaneseq
    %v2595 = vshrl.u32 %v2594, 7
    %v2596 = vsub.s32 %v2593, %v2595
    %v2597 = vrot.slane %v2584, %v2596
    %v2599 = vunpack.c.l.s4 1966171168
    %v2600 = vunpack.c.0.s8 %v2599
    %v2601 = vlaneseq
    %v2602 = vshrl.u32 %v2601, 7
    %v2603 = vsub.s32 %v2600, %v2602
    %v2604 = vrot.slane %v2590, %v2603
    %v2605 = vcombine.high %v2597, %v2597
    %v2606 = vcombine.high %v2604, %v2604
    %v2608 = vunpack.c.l.s4 1966171168
    %v2609 = vunpack.c.0.s8 %v2608
    %v2610 = vlaneseq
    %v2611 = vshrl.u32 %v2610, 7
    %v2612 = vsub.s32 %v2609, %v2611
    %v2613 = vrot.slane %v2597, %v2612
    %v2615 = vunpack.c.l.s4 1966171168
    %v2616 = vunpack.c.0.s8 %v2615
    %v2617 = vlaneseq
    %v2618 = vshrl.u32 %v2617, 7
    %v2619 = vsub.s32 %v2616, %v2618
    %v2620 = vrot.slane %v2604, %v2619
    %v2622 = vunpack.c.l.s4 1966171168
    %v2623 = vunpack.c.0.s8 %v2622
    %v2624 = vlaneseq
    %v2625 = vshrl.u32 %v2624, 7
    %v2626 = vsub.s32 %v2623, %v2625
    %v2627 = vrot.slane %v2605, %v2626
    %v2629 = vunpack.c.l.s4 1966171168
    %v2630 = vunpack.c.0.s8 %v2629
    %v2631 = vlaneseq
    %v2632 = vshrl.u32 %v2631, 7
    %v2633 = vsub.s32 %v2630, %v2632
    %v2634 = vrot.slane %v2606, %v2633
    %v2635 = vcombine.high %v2613, %v2613
    %v2636 = vcombine.high %v2620, %v2620
    %v2637 = vcombine.high %v2627, %v2627
    %v2638 = vcombine.high %v2634, %v2634
    %v2639 = vcombine.high %v2585, %v2585
    %v2641 = vunpack.c.l.s4 1966171168
    %v2642 = vunpack.c.0.s8 %v2641
    %v2643 = vlaneseq
    %v2644 = vshrl.u32 %v2643, 7
    %v2645 = vsub.s32 %v2642, %v2644
    %v2646 = vrot.slane %v2585, %v2645
    %v2648 = vunpack.c.l.s4 1966171168
    %v2649 = vunpack.c.0.s8 %v2648
    %v2650 = vlaneseq
    %v2651 = vshrl.u32 %v2650, 7
    %v2652 = vsub.s32 %v2649, %v2651
    %v2653 = vrot.slane %v2639, %v2652
    %v2654 = vcombine.high %v2646, %v2646
    %v2655 = vcombine.high %v2653, %v2653
    %v2657 = vunpack.c.l.s4 1966171168
    %v2658 = vunpack.c.0.s8 %v2657
    %v2659 = vlaneseq
    %v2660 = vshrl.u32 %v2659, 7
    %v2661 = vsub.s32 %v2658, %v2660
    %v2662 = vrot.slane %v2646, %v2661
    %v2664 = vunpack.c.l.s4 1966171168
    %v2665 = vunpack.c.0.s8 %v2664
    %v2666 = vlaneseq
    %v2667 = vshrl.u32 %v2666, 7
    %v2668 = vsub.s32 %v2665, %v2667
    %v2669 = vrot.slane %v2653, %v2668
    %v2671 = vunpack.c.l.s4 1966171168
    %v2672 = vunpack.c.0.s8 %v2671
    %v2673 = vlaneseq
    %v2674 = vshrl.u32 %v2673, 7
    %v2675 = vsub.s32 %v2672, %v2674
    %v2676 = vrot.slane %v2654, %v2675
    %v2678 = vunpack.c.l.s4 1966171168
    %v2679 = vunpack.c.0.s8 %v2678
    %v2680 = vlaneseq
    %v2681 = vshrl.u32 %v2680, 7
    %v2682 = vsub.s32 %v2679, %v2681
    %v2683 = vrot.slane %v2655, %v2682
    %v2684 = vcombine.high %v2662, %v2662
    %v2685 = vcombine.high %v2669, %v2669
    %v2686 = vcombine.high %v2676, %v2676
    %v2687 = vcombine.high %v2683, %v2683
    %v2689 = vunpack.c.l.s4 1966171168
    %v2690 = vunpack.c.0.s8 %v2689
    %v2691 = vlaneseq
    %v2692 = vshrl.u32 %v2691, 7
    %v2693 = vsub.s32 %v2690, %v2692
    %v2694 = vrot.slane %v2586, %v2693
    %v2695 = vcombine.high %v2694, %v2694
    %v2697 = vunpack.c.l.s4 1966171168
    %v2698 = vunpack.c.0.s8 %v2697
    %v2699 = vlaneseq
    %v2700 = vshrl.u32 %v2699, 7
    %v2701 = vsub.s32 %v2698, %v2700
    %v2702 = vrot.slane %v2694, %v2701
    %v2704 = vunpack.c.l.s4 1966171168
    %v2705 = vunpack.c.0.s8 %v2704
    %v2706 = vlaneseq
    %v2707 = vshrl.u32 %v2706, 7
    %v2708 = vsub.s32 %v2705, %v2707
    %v2709 = vrot.slane %v2695, %v2708
    %v2710 = vcombine.high %v2702, %v2702
    %v2711 = vcombine.high %v2709, %v2709
    %v2712 = vlaneseq
    %v2713 = vshrl.u32 %v2712, 7
    %v2714 = vsub.s32 0, %v2713
    %v2715 = vrot.slane %v2613, %v2714
    %v2716 = vlaneseq
    %v2717 = vshrl.u32 %v2716, 7
    %v2718 = vsub.s32 0, %v2717
    %v2719 = vrot.slane %v2627, %v2718
    %v2720 = vlaneseq
    %v2721 = vshrl.u32 %v2720, 7
    %v2722 = vsub.s32 0, %v2721
    %v2723 = vrot.slane %v2635, %v2722
    %v2724 = vlaneseq
    %v2725 = vshrl.u32 %v2724, 7
    %v2726 = vsub.s32 0, %v2725
    %v2727 = vrot.slane %v2637, %v2726
    %v2728 = vlaneseq
    %v2729 = vshrl.u32 %v2728, 7
    %v2730 = vsub.s32 0, %v2729
    %v2731 = vrot.slane %v2620, %v2730
    %v2732 = vlaneseq
    %v2733 = vshrl.u32 %v2732, 7
    %v2734 = vsub.s32 0, %v2733
    %v2735 = vrot.slane %v2634, %v2734
    %v2736 = vlaneseq
    %v2737 = vshrl.u32 %v2736, 7
    %v2738 = vsub.s32 0, %v2737
    %v2739 = vrot.slane %v2636, %v2738
    %v2740 = vlaneseq
    %v2741 = vshrl.u32 %v2740, 7
    %v2742 = vsub.s32 0, %v2741
    %v2743 = vrot.slane %v2638, %v2742
    %v2744 = vlaneseq
    %v2745 = vshrl.u32 %v2744, 7
    %v2746 = vsub.s32 0, %v2745
    %v2747 = vrot.slane %v2662, %v2746
    %v2748 = vlaneseq
    %v2749 = vshrl.u32 %v2748, 7
    %v2750 = vsub.s32 0, %v2749
    %v2751 = vrot.slane %v2676, %v2750
    %v2752 = vlaneseq
    %v2753 = vshrl.u32 %v2752, 7
    %v2754 = vsub.s32 0, %v2753
    %v2755 = vrot.slane %v2684, %v2754
    %v2756 = vlaneseq
    %v2757 = vshrl.u32 %v2756, 7
    %v2758 = vsub.s32 0, %v2757
    %v2759 = vrot.slane %v2686, %v2758
    %v2760 = vlaneseq
    %v2761 = vshrl.u32 %v2760, 7
    %v2762 = vsub.s32 0, %v2761
    %v2763 = vrot.slane %v2669, %v2762
    %v2764 = vlaneseq
    %v2765 = vshrl.u32 %v2764, 7
    %v2766 = vsub.s32 0, %v2765
    %v2767 = vrot.slane %v2683, %v2766
    %v2768 = vlaneseq
    %v2769 = vshrl.u32 %v2768, 7
    %v2770 = vsub.s32 0, %v2769
    %v2771 = vrot.slane %v2685, %v2770
    %v2772 = vlaneseq
    %v2773 = vshrl.u32 %v2772, 7
    %v2774 = vsub.s32 0, %v2773
    %v2775 = vrot.slane %v2687, %v2774
    %v2776 = vlaneseq
    %v2777 = vshrl.u32 %v2776, 7
    %v2778 = vsub.s32 0, %v2777
    %v2779 = vrot.slane %v2702, %v2778
    %v2780 = vlaneseq
    %v2781 = vshrl.u32 %v2780, 7
    %v2782 = vsub.s32 0, %v2781
    %v2783 = vrot.slane %v2709, %v2782
    %v2784 = vlaneseq
    %v2785 = vshrl.u32 %v2784, 7
    %v2786 = vsub.s32 0, %v2785
    %v2787 = vrot.slane %v2710, %v2786
    %v2788 = vlaneseq
    %v2789 = vshrl.u32 %v2788, 7
    %v2790 = vsub.s32 0, %v2789
    %v2791 = vrot.slane %v2711, %v2790
    %v2812 = vmul.f32 %v2431, %v2715
    %v2813 = vmul.f32 %v2439, %v2719
    %v2814 = vmul.f32 %v2447, %v2723
    %v2815 = vmul.f32 %v2455, %v2727
    %v2816 = vmul.f32 %v2463, %v2731
    %v2817 = vmul.f32 %v2471, %v2735
    %v2818 = vmul.f32 %v2479, %v2739
    %v2819 = vmul.f32 %v2487, %v2743
    %v2820 = vmul.f32 %v2495, %v2747
    %v2821 = vmul.f32 %v2503, %v2751
    %v2822 = vmul.f32 %v2511, %v2755
    %v2823 = vmul.f32 %v2519, %v2759
    %v2824 = vmul.f32 %v2527, %v2763
    %v2825 = vmul.f32 %v2535, %v2767
    %v2826 = vmul.f32 %v2543, %v2771
    %v2827 = vmul.f32 %v2551, %v2775
    %v2828 = vmul.f32 %v2559, %v2779
    %v2829 = vmul.f32 %v2567, %v2783
    %v2830 = vmul.f32 %v2575, %v2787
    %v2831 = vmul.f32 %v2583, %v2791
    %v2832 = vmul.f32 %v2421, 0.0
    %v2833 = vmul.f32 %v2423, 0.0
    %v2834 = vadd.f32 %v2832, %v2830
    %v2835 = vadd.f32 %v2833, %v2831
    %s2837 = sor.u32 256, 40
    %2838 = vbcast.lane.b32.xlu0 %v2571, %s2837
    %v2839 = vpop.permute.xlu0 %2838
    %s2841 = sor.u32 256, 40
    %2842 = vbcast.lane.b32.xlu0 %v2579, %s2841
    %v2843 = vpop.permute.xlu0 %2842
    %v2844 = vmul.f32 %v2834, %v2839
    %v2845 = vmul.f32 %v2835, %v2843
    %v2846 = vsel %vm359, %v2844, 0.0
    %v2847 = vrot.slane %v2846, 4
    %v2848 = vadd.f32 %v2846, %v2847
    %v2849 = vrot.slane %v2848, 2
    %v2850 = vadd.f32 %v2848, %v2849
    %v2851 = vrot.slane %v2850, 1
    %v2852 = vadd.f32 %v2850, %v2851
    %v2853 = vsel %vm359, %v2845, 0.0
    %v2854 = vrot.slane %v2853, 4
    %v2855 = vadd.f32 %v2853, %v2854
    %v2856 = vrot.slane %v2855, 2
    %v2857 = vadd.f32 %v2855, %v2856
    %v2858 = vrot.slane %v2857, 1
    %v2859 = vadd.f32 %v2857, %v2858
    %v2862 = vsel %vm1467, %v2859, %v2852
    %2864 = vst.msk [vmem:[#allocation2 + $0x12] sm:$0x3] %vm1470, %v2862
    %v2865 = vmul.f32 %v2417, %v2834
    %v2866 = vmul.f32 %v2419, %v2835
    %v2867 = vadd.f32 %v2865, %v2828
    %v2868 = vadd.f32 %v2866, %v2829
    %s2870 = sor.u32 256, 40
    %2871 = vbcast.lane.b32.xlu0 %v2555, %s2870
    %v2872 = vpop.permute.xlu0 %2871
    %s2874 = sor.u32 256, 40
    %2875 = vbcast.lane.b32.xlu0 %v2563, %s2874
    %v2876 = vpop.permute.xlu0 %2875
    %v2877 = vmul.f32 %v2867, %v2872
    %v2878 = vmul.f32 %v2868, %v2876
    %v2879 = vsel %vm359, %v2877, 0.0
    %v2880 = vrot.slane %v2879, 4
    %v2881 = vadd.f32 %v2879, %v2880
    %v2882 = vrot.slane %v2881, 2
    %v2883 = vadd.f32 %v2881, %v2882
    %v2884 = vrot.slane %v2883, 1
    %v2885 = vadd.f32 %v2883, %v2884
    %v2886 = vsel %vm359, %v2878, 0.0
    %v2887 = vrot.slane %v2886, 4
    %v2888 = vadd.f32 %v2886, %v2887
    %v2889 = vrot.slane %v2888, 2
    %v2890 = vadd.f32 %v2888, %v2889
    %v2891 = vrot.slane %v2890, 1
    %v2892 = vadd.f32 %v2890, %v2891
    %v2895 = vsel %vm1467, %v2892, %v2885
    %2897 = vst.msk [vmem:[#allocation2 + $0x10] sm:$0x3] %vm1470, %v2895
    %v2898 = vmul.f32 %v2413, %v2867
    %v2899 = vmul.f32 %v2415, %v2868
    %v2900 = vadd.f32 %v2898, %v2826
    %v2901 = vadd.f32 %v2899, %v2827
    %s2903 = sor.u32 256, 40
    %2904 = vbcast.lane.b32.xlu0 %v2539, %s2903
    %v2905 = vpop.permute.xlu0 %2904
    %s2907 = sor.u32 256, 40
    %2908 = vbcast.lane.b32.xlu0 %v2547, %s2907
    %v2909 = vpop.permute.xlu0 %2908
    %v2910 = vmul.f32 %v2900, %v2905
    %v2911 = vmul.f32 %v2901, %v2909
    %v2912 = vsel %vm359, %v2910, 0.0
    %v2913 = vrot.slane %v2912, 4
    %v2914 = vadd.f32 %v2912, %v2913
    %v2915 = vrot.slane %v2914, 2
    %v2916 = vadd.f32 %v2914, %v2915
    %v2917 = vrot.slane %v2916, 1
    %v2918 = vadd.f32 %v2916, %v2917
    %v2919 = vsel %vm359, %v2911, 0.0
    %v2920 = vrot.slane %v2919, 4
    %v2921 = vadd.f32 %v2919, %v2920
    %v2922 = vrot.slane %v2921, 2
    %v2923 = vadd.f32 %v2921, %v2922
    %v2924 = vrot.slane %v2923, 1
    %v2925 = vadd.f32 %v2923, %v2924
    %v2928 = vsel %vm1467, %v2925, %v2918
    %2930 = vst.msk [vmem:[#allocation2 + $0xe] sm:$0x3] %vm1470, %v2928
    %v2931 = vmul.f32 %v2409, %v2900
    %v2932 = vmul.f32 %v2411, %v2901
    %v2933 = vadd.f32 %v2931, %v2824
    %v2934 = vadd.f32 %v2932, %v2825
    %s2936 = sor.u32 256, 40
    %2937 = vbcast.lane.b32.xlu0 %v2523, %s2936
    %v2938 = vpop.permute.xlu0 %2937
    %s2940 = sor.u32 256, 40
    %2941 = vbcast.lane.b32.xlu0 %v2531, %s2940
    %v2942 = vpop.permute.xlu0 %2941
    %v2943 = vmul.f32 %v2933, %v2938
    %v2944 = vmul.f32 %v2934, %v2942
    %v2945 = vsel %vm359, %v2943, 0.0
    %v2946 = vrot.slane %v2945, 4
    %v2947 = vadd.f32 %v2945, %v2946
    %v2948 = vrot.slane %v2947, 2
    %v2949 = vadd.f32 %v2947, %v2948
    %v2950 = vrot.slane %v2949, 1
    %v2951 = vadd.f32 %v2949, %v2950
    %v2952 = vsel %vm359, %v2944, 0.0
    %v2953 = vrot.slane %v2952, 4
    %v2954 = vadd.f32 %v2952, %v2953
    %v2955 = vrot.slane %v2954, 2
    %v2956 = vadd.f32 %v2954, %v2955
    %v2957 = vrot.slane %v2956, 1
    %v2958 = vadd.f32 %v2956, %v2957
    %v2961 = vsel %vm1467, %v2958, %v2951
    %2963 = vst.msk [vmem:[#allocation2 + $0xc] sm:$0x3] %vm1470, %v2961
    %v2964 = vmul.f32 %v2405, %v2933
    %v2965 = vmul.f32 %v2407, %v2934
    %v2966 = vadd.f32 %v2964, %v2822
    %v2967 = vadd.f32 %v2965, %v2823
    %s2969 = sor.u32 256, 40
    %2970 = vbcast.lane.b32.xlu0 %v2507, %s2969
    %v2971 = vpop.permute.xlu0 %2970
    %s2973 = sor.u32 256, 40
    %2974 = vbcast.lane.b32.xlu0 %v2515, %s2973
    %v2975 = vpop.permute.xlu0 %2974
    %v2976 = vmul.f32 %v2966, %v2971
    %v2977 = vmul.f32 %v2967, %v2975
    %v2978 = vsel %vm359, %v2976, 0.0
    %v2979 = vrot.slane %v2978, 4
    %v2980 = vadd.f32 %v2978, %v2979
    %v2981 = vrot.slane %v2980, 2
    %v2982 = vadd.f32 %v2980, %v2981
    %v2983 = vrot.slane %v2982, 1
    %v2984 = vadd.f32 %v2982, %v2983
    %v2985 = vsel %vm359, %v2977, 0.0
    %v2986 = vrot.slane %v2985, 4
    %v2987 = vadd.f32 %v2985, %v2986
    %v2988 = vrot.slane %v2987, 2
    %v2989 = vadd.f32 %v2987, %v2988
    %v2990 = vrot.slane %v2989, 1
    %v2991 = vadd.f32 %v2989, %v2990
    %v2994 = vsel %vm1467, %v2991, %v2984
    %2996 = vst.msk [vmem:[#allocation2 + $0xa] sm:$0x3] %vm1470, %v2994
    %v2997 = vmul.f32 %v2401, %v2966
    %v2998 = vmul.f32 %v2403, %v2967
    %v2999 = vadd.f32 %v2997, %v2820
    %v3000 = vadd.f32 %v2998, %v2821
    %s3002 = sor.u32 256, 40
    %3003 = vbcast.lane.b32.xlu0 %v2491, %s3002
    %v3004 = vpop.permute.xlu0 %3003
    %s3006 = sor.u32 256, 40
    %3007 = vbcast.lane.b32.xlu0 %v2499, %s3006
    %v3008 = vpop.permute.xlu0 %3007
    %v3009 = vmul.f32 %v2999, %v3004
    %v3010 = vmul.f32 %v3000, %v3008
    %v3011 = vsel %vm359, %v3009, 0.0
    %v3012 = vrot.slane %v3011, 4
    %v3013 = vadd.f32 %v3011, %v3012
    %v3014 = vrot.slane %v3013, 2
    %v3015 = vadd.f32 %v3013, %v3014
    %v3016 = vrot.slane %v3015, 1
    %v3017 = vadd.f32 %v3015, %v3016
    %v3018 = vsel %vm359, %v3010, 0.0
    %v3019 = vrot.slane %v3018, 4
    %v3020 = vadd.f32 %v3018, %v3019
    %v3021 = vrot.slane %v3020, 2
    %v3022 = vadd.f32 %v3020, %v3021
    %v3023 = vrot.slane %v3022, 1
    %v3024 = vadd.f32 %v3022, %v3023
    %v3027 = vsel %vm1467, %v3024, %v3017
    %3029 = vst.msk [vmem:[#allocation2 + $0x8] sm:$0x3] %vm1470, %v3027
    %v3030 = vmul.f32 %v2397, %v2999
    %v3031 = vmul.f32 %v2399, %v3000
    %v3032 = vadd.f32 %v3030, %v2818
    %v3033 = vadd.f32 %v3031, %v2819
    %s3035 = sor.u32 256, 40
    %3036 = vbcast.lane.b32.xlu0 %v2475, %s3035
    %v3037 = vpop.permute.xlu0 %3036
    %s3039 = sor.u32 256, 40
    %3040 = vbcast.lane.b32.xlu0 %v2483, %s3039
    %v3041 = vpop.permute.xlu0 %3040
    %v3042 = vmul.f32 %v3032, %v3037
    %v3043 = vmul.f32 %v3033, %v3041
    %v3044 = vsel %vm359, %v3042, 0.0
    %v3045 = vrot.slane %v3044, 4
    %v3046 = vadd.f32 %v3044, %v3045
    %v3047 = vrot.slane %v3046, 2
    %v3048 = vadd.f32 %v3046, %v3047
    %v3049 = vrot.slane %v3048, 1
    %v3050 = vadd.f32 %v3048, %v3049
    %v3051 = vsel %vm359, %v3043, 0.0
    %v3052 = vrot.slane %v3051, 4
    %v3053 = vadd.f32 %v3051, %v3052
    %v3054 = vrot.slane %v3053, 2
    %v3055 = vadd.f32 %v3053, %v3054
    %v3056 = vrot.slane %v3055, 1
    %v3057 = vadd.f32 %v3055, %v3056
    %v3060 = vsel %vm1467, %v3057, %v3050
    %3062 = vst.msk [vmem:[#allocation2 + $0x6] sm:$0x3] %vm1470, %v3060
    %v3063 = vmul.f32 %v2393, %v3032
    %v3064 = vmul.f32 %v2395, %v3033
    %v3065 = vadd.f32 %v3063, %v2816
    %v3066 = vadd.f32 %v3064, %v2817
    %s3068 = sor.u32 256, 40
    %3069 = vbcast.lane.b32.xlu0 %v2459, %s3068
    %v3070 = vpop.permute.xlu0 %3069
    %s3072 = sor.u32 256, 40
    %3073 = vbcast.lane.b32.xlu0 %v2467, %s3072
    %v3074 = vpop.permute.xlu0 %3073
    %v3075 = vmul.f32 %v3065, %v3070
    %v3076 = vmul.f32 %v3066, %v3074
    %v3077 = vsel %vm359, %v3075, 0.0
    %v3078 = vrot.slane %v3077, 4
    %v3079 = vadd.f32 %v3077, %v3078
    %v3080 = vrot.slane %v3079, 2
    %v3081 = vadd.f32 %v3079, %v3080
    %v3082 = vrot.slane %v3081, 1
    %v3083 = vadd.f32 %v3081, %v3082
    %v3084 = vsel %vm359, %v3076, 0.0
    %v3085 = vrot.slane %v3084, 4
    %v3086 = vadd.f32 %v3084, %v3085
    %v3087 = vrot.slane %v3086, 2
    %v3088 = vadd.f32 %v3086, %v3087
    %v3089 = vrot.slane %v3088, 1
    %v3090 = vadd.f32 %v3088, %v3089
    %v3093 = vsel %vm1467, %v3090, %v3083
    %3095 = vst.msk [vmem:[#allocation2 + $0x4] sm:$0x3] %vm1470, %v3093
    %v3096 = vmul.f32 %v2389, %v3065
    %v3097 = vmul.f32 %v2391, %v3066
    %v3098 = vadd.f32 %v3096, %v2814
    %v3099 = vadd.f32 %v3097, %v2815
    %s3101 = sor.u32 256, 40
    %3102 = vbcast.lane.b32.xlu0 %v2443, %s3101
    %v3103 = vpop.permute.xlu0 %3102
    %s3105 = sor.u32 256, 40
    %3106 = vbcast.lane.b32.xlu0 %v2451, %s3105
    %v3107 = vpop.permute.xlu0 %3106
    %v3108 = vmul.f32 %v3098, %v3103
    %v3109 = vmul.f32 %v3099, %v3107
    %v3110 = vsel %vm359, %v3108, 0.0
    %v3111 = vrot.slane %v3110, 4
    %v3112 = vadd.f32 %v3110, %v3111
    %v3113 = vrot.slane %v3112, 2
    %v3114 = vadd.f32 %v3112, %v3113
    %v3115 = vrot.slane %v3114, 1
    %v3116 = vadd.f32 %v3114, %v3115
    %v3117 = vsel %vm359, %v3109, 0.0
    %v3118 = vrot.slane %v3117, 4
    %v3119 = vadd.f32 %v3117, %v3118
    %v3120 = vrot.slane %v3119, 2
    %v3121 = vadd.f32 %v3119, %v3120
    %v3122 = vrot.slane %v3121, 1
    %v3123 = vadd.f32 %v3121, %v3122
    %v3126 = vsel %vm1467, %v3123, %v3116
    %3128 = vst.msk [vmem:[#allocation2 + $0x2] sm:$0x3] %vm1470, %v3126
    %v3129 = vmul.f32 %v2385, %v3098
    %v3130 = vmul.f32 %v2387, %v3099
    %v3131 = vadd.f32 %v3129, %v2812
    %v3132 = vadd.f32 %v3130, %v2813
    %s3134 = sor.u32 256, 40
    %3135 = vbcast.lane.b32.xlu0 %v2427, %s3134
    %v3136 = vpop.permute.xlu0 %3135
    %s3138 = sor.u32 256, 40
    %3139 = vbcast.lane.b32.xlu0 %v2435, %s3138
    %v3140 = vpop.permute.xlu0 %3139
    %v3141 = vmul.f32 %v3131, %v3136
    %v3142 = vmul.f32 %v3132, %v3140
    %v3143 = vsel %vm359, %v3141, 0.0
    %v3144 = vrot.slane %v3143, 4
    %v3145 = vadd.f32 %v3143, %v3144
    %v3146 = vrot.slane %v3145, 2
    %v3147 = vadd.f32 %v3145, %v3146
    %v3148 = vrot.slane %v3147, 1
    %v3149 = vadd.f32 %v3147, %v3148
    %v3150 = vsel %vm359, %v3142, 0.0
    %v3151 = vrot.slane %v3150, 4
    %v3152 = vadd.f32 %v3150, %v3151
    %v3153 = vrot.slane %v3152, 2
    %v3154 = vadd.f32 %v3152, %v3153
    %v3155 = vrot.slane %v3154, 1
    %v3156 = vadd.f32 %v3154, %v3155
    %v3159 = vsel %vm1467, %v3156, %v3149
    %3161 = vst.msk [vmem:[#allocation2] sm:$0x3] %vm1470, %v3159
    %v3162 = vld [vmem:[#allocation2] sm:$0xff]
    %v3163 = vld [vmem:[#allocation2 + $0x8] sm:$0xff]
    %v3164 = vld [vmem:[#allocation2 + $0x10] sm:$0xf]
    %v3165 = vlaneseq
    %v3166 = vshrl.u32 %v3165, 7
    %v3167 = vsub.s32 4, %v3166
    %v3168 = vrot.slane %v1826, %v3167
    %v3169 = vmul.f32 %v3168, %v1986
    %v3170 = vmul.f32 %v3168, %v1987
    %v3171 = vmul.f32 %v3168, %v1988
    %v3172 = vadd.f32 %v3162, %v3169
    %v3173 = vadd.f32 %v3163, %v3170
    %v3174 = vadd.f32 %v3164, %v3171
    %3175 = vrot.lane.b32.xlu0 %v1800, 32
    %v3176 = vpop.permute.xlu0 %3175
    %3177 = vrot.lane.b32.xlu0 %v1801, 32
    %v3178 = vpop.permute.xlu0 %3177
    %3179 = vrot.lane.b32.xlu0 %v1802, 32
    %v3180 = vpop.permute.xlu0 %3179
    %v3184 = vmul.f32 %v3172, %v3176
    %v3185 = vmul.f32 %v3173, %v3178
    %v3186 = vmul.f32 %v3174, %v3180
    %3190 = vrot.lane.b32.xlu0 %v3184, 32
    %v3191 = vpop.permute.xlu0 %3190
    %3192 = vrot.lane.b32.xlu0 %v3185, 32
    %v3193 = vpop.permute.xlu0 %3192
    %3194 = vrot.lane.b32.xlu0 %v3186, 32
    %v3195 = vpop.permute.xlu0 %3194
    %v3199 = vsel %vm359, %v1815, %v3191
    %v3200 = vsel %vm359, %v1816, %v3193
    %v3201 = vsel %vm359, %v1817, %v3195
    %v3202 = vld [vmem:[#allocation17] sm:$0xff]
    %v3203 = vld [vmem:[#allocation17 + $0x8] sm:$0xff]
    %v3204 = vld [vmem:[#allocation17 + $0x10] sm:$0xff]
    %v3205 = vld [vmem:[#allocation17 + $0x18] sm:$0xff]
    %v3206 = vld [vmem:[#allocation17 + $0x20] sm:$0xff]
    %v3207 = vld [vmem:[#allocation17 + $0x28] sm:$0xff]
    %v3208 = vld [vmem:[#allocation17 + $0x30] sm:$0xff]
    %v3209 = vld [vmem:[#allocation17 + $0x38] sm:$0xff]
    %vm3210 = vcmask 523264
    %v3212 = vsel %vm3210, %v3199, 0
    %v3215 = vsel %vm3210, %v3200, 0
    %v3218 = vsel %vm3210, %v3201, 0
    %3220 = vmatprep.subr.mxu0 0.0
    %3221 = vmatpush1.msra.mxu0 %v3202
    %3222 = vmatprep.subr.mxu0 0.0
    %3223 = vmatpush1.msra.mxu0 %v3203
    %3224 = vmatprep.subr.mxu0 0.0
    %3225 = vmatpush1.msra.mxu0 %v3204
    %3226 = vmatprep.subr.mxu0 0.0
    %3227 = vmatpush1.msra.mxu0 %v3205
    %3228 = vmatprep.subr.mxu0 0.0
    %3229 = vmatpush1.msra.mxu0 %v3206
    %3230 = vmatprep.subr.mxu0 0.0
    %3231 = vmatpush1.msra.mxu0 %v3207
    %3232 = vmatprep.subr.mxu0 0.0
    %3233 = vmatpush1.msra.mxu0 %v3208
    %3234 = vmatprep.subr.mxu0 0.0
    %3235 = vmatpush1.msra.mxu0 %v3209
    %3236 = vmatprep.subr.mxu0 0.0
    %3237 = vmatpush1.msra.mxu0 0.0
    %3238 = vmatprep.subr.mxu0 0.0
    %3239 = vmatpush1.msra.mxu0 0.0
    %3240 = vmatprep.subr.mxu0 0.0
    %3241 = vmatpush1.msra.mxu0 0.0
    %3242 = vmatprep.subr.mxu0 0.0
    %3243 = vmatpush1.msra.mxu0 0.0
    %3244 = vmatprep.subr.mxu0 0.0
    %3245 = vmatpush1.msra.mxu0 0.0
    %3246 = vmatprep.subr.mxu0 0.0
    %3247 = vmatpush1.msra.mxu0 0.0
    %3248 = vmatprep.subr.mxu0 0.0
    %3249 = vmatpush1.msra.mxu0 0.0
    %3250 = vmatprep.subr.mxu0 0.0
    %3251 = vmatpush1.msra.mxu0 0.0
    %3252 = vmatprep.subr.mxu0 0.0
    %3253 = vmatpush1.msra.mxu0 0.0
    %3254 = vmatprep.subr.mxu0 0.0
    %3255 = vmatpush1.msra.mxu0 0.0
    %3256 = vmatprep.subr.mxu0 0.0
    %3257 = vmatpush1.msra.mxu0 0.0
    %3258 = vmatprep.subr.mxu0 0.0
    %3259 = vmatpush1.msra.mxu0 0.0
    %3260 = vmatprep.subr.mxu0 0.0
    %3261 = vmatpush1.msra.mxu0 0.0
    %3262 = vmatprep.subr.mxu0 0.0
    %3263 = vmatpush1.msra.mxu0 0.0
    %3264 = vmatprep.subr.mxu0 0.0
    %3265 = vmatpush1.msra.mxu0 0.0
    %3266 = vmatprep.subr.mxu0 0.0
    %3267 = vmatpush1.msra.mxu0 0.0
    %3268 = vmatprep.subr.mxu0 0.0
    %3269 = vmatpush1.msra.mxu0 0.0
    %3270 = vmatprep.subr.mxu0 0.0
    %3271 = vmatpush1.msra.mxu0 0.0
    %3272 = vmatprep.subr.mxu0 0.0
    %3273 = vmatpush1.msra.mxu0 0.0
    %3274 = vmatprep.subr.mxu0 0.0
    %3275 = vmatpush1.msra.mxu0 0.0
    %3276 = vmatprep.subr.mxu0 0.0
    %3277 = vmatpush1.msra.mxu0 0.0
    %3278 = vmatprep.subr.mxu0 0.0
    %3279 = vmatpush1.msra.mxu0 0.0
    %3280 = vmatprep.subr.mxu0 0.0
    %3281 = vmatpush1.msra.mxu0 0.0
    %3282 = vmatprep.subr.mxu0 0.0
    %3283 = vmatpush1.msra.mxu0 0.0
    %3284 = vmatprep.mubr.f32.mxu0 0.0
    %3285 = vmatmul.mubr.f32.gmra.mrb[0].mxu0 %v3212
    %v3286 = vpop.f32.mrb[0].mxu0
    %v3287 = vadd.f32 0.0, %v3286
    %v3288 = vpop.f32.mrb[0].mxu0
    %3289 = vmatprep.mubr.f32.mxu0 0.0
    %3290 = vmatmul.mubr.f32.gmra.mrb[0].mxu0 %v3215
    %v3291 = vpop.f32.mrb[0].mxu0
    %v3292 = vadd.f32 0.0, %v3291
    %v3293 = vpop.f32.mrb[0].mxu0
    %3294 = vmatprep.mubr.f32.mxu0 0.0
    %3295 = vmatmul.mubr.f32.gmra.mrb[0].mxu0 %v3218
    %v3296 = vpop.f32.mrb[0].mxu0
    %v3297 = vadd.f32 0.0, %v3296
    %v3298 = vpop.f32.mrb[0].mxu0
    %3299 = vdwg.mxu0
    %v3300 = vld [vmem:[#allocation23] sm:$0x1f]
    %v3301 = vadd.f32 %v342, %v3287
    %v3302 = vadd.f32 %v347, %v3292
    %v3303 = vadd.f32 %v352, %v3297
    %v3304 = vsel %vm359, %v3301, 0.0
    %3305 = vadd.xlane.f32.xlu0 %v3304
    %v3306 = vpop.xlane.xlu0 %3305
    %v3307 = vsel %vm359, %v3302, 0.0
    %3308 = vadd.xlane.f32.xlu0 %v3307
    %v3309 = vpop.xlane.xlu0 %3308
    %vm3310 = vcmask 257024
    %v3311 = vsel %vm3310, %v3303, 0.0
    %3312 = vadd.xlane.f32.xlu0 %v3311
    %v3313 = vpop.xlane.xlu0 %3312
    %v3314 = vrcp.pop 32.0
    %v3315 = vmul.f32 %v3306, %v3314
    %v3316 = vmul.f32 %v3309, %v3314
    %v3317 = vmul.f32 %v3313, %v3314
    %v3318 = vsub.f32 %v3301, %v3315
    %v3319 = vsub.f32 %v3302, %v3316
    %v3320 = vsub.f32 %v3303, %v3317
    %v3321 = vmul.f32 %v3318, %v3318
    %v3322 = vmul.f32 %v3319, %v3319
    %v3323 = vmul.f32 %v3320, %v3320
    %v3324 = vsel %vm359, %v3321, 0.0
    %3325 = vadd.xlane.f32.xlu0 %v3324
    %v3326 = vpop.xlane.xlu0 %3325
    %v3327 = vsel %vm359, %v3322, 0.0
    %3328 = vadd.xlane.f32.xlu0 %v3327
    %v3329 = vpop.xlane.xlu0 %3328
    %v3330 = vsel %vm3310, %v3323, 0.0
    %3331 = vadd.xlane.f32.xlu0 %v3330
    %v3332 = vpop.xlane.xlu0 %3331
    %v3333 = vmul.f32 %v3326, %v3314
    %v3334 = vmul.f32 %v3329, %v3314
    %v3335 = vmul.f32 %v3332, %v3314
    %v3336 = vadd.f32 %v3333, 1e-05
    %v3337 = vadd.f32 %v3334, 1e-05
    %v3338 = vadd.f32 %v3335, 1e-05
    %v3339 = vrsqrt.pop %v3336
    %v3340 = vrsqrt.pop %v3337
    %v3341 = vrsqrt.pop %v3338
    %v3342 = vmul.f32 %v3318, %v3339
    %v3343 = vmul.f32 %v3319, %v3340
    %v3344 = vmul.f32 %v3320, %v3341
    %v3345 = vlaneseq
    %v3346 = vshrl.u32 %v3345, 7
    %v3347 = vsub.s32 0, %v3346
    %v3348 = vrot.slane %v3300, %v3347
    %v3349 = vmul.f32 %v3342, %v3348
    %v3350 = vmul.f32 %v3343, %v3348
    %v3351 = vmul.f32 %v3344, %v3348
    %v3352 = vlaneseq
    %v3353 = vshrl.u32 %v3352, 7
    %v3354 = vsub.s32 1, %v3353
    %v3355 = vrot.slane %v3300, %v3354
    %v3356 = vadd.f32 %v3349, %v3355
    %v3357 = vadd.f32 %v3350, %v3355
    %v3358 = vadd.f32 %v3351, %v3355
    %v3359 = vld [vmem:[#allocation20] sm:$0xff]
    %v3360 = vld [vmem:[#allocation20 + $0x8] sm:$0xff]
    %v3361 = vld [vmem:[#allocation20 + $0x10] sm:$0xff]
    %v3362 = vld [vmem:[#allocation20 + $0x18] sm:$0xff]
    %v3363 = vld [vmem:[#allocation24] sm:$0x1]
    %v3365 = vlaneseq
    %v3366 = vshrl.u32 %v3365, 7
    %v3367 = vsub.s32 0, %v3366
    %v3368 = vrot.slane %v3363, %v3367
    %v3371 = vsel %vm359, %v3356, 0
    %v3374 = vsel %vm359, %v3357, 0
    %v3377 = vsel %vm359, %v3358, 0
    %3379 = vmatprep.subr.mxu0 0.0
    %3380 = vmatpush1.msra.mxu0 %v3359
    %3381 = vmatprep.subr.mxu0 0.0
    %3382 = vmatpush1.msra.mxu0 %v3360
    %3383 = vmatprep.subr.mxu0 0.0
    %3384 = vmatpush1.msra.mxu0 %v3361
    %3385 = vmatprep.subr.mxu0 0.0
    %3386 = vmatpush1.msra.mxu0 %v3362
    %3387 = vmatprep.subr.mxu0 0.0
    %3388 = vmatpush1.msra.mxu0 0.0
    %3389 = vmatprep.subr.mxu0 0.0
    %3390 = vmatpush1.msra.mxu0 0.0
    %3391 = vmatprep.subr.mxu0 0.0
    %3392 = vmatpush1.msra.mxu0 0.0
    %3393 = vmatprep.subr.mxu0 0.0
    %3394 = vmatpush1.msra.mxu0 0.0
    %3395 = vmatprep.subr.mxu0 0.0
    %3396 = vmatpush1.msra.mxu0 0.0
    %3397 = vmatprep.subr.mxu0 0.0
    %3398 = vmatpush1.msra.mxu0 0.0
    %3399 = vmatprep.subr.mxu0 0.0
    %3400 = vmatpush1.msra.mxu0 0.0
    %3401 = vmatprep.subr.mxu0 0.0
    %3402 = vmatpush1.msra.mxu0 0.0
    %3403 = vmatprep.subr.mxu0 0.0
    %3404 = vmatpush1.msra.mxu0 0.0
    %3405 = vmatprep.subr.mxu0 0.0
    %3406 = vmatpush1.msra.mxu0 0.0
    %3407 = vmatprep.subr.mxu0 0.0
    %3408 = vmatpush1.msra.mxu0 0.0
    %3409 = vmatprep.subr.mxu0 0.0
    %3410 = vmatpush1.msra.mxu0 0.0
    %3411 = vmatprep.subr.mxu0 0.0
    %3412 = vmatpush1.msra.mxu0 0.0
    %3413 = vmatprep.subr.mxu0 0.0
    %3414 = vmatpush1.msra.mxu0 0.0
    %3415 = vmatprep.subr.mxu0 0.0
    %3416 = vmatpush1.msra.mxu0 0.0
    %3417 = vmatprep.subr.mxu0 0.0
    %3418 = vmatpush1.msra.mxu0 0.0
    %3419 = vmatprep.subr.mxu0 0.0
    %3420 = vmatpush1.msra.mxu0 0.0
    %3421 = vmatprep.subr.mxu0 0.0
    %3422 = vmatpush1.msra.mxu0 0.0
    %3423 = vmatprep.subr.mxu0 0.0
    %3424 = vmatpush1.msra.mxu0 0.0
    %3425 = vmatprep.subr.mxu0 0.0
    %3426 = vmatpush1.msra.mxu0 0.0
    %3427 = vmatprep.subr.mxu0 0.0
    %3428 = vmatpush1.msra.mxu0 0.0
    %3429 = vmatprep.subr.mxu0 0.0
    %3430 = vmatpush1.msra.mxu0 0.0
    %3431 = vmatprep.subr.mxu0 0.0
    %3432 = vmatpush1.msra.mxu0 0.0
    %3433 = vmatprep.subr.mxu0 0.0
    %3434 = vmatpush1.msra.mxu0 0.0
    %3435 = vmatprep.subr.mxu0 0.0
    %3436 = vmatpush1.msra.mxu0 0.0
    %3437 = vmatprep.subr.mxu0 0.0
    %3438 = vmatpush1.msra.mxu0 0.0
    %3439 = vmatprep.subr.mxu0 0.0
    %3440 = vmatpush1.msra.mxu0 0.0
    %3441 = vmatprep.subr.mxu0 0.0
    %3442 = vmatpush1.msra.mxu0 0.0
    %3443 = vmatprep.mubr.f32.mxu0 0.0
    %3444 = vmatmul.mubr.f32.gmra.mrb[0].mxu0 %v3371
    %v3445 = vpop.f32.mrb[0].mxu0
    %v3446 = vadd.f32 %v3368, %v3445
    %v3447 = vpop.f32.mrb[0].mxu0
    %3448 = vmatprep.mubr.f32.mxu0 0.0
    %3449 = vmatmul.mubr.f32.gmra.mrb[0].mxu0 %v3374
    %v3450 = vpop.f32.mrb[0].mxu0
    %v3451 = vadd.f32 %v3368, %v3450
    %v3452 = vpop.f32.mrb[0].mxu0
    %3453 = vmatprep.mubr.f32.mxu0 0.0
    %3454 = vmatmul.mubr.f32.gmra.mrb[0].mxu0 %v3377
    %v3455 = vpop.f32.mrb[0].mxu0
    %v3456 = vadd.f32 %v3368, %v3455
    %v3457 = vpop.f32.mrb[0].mxu0
    %3458 = vdwg.mxu0
    %v3459 = vmax.f32 %v3446, 0.0
    %v3460 = vmax.f32 %v3451, 0.0
    %v3461 = vmax.f32 %v3456, 0.0
    %v3462 = vld [vmem:[#allocation21] sm:$0xff]
    %v3463 = vld [vmem:[#allocation21 + $0x8] sm:$0xff]
    %v3464 = vld [vmem:[#allocation21 + $0x10] sm:$0xff]
    %v3465 = vld [vmem:[#allocation21 + $0x18] sm:$0xff]
    %v3466 = vlaneseq
    %v3467 = vshrl.u32 %v3466, 7
    %v3468 = vsub.s32 4, %v3467
    %v3469 = vrot.slane %v3300, %v3468
    %v3471 = vsel %vm359, %v3459, 0
    %v3474 = vsel %vm359, %v3460, 0
    %v3477 = vsel %vm359, %v3461, 0
    %3479 = vmatprep.subr.mxu0 0.0
    %3480 = vmatpush1.msra.mxu0 %v3462
    %3481 = vmatprep.subr.mxu0 0.0
    %3482 = vmatpush1.msra.mxu0 %v3463
    %3483 = vmatprep.subr.mxu0 0.0
    %3484 = vmatpush1.msra.mxu0 %v3464
    %3485 = vmatprep.subr.mxu0 0.0
    %3486 = vmatpush1.msra.mxu0 %v3465
    %3487 = vmatprep.subr.mxu0 0.0
    %3488 = vmatpush1.msra.mxu0 0.0
    %3489 = vmatprep.subr.mxu0 0.0
    %3490 = vmatpush1.msra.mxu0 0.0
    %3491 = vmatprep.subr.mxu0 0.0
    %3492 = vmatpush1.msra.mxu0 0.0
    %3493 = vmatprep.subr.mxu0 0.0
    %3494 = vmatpush1.msra.mxu0 0.0
    %3495 = vmatprep.subr.mxu0 0.0
    %3496 = vmatpush1.msra.mxu0 0.0
    %3497 = vmatprep.subr.mxu0 0.0
    %3498 = vmatpush1.msra.mxu0 0.0
    %3499 = vmatprep.subr.mxu0 0.0
    %3500 = vmatpush1.msra.mxu0 0.0
    %3501 = vmatprep.subr.mxu0 0.0
    %3502 = vmatpush1.msra.mxu0 0.0
    %3503 = vmatprep.subr.mxu0 0.0
    %3504 = vmatpush1.msra.mxu0 0.0
    %3505 = vmatprep.subr.mxu0 0.0
    %3506 = vmatpush1.msra.mxu0 0.0
    %3507 = vmatprep.subr.mxu0 0.0
    %3508 = vmatpush1.msra.mxu0 0.0
    %3509 = vmatprep.subr.mxu0 0.0
    %3510 = vmatpush1.msra.mxu0 0.0
    %3511 = vmatprep.subr.mxu0 0.0
    %3512 = vmatpush1.msra.mxu0 0.0
    %3513 = vmatprep.subr.mxu0 0.0
    %3514 = vmatpush1.msra.mxu0 0.0
    %3515 = vmatprep.subr.mxu0 0.0
    %3516 = vmatpush1.msra.mxu0 0.0
    %3517 = vmatprep.subr.mxu0 0.0
    %3518 = vmatpush1.msra.mxu0 0.0
    %3519 = vmatprep.subr.mxu0 0.0
    %3520 = vmatpush1.msra.mxu0 0.0
    %3521 = vmatprep.subr.mxu0 0.0
    %3522 = vmatpush1.msra.mxu0 0.0
    %3523 = vmatprep.subr.mxu0 0.0
    %3524 = vmatpush1.msra.mxu0 0.0
    %3525 = vmatprep.subr.mxu0 0.0
    %3526 = vmatpush1.msra.mxu0 0.0
    %3527 = vmatprep.subr.mxu0 0.0
    %3528 = vmatpush1.msra.mxu0 0.0
    %3529 = vmatprep.subr.mxu0 0.0
    %3530 = vmatpush1.msra.mxu0 0.0
    %3531 = vmatprep.subr.mxu0 0.0
    %3532 = vmatpush1.msra.mxu0 0.0
    %3533 = vmatprep.subr.mxu0 0.0
    %3534 = vmatpush1.msra.mxu0 0.0
    %3535 = vmatprep.subr.mxu0 0.0
    %3536 = vmatpush1.msra.mxu0 0.0
    %3537 = vmatprep.subr.mxu0 0.0
    %3538 = vmatpush1.msra.mxu0 0.0
    %3539 = vmatprep.subr.mxu0 0.0
    %3540 = vmatpush1.msra.mxu0 0.0
    %3541 = vmatprep.subr.mxu0 0.0
    %3542 = vmatpush1.msra.mxu0 0.0
    %3543 = vmatprep.mubr.f32.mxu0 0.0
    %3544 = vmatmul.mubr.f32.gmra.mrb[0].mxu0 %v3471
    %v3545 = vpop.f32.mrb[0].mxu0
    %v3546 = vadd.f32 %v3469, %v3545
    %v3547 = vpop.f32.mrb[0].mxu0
    %3548 = vmatprep.mubr.f32.mxu0 0.0
    %3549 = vmatmul.mubr.f32.gmra.mrb[0].mxu0 %v3474
    %v3550 = vpop.f32.mrb[0].mxu0
    %v3551 = vadd.f32 %v3469, %v3550
    %v3552 = vpop.f32.mrb[0].mxu0
    %3553 = vmatprep.mubr.f32.mxu0 0.0
    %3554 = vmatmul.mubr.f32.gmra.mrb[0].mxu0 %v3477
    %v3555 = vpop.f32.mrb[0].mxu0
    %v3556 = vadd.f32 %v3469, %v3555
    %v3557 = vpop.f32.mrb[0].mxu0
    %3558 = vdwg.mxu0
    %v3559 = vadd.f32 %v3356, %v3546
    %v3560 = vadd.f32 %v3357, %v3551
    %v3561 = vadd.f32 %v3358, %v3556
    %v3562 = vsel %vm359, %v3559, 0.0
    %3563 = vadd.xlane.f32.xlu0 %v3562
    %v3564 = vpop.xlane.xlu0 %3563
    %v3565 = vsel %vm359, %v3560, 0.0
    %3566 = vadd.xlane.f32.xlu0 %v3565
    %v3567 = vpop.xlane.xlu0 %3566
    %v3568 = vsel %vm3310, %v3561, 0.0
    %3569 = vadd.xlane.f32.xlu0 %v3568
    %v3570 = vpop.xlane.xlu0 %3569
    %v3571 = vmul.f32 %v3564, %v3314
    %v3572 = vmul.f32 %v3567, %v3314
    %v3573 = vmul.f32 %v3570, %v3314
    %v3574 = vsub.f32 %v3559, %v3571
    %v3575 = vsub.f32 %v3560, %v3572
    %v3576 = vsub.f32 %v3561, %v3573
    %v3577 = vmul.f32 %v3574, %v3574
    %v3578 = vmul.f32 %v3575, %v3575
    %v3579 = vmul.f32 %v3576, %v3576
    %v3580 = vsel %vm359, %v3577, 0.0
    %3581 = vadd.xlane.f32.xlu0 %v3580
    %v3582 = vpop.xlane.xlu0 %3581
    %v3583 = vsel %vm359, %v3578, 0.0
    %3584 = vadd.xlane.f32.xlu0 %v3583
    %v3585 = vpop.xlane.xlu0 %3584
    %v3586 = vsel %vm3310, %v3579, 0.0
    %3587 = vadd.xlane.f32.xlu0 %v3586
    %v3588 = vpop.xlane.xlu0 %3587
    %v3589 = vmul.f32 %v3582, %v3314
    %v3590 = vmul.f32 %v3585, %v3314
    %v3591 = vmul.f32 %v3588, %v3314
    %v3592 = vadd.f32 %v3589, 1e-05
    %v3593 = vadd.f32 %v3590, 1e-05
    %v3594 = vadd.f32 %v3591, 1e-05
    %v3595 = vrsqrt.pop %v3592
    %v3596 = vrsqrt.pop %v3593
    %v3597 = vrsqrt.pop %v3594
    %v3598 = vmul.f32 %v3574, %v3595
    %v3599 = vmul.f32 %v3575, %v3596
    %v3600 = vmul.f32 %v3576, %v3597
    %v3601 = vlaneseq
    %v3602 = vshrl.u32 %v3601, 7
    %v3603 = vsub.s32 2, %v3602
    %v3604 = vrot.slane %v3300, %v3603
    %v3605 = vmul.f32 %v3598, %v3604
    %v3606 = vmul.f32 %v3599, %v3604
    %v3607 = vmul.f32 %v3600, %v3604
    %v3608 = vlaneseq
    %v3609 = vshrl.u32 %v3608, 7
    %v3610 = vsub.s32 3, %v3609
    %v3611 = vrot.slane %v3300, %v3610
    %v3612 = vadd.f32 %v3605, %v3611
    %v3613 = vadd.f32 %v3606, %v3611
    %v3614 = vadd.f32 %v3607, %v3611
    %s3615 = scalar_lea.vmem [#allocation12], 32
    %v3616 = vld [vmem:[%s3615] sm:$0xff]
    %v3617 = vld [vmem:[%s3615 + $0x8] sm:$0xff]
    %v3618 = vld [vmem:[%s3615 + $0x10] sm:$0xff]
    %v3619 = vld [vmem:[%s3615 + $0x18] sm:$0xff]
    %v3621 = vsel %vm359, %v3612, 0
    %v3624 = vsel %vm359, %v3613, 0
    %v3627 = vsel %vm359, %v3614, 0
    %3629 = vmatprep.subr.mxu0 0.0
    %3630 = vmatpush1.msra.mxu0 %v3616
    %3631 = vmatprep.subr.mxu0 0.0
    %3632 = vmatpush1.msra.mxu0 %v3617
    %3633 = vmatprep.subr.mxu0 0.0
    %3634 = vmatpush1.msra.mxu0 %v3618
    %3635 = vmatprep.subr.mxu0 0.0
    %3636 = vmatpush1.msra.mxu0 %v3619
    %3637 = vmatprep.subr.mxu0 0.0
    %3638 = vmatpush1.msra.mxu0 0.0
    %3639 = vmatprep.subr.mxu0 0.0
    %3640 = vmatpush1.msra.mxu0 0.0
    %3641 = vmatprep.subr.mxu0 0.0
    %3642 = vmatpush1.msra.mxu0 0.0
    %3643 = vmatprep.subr.mxu0 0.0
    %3644 = vmatpush1.msra.mxu0 0.0
    %3645 = vmatprep.subr.mxu0 0.0
    %3646 = vmatpush1.msra.mxu0 0.0
    %3647 = vmatprep.subr.mxu0 0.0
    %3648 = vmatpush1.msra.mxu0 0.0
    %3649 = vmatprep.subr.mxu0 0.0
    %3650 = vmatpush1.msra.mxu0 0.0
    %3651 = vmatprep.subr.mxu0 0.0
    %3652 = vmatpush1.msra.mxu0 0.0
    %3653 = vmatprep.subr.mxu0 0.0
    %3654 = vmatpush1.msra.mxu0 0.0
    %3655 = vmatprep.subr.mxu0 0.0
    %3656 = vmatpush1.msra.mxu0 0.0
    %3657 = vmatprep.subr.mxu0 0.0
    %3658 = vmatpush1.msra.mxu0 0.0
    %3659 = vmatprep.subr.mxu0 0.0
    %3660 = vmatpush1.msra.mxu0 0.0
    %3661 = vmatprep.subr.mxu0 0.0
    %3662 = vmatpush1.msra.mxu0 0.0
    %3663 = vmatprep.subr.mxu0 0.0
    %3664 = vmatpush1.msra.mxu0 0.0
    %3665 = vmatprep.subr.mxu0 0.0
    %3666 = vmatpush1.msra.mxu0 0.0
    %3667 = vmatprep.subr.mxu0 0.0
    %3668 = vmatpush1.msra.mxu0 0.0
    %3669 = vmatprep.subr.mxu0 0.0
    %3670 = vmatpush1.msra.mxu0 0.0
    %3671 = vmatprep.subr.mxu0 0.0
    %3672 = vmatpush1.msra.mxu0 0.0
    %3673 = vmatprep.subr.mxu0 0.0
    %3674 = vmatpush1.msra.mxu0 0.0
    %3675 = vmatprep.subr.mxu0 0.0
    %3676 = vmatpush1.msra.mxu0 0.0
    %3677 = vmatprep.subr.mxu0 0.0
    %3678 = vmatpush1.msra.mxu0 0.0
    %3679 = vmatprep.subr.mxu0 0.0
    %3680 = vmatpush1.msra.mxu0 0.0
    %3681 = vmatprep.subr.mxu0 0.0
    %3682 = vmatpush1.msra.mxu0 0.0
    %3683 = vmatprep.subr.mxu0 0.0
    %3684 = vmatpush1.msra.mxu0 0.0
    %3685 = vmatprep.subr.mxu0 0.0
    %3686 = vmatpush1.msra.mxu0 0.0
    %3687 = vmatprep.subr.mxu0 0.0
    %3688 = vmatpush1.msra.mxu0 0.0
    %3689 = vmatprep.subr.mxu0 0.0
    %3690 = vmatpush1.msra.mxu0 0.0
    %3691 = vmatprep.subr.mxu0 0.0
    %3692 = vmatpush1.msra.mxu0 0.0
    %3693 = vmatprep.mubr.f32.mxu0 0.0
    %3694 = vmatmul.mubr.f32.gmra.mrb[0].mxu0 %v3621
    %v3695 = vpop.f32.mrb[0].mxu0
    %v3696 = vadd.f32 0.0, %v3695
    %v3697 = vpop.f32.mrb[0].mxu0
    %3698 = vmatprep.mubr.f32.mxu0 0.0
    %3699 = vmatmul.mubr.f32.gmra.mrb[0].mxu0 %v3624
    %v3700 = vpop.f32.mrb[0].mxu0
    %v3701 = vadd.f32 0.0, %v3700
    %v3702 = vpop.f32.mrb[0].mxu0
    %3703 = vmatprep.mubr.f32.mxu0 0.0
    %3704 = vmatmul.mubr.f32.gmra.mrb[0].mxu0 %v3627
    %v3705 = vpop.f32.mrb[0].mxu0
    %v3706 = vadd.f32 0.0, %v3705
    %v3707 = vpop.f32.mrb[0].mxu0
    %3708 = vdwg.mxu0
    %s3709 = scalar_lea.vmem [#allocation14], 64
    %v3710 = vld [vmem:[%s3709] sm:$0xff]
    %v3711 = vld [vmem:[%s3709 + $0x8] sm:$0xff]
    %v3712 = vld [vmem:[%s3709 + $0x10] sm:$0xff]
    %v3713 = vld [vmem:[%s3709 + $0x18] sm:$0xff]
    %s3714 = scalar_lea.vmem [#allocation15], 16
    %v3715 = vld [vmem:[%s3714] sm:$0xff]
    %s3716 = scalar_lea.vmem [#allocation18], 16
    %v3717 = vld [vmem:[%s3716] sm:$0x1f]
    %v3719 = vsel %vm465, %v3706, 0
    %3721 = vmatprep.subr.mxu0 0.0
    %3722 = vmatpush1.msra.mxu0 %v3696
    %3723 = vmatprep.subr.mxu0 0.0
    %3724 = vmatpush1.msra.mxu0 %v3701
    %3725 = vmatprep.subr.mxu0 0.0
    %3726 = vmatpush1.msra.mxu0 %v3719
    %3727 = vmatprep.subr.mxu0 0.0
    %3728 = vmatpush1.msra.mxu0 0.0
    %3729 = vmatprep.subr.mxu0 0.0
    %3730 = vmatpush1.msra.mxu0 0.0
    %3731 = vmatprep.subr.mxu0 0.0
    %3732 = vmatpush1.msra.mxu0 0.0
    %3733 = vmatprep.subr.mxu0 0.0
    %3734 = vmatpush1.msra.mxu0 0.0
    %3735 = vmatprep.subr.mxu0 0.0
    %3736 = vmatpush1.msra.mxu0 0.0
    %3737 = vmatprep.subr.mxu0 0.0
    %3738 = vmatpush1.msra.mxu0 0.0
    %3739 = vmatprep.subr.mxu0 0.0
    %3740 = vmatpush1.msra.mxu0 0.0
    %3741 = vmatprep.subr.mxu0 0.0
    %3742 = vmatpush1.msra.mxu0 0.0
    %3743 = vmatprep.subr.mxu0 0.0
    %3744 = vmatpush1.msra.mxu0 0.0
    %3745 = vmatprep.subr.mxu0 0.0
    %3746 = vmatpush1.msra.mxu0 0.0
    %3747 = vmatprep.subr.mxu0 0.0
    %3748 = vmatpush1.msra.mxu0 0.0
    %3749 = vmatprep.subr.mxu0 0.0
    %3750 = vmatpush1.msra.mxu0 0.0
    %3751 = vmatprep.subr.mxu0 0.0
    %3752 = vmatpush1.msra.mxu0 0.0
    %3753 = vmatprep.subr.mxu0 0.0
    %3754 = vmatpush1.msra.mxu0 0.0
    %3755 = vmatprep.subr.mxu0 0.0
    %3756 = vmatpush1.msra.mxu0 0.0
    %3757 = vmatprep.subr.mxu0 0.0
    %3758 = vmatpush1.msra.mxu0 0.0
    %3759 = vmatprep.subr.mxu0 0.0
    %3760 = vmatpush1.msra.mxu0 0.0
    %3761 = vmatprep.subr.mxu0 0.0
    %3762 = vmatpush1.msra.mxu0 0.0
    %3763 = vmatprep.subr.mxu0 0.0
    %3764 = vmatpush1.msra.mxu0 0.0
    %3765 = vmatprep.subr.mxu0 0.0
    %3766 = vmatpush1.msra.mxu0 0.0
    %3767 = vmatprep.subr.mxu0 0.0
    %3768 = vmatpush1.msra.mxu0 0.0
    %3769 = vmatprep.subr.mxu0 0.0
    %3770 = vmatpush1.msra.mxu0 0.0
    %3771 = vmatprep.subr.mxu0 0.0
    %3772 = vmatpush1.msra.mxu0 0.0
    %3773 = vmatprep.subr.mxu0 0.0
    %3774 = vmatpush1.msra.mxu0 0.0
    %3775 = vmatprep.subr.mxu0 0.0
    %3776 = vmatpush1.msra.mxu0 0.0
    %3777 = vmatprep.subr.mxu0 0.0
    %3778 = vmatpush1.msra.mxu0 0.0
    %3779 = vmatprep.subr.mxu0 0.0
    %3780 = vmatpush1.msra.mxu0 0.0
    %3781 = vmatprep.subr.mxu0 0.0
    %3782 = vmatpush1.msra.mxu0 0.0
    %3783 = vmatprep.subr.mxu0 0.0
    %3784 = vmatpush1.msra.mxu0 0.0
    %3785 = vmatprep.mubr.f32.mxu0 0.0
    %3786 = vmatmul.mubr.f32.gmra.mrb[0].mxu0 %v457
    %v3787 = vpop.f32.mrb[0].mxu0
    %v3788 = vadd.f32 0.0, %v3787
    %v3789 = vpop.f32.mrb[0].mxu0
    %3790 = vmatprep.mubr.f32.mxu0 0.0
    %3791 = vmatmul.mubr.f32.gmra.mrb[0].mxu0 %v460
    %v3792 = vpop.f32.mrb[0].mxu0
    %v3793 = vadd.f32 0.0, %v3792
    %v3794 = vpop.f32.mrb[0].mxu0
    %3795 = vmatprep.mubr.f32.mxu0 0.0
    %3796 = vmatmul.mubr.f32.gmra.mrb[0].mxu0 %v463
    %v3797 = vpop.f32.mrb[0].mxu0
    %v3798 = vadd.f32 0.0, %v3797
    %v3799 = vpop.f32.mrb[0].mxu0
    %3800 = vdwg.mxu0
    %v3801 = vlaneseq
    %v3802 = vshrl.u32 %v3801, 7
    %v3803 = vsub.s32 0, %v3802
    %v3804 = vrot.slane %v3717, %v3803
    %v3805 = vmul.f32 %v3788, %v3804
    %v3806 = vmul.f32 %v3793, %v3804
    %v3807 = vmul.f32 %v3798, %v3804
    %v3808 = vlaneseq
    %v3809 = vshrl.u32 %v3808, 7
    %v3810 = vsub.s32 1, %v3809
    %v3811 = vrot.slane %v3717, %v3810
    %v3812 = vmul.f32 %v3696, %v3811
    %v3813 = vmul.f32 %v3701, %v3811
    %v3814 = vmul.f32 %v3706, %v3811
    %v3815 = vadd.f32 %v3805, %v3812
    %v3816 = vadd.f32 %v3806, %v3813
    %v3817 = vadd.f32 %v3807, %v3814
    %v3818 = vlaneseq
    %v3819 = vshrl.u32 %v3818, 7
    %v3820 = vsub.s32 2, %v3819
    %v3821 = vrot.slane %v3717, %v3820
    %v3822 = vadd.f32 %v3815, %v3821
    %v3823 = vadd.f32 %v3816, %v3821
    %v3824 = vadd.f32 %v3817, %v3821
    %v3825 = vxor.u32 %v3822, 2147483648
    %v3826 = vxor.u32 %v3823, 2147483648
    %v3827 = vxor.u32 %v3824, 2147483648
    %v3828 = vmul.f32 %v3825, 1.442695
    %v3829 = vpow.pop %v3828
    %v3830 = vmul.f32 %v3826, 1.442695
    %v3831 = vpow.pop %v3830
    %v3832 = vmul.f32 %v3827, 1.442695
    %v3833 = vpow.pop %v3832
    %v3834 = vadd.f32 %v3829, 1.0
    %v3835 = vadd.f32 %v3831, 1.0
    %v3836 = vadd.f32 %v3833, 1.0
    %v3837 = vrcp.pop %v3834
    %v3838 = vmul.f32 1.0, %v3837
    %v3839 = vrcp.pop %v3835
    %v3840 = vmul.f32 1.0, %v3839
    %v3841 = vrcp.pop %v3836
    %v3842 = vmul.f32 1.0, %v3841
    %v3843 = vmul.f32 %v3822, %v3838
    %v3844 = vmul.f32 %v3823, %v3840
    %v3845 = vmul.f32 %v3824, %v3842
    %v3847 = vsel %vm359, %v3843, 0
    %v3850 = vsel %vm359, %v3844, 0
    %v3853 = vsel %vm359, %v3845, 0
    %3855 = vmatprep.subr.mxu0 0.0
    %3856 = vmatpush1.msra.mxu0 %v3710
    %3857 = vmatprep.subr.mxu0 0.0
    %3858 = vmatpush1.msra.mxu0 %v3711
    %3859 = vmatprep.subr.mxu0 0.0
    %3860 = vmatpush1.msra.mxu0 %v3712
    %3861 = vmatprep.subr.mxu0 0.0
    %3862 = vmatpush1.msra.mxu0 %v3713
    %3863 = vmatprep.subr.mxu0 0.0
    %3864 = vmatpush1.msra.mxu0 0.0
    %3865 = vmatprep.subr.mxu0 0.0
    %3866 = vmatpush1.msra.mxu0 0.0
    %3867 = vmatprep.subr.mxu0 0.0
    %3868 = vmatpush1.msra.mxu0 0.0
    %3869 = vmatprep.subr.mxu0 0.0
    %3870 = vmatpush1.msra.mxu0 0.0
    %3871 = vmatprep.subr.mxu0 0.0
    %3872 = vmatpush1.msra.mxu0 0.0
    %3873 = vmatprep.subr.mxu0 0.0
    %3874 = vmatpush1.msra.mxu0 0.0
    %3875 = vmatprep.subr.mxu0 0.0
    %3876 = vmatpush1.msra.mxu0 0.0
    %3877 = vmatprep.subr.mxu0 0.0
    %3878 = vmatpush1.msra.mxu0 0.0
    %3879 = vmatprep.subr.mxu0 0.0
    %3880 = vmatpush1.msra.mxu0 0.0
    %3881 = vmatprep.subr.mxu0 0.0
    %3882 = vmatpush1.msra.mxu0 0.0
    %3883 = vmatprep.subr.mxu0 0.0
    %3884 = vmatpush1.msra.mxu0 0.0
    %3885 = vmatprep.subr.mxu0 0.0
    %3886 = vmatpush1.msra.mxu0 0.0
    %3887 = vmatprep.subr.mxu0 0.0
    %3888 = vmatpush1.msra.mxu0 0.0
    %3889 = vmatprep.subr.mxu0 0.0
    %3890 = vmatpush1.msra.mxu0 0.0
    %3891 = vmatprep.subr.mxu0 0.0
    %3892 = vmatpush1.msra.mxu0 0.0
    %3893 = vmatprep.subr.mxu0 0.0
    %3894 = vmatpush1.msra.mxu0 0.0
    %3895 = vmatprep.subr.mxu0 0.0
    %3896 = vmatpush1.msra.mxu0 0.0
    %3897 = vmatprep.subr.mxu0 0.0
    %3898 = vmatpush1.msra.mxu0 0.0
    %3899 = vmatprep.subr.mxu0 0.0
    %3900 = vmatpush1.msra.mxu0 0.0
    %3901 = vmatprep.subr.mxu0 0.0
    %3902 = vmatpush1.msra.mxu0 0.0
    %3903 = vmatprep.subr.mxu0 0.0
    %3904 = vmatpush1.msra.mxu0 0.0
    %3905 = vmatprep.subr.mxu0 0.0
    %3906 = vmatpush1.msra.mxu0 0.0
    %3907 = vmatprep.subr.mxu0 0.0
    %3908 = vmatpush1.msra.mxu0 0.0
    %3909 = vmatprep.subr.mxu0 0.0
    %3910 = vmatpush1.msra.mxu0 0.0
    %3911 = vmatprep.subr.mxu0 0.0
    %3912 = vmatpush1.msra.mxu0 0.0
    %3913 = vmatprep.subr.mxu0 0.0
    %3914 = vmatpush1.msra.mxu0 0.0
    %3915 = vmatprep.subr.mxu0 0.0
    %3916 = vmatpush1.msra.mxu0 0.0
    %3917 = vmatprep.subr.mxu0 0.0
    %3918 = vmatpush1.msra.mxu0 0.0
    %3919 = vmatprep.mubr.f32.mxu0 0.0
    %3920 = vmatmul.mubr.f32.gmra.mrb[0].mxu0 %v3847
    %v3921 = vpop.f32.mrb[0].mxu0
    %v3922 = vadd.f32 0.0, %v3921
    %v3923 = vpop.f32.mrb[0].mxu0
    %3924 = vmatprep.mubr.f32.mxu0 0.0
    %3925 = vmatmul.mubr.f32.gmra.mrb[0].mxu0 %v3850
    %v3926 = vpop.f32.mrb[0].mxu0
    %v3927 = vadd.f32 0.0, %v3926
    %v3928 = vpop.f32.mrb[0].mxu0
    %3929 = vmatprep.mubr.f32.mxu0 0.0
    %3930 = vmatmul.mubr.f32.gmra.mrb[0].mxu0 %v3853
    %v3931 = vpop.f32.mrb[0].mxu0
    %v3932 = vadd.f32 0.0, %v3931
    %v3933 = vpop.f32.mrb[0].mxu0
    %3934 = vdwg.mxu0
    %v3935 = vlaneseq
    %v3936 = vshrl.u32 %v3935, 7
    %v3937 = vsub.s32 3, %v3936
    %v3938 = vrot.slane %v3717, %v3937
    %v3939 = vadd.f32 %v3922, %v3938
    %v3940 = vadd.f32 %v3927, %v3938
    %v3941 = vadd.f32 %v3932, %v3938
    %v3942 = vmax.f32 %v3939, 0.0
    %v3943 = vmax.f32 %v3940, 0.0
    %v3944 = vmax.f32 %v3941, 0.0
    %vm3945 = vcmp.ne.f32.partialorder %v3939, %v3939
    %vm3946 = vcmp.ne.f32.partialorder %v3940, %v3940
    %vm3947 = vcmp.ne.f32.partialorder %v3941, %v3941
    %v3948 = vadd.f32 %v3939, 0.0
    %v3949 = vadd.f32 %v3940, 0.0
    %v3950 = vadd.f32 %v3941, 0.0
    %v3951 = vand.u32 2147483647, %v3939
    %v3952 = vand.u32 2147483647, %v3940
    %v3953 = vand.u32 2147483647, %v3941
    %v3954 = vsub.f32 0.0, %v3951
    %v3955 = vsub.f32 0.0, %v3952
    %v3956 = vsub.f32 0.0, %v3953
    %v3957 = vmul.f32 %v3954, 1.442695
    %v3958 = vpow.pop %v3957
    %v3959 = vmul.f32 %v3955, 1.442695
    %v3960 = vpow.pop %v3959
    %v3961 = vmul.f32 %v3956, 1.442695
    %v3962 = vpow.pop %v3961
    %v3963 = vadd.f32 %v3958, 1.0
    %v3964 = vlog2.pop %v3963
    %v3965 = vmul.f32 %v3964, 0.6931472
    %v3966 = vmul.f32 -0.5, %v3958
    %v3967 = vadd.f32 %v3966, 1.0
    %v3968 = vmul.f32 %v3967, %v3958
    %v3969 = vand.u32 2147483647, %v3958
    %vm3970 = vcmp.lt.f32.partialorder %v3969, 0.0004427343
    %v3971 = vsel %vm3970, %v3968, %v3965
    %v3972 = vadd.f32 %v3960, 1.0
    %v3973 = vlog2.pop %v3972
    %v3974 = vmul.f32 %v3973, 0.6931472
    %v3975 = vmul.f32 -0.5, %v3960
    %v3976 = vadd.f32 %v3975, 1.0
    %v3977 = vmul.f32 %v3976, %v3960
    %v3978 = vand.u32 2147483647, %v3960
    %vm3979 = vcmp.lt.f32.partialorder %v3978, 0.0004427343
    %v3980 = vsel %vm3979, %v3977, %v3974
    %v3981 = vadd.f32 %v3962, 1.0
    %v3982 = vlog2.pop %v3981
    %v3983 = vmul.f32 %v3982, 0.6931472
    %v3984 = vmul.f32 -0.5, %v3962
    %v3985 = vadd.f32 %v3984, 1.0
    %v3986 = vmul.f32 %v3985, %v3962
    %v3987 = vand.u32 2147483647, %v3962
    %vm3988 = vcmp.lt.f32.partialorder %v3987, 0.0004427343
    %v3989 = vsel %vm3988, %v3986, %v3983
    %v3990 = vadd.f32 %v3942, %v3971
    %v3991 = vadd.f32 %v3943, %v3980
    %v3992 = vadd.f32 %v3944, %v3989
    %v3993 = vsel %vm3945, %v3948, %v3990
    %v3994 = vsel %vm3946, %v3949, %v3991
    %v3995 = vsel %vm3947, %v3950, %v3992
    %v3999 = vcombine.high %v3993, %v3993
    %v4001 = vunpack.c.l.s4 1966171168
    %v4002 = vunpack.c.0.s8 %v4001
    %v4003 = vlaneseq
    %v4004 = vshrl.u32 %v4003, 7
    %v4005 = vsub.s32 %v4002, %v4004
    %v4006 = vrot.slane %v3993, %v4005
    %v4008 = vunpack.c.l.s4 1966171168
    %v4009 = vunpack.c.0.s8 %v4008
    %v4010 = vlaneseq
    %v4011 = vshrl.u32 %v4010, 7
    %v4012 = vsub.s32 %v4009, %v4011
    %v4013 = vrot.slane %v3999, %v4012
    %v4014 = vcombine.high %v4006, %v4006
    %v4015 = vcombine.high %v4013, %v4013
    %v4017 = vunpack.c.l.s4 1966171168
    %v4018 = vunpack.c.0.s8 %v4017
    %v4019 = vlaneseq
    %v4020 = vshrl.u32 %v4019, 7
    %v4021 = vsub.s32 %v4018, %v4020
    %v4022 = vrot.slane %v4006, %v4021
    %v4024 = vunpack.c.l.s4 1966171168
    %v4025 = vunpack.c.0.s8 %v4024
    %v4026 = vlaneseq
    %v4027 = vshrl.u32 %v4026, 7
    %v4028 = vsub.s32 %v4025, %v4027
    %v4029 = vrot.slane %v4013, %v4028
    %v4031 = vunpack.c.l.s4 1966171168
    %v4032 = vunpack.c.0.s8 %v4031
    %v4033 = vlaneseq
    %v4034 = vshrl.u32 %v4033, 7
    %v4035 = vsub.s32 %v4032, %v4034
    %v4036 = vrot.slane %v4014, %v4035
    %v4038 = vunpack.c.l.s4 1966171168
    %v4039 = vunpack.c.0.s8 %v4038
    %v4040 = vlaneseq
    %v4041 = vshrl.u32 %v4040, 7
    %v4042 = vsub.s32 %v4039, %v4041
    %v4043 = vrot.slane %v4015, %v4042
    %v4044 = vcombine.high %v4022, %v4022
    %v4045 = vcombine.high %v4029, %v4029
    %v4046 = vcombine.high %v4036, %v4036
    %v4047 = vcombine.high %v4043, %v4043
    %v4048 = vcombine.high %v3994, %v3994
    %v4050 = vunpack.c.l.s4 1966171168
    %v4051 = vunpack.c.0.s8 %v4050
    %v4052 = vlaneseq
    %v4053 = vshrl.u32 %v4052, 7
    %v4054 = vsub.s32 %v4051, %v4053
    %v4055 = vrot.slane %v3994, %v4054
    %v4057 = vunpack.c.l.s4 1966171168
    %v4058 = vunpack.c.0.s8 %v4057
    %v4059 = vlaneseq
    %v4060 = vshrl.u32 %v4059, 7
    %v4061 = vsub.s32 %v4058, %v4060
    %v4062 = vrot.slane %v4048, %v4061
    %v4063 = vcombine.high %v4055, %v4055
    %v4064 = vcombine.high %v4062, %v4062
    %v4066 = vunpack.c.l.s4 1966171168
    %v4067 = vunpack.c.0.s8 %v4066
    %v4068 = vlaneseq
    %v4069 = vshrl.u32 %v4068, 7
    %v4070 = vsub.s32 %v4067, %v4069
    %v4071 = vrot.slane %v4055, %v4070
    %v4073 = vunpack.c.l.s4 1966171168
    %v4074 = vunpack.c.0.s8 %v4073
    %v4075 = vlaneseq
    %v4076 = vshrl.u32 %v4075, 7
    %v4077 = vsub.s32 %v4074, %v4076
    %v4078 = vrot.slane %v4062, %v4077
    %v4080 = vunpack.c.l.s4 1966171168
    %v4081 = vunpack.c.0.s8 %v4080
    %v4082 = vlaneseq
    %v4083 = vshrl.u32 %v4082, 7
    %v4084 = vsub.s32 %v4081, %v4083
    %v4085 = vrot.slane %v4063, %v4084
    %v4087 = vunpack.c.l.s4 1966171168
    %v4088 = vunpack.c.0.s8 %v4087
    %v4089 = vlaneseq
    %v4090 = vshrl.u32 %v4089, 7
    %v4091 = vsub.s32 %v4088, %v4090
    %v4092 = vrot.slane %v4064, %v4091
    %v4093 = vcombine.high %v4071, %v4071
    %v4094 = vcombine.high %v4078, %v4078
    %v4095 = vcombine.high %v4085, %v4085
    %v4096 = vcombine.high %v4092, %v4092
    %v4098 = vunpack.c.l.s4 1966171168
    %v4099 = vunpack.c.0.s8 %v4098
    %v4100 = vlaneseq
    %v4101 = vshrl.u32 %v4100, 7
    %v4102 = vsub.s32 %v4099, %v4101
    %v4103 = vrot.slane %v3995, %v4102
    %v4104 = vcombine.high %v4103, %v4103
    %v4106 = vunpack.c.l.s4 1966171168
    %v4107 = vunpack.c.0.s8 %v4106
    %v4108 = vlaneseq
    %v4109 = vshrl.u32 %v4108, 7
    %v4110 = vsub.s32 %v4107, %v4109
    %v4111 = vrot.slane %v4103, %v4110
    %v4113 = vunpack.c.l.s4 1966171168
    %v4114 = vunpack.c.0.s8 %v4113
    %v4115 = vlaneseq
    %v4116 = vshrl.u32 %v4115, 7
    %v4117 = vsub.s32 %v4114, %v4116
    %v4118 = vrot.slane %v4104, %v4117
    %v4119 = vcombine.high %v4111, %v4111
    %v4120 = vcombine.high %v4118, %v4118
    %v4121 = vlaneseq
    %v4122 = vshrl.u32 %v4121, 7
    %v4123 = vsub.s32 0, %v4122
    %v4124 = vrot.slane %v4022, %v4123
    %v4125 = vlaneseq
    %v4126 = vshrl.u32 %v4125, 7
    %v4127 = vsub.s32 0, %v4126
    %v4128 = vrot.slane %v4036, %v4127
    %v4129 = vlaneseq
    %v4130 = vshrl.u32 %v4129, 7
    %v4131 = vsub.s32 0, %v4130
    %v4132 = vrot.slane %v4044, %v4131
    %v4133 = vlaneseq
    %v4134 = vshrl.u32 %v4133, 7
    %v4135 = vsub.s32 0, %v4134
    %v4136 = vrot.slane %v4046, %v4135
    %v4137 = vlaneseq
    %v4138 = vshrl.u32 %v4137, 7
    %v4139 = vsub.s32 0, %v4138
    %v4140 = vrot.slane %v4029, %v4139
    %v4141 = vlaneseq
    %v4142 = vshrl.u32 %v4141, 7
    %v4143 = vsub.s32 0, %v4142
    %v4144 = vrot.slane %v4043, %v4143
    %v4145 = vlaneseq
    %v4146 = vshrl.u32 %v4145, 7
    %v4147 = vsub.s32 0, %v4146
    %v4148 = vrot.slane %v4045, %v4147
    %v4149 = vlaneseq
    %v4150 = vshrl.u32 %v4149, 7
    %v4151 = vsub.s32 0, %v4150
    %v4152 = vrot.slane %v4047, %v4151
    %v4153 = vlaneseq
    %v4154 = vshrl.u32 %v4153, 7
    %v4155 = vsub.s32 0, %v4154
    %v4156 = vrot.slane %v4071, %v4155
    %v4157 = vlaneseq
    %v4158 = vshrl.u32 %v4157, 7
    %v4159 = vsub.s32 0, %v4158
    %v4160 = vrot.slane %v4085, %v4159
    %v4161 = vlaneseq
    %v4162 = vshrl.u32 %v4161, 7
    %v4163 = vsub.s32 0, %v4162
    %v4164 = vrot.slane %v4093, %v4163
    %v4165 = vlaneseq
    %v4166 = vshrl.u32 %v4165, 7
    %v4167 = vsub.s32 0, %v4166
    %v4168 = vrot.slane %v4095, %v4167
    %v4169 = vlaneseq
    %v4170 = vshrl.u32 %v4169, 7
    %v4171 = vsub.s32 0, %v4170
    %v4172 = vrot.slane %v4078, %v4171
    %v4173 = vlaneseq
    %v4174 = vshrl.u32 %v4173, 7
    %v4175 = vsub.s32 0, %v4174
    %v4176 = vrot.slane %v4092, %v4175
    %v4177 = vlaneseq
    %v4178 = vshrl.u32 %v4177, 7
    %v4179 = vsub.s32 0, %v4178
    %v4180 = vrot.slane %v4094, %v4179
    %v4181 = vlaneseq
    %v4182 = vshrl.u32 %v4181, 7
    %v4183 = vsub.s32 0, %v4182
    %v4184 = vrot.slane %v4096, %v4183
    %v4185 = vlaneseq
    %v4186 = vshrl.u32 %v4185, 7
    %v4187 = vsub.s32 0, %v4186
    %v4188 = vrot.slane %v4111, %v4187
    %v4189 = vlaneseq
    %v4190 = vshrl.u32 %v4189, 7
    %v4191 = vsub.s32 0, %v4190
    %v4192 = vrot.slane %v4118, %v4191
    %v4193 = vlaneseq
    %v4194 = vshrl.u32 %v4193, 7
    %v4195 = vsub.s32 0, %v4194
    %v4196 = vrot.slane %v4119, %v4195
    %v4197 = vlaneseq
    %v4198 = vshrl.u32 %v4197, 7
    %v4199 = vsub.s32 0, %v4198
    %v4200 = vrot.slane %v4120, %v4199
    %v4221 = vmul.f32 %v4124, %v3715
    %v4222 = vmul.f32 %v4128, %v3715
    %v4223 = vmul.f32 %v4132, %v3715
    %v4224 = vmul.f32 %v4136, %v3715
    %v4225 = vmul.f32 %v4140, %v3715
    %v4226 = vmul.f32 %v4144, %v3715
    %v4227 = vmul.f32 %v4148, %v3715
    %v4228 = vmul.f32 %v4152, %v3715
    %v4229 = vmul.f32 %v4156, %v3715
    %v4230 = vmul.f32 %v4160, %v3715
    %v4231 = vmul.f32 %v4164, %v3715
    %v4232 = vmul.f32 %v4168, %v3715
    %v4233 = vmul.f32 %v4172, %v3715
    %v4234 = vmul.f32 %v4176, %v3715
    %v4235 = vmul.f32 %v4180, %v3715
    %v4236 = vmul.f32 %v4184, %v3715
    %v4237 = vmul.f32 %v4188, %v3715
    %v4238 = vmul.f32 %v4192, %v3715
    %v4239 = vmul.f32 %v4196, %v3715
    %v4240 = vmul.f32 %v4200, %v3715
    %v4241 = vmul.f32 %v4221, 1.442695
    %v4242 = vpow.pop %v4241
    %v4243 = vmul.f32 %v4222, 1.442695
    %v4244 = vpow.pop %v4243
    %v4245 = vmul.f32 %v4223, 1.442695
    %v4246 = vpow.pop %v4245
    %v4247 = vmul.f32 %v4224, 1.442695
    %v4248 = vpow.pop %v4247
    %v4249 = vmul.f32 %v4225, 1.442695
    %v4250 = vpow.pop %v4249
    %v4251 = vmul.f32 %v4226, 1.442695
    %v4252 = vpow.pop %v4251
    %v4253 = vmul.f32 %v4227, 1.442695
    %v4254 = vpow.pop %v4253
    %v4255 = vmul.f32 %v4228, 1.442695
    %v4256 = vpow.pop %v4255
    %v4257 = vmul.f32 %v4229, 1.442695
    %v4258 = vpow.pop %v4257
    %v4259 = vmul.f32 %v4230, 1.442695
    %v4260 = vpow.pop %v4259
    %v4261 = vmul.f32 %v4231, 1.442695
    %v4262 = vpow.pop %v4261
    %v4263 = vmul.f32 %v4232, 1.442695
    %v4264 = vpow.pop %v4263
    %v4265 = vmul.f32 %v4233, 1.442695
    %v4266 = vpow.pop %v4265
    %v4267 = vmul.f32 %v4234, 1.442695
    %v4268 = vpow.pop %v4267
    %v4269 = vmul.f32 %v4235, 1.442695
    %v4270 = vpow.pop %v4269
    %v4271 = vmul.f32 %v4236, 1.442695
    %v4272 = vpow.pop %v4271
    %v4273 = vmul.f32 %v4237, 1.442695
    %v4274 = vpow.pop %v4273
    %v4275 = vmul.f32 %v4238, 1.442695
    %v4276 = vpow.pop %v4275
    %v4277 = vmul.f32 %v4239, 1.442695
    %v4278 = vpow.pop %v4277
    %v4279 = vmul.f32 %v4240, 1.442695
    %v4280 = vpow.pop %v4279
    %v4281 = vlaneseq
    %v4282 = vshrl.u32 %v4281, 7
    %v4283 = vsub.s32 0, %v4282
    %v4284 = vrot.slane %v3922, %v4283
    %s4286 = sor.u32 256, 32
    %4287 = vbcast.lane.b32.xlu0 %v4284, %s4286
    %v4288 = vpop.permute.xlu0 %4287
    %v4289 = vlaneseq
    %v4290 = vshrl.u32 %v4289, 7
    %v4291 = vsub.s32 1, %v4290
    %v4292 = vrot.slane %v3922, %v4291
    %s4294 = sor.u32 256, 32
    %4295 = vbcast.lane.b32.xlu0 %v4292, %s4294
    %v4296 = vpop.permute.xlu0 %4295
    %v4297 = vlaneseq
    %v4298 = vshrl.u32 %v4297, 7
    %v4299 = vsub.s32 2, %v4298
    %v4300 = vrot.slane %v3922, %v4299
    %s4302 = sor.u32 256, 32
    %4303 = vbcast.lane.b32.xlu0 %v4300, %s4302
    %v4304 = vpop.permute.xlu0 %4303
    %v4305 = vlaneseq
    %v4306 = vshrl.u32 %v4305, 7
    %v4307 = vsub.s32 3, %v4306
    %v4308 = vrot.slane %v3922, %v4307
    %s4310 = sor.u32 256, 32
    %4311 = vbcast.lane.b32.xlu0 %v4308, %s4310
    %v4312 = vpop.permute.xlu0 %4311
    %v4313 = vlaneseq
    %v4314 = vshrl.u32 %v4313, 7
    %v4315 = vsub.s32 4, %v4314
    %v4316 = vrot.slane %v3922, %v4315
    %s4318 = sor.u32 256, 32
    %4319 = vbcast.lane.b32.xlu0 %v4316, %s4318
    %v4320 = vpop.permute.xlu0 %4319
    %v4321 = vlaneseq
    %v4322 = vshrl.u32 %v4321, 7
    %v4323 = vsub.s32 5, %v4322
    %v4324 = vrot.slane %v3922, %v4323
    %s4326 = sor.u32 256, 32
    %4327 = vbcast.lane.b32.xlu0 %v4324, %s4326
    %v4328 = vpop.permute.xlu0 %4327
    %v4329 = vlaneseq
    %v4330 = vshrl.u32 %v4329, 7
    %v4331 = vsub.s32 6, %v4330
    %v4332 = vrot.slane %v3922, %v4331
    %s4334 = sor.u32 256, 32
    %4335 = vbcast.lane.b32.xlu0 %v4332, %s4334
    %v4336 = vpop.permute.xlu0 %4335
    %v4337 = vlaneseq
    %v4338 = vshrl.u32 %v4337, 7
    %v4339 = vsub.s32 7, %v4338
    %v4340 = vrot.slane %v3922, %v4339
    %s4342 = sor.u32 256, 32
    %4343 = vbcast.lane.b32.xlu0 %v4340, %s4342
    %v4344 = vpop.permute.xlu0 %4343
    %v4345 = vlaneseq
    %v4346 = vshrl.u32 %v4345, 7
    %v4347 = vsub.s32 0, %v4346
    %v4348 = vrot.slane %v3927, %v4347
    %s4350 = sor.u32 256, 32
    %4351 = vbcast.lane.b32.xlu0 %v4348, %s4350
    %v4352 = vpop.permute.xlu0 %4351
    %v4353 = vlaneseq
    %v4354 = vshrl.u32 %v4353, 7
    %v4355 = vsub.s32 1, %v4354
    %v4356 = vrot.slane %v3927, %v4355
    %s4358 = sor.u32 256, 32
    %4359 = vbcast.lane.b32.xlu0 %v4356, %s4358
    %v4360 = vpop.permute.xlu0 %4359
    %v4361 = vlaneseq
    %v4362 = vshrl.u32 %v4361, 7
    %v4363 = vsub.s32 2, %v4362
    %v4364 = vrot.slane %v3927, %v4363
    %s4366 = sor.u32 256, 32
    %4367 = vbcast.lane.b32.xlu0 %v4364, %s4366
    %v4368 = vpop.permute.xlu0 %4367
    %v4369 = vlaneseq
    %v4370 = vshrl.u32 %v4369, 7
    %v4371 = vsub.s32 3, %v4370
    %v4372 = vrot.slane %v3927, %v4371
    %s4374 = sor.u32 256, 32
    %4375 = vbcast.lane.b32.xlu0 %v4372, %s4374
    %v4376 = vpop.permute.xlu0 %4375
    %v4377 = vlaneseq
    %v4378 = vshrl.u32 %v4377, 7
    %v4379 = vsub.s32 4, %v4378
    %v4380 = vrot.slane %v3927, %v4379
    %s4382 = sor.u32 256, 32
    %4383 = vbcast.lane.b32.xlu0 %v4380, %s4382
    %v4384 = vpop.permute.xlu0 %4383
    %v4385 = vlaneseq
    %v4386 = vshrl.u32 %v4385, 7
    %v4387 = vsub.s32 5, %v4386
    %v4388 = vrot.slane %v3927, %v4387
    %s4390 = sor.u32 256, 32
    %4391 = vbcast.lane.b32.xlu0 %v4388, %s4390
    %v4392 = vpop.permute.xlu0 %4391
    %v4393 = vlaneseq
    %v4394 = vshrl.u32 %v4393, 7
    %v4395 = vsub.s32 6, %v4394
    %v4396 = vrot.slane %v3927, %v4395
    %s4398 = sor.u32 256, 32
    %4399 = vbcast.lane.b32.xlu0 %v4396, %s4398
    %v4400 = vpop.permute.xlu0 %4399
    %v4401 = vlaneseq
    %v4402 = vshrl.u32 %v4401, 7
    %v4403 = vsub.s32 7, %v4402
    %v4404 = vrot.slane %v3927, %v4403
    %s4406 = sor.u32 256, 32
    %4407 = vbcast.lane.b32.xlu0 %v4404, %s4406
    %v4408 = vpop.permute.xlu0 %4407
    %v4409 = vlaneseq
    %v4410 = vshrl.u32 %v4409, 7
    %v4411 = vsub.s32 0, %v4410
    %v4412 = vrot.slane %v3932, %v4411
    %s4414 = sor.u32 256, 32
    %4415 = vbcast.lane.b32.xlu0 %v4412, %s4414
    %v4416 = vpop.permute.xlu0 %4415
    %v4417 = vlaneseq
    %v4418 = vshrl.u32 %v4417, 7
    %v4419 = vsub.s32 1, %v4418
    %v4420 = vrot.slane %v3932, %v4419
    %s4422 = sor.u32 256, 32
    %4423 = vbcast.lane.b32.xlu0 %v4420, %s4422
    %v4424 = vpop.permute.xlu0 %4423
    %v4425 = vlaneseq
    %v4426 = vshrl.u32 %v4425, 7
    %v4427 = vsub.s32 2, %v4426
    %v4428 = vrot.slane %v3932, %v4427
    %s4430 = sor.u32 256, 32
    %4431 = vbcast.lane.b32.xlu0 %v4428, %s4430
    %v4432 = vpop.permute.xlu0 %4431
    %v4433 = vlaneseq
    %v4434 = vshrl.u32 %v4433, 7
    %v4435 = vsub.s32 3, %v4434
    %v4436 = vrot.slane %v3932, %v4435
    %s4438 = sor.u32 256, 32
    %4439 = vbcast.lane.b32.xlu0 %v4436, %s4438
    %v4440 = vpop.permute.xlu0 %4439
    %v4441 = vmul.f32 %v3993, %v3843
    %v4442 = vmul.f32 %v3994, %v3844
    %v4443 = vmul.f32 %v3995, %v3845
    %v4447 = vcombine.high %v4441, %v4441
    %v4449 = vunpack.c.l.s4 1966171168
    %v4450 = vunpack.c.0.s8 %v4449
    %v4451 = vlaneseq
    %v4452 = vshrl.u32 %v4451, 7
    %v4453 = vsub.s32 %v4450, %v4452
    %v4454 = vrot.slane %v4441, %v4453
    %v4456 = vunpack.c.l.s4 1966171168
    %v4457 = vunpack.c.0.s8 %v4456
    %v4458 = vlaneseq
    %v4459 = vshrl.u32 %v4458, 7
    %v4460 = vsub.s32 %v4457, %v4459
    %v4461 = vrot.slane %v4447, %v4460
    %v4462 = vcombine.high %v4454, %v4454
    %v4463 = vcombine.high %v4461, %v4461
    %v4465 = vunpack.c.l.s4 1966171168
    %v4466 = vunpack.c.0.s8 %v4465
    %v4467 = vlaneseq
    %v4468 = vshrl.u32 %v4467, 7
    %v4469 = vsub.s32 %v4466, %v4468
    %v4470 = vrot.slane %v4454, %v4469
    %v4472 = vunpack.c.l.s4 1966171168
    %v4473 = vunpack.c.0.s8 %v4472
    %v4474 = vlaneseq
    %v4475 = vshrl.u32 %v4474, 7
    %v4476 = vsub.s32 %v4473, %v4475
    %v4477 = vrot.slane %v4461, %v4476
    %v4479 = vunpack.c.l.s4 1966171168
    %v4480 = vunpack.c.0.s8 %v4479
    %v4481 = vlaneseq
    %v4482 = vshrl.u32 %v4481, 7
    %v4483 = vsub.s32 %v4480, %v4482
    %v4484 = vrot.slane %v4462, %v4483
    %v4486 = vunpack.c.l.s4 1966171168
    %v4487 = vunpack.c.0.s8 %v4486
    %v4488 = vlaneseq
    %v4489 = vshrl.u32 %v4488, 7
    %v4490 = vsub.s32 %v4487, %v4489
    %v4491 = vrot.slane %v4463, %v4490
    %v4492 = vcombine.high %v4470, %v4470
    %v4493 = vcombine.high %v4477, %v4477
    %v4494 = vcombine.high %v4484, %v4484
    %v4495 = vcombine.high %v4491, %v4491
    %v4496 = vcombine.high %v4442, %v4442
    %v4498 = vunpack.c.l.s4 1966171168
    %v4499 = vunpack.c.0.s8 %v4498
    %v4500 = vlaneseq
    %v4501 = vshrl.u32 %v4500, 7
    %v4502 = vsub.s32 %v4499, %v4501
    %v4503 = vrot.slane %v4442, %v4502
    %v4505 = vunpack.c.l.s4 1966171168
    %v4506 = vunpack.c.0.s8 %v4505
    %v4507 = vlaneseq
    %v4508 = vshrl.u32 %v4507, 7
    %v4509 = vsub.s32 %v4506, %v4508
    %v4510 = vrot.slane %v4496, %v4509
    %v4511 = vcombine.high %v4503, %v4503
    %v4512 = vcombine.high %v4510, %v4510
    %v4514 = vunpack.c.l.s4 1966171168
    %v4515 = vunpack.c.0.s8 %v4514
    %v4516 = vlaneseq
    %v4517 = vshrl.u32 %v4516, 7
    %v4518 = vsub.s32 %v4515, %v4517
    %v4519 = vrot.slane %v4503, %v4518
    %v4521 = vunpack.c.l.s4 1966171168
    %v4522 = vunpack.c.0.s8 %v4521
    %v4523 = vlaneseq
    %v4524 = vshrl.u32 %v4523, 7
    %v4525 = vsub.s32 %v4522, %v4524
    %v4526 = vrot.slane %v4510, %v4525
    %v4528 = vunpack.c.l.s4 1966171168
    %v4529 = vunpack.c.0.s8 %v4528
    %v4530 = vlaneseq
    %v4531 = vshrl.u32 %v4530, 7
    %v4532 = vsub.s32 %v4529, %v4531
    %v4533 = vrot.slane %v4511, %v4532
    %v4535 = vunpack.c.l.s4 1966171168
    %v4536 = vunpack.c.0.s8 %v4535
    %v4537 = vlaneseq
    %v4538 = vshrl.u32 %v4537, 7
    %v4539 = vsub.s32 %v4536, %v4538
    %v4540 = vrot.slane %v4512, %v4539
    %v4541 = vcombine.high %v4519, %v4519
    %v4542 = vcombine.high %v4526, %v4526
    %v4543 = vcombine.high %v4533, %v4533
    %v4544 = vcombine.high %v4540, %v4540
    %v4546 = vunpack.c.l.s4 1966171168
    %v4547 = vunpack.c.0.s8 %v4546
    %v4548 = vlaneseq
    %v4549 = vshrl.u32 %v4548, 7
    %v4550 = vsub.s32 %v4547, %v4549
    %v4551 = vrot.slane %v4443, %v4550
    %v4552 = vcombine.high %v4551, %v4551
    %v4554 = vunpack.c.l.s4 1966171168
    %v4555 = vunpack.c.0.s8 %v4554
    %v4556 = vlaneseq
    %v4557 = vshrl.u32 %v4556, 7
    %v4558 = vsub.s32 %v4555, %v4557
    %v4559 = vrot.slane %v4551, %v4558
    %v4561 = vunpack.c.l.s4 1966171168
    %v4562 = vunpack.c.0.s8 %v4561
    %v4563 = vlaneseq
    %v4564 = vshrl.u32 %v4563, 7
    %v4565 = vsub.s32 %v4562, %v4564
    %v4566 = vrot.slane %v4552, %v4565
    %v4567 = vcombine.high %v4559, %v4559
    %v4568 = vcombine.high %v4566, %v4566
    %v4569 = vlaneseq
    %v4570 = vshrl.u32 %v4569, 7
    %v4571 = vsub.s32 0, %v4570
    %v4572 = vrot.slane %v4470, %v4571
    %v4573 = vlaneseq
    %v4574 = vshrl.u32 %v4573, 7
    %v4575 = vsub.s32 0, %v4574
    %v4576 = vrot.slane %v4484, %v4575
    %v4577 = vlaneseq
    %v4578 = vshrl.u32 %v4577, 7
    %v4579 = vsub.s32 0, %v4578
    %v4580 = vrot.slane %v4492, %v4579
    %v4581 = vlaneseq
    %v4582 = vshrl.u32 %v4581, 7
    %v4583 = vsub.s32 0, %v4582
    %v4584 = vrot.slane %v4494, %v4583
    %v4585 = vlaneseq
    %v4586 = vshrl.u32 %v4585, 7
    %v4587 = vsub.s32 0, %v4586
    %v4588 = vrot.slane %v4477, %v4587
    %v4589 = vlaneseq
    %v4590 = vshrl.u32 %v4589, 7
    %v4591 = vsub.s32 0, %v4590
    %v4592 = vrot.slane %v4491, %v4591
    %v4593 = vlaneseq
    %v4594 = vshrl.u32 %v4593, 7
    %v4595 = vsub.s32 0, %v4594
    %v4596 = vrot.slane %v4493, %v4595
    %v4597 = vlaneseq
    %v4598 = vshrl.u32 %v4597, 7
    %v4599 = vsub.s32 0, %v4598
    %v4600 = vrot.slane %v4495, %v4599
    %v4601 = vlaneseq
    %v4602 = vshrl.u32 %v4601, 7
    %v4603 = vsub.s32 0, %v4602
    %v4604 = vrot.slane %v4519, %v4603
    %v4605 = vlaneseq
    %v4606 = vshrl.u32 %v4605, 7
    %v4607 = vsub.s32 0, %v4606
    %v4608 = vrot.slane %v4533, %v4607
    %v4609 = vlaneseq
    %v4610 = vshrl.u32 %v4609, 7
    %v4611 = vsub.s32 0, %v4610
    %v4612 = vrot.slane %v4541, %v4611
    %v4613 = vlaneseq
    %v4614 = vshrl.u32 %v4613, 7
    %v4615 = vsub.s32 0, %v4614
    %v4616 = vrot.slane %v4543, %v4615
    %v4617 = vlaneseq
    %v4618 = vshrl.u32 %v4617, 7
    %v4619 = vsub.s32 0, %v4618
    %v4620 = vrot.slane %v4526, %v4619
    %v4621 = vlaneseq
    %v4622 = vshrl.u32 %v4621, 7
    %v4623 = vsub.s32 0, %v4622
    %v4624 = vrot.slane %v4540, %v4623
    %v4625 = vlaneseq
    %v4626 = vshrl.u32 %v4625, 7
    %v4627 = vsub.s32 0, %v4626
    %v4628 = vrot.slane %v4542, %v4627
    %v4629 = vlaneseq
    %v4630 = vshrl.u32 %v4629, 7
    %v4631 = vsub.s32 0, %v4630
    %v4632 = vrot.slane %v4544, %v4631
    %v4633 = vlaneseq
    %v4634 = vshrl.u32 %v4633, 7
    %v4635 = vsub.s32 0, %v4634
    %v4636 = vrot.slane %v4559, %v4635
    %v4637 = vlaneseq
    %v4638 = vshrl.u32 %v4637, 7
    %v4639 = vsub.s32 0, %v4638
    %v4640 = vrot.slane %v4566, %v4639
    %v4641 = vlaneseq
    %v4642 = vshrl.u32 %v4641, 7
    %v4643 = vsub.s32 0, %v4642
    %v4644 = vrot.slane %v4567, %v4643
    %v4645 = vlaneseq
    %v4646 = vshrl.u32 %v4645, 7
    %v4647 = vsub.s32 0, %v4646
    %v4648 = vrot.slane %v4568, %v4647
    %v4669 = vmul.f32 %v4288, %v4572
    %v4670 = vmul.f32 %v4296, %v4576
    %v4671 = vmul.f32 %v4304, %v4580
    %v4672 = vmul.f32 %v4312, %v4584
    %v4673 = vmul.f32 %v4320, %v4588
    %v4674 = vmul.f32 %v4328, %v4592
    %v4675 = vmul.f32 %v4336, %v4596
    %v4676 = vmul.f32 %v4344, %v4600
    %v4677 = vmul.f32 %v4352, %v4604
    %v4678 = vmul.f32 %v4360, %v4608
    %v4679 = vmul.f32 %v4368, %v4612
    %v4680 = vmul.f32 %v4376, %v4616
    %v4681 = vmul.f32 %v4384, %v4620
    %v4682 = vmul.f32 %v4392, %v4624
    %v4683 = vmul.f32 %v4400, %v4628
    %v4684 = vmul.f32 %v4408, %v4632
    %v4685 = vmul.f32 %v4416, %v4636
    %v4686 = vmul.f32 %v4424, %v4640
    %v4687 = vmul.f32 %v4432, %v4644
    %v4688 = vmul.f32 %v4440, %v4648
    %v4689 = vmul.f32 %v4242, 0.0
    %v4690 = vmul.f32 %v4244, 0.0
    %v4691 = vadd.f32 %v4689, %v4669
    %v4692 = vadd.f32 %v4690, %v4670
    %s4694 = sor.u32 256, 40
    %4695 = vbcast.lane.b32.xlu0 %v4284, %s4694
    %v4696 = vpop.permute.xlu0 %4695
    %s4698 = sor.u32 256, 40
    %4699 = vbcast.lane.b32.xlu0 %v4292, %s4698
    %v4700 = vpop.permute.xlu0 %4699
    %v4701 = vmul.f32 %v4691, %v4696
    %v4702 = vmul.f32 %v4692, %v4700
    %v4703 = vsel %vm359, %v4701, 0.0
    %v4704 = vrot.slane %v4703, 4
    %v4705 = vadd.f32 %v4703, %v4704
    %v4706 = vrot.slane %v4705, 2
    %v4707 = vadd.f32 %v4705, %v4706
    %v4708 = vrot.slane %v4707, 1
    %v4709 = vadd.f32 %v4707, %v4708
    %v4710 = vsel %vm359, %v4702, 0.0
    %v4711 = vrot.slane %v4710, 4
    %v4712 = vadd.f32 %v4710, %v4711
    %v4713 = vrot.slane %v4712, 2
    %v4714 = vadd.f32 %v4712, %v4713
    %v4715 = vrot.slane %v4714, 1
    %v4716 = vadd.f32 %v4714, %v4715
    %v4719 = vsel %vm1467, %v4716, %v4709
    %4721 = vst.msk [vmem:[#allocation2] sm:$0x3] %vm1470, %v4719
    %v4722 = vmul.f32 %v4246, %v4691
    %v4723 = vmul.f32 %v4248, %v4692
    %v4724 = vadd.f32 %v4722, %v4671
    %v4725 = vadd.f32 %v4723, %v4672
    %s4727 = sor.u32 256, 40
    %4728 = vbcast.lane.b32.xlu0 %v4300, %s4727
    %v4729 = vpop.permute.xlu0 %4728
    %s4731 = sor.u32 256, 40
    %4732 = vbcast.lane.b32.xlu0 %v4308, %s4731
    %v4733 = vpop.permute.xlu0 %4732
    %v4734 = vmul.f32 %v4724, %v4729
    %v4735 = vmul.f32 %v4725, %v4733
    %v4736 = vsel %vm359, %v4734, 0.0
    %v4737 = vrot.slane %v4736, 4
    %v4738 = vadd.f32 %v4736, %v4737
    %v4739 = vrot.slane %v4738, 2
    %v4740 = vadd.f32 %v4738, %v4739
    %v4741 = vrot.slane %v4740, 1
    %v4742 = vadd.f32 %v4740, %v4741
    %v4743 = vsel %vm359, %v4735, 0.0
    %v4744 = vrot.slane %v4743, 4
    %v4745 = vadd.f32 %v4743, %v4744
    %v4746 = vrot.slane %v4745, 2
    %v4747 = vadd.f32 %v4745, %v4746
    %v4748 = vrot.slane %v4747, 1
    %v4749 = vadd.f32 %v4747, %v4748
    %v4752 = vsel %vm1467, %v4749, %v4742
    %4754 = vst.msk [vmem:[#allocation2 + $0x2] sm:$0x3] %vm1470, %v4752
    %v4755 = vmul.f32 %v4250, %v4724
    %v4756 = vmul.f32 %v4252, %v4725
    %v4757 = vadd.f32 %v4755, %v4673
    %v4758 = vadd.f32 %v4756, %v4674
    %s4760 = sor.u32 256, 40
    %4761 = vbcast.lane.b32.xlu0 %v4316, %s4760
    %v4762 = vpop.permute.xlu0 %4761
    %s4764 = sor.u32 256, 40
    %4765 = vbcast.lane.b32.xlu0 %v4324, %s4764
    %v4766 = vpop.permute.xlu0 %4765
    %v4767 = vmul.f32 %v4757, %v4762
    %v4768 = vmul.f32 %v4758, %v4766
    %v4769 = vsel %vm359, %v4767, 0.0
    %v4770 = vrot.slane %v4769, 4
    %v4771 = vadd.f32 %v4769, %v4770
    %v4772 = vrot.slane %v4771, 2
    %v4773 = vadd.f32 %v4771, %v4772
    %v4774 = vrot.slane %v4773, 1
    %v4775 = vadd.f32 %v4773, %v4774
    %v4776 = vsel %vm359, %v4768, 0.0
    %v4777 = vrot.slane %v4776, 4
    %v4778 = vadd.f32 %v4776, %v4777
    %v4779 = vrot.slane %v4778, 2
    %v4780 = vadd.f32 %v4778, %v4779
    %v4781 = vrot.slane %v4780, 1
    %v4782 = vadd.f32 %v4780, %v4781
    %v4785 = vsel %vm1467, %v4782, %v4775
    %4787 = vst.msk [vmem:[#allocation2 + $0x4] sm:$0x3] %vm1470, %v4785
    %v4788 = vmul.f32 %v4254, %v4757
    %v4789 = vmul.f32 %v4256, %v4758
    %v4790 = vadd.f32 %v4788, %v4675
    %v4791 = vadd.f32 %v4789, %v4676
    %s4793 = sor.u32 256, 40
    %4794 = vbcast.lane.b32.xlu0 %v4332, %s4793
    %v4795 = vpop.permute.xlu0 %4794
    %s4797 = sor.u32 256, 40
    %4798 = vbcast.lane.b32.xlu0 %v4340, %s4797
    %v4799 = vpop.permute.xlu0 %4798
    %v4800 = vmul.f32 %v4790, %v4795
    %v4801 = vmul.f32 %v4791, %v4799
    %v4802 = vsel %vm359, %v4800, 0.0
    %v4803 = vrot.slane %v4802, 4
    %v4804 = vadd.f32 %v4802, %v4803
    %v4805 = vrot.slane %v4804, 2
    %v4806 = vadd.f32 %v4804, %v4805
    %v4807 = vrot.slane %v4806, 1
    %v4808 = vadd.f32 %v4806, %v4807
    %v4809 = vsel %vm359, %v4801, 0.0
    %v4810 = vrot.slane %v4809, 4
    %v4811 = vadd.f32 %v4809, %v4810
    %v4812 = vrot.slane %v4811, 2
    %v4813 = vadd.f32 %v4811, %v4812
    %v4814 = vrot.slane %v4813, 1
    %v4815 = vadd.f32 %v4813, %v4814
    %v4818 = vsel %vm1467, %v4815, %v4808
    %4820 = vst.msk [vmem:[#allocation2 + $0x6] sm:$0x3] %vm1470, %v4818
    %v4821 = vmul.f32 %v4258, %v4790
    %v4822 = vmul.f32 %v4260, %v4791
    %v4823 = vadd.f32 %v4821, %v4677
    %v4824 = vadd.f32 %v4822, %v4678
    %s4826 = sor.u32 256, 40
    %4827 = vbcast.lane.b32.xlu0 %v4348, %s4826
    %v4828 = vpop.permute.xlu0 %4827
    %s4830 = sor.u32 256, 40
    %4831 = vbcast.lane.b32.xlu0 %v4356, %s4830
    %v4832 = vpop.permute.xlu0 %4831
    %v4833 = vmul.f32 %v4823, %v4828
    %v4834 = vmul.f32 %v4824, %v4832
    %v4835 = vsel %vm359, %v4833, 0.0
    %v4836 = vrot.slane %v4835, 4
    %v4837 = vadd.f32 %v4835, %v4836
    %v4838 = vrot.slane %v4837, 2
    %v4839 = vadd.f32 %v4837, %v4838
    %v4840 = vrot.slane %v4839, 1
    %v4841 = vadd.f32 %v4839, %v4840
    %v4842 = vsel %vm359, %v4834, 0.0
    %v4843 = vrot.slane %v4842, 4
    %v4844 = vadd.f32 %v4842, %v4843
    %v4845 = vrot.slane %v4844, 2
    %v4846 = vadd.f32 %v4844, %v4845
    %v4847 = vrot.slane %v4846, 1
    %v4848 = vadd.f32 %v4846, %v4847
    %v4851 = vsel %vm1467, %v4848, %v4841
    %4853 = vst.msk [vmem:[#allocation2 + $0x8] sm:$0x3] %vm1470, %v4851
    %v4854 = vmul.f32 %v4262, %v4823
    %v4855 = vmul.f32 %v4264, %v4824
    %v4856 = vadd.f32 %v4854, %v4679
    %v4857 = vadd.f32 %v4855, %v4680
    %s4859 = sor.u32 256, 40
    %4860 = vbcast.lane.b32.xlu0 %v4364, %s4859
    %v4861 = vpop.permute.xlu0 %4860
    %s4863 = sor.u32 256, 40
    %4864 = vbcast.lane.b32.xlu0 %v4372, %s4863
    %v4865 = vpop.permute.xlu0 %4864
    %v4866 = vmul.f32 %v4856, %v4861
    %v4867 = vmul.f32 %v4857, %v4865
    %v4868 = vsel %vm359, %v4866, 0.0
    %v4869 = vrot.slane %v4868, 4
    %v4870 = vadd.f32 %v4868, %v4869
    %v4871 = vrot.slane %v4870, 2
    %v4872 = vadd.f32 %v4870, %v4871
    %v4873 = vrot.slane %v4872, 1
    %v4874 = vadd.f32 %v4872, %v4873
    %v4875 = vsel %vm359, %v4867, 0.0
    %v4876 = vrot.slane %v4875, 4
    %v4877 = vadd.f32 %v4875, %v4876
    %v4878 = vrot.slane %v4877, 2
    %v4879 = vadd.f32 %v4877, %v4878
    %v4880 = vrot.slane %v4879, 1
    %v4881 = vadd.f32 %v4879, %v4880
    %v4884 = vsel %vm1467, %v4881, %v4874
    %4886 = vst.msk [vmem:[#allocation2 + $0xa] sm:$0x3] %vm1470, %v4884
    %v4887 = vmul.f32 %v4266, %v4856
    %v4888 = vmul.f32 %v4268, %v4857
    %v4889 = vadd.f32 %v4887, %v4681
    %v4890 = vadd.f32 %v4888, %v4682
    %s4892 = sor.u32 256, 40
    %4893 = vbcast.lane.b32.xlu0 %v4380, %s4892
    %v4894 = vpop.permute.xlu0 %4893
    %s4896 = sor.u32 256, 40
    %4897 = vbcast.lane.b32.xlu0 %v4388, %s4896
    %v4898 = vpop.permute.xlu0 %4897
    %v4899 = vmul.f32 %v4889, %v4894
    %v4900 = vmul.f32 %v4890, %v4898
    %v4901 = vsel %vm359, %v4899, 0.0
    %v4902 = vrot.slane %v4901, 4
    %v4903 = vadd.f32 %v4901, %v4902
    %v4904 = vrot.slane %v4903, 2
    %v4905 = vadd.f32 %v4903, %v4904
    %v4906 = vrot.slane %v4905, 1
    %v4907 = vadd.f32 %v4905, %v4906
    %v4908 = vsel %vm359, %v4900, 0.0
    %v4909 = vrot.slane %v4908, 4
    %v4910 = vadd.f32 %v4908, %v4909
    %v4911 = vrot.slane %v4910, 2
    %v4912 = vadd.f32 %v4910, %v4911
    %v4913 = vrot.slane %v4912, 1
    %v4914 = vadd.f32 %v4912, %v4913
    %v4917 = vsel %vm1467, %v4914, %v4907
    %4919 = vst.msk [vmem:[#allocation2 + $0xc] sm:$0x3] %vm1470, %v4917
    %v4920 = vmul.f32 %v4270, %v4889
    %v4921 = vmul.f32 %v4272, %v4890
    %v4922 = vadd.f32 %v4920, %v4683
    %v4923 = vadd.f32 %v4921, %v4684
    %s4925 = sor.u32 256, 40
    %4926 = vbcast.lane.b32.xlu0 %v4396, %s4925
    %v4927 = vpop.permute.xlu0 %4926
    %s4929 = sor.u32 256, 40
    %4930 = vbcast.lane.b32.xlu0 %v4404, %s4929
    %v4931 = vpop.permute.xlu0 %4930
    %v4932 = vmul.f32 %v4922, %v4927
    %v4933 = vmul.f32 %v4923, %v4931
    %v4934 = vsel %vm359, %v4932, 0.0
    %v4935 = vrot.slane %v4934, 4
    %v4936 = vadd.f32 %v4934, %v4935
    %v4937 = vrot.slane %v4936, 2
    %v4938 = vadd.f32 %v4936, %v4937
    %v4939 = vrot.slane %v4938, 1
    %v4940 = vadd.f32 %v4938, %v4939
    %v4941 = vsel %vm359, %v4933, 0.0
    %v4942 = vrot.slane %v4941, 4
    %v4943 = vadd.f32 %v4941, %v4942
    %v4944 = vrot.slane %v4943, 2
    %v4945 = vadd.f32 %v4943, %v4944
    %v4946 = vrot.slane %v4945, 1
    %v4947 = vadd.f32 %v4945, %v4946
    %v4950 = vsel %vm1467, %v4947, %v4940
    %4952 = vst.msk [vmem:[#allocation2 + $0xe] sm:$0x3] %vm1470, %v4950
    %v4953 = vmul.f32 %v4274, %v4922
    %v4954 = vmul.f32 %v4276, %v4923
    %v4955 = vadd.f32 %v4953, %v4685
    %v4956 = vadd.f32 %v4954, %v4686
    %s4958 = sor.u32 256, 40
    %4959 = vbcast.lane.b32.xlu0 %v4412, %s4958
    %v4960 = vpop.permute.xlu0 %4959
    %s4962 = sor.u32 256, 40
    %4963 = vbcast.lane.b32.xlu0 %v4420, %s4962
    %v4964 = vpop.permute.xlu0 %4963
    %v4965 = vmul.f32 %v4955, %v4960
    %v4966 = vmul.f32 %v4956, %v4964
    %v4967 = vsel %vm359, %v4965, 0.0
    %v4968 = vrot.slane %v4967, 4
    %v4969 = vadd.f32 %v4967, %v4968
    %v4970 = vrot.slane %v4969, 2
    %v4971 = vadd.f32 %v4969, %v4970
    %v4972 = vrot.slane %v4971, 1
    %v4973 = vadd.f32 %v4971, %v4972
    %v4974 = vsel %vm359, %v4966, 0.0
    %v4975 = vrot.slane %v4974, 4
    %v4976 = vadd.f32 %v4974, %v4975
    %v4977 = vrot.slane %v4976, 2
    %v4978 = vadd.f32 %v4976, %v4977
    %v4979 = vrot.slane %v4978, 1
    %v4980 = vadd.f32 %v4978, %v4979
    %v4983 = vsel %vm1467, %v4980, %v4973
    %4985 = vst.msk [vmem:[#allocation2 + $0x10] sm:$0x3] %vm1470, %v4983
    %v4986 = vmul.f32 %v4278, %v4955
    %v4987 = vmul.f32 %v4280, %v4956
    %v4988 = vadd.f32 %v4986, %v4687
    %v4989 = vadd.f32 %v4987, %v4688
    %s4991 = sor.u32 256, 40
    %4992 = vbcast.lane.b32.xlu0 %v4428, %s4991
    %v4993 = vpop.permute.xlu0 %4992
    %s4995 = sor.u32 256, 40
    %4996 = vbcast.lane.b32.xlu0 %v4436, %s4995
    %v4997 = vpop.permute.xlu0 %4996
    %v4998 = vmul.f32 %v4988, %v4993
    %v4999 = vmul.f32 %v4989, %v4997
    %v5000 = vsel %vm359, %v4998, 0.0
    %v5001 = vrot.slane %v5000, 4
    %v5002 = vadd.f32 %v5000, %v5001
    %v5003 = vrot.slane %v5002, 2
    %v5004 = vadd.f32 %v5002, %v5003
    %v5005 = vrot.slane %v5004, 1
    %v5006 = vadd.f32 %v5004, %v5005
    %v5007 = vsel %vm359, %v4999, 0.0
    %v5008 = vrot.slane %v5007, 4
    %v5009 = vadd.f32 %v5007, %v5008
    %v5010 = vrot.slane %v5009, 2
    %v5011 = vadd.f32 %v5009, %v5010
    %v5012 = vrot.slane %v5011, 1
    %v5013 = vadd.f32 %v5011, %v5012
    %v5016 = vsel %vm1467, %v5013, %v5006
    %5018 = vst.msk [vmem:[#allocation2 + $0x12] sm:$0x3] %vm1470, %v5016
    %v5019 = vld [vmem:[#allocation2] sm:$0xff]
    %v5020 = vld [vmem:[#allocation2 + $0x8] sm:$0xff]
    %v5021 = vld [vmem:[#allocation2 + $0x10] sm:$0xf]
    %v5022 = vlaneseq
    %v5023 = vshrl.u32 %v5022, 7
    %v5024 = vsub.s32 4, %v5023
    %v5025 = vrot.slane %v3717, %v5024
    %v5026 = vmul.f32 %v5025, %v3843
    %v5027 = vmul.f32 %v5025, %v3844
    %v5028 = vmul.f32 %v5025, %v3845
    %v5029 = vadd.f32 %v5019, %v5026
    %v5030 = vadd.f32 %v5020, %v5027
    %v5031 = vadd.f32 %v5021, %v5028
    %v5032 = vxor.u32 %v3696, 2147483648
    %v5033 = vxor.u32 %v3701, 2147483648
    %v5034 = vxor.u32 %v3706, 2147483648
    %v5035 = vmul.f32 %v5032, 1.442695
    %v5036 = vpow.pop %v5035
    %v5037 = vmul.f32 %v5033, 1.442695
    %v5038 = vpow.pop %v5037
    %v5039 = vmul.f32 %v5034, 1.442695
    %v5040 = vpow.pop %v5039
    %v5041 = vadd.f32 %v5036, 1.0
    %v5042 = vadd.f32 %v5038, 1.0
    %v5043 = vadd.f32 %v5040, 1.0
    %v5044 = vrcp.pop %v5041
    %v5045 = vmul.f32 1.0, %v5044
    %v5046 = vrcp.pop %v5042
    %v5047 = vmul.f32 1.0, %v5046
    %v5048 = vrcp.pop %v5043
    %v5049 = vmul.f32 1.0, %v5048
    %v5050 = vmul.f32 %v3696, %v5045
    %v5051 = vmul.f32 %v3701, %v5047
    %v5052 = vmul.f32 %v3706, %v5049
    %5056 = vrot.lane.b32.xlu0 %v5050, 96
    %v5057 = vpop.permute.xlu0 %5056
    %5058 = vrot.lane.b32.xlu0 %v5051, 96
    %v5059 = vpop.permute.xlu0 %5058
    %5060 = vrot.lane.b32.xlu0 %v5052, 96
    %v5061 = vpop.permute.xlu0 %5060
    %v5065 = vmul.f32 %v5029, %v5057
    %v5066 = vmul.f32 %v5030, %v5059
    %v5067 = vmul.f32 %v5031, %v5061
    %s5068 = scalar_lea.vmem [#allocation14], 96
    %v5069 = vld [vmem:[%s5068] sm:$0xff]
    %v5070 = vld [vmem:[%s5068 + $0x8] sm:$0xff]
    %v5071 = vld [vmem:[%s5068 + $0x10] sm:$0xff]
    %v5072 = vld [vmem:[%s5068 + $0x18] sm:$0xff]
    %s5073 = scalar_lea.vmem [#allocation15], 24
    %v5074 = vld [vmem:[%s5073] sm:$0xff]
    %s5075 = scalar_lea.vmem [#allocation18], 24
    %v5076 = vld [vmem:[%s5075] sm:$0x1f]
    %5079 = vrot.lane.b32.xlu0 %v3696, 64
    %v5080 = vpop.permute.xlu0 %5079
    %5081 = vrot.lane.b32.xlu0 %v3701, 64
    %v5082 = vpop.permute.xlu0 %5081
    %5083 = vrot.lane.b32.xlu0 %v3706, 64
    %v5084 = vpop.permute.xlu0 %5083
    %v5087 = vsel %vm465, %v5084, 0
    %5089 = vmatprep.subr.mxu0 0.0
    %5090 = vmatpush1.msra.mxu0 %v5080
    %5091 = vmatprep.subr.mxu0 0.0
    %5092 = vmatpush1.msra.mxu0 %v5082
    %5093 = vmatprep.subr.mxu0 0.0
    %5094 = vmatpush1.msra.mxu0 %v5087
    %5095 = vmatprep.subr.mxu0 0.0
    %5096 = vmatpush1.msra.mxu0 0.0
    %5097 = vmatprep.subr.mxu0 0.0
    %5098 = vmatpush1.msra.mxu0 0.0
    %5099 = vmatprep.subr.mxu0 0.0
    %5100 = vmatpush1.msra.mxu0 0.0
    %5101 = vmatprep.subr.mxu0 0.0
    %5102 = vmatpush1.msra.mxu0 0.0
    %5103 = vmatprep.subr.mxu0 0.0
    %5104 = vmatpush1.msra.mxu0 0.0
    %5105 = vmatprep.subr.mxu0 0.0
    %5106 = vmatpush1.msra.mxu0 0.0
    %5107 = vmatprep.subr.mxu0 0.0
    %5108 = vmatpush1.msra.mxu0 0.0
    %5109 = vmatprep.subr.mxu0 0.0
    %5110 = vmatpush1.msra.mxu0 0.0
    %5111 = vmatprep.subr.mxu0 0.0
    %5112 = vmatpush1.msra.mxu0 0.0
    %5113 = vmatprep.subr.mxu0 0.0
    %5114 = vmatpush1.msra.mxu0 0.0
    %5115 = vmatprep.subr.mxu0 0.0
    %5116 = vmatpush1.msra.mxu0 0.0
    %5117 = vmatprep.subr.mxu0 0.0
    %5118 = vmatpush1.msra.mxu0 0.0
    %5119 = vmatprep.subr.mxu0 0.0
    %5120 = vmatpush1.msra.mxu0 0.0
    %5121 = vmatprep.subr.mxu0 0.0
    %5122 = vmatpush1.msra.mxu0 0.0
    %5123 = vmatprep.subr.mxu0 0.0
    %5124 = vmatpush1.msra.mxu0 0.0
    %5125 = vmatprep.subr.mxu0 0.0
    %5126 = vmatpush1.msra.mxu0 0.0
    %5127 = vmatprep.subr.mxu0 0.0
    %5128 = vmatpush1.msra.mxu0 0.0
    %5129 = vmatprep.subr.mxu0 0.0
    %5130 = vmatpush1.msra.mxu0 0.0
    %5131 = vmatprep.subr.mxu0 0.0
    %5132 = vmatpush1.msra.mxu0 0.0
    %5133 = vmatprep.subr.mxu0 0.0
    %5134 = vmatpush1.msra.mxu0 0.0
    %5135 = vmatprep.subr.mxu0 0.0
    %5136 = vmatpush1.msra.mxu0 0.0
    %5137 = vmatprep.subr.mxu0 0.0
    %5138 = vmatpush1.msra.mxu0 0.0
    %5139 = vmatprep.subr.mxu0 0.0
    %5140 = vmatpush1.msra.mxu0 0.0
    %5141 = vmatprep.subr.mxu0 0.0
    %5142 = vmatpush1.msra.mxu0 0.0
    %5143 = vmatprep.subr.mxu0 0.0
    %5144 = vmatpush1.msra.mxu0 0.0
    %5145 = vmatprep.subr.mxu0 0.0
    %5146 = vmatpush1.msra.mxu0 0.0
    %5147 = vmatprep.subr.mxu0 0.0
    %5148 = vmatpush1.msra.mxu0 0.0
    %5149 = vmatprep.subr.mxu0 0.0
    %5150 = vmatpush1.msra.mxu0 0.0
    %5151 = vmatprep.subr.mxu0 0.0
    %5152 = vmatpush1.msra.mxu0 0.0
    %5153 = vmatprep.mubr.f32.mxu0 0.0
    %5154 = vmatmul.mubr.f32.gmra.mrb[0].mxu0 %v1838
    %v5155 = vpop.f32.mrb[0].mxu0
    %v5156 = vadd.f32 0.0, %v5155
    %v5157 = vpop.f32.mrb[0].mxu0
    %5158 = vmatprep.mubr.f32.mxu0 0.0
    %5159 = vmatmul.mubr.f32.gmra.mrb[0].mxu0 %v1841
    %v5160 = vpop.f32.mrb[0].mxu0
    %v5161 = vadd.f32 0.0, %v5160
    %v5162 = vpop.f32.mrb[0].mxu0
    %5163 = vmatprep.mubr.f32.mxu0 0.0
    %5164 = vmatmul.mubr.f32.gmra.mrb[0].mxu0 %v1844
    %v5165 = vpop.f32.mrb[0].mxu0
    %v5166 = vadd.f32 0.0, %v5165
    %v5167 = vpop.f32.mrb[0].mxu0
    %5168 = vdwg.mxu0
    %v5169 = vlaneseq
    %v5170 = vshrl.u32 %v5169, 7
    %v5171 = vsub.s32 0, %v5170
    %v5172 = vrot.slane %v5076, %v5171
    %v5173 = vmul.f32 %v5156, %v5172
    %v5174 = vmul.f32 %v5161, %v5172
    %v5175 = vmul.f32 %v5166, %v5172
    %v5176 = vlaneseq
    %v5177 = vshrl.u32 %v5176, 7
    %v5178 = vsub.s32 1, %v5177
    %v5179 = vrot.slane %v5076, %v5178
    %5181 = vrot.lane.b32.xlu0 %v5179, 64
    %v5182 = vpop.permute.xlu0 %5181
    %v5184 = vmul.f32 %v3696, %v5182
    %v5185 = vmul.f32 %v3701, %v5182
    %v5186 = vmul.f32 %v3706, %v5182
    %5190 = vrot.lane.b32.xlu0 %v5184, 64
    %v5191 = vpop.permute.xlu0 %5190
    %5192 = vrot.lane.b32.xlu0 %v5185, 64
    %v5193 = vpop.permute.xlu0 %5192
    %5194 = vrot.lane.b32.xlu0 %v5186, 64
    %v5195 = vpop.permute.xlu0 %5194
    %v5199 = vadd.f32 %v5173, %v5191
    %v5200 = vadd.f32 %v5174, %v5193
    %v5201 = vadd.f32 %v5175, %v5195
    %v5202 = vlaneseq
    %v5203 = vshrl.u32 %v5202, 7
    %v5204 = vsub.s32 2, %v5203
    %v5205 = vrot.slane %v5076, %v5204
    %v5206 = vadd.f32 %v5199, %v5205
    %v5207 = vadd.f32 %v5200, %v5205
    %v5208 = vadd.f32 %v5201, %v5205
    %v5209 = vxor.u32 %v5206, 2147483648
    %v5210 = vxor.u32 %v5207, 2147483648
    %v5211 = vxor.u32 %v5208, 2147483648
    %v5212 = vmul.f32 %v5209, 1.442695
    %v5213 = vpow.pop %v5212
    %v5214 = vmul.f32 %v5210, 1.442695
    %v5215 = vpow.pop %v5214
    %v5216 = vmul.f32 %v5211, 1.442695
    %v5217 = vpow.pop %v5216
    %v5218 = vadd.f32 %v5213, 1.0
    %v5219 = vadd.f32 %v5215, 1.0
    %v5220 = vadd.f32 %v5217, 1.0
    %v5221 = vrcp.pop %v5218
    %v5222 = vmul.f32 1.0, %v5221
    %v5223 = vrcp.pop %v5219
    %v5224 = vmul.f32 1.0, %v5223
    %v5225 = vrcp.pop %v5220
    %v5226 = vmul.f32 1.0, %v5225
    %v5227 = vmul.f32 %v5206, %v5222
    %v5228 = vmul.f32 %v5207, %v5224
    %v5229 = vmul.f32 %v5208, %v5226
    %v5231 = vsel %vm359, %v5227, 0
    %v5234 = vsel %vm359, %v5228, 0
    %v5237 = vsel %vm359, %v5229, 0
    %5239 = vmatprep.subr.mxu0 0.0
    %5240 = vmatpush1.msra.mxu0 %v5069
    %5241 = vmatprep.subr.mxu0 0.0
    %5242 = vmatpush1.msra.mxu0 %v5070
    %5243 = vmatprep.subr.mxu0 0.0
    %5244 = vmatpush1.msra.mxu0 %v5071
    %5245 = vmatprep.subr.mxu0 0.0
    %5246 = vmatpush1.msra.mxu0 %v5072
    %5247 = vmatprep.subr.mxu0 0.0
    %5248 = vmatpush1.msra.mxu0 0.0
    %5249 = vmatprep.subr.mxu0 0.0
    %5250 = vmatpush1.msra.mxu0 0.0
    %5251 = vmatprep.subr.mxu0 0.0
    %5252 = vmatpush1.msra.mxu0 0.0
    %5253 = vmatprep.subr.mxu0 0.0
    %5254 = vmatpush1.msra.mxu0 0.0
    %5255 = vmatprep.subr.mxu0 0.0
    %5256 = vmatpush1.msra.mxu0 0.0
    %5257 = vmatprep.subr.mxu0 0.0
    %5258 = vmatpush1.msra.mxu0 0.0
    %5259 = vmatprep.subr.mxu0 0.0
    %5260 = vmatpush1.msra.mxu0 0.0
    %5261 = vmatprep.subr.mxu0 0.0
    %5262 = vmatpush1.msra.mxu0 0.0
    %5263 = vmatprep.subr.mxu0 0.0
    %5264 = vmatpush1.msra.mxu0 0.0
    %5265 = vmatprep.subr.mxu0 0.0
    %5266 = vmatpush1.msra.mxu0 0.0
    %5267 = vmatprep.subr.mxu0 0.0
    %5268 = vmatpush1.msra.mxu0 0.0
    %5269 = vmatprep.subr.mxu0 0.0
    %5270 = vmatpush1.msra.mxu0 0.0
    %5271 = vmatprep.subr.mxu0 0.0
    %5272 = vmatpush1.msra.mxu0 0.0
    %5273 = vmatprep.subr.mxu0 0.0
    %5274 = vmatpush1.msra.mxu0 0.0
    %5275 = vmatprep.subr.mxu0 0.0
    %5276 = vmatpush1.msra.mxu0 0.0
    %5277 = vmatprep.subr.mxu0 0.0
    %5278 = vmatpush1.msra.mxu0 0.0
    %5279 = vmatprep.subr.mxu0 0.0
    %5280 = vmatpush1.msra.mxu0 0.0
    %5281 = vmatprep.subr.mxu0 0.0
    %5282 = vmatpush1.msra.mxu0 0.0
    %5283 = vmatprep.subr.mxu0 0.0
    %5284 = vmatpush1.msra.mxu0 0.0
    %5285 = vmatprep.subr.mxu0 0.0
    %5286 = vmatpush1.msra.mxu0 0.0
    %5287 = vmatprep.subr.mxu0 0.0
    %5288 = vmatpush1.msra.mxu0 0.0
    %5289 = vmatprep.subr.mxu0 0.0
    %5290 = vmatpush1.msra.mxu0 0.0
    %5291 = vmatprep.subr.mxu0 0.0
    %5292 = vmatpush1.msra.mxu0 0.0
    %5293 = vmatprep.subr.mxu0 0.0
    %5294 = vmatpush1.msra.mxu0 0.0
    %5295 = vmatprep.subr.mxu0 0.0
    %5296 = vmatpush1.msra.mxu0 0.0
    %5297 = vmatprep.subr.mxu0 0.0
    %5298 = vmatpush1.msra.mxu0 0.0
    %5299 = vmatprep.subr.mxu0 0.0
    %5300 = vmatpush1.msra.mxu0 0.0
    %5301 = vmatprep.subr.mxu0 0.0
    %5302 = vmatpush1.msra.mxu0 0.0
    %5303 = vmatprep.mubr.f32.mxu0 0.0
    %5304 = vmatmul.mubr.f32.gmra.mrb[0].mxu0 %v5231
    %v5305 = vpop.f32.mrb[0].mxu0
    %v5306 = vadd.f32 0.0, %v5305
    %v5307 = vpop.f32.mrb[0].mxu0
    %5308 = vmatprep.mubr.f32.mxu0 0.0
    %5309 = vmatmul.mubr.f32.gmra.mrb[0].mxu0 %v5234
    %v5310 = vpop.f32.mrb[0].mxu0
    %v5311 = vadd.f32 0.0, %v5310
    %v5312 = vpop.f32.mrb[0].mxu0
    %5313 = vmatprep.mubr.f32.mxu0 0.0
    %5314 = vmatmul.mubr.f32.gmra.mrb[0].mxu0 %v5237
    %v5315 = vpop.f32.mrb[0].mxu0
    %v5316 = vadd.f32 0.0, %v5315
    %v5317 = vpop.f32.mrb[0].mxu0
    %5318 = vdwg.mxu0
    %v5319 = vlaneseq
    %v5320 = vshrl.u32 %v5319, 7
    %v5321 = vsub.s32 3, %v5320
    %v5322 = vrot.slane %v5076, %v5321
    %v5323 = vadd.f32 %v5306, %v5322
    %v5324 = vadd.f32 %v5311, %v5322
    %v5325 = vadd.f32 %v5316, %v5322
    %v5326 = vmax.f32 %v5323, 0.0
    %v5327 = vmax.f32 %v5324, 0.0
    %v5328 = vmax.f32 %v5325, 0.0
    %vm5329 = vcmp.ne.f32.partialorder %v5323, %v5323
    %vm5330 = vcmp.ne.f32.partialorder %v5324, %v5324
    %vm5331 = vcmp.ne.f32.partialorder %v5325, %v5325
    %v5332 = vadd.f32 %v5323, 0.0
    %v5333 = vadd.f32 %v5324, 0.0
    %v5334 = vadd.f32 %v5325, 0.0
    %v5335 = vand.u32 2147483647, %v5323
    %v5336 = vand.u32 2147483647, %v5324
    %v5337 = vand.u32 2147483647, %v5325
    %v5338 = vsub.f32 0.0, %v5335
    %v5339 = vsub.f32 0.0, %v5336
    %v5340 = vsub.f32 0.0, %v5337
    %v5341 = vmul.f32 %v5338, 1.442695
    %v5342 = vpow.pop %v5341
    %v5343 = vmul.f32 %v5339, 1.442695
    %v5344 = vpow.pop %v5343
    %v5345 = vmul.f32 %v5340, 1.442695
    %v5346 = vpow.pop %v5345
    %v5347 = vadd.f32 %v5342, 1.0
    %v5348 = vlog2.pop %v5347
    %v5349 = vmul.f32 %v5348, 0.6931472
    %v5350 = vmul.f32 -0.5, %v5342
    %v5351 = vadd.f32 %v5350, 1.0
    %v5352 = vmul.f32 %v5351, %v5342
    %v5353 = vand.u32 2147483647, %v5342
    %vm5354 = vcmp.lt.f32.partialorder %v5353, 0.0004427343
    %v5355 = vsel %vm5354, %v5352, %v5349
    %v5356 = vadd.f32 %v5344, 1.0
    %v5357 = vlog2.pop %v5356
    %v5358 = vmul.f32 %v5357, 0.6931472
    %v5359 = vmul.f32 -0.5, %v5344
    %v5360 = vadd.f32 %v5359, 1.0
    %v5361 = vmul.f32 %v5360, %v5344
    %v5362 = vand.u32 2147483647, %v5344
    %vm5363 = vcmp.lt.f32.partialorder %v5362, 0.0004427343
    %v5364 = vsel %vm5363, %v5361, %v5358
    %v5365 = vadd.f32 %v5346, 1.0
    %v5366 = vlog2.pop %v5365
    %v5367 = vmul.f32 %v5366, 0.6931472
    %v5368 = vmul.f32 -0.5, %v5346
    %v5369 = vadd.f32 %v5368, 1.0
    %v5370 = vmul.f32 %v5369, %v5346
    %v5371 = vand.u32 2147483647, %v5346
    %vm5372 = vcmp.lt.f32.partialorder %v5371, 0.0004427343
    %v5373 = vsel %vm5372, %v5370, %v5367
    %v5374 = vadd.f32 %v5326, %v5355
    %v5375 = vadd.f32 %v5327, %v5364
    %v5376 = vadd.f32 %v5328, %v5373
    %v5377 = vsel %vm5329, %v5332, %v5374
    %v5378 = vsel %vm5330, %v5333, %v5375
    %v5379 = vsel %vm5331, %v5334, %v5376
    %v5383 = vcombine.high %v5377, %v5377
    %v5385 = vunpack.c.l.s4 1966171168
    %v5386 = vunpack.c.0.s8 %v5385
    %v5387 = vlaneseq
    %v5388 = vshrl.u32 %v5387, 7
    %v5389 = vsub.s32 %v5386, %v5388
    %v5390 = vrot.slane %v5377, %v5389
    %v5392 = vunpack.c.l.s4 1966171168
    %v5393 = vunpack.c.0.s8 %v5392
    %v5394 = vlaneseq
    %v5395 = vshrl.u32 %v5394, 7
    %v5396 = vsub.s32 %v5393, %v5395
    %v5397 = vrot.slane %v5383, %v5396
    %v5398 = vcombine.high %v5390, %v5390
    %v5399 = vcombine.high %v5397, %v5397
    %v5401 = vunpack.c.l.s4 1966171168
    %v5402 = vunpack.c.0.s8 %v5401
    %v5403 = vlaneseq
    %v5404 = vshrl.u32 %v5403, 7
    %v5405 = vsub.s32 %v5402, %v5404
    %v5406 = vrot.slane %v5390, %v5405
    %v5408 = vunpack.c.l.s4 1966171168
    %v5409 = vunpack.c.0.s8 %v5408
    %v5410 = vlaneseq
    %v5411 = vshrl.u32 %v5410, 7
    %v5412 = vsub.s32 %v5409, %v5411
    %v5413 = vrot.slane %v5397, %v5412
    %v5415 = vunpack.c.l.s4 1966171168
    %v5416 = vunpack.c.0.s8 %v5415
    %v5417 = vlaneseq
    %v5418 = vshrl.u32 %v5417, 7
    %v5419 = vsub.s32 %v5416, %v5418
    %v5420 = vrot.slane %v5398, %v5419
    %v5422 = vunpack.c.l.s4 1966171168
    %v5423 = vunpack.c.0.s8 %v5422
    %v5424 = vlaneseq
    %v5425 = vshrl.u32 %v5424, 7
    %v5426 = vsub.s32 %v5423, %v5425
    %v5427 = vrot.slane %v5399, %v5426
    %v5428 = vcombine.high %v5406, %v5406
    %v5429 = vcombine.high %v5413, %v5413
    %v5430 = vcombine.high %v5420, %v5420
    %v5431 = vcombine.high %v5427, %v5427
    %v5432 = vcombine.high %v5378, %v5378
    %v5434 = vunpack.c.l.s4 1966171168
    %v5435 = vunpack.c.0.s8 %v5434
    %v5436 = vlaneseq
    %v5437 = vshrl.u32 %v5436, 7
    %v5438 = vsub.s32 %v5435, %v5437
    %v5439 = vrot.slane %v5378, %v5438
    %v5441 = vunpack.c.l.s4 1966171168
    %v5442 = vunpack.c.0.s8 %v5441
    %v5443 = vlaneseq
    %v5444 = vshrl.u32 %v5443, 7
    %v5445 = vsub.s32 %v5442, %v5444
    %v5446 = vrot.slane %v5432, %v5445
    %v5447 = vcombine.high %v5439, %v5439
    %v5448 = vcombine.high %v5446, %v5446
    %v5450 = vunpack.c.l.s4 1966171168
    %v5451 = vunpack.c.0.s8 %v5450
    %v5452 = vlaneseq
    %v5453 = vshrl.u32 %v5452, 7
    %v5454 = vsub.s32 %v5451, %v5453
    %v5455 = vrot.slane %v5439, %v5454
    %v5457 = vunpack.c.l.s4 1966171168
    %v5458 = vunpack.c.0.s8 %v5457
    %v5459 = vlaneseq
    %v5460 = vshrl.u32 %v5459, 7
    %v5461 = vsub.s32 %v5458, %v5460
    %v5462 = vrot.slane %v5446, %v5461
    %v5464 = vunpack.c.l.s4 1966171168
    %v5465 = vunpack.c.0.s8 %v5464
    %v5466 = vlaneseq
    %v5467 = vshrl.u32 %v5466, 7
    %v5468 = vsub.s32 %v5465, %v5467
    %v5469 = vrot.slane %v5447, %v5468
    %v5471 = vunpack.c.l.s4 1966171168
    %v5472 = vunpack.c.0.s8 %v5471
    %v5473 = vlaneseq
    %v5474 = vshrl.u32 %v5473, 7
    %v5475 = vsub.s32 %v5472, %v5474
    %v5476 = vrot.slane %v5448, %v5475
    %v5477 = vcombine.high %v5455, %v5455
    %v5478 = vcombine.high %v5462, %v5462
    %v5479 = vcombine.high %v5469, %v5469
    %v5480 = vcombine.high %v5476, %v5476
    %v5482 = vunpack.c.l.s4 1966171168
    %v5483 = vunpack.c.0.s8 %v5482
    %v5484 = vlaneseq
    %v5485 = vshrl.u32 %v5484, 7
    %v5486 = vsub.s32 %v5483, %v5485
    %v5487 = vrot.slane %v5379, %v5486
    %v5488 = vcombine.high %v5487, %v5487
    %v5490 = vunpack.c.l.s4 1966171168
    %v5491 = vunpack.c.0.s8 %v5490
    %v5492 = vlaneseq
    %v5493 = vshrl.u32 %v5492, 7
    %v5494 = vsub.s32 %v5491, %v5493
    %v5495 = vrot.slane %v5487, %v5494
    %v5497 = vunpack.c.l.s4 1966171168
    %v5498 = vunpack.c.0.s8 %v5497
    %v5499 = vlaneseq
    %v5500 = vshrl.u32 %v5499, 7
    %v5501 = vsub.s32 %v5498, %v5500
    %v5502 = vrot.slane %v5488, %v5501
    %v5503 = vcombine.high %v5495, %v5495
    %v5504 = vcombine.high %v5502, %v5502
    %v5505 = vlaneseq
    %v5506 = vshrl.u32 %v5505, 7
    %v5507 = vsub.s32 0, %v5506
    %v5508 = vrot.slane %v5406, %v5507
    %v5509 = vlaneseq
    %v5510 = vshrl.u32 %v5509, 7
    %v5511 = vsub.s32 0, %v5510
    %v5512 = vrot.slane %v5420, %v5511
    %v5513 = vlaneseq
    %v5514 = vshrl.u32 %v5513, 7
    %v5515 = vsub.s32 0, %v5514
    %v5516 = vrot.slane %v5428, %v5515
    %v5517 = vlaneseq
    %v5518 = vshrl.u32 %v5517, 7
    %v5519 = vsub.s32 0, %v5518
    %v5520 = vrot.slane %v5430, %v5519
    %v5521 = vlaneseq
    %v5522 = vshrl.u32 %v5521, 7
    %v5523 = vsub.s32 0, %v5522
    %v5524 = vrot.slane %v5413, %v5523
    %v5525 = vlaneseq
    %v5526 = vshrl.u32 %v5525, 7
    %v5527 = vsub.s32 0, %v5526
    %v5528 = vrot.slane %v5427, %v5527
    %v5529 = vlaneseq
    %v5530 = vshrl.u32 %v5529, 7
    %v5531 = vsub.s32 0, %v5530
    %v5532 = vrot.slane %v5429, %v5531
    %v5533 = vlaneseq
    %v5534 = vshrl.u32 %v5533, 7
    %v5535 = vsub.s32 0, %v5534
    %v5536 = vrot.slane %v5431, %v5535
    %v5537 = vlaneseq
    %v5538 = vshrl.u32 %v5537, 7
    %v5539 = vsub.s32 0, %v5538
    %v5540 = vrot.slane %v5455, %v5539
    %v5541 = vlaneseq
    %v5542 = vshrl.u32 %v5541, 7
    %v5543 = vsub.s32 0, %v5542
    %v5544 = vrot.slane %v5469, %v5543
    %v5545 = vlaneseq
    %v5546 = vshrl.u32 %v5545, 7
    %v5547 = vsub.s32 0, %v5546
    %v5548 = vrot.slane %v5477, %v5547
    %v5549 = vlaneseq
    %v5550 = vshrl.u32 %v5549, 7
    %v5551 = vsub.s32 0, %v5550
    %v5552 = vrot.slane %v5479, %v5551
    %v5553 = vlaneseq
    %v5554 = vshrl.u32 %v5553, 7
    %v5555 = vsub.s32 0, %v5554
    %v5556 = vrot.slane %v5462, %v5555
    %v5557 = vlaneseq
    %v5558 = vshrl.u32 %v5557, 7
    %v5559 = vsub.s32 0, %v5558
    %v5560 = vrot.slane %v5476, %v5559
    %v5561 = vlaneseq
    %v5562 = vshrl.u32 %v5561, 7
    %v5563 = vsub.s32 0, %v5562
    %v5564 = vrot.slane %v5478, %v5563
    %v5565 = vlaneseq
    %v5566 = vshrl.u32 %v5565, 7
    %v5567 = vsub.s32 0, %v5566
    %v5568 = vrot.slane %v5480, %v5567
    %v5569 = vlaneseq
    %v5570 = vshrl.u32 %v5569, 7
    %v5571 = vsub.s32 0, %v5570
    %v5572 = vrot.slane %v5495, %v5571
    %v5573 = vlaneseq
    %v5574 = vshrl.u32 %v5573, 7
    %v5575 = vsub.s32 0, %v5574
    %v5576 = vrot.slane %v5502, %v5575
    %v5577 = vlaneseq
    %v5578 = vshrl.u32 %v5577, 7
    %v5579 = vsub.s32 0, %v5578
    %v5580 = vrot.slane %v5503, %v5579
    %v5581 = vlaneseq
    %v5582 = vshrl.u32 %v5581, 7
    %v5583 = vsub.s32 0, %v5582
    %v5584 = vrot.slane %v5504, %v5583
    %v5605 = vmul.f32 %v5508, %v5074
    %v5606 = vmul.f32 %v5512, %v5074
    %v5607 = vmul.f32 %v5516, %v5074
    %v5608 = vmul.f32 %v5520, %v5074
    %v5609 = vmul.f32 %v5524, %v5074
    %v5610 = vmul.f32 %v5528, %v5074
    %v5611 = vmul.f32 %v5532, %v5074
    %v5612 = vmul.f32 %v5536, %v5074
    %v5613 = vmul.f32 %v5540, %v5074
    %v5614 = vmul.f32 %v5544, %v5074
    %v5615 = vmul.f32 %v5548, %v5074
    %v5616 = vmul.f32 %v5552, %v5074
    %v5617 = vmul.f32 %v5556, %v5074
    %v5618 = vmul.f32 %v5560, %v5074
    %v5619 = vmul.f32 %v5564, %v5074
    %v5620 = vmul.f32 %v5568, %v5074
    %v5621 = vmul.f32 %v5572, %v5074
    %v5622 = vmul.f32 %v5576, %v5074
    %v5623 = vmul.f32 %v5580, %v5074
    %v5624 = vmul.f32 %v5584, %v5074
    %v5625 = vmul.f32 %v5605, 1.442695
    %v5626 = vpow.pop %v5625
    %v5627 = vmul.f32 %v5606, 1.442695
    %v5628 = vpow.pop %v5627
    %v5629 = vmul.f32 %v5607, 1.442695
    %v5630 = vpow.pop %v5629
    %v5631 = vmul.f32 %v5608, 1.442695
    %v5632 = vpow.pop %v5631
    %v5633 = vmul.f32 %v5609, 1.442695
    %v5634 = vpow.pop %v5633
    %v5635 = vmul.f32 %v5610, 1.442695
    %v5636 = vpow.pop %v5635
    %v5637 = vmul.f32 %v5611, 1.442695
    %v5638 = vpow.pop %v5637
    %v5639 = vmul.f32 %v5612, 1.442695
    %v5640 = vpow.pop %v5639
    %v5641 = vmul.f32 %v5613, 1.442695
    %v5642 = vpow.pop %v5641
    %v5643 = vmul.f32 %v5614, 1.442695
    %v5644 = vpow.pop %v5643
    %v5645 = vmul.f32 %v5615, 1.442695
    %v5646 = vpow.pop %v5645
    %v5647 = vmul.f32 %v5616, 1.442695
    %v5648 = vpow.pop %v5647
    %v5649 = vmul.f32 %v5617, 1.442695
    %v5650 = vpow.pop %v5649
    %v5651 = vmul.f32 %v5618, 1.442695
    %v5652 = vpow.pop %v5651
    %v5653 = vmul.f32 %v5619, 1.442695
    %v5654 = vpow.pop %v5653
    %v5655 = vmul.f32 %v5620, 1.442695
    %v5656 = vpow.pop %v5655
    %v5657 = vmul.f32 %v5621, 1.442695
    %v5658 = vpow.pop %v5657
    %v5659 = vmul.f32 %v5622, 1.442695
    %v5660 = vpow.pop %v5659
    %v5661 = vmul.f32 %v5623, 1.442695
    %v5662 = vpow.pop %v5661
    %v5663 = vmul.f32 %v5624, 1.442695
    %v5664 = vpow.pop %v5663
    %v5665 = vlaneseq
    %v5666 = vshrl.u32 %v5665, 7
    %v5667 = vsub.s32 0, %v5666
    %v5668 = vrot.slane %v5306, %v5667
    %s5670 = sor.u32 256, 32
    %5671 = vbcast.lane.b32.xlu0 %v5668, %s5670
    %v5672 = vpop.permute.xlu0 %5671
    %v5673 = vlaneseq
    %v5674 = vshrl.u32 %v5673, 7
    %v5675 = vsub.s32 1, %v5674
    %v5676 = vrot.slane %v5306, %v5675
    %s5678 = sor.u32 256, 32
    %5679 = vbcast.lane.b32.xlu0 %v5676, %s5678
    %v5680 = vpop.permute.xlu0 %5679
    %v5681 = vlaneseq
    %v5682 = vshrl.u32 %v5681, 7
    %v5683 = vsub.s32 2, %v5682
    %v5684 = vrot.slane %v5306, %v5683
    %s5686 = sor.u32 256, 32
    %5687 = vbcast.lane.b32.xlu0 %v5684, %s5686
    %v5688 = vpop.permute.xlu0 %5687
    %v5689 = vlaneseq
    %v5690 = vshrl.u32 %v5689, 7
    %v5691 = vsub.s32 3, %v5690
    %v5692 = vrot.slane %v5306, %v5691
    %s5694 = sor.u32 256, 32
    %5695 = vbcast.lane.b32.xlu0 %v5692, %s5694
    %v5696 = vpop.permute.xlu0 %5695
    %v5697 = vlaneseq
    %v5698 = vshrl.u32 %v5697, 7
    %v5699 = vsub.s32 4, %v5698
    %v5700 = vrot.slane %v5306, %v5699
    %s5702 = sor.u32 256, 32
    %5703 = vbcast.lane.b32.xlu0 %v5700, %s5702
    %v5704 = vpop.permute.xlu0 %5703
    %v5705 = vlaneseq
    %v5706 = vshrl.u32 %v5705, 7
    %v5707 = vsub.s32 5, %v5706
    %v5708 = vrot.slane %v5306, %v5707
    %s5710 = sor.u32 256, 32
    %5711 = vbcast.lane.b32.xlu0 %v5708, %s5710
    %v5712 = vpop.permute.xlu0 %5711
    %v5713 = vlaneseq
    %v5714 = vshrl.u32 %v5713, 7
    %v5715 = vsub.s32 6, %v5714
    %v5716 = vrot.slane %v5306, %v5715
    %s5718 = sor.u32 256, 32
    %5719 = vbcast.lane.b32.xlu0 %v5716, %s5718
    %v5720 = vpop.permute.xlu0 %5719
    %v5721 = vlaneseq
    %v5722 = vshrl.u32 %v5721, 7
    %v5723 = vsub.s32 7, %v5722
    %v5724 = vrot.slane %v5306, %v5723
    %s5726 = sor.u32 256, 32
    %5727 = vbcast.lane.b32.xlu0 %v5724, %s5726
    %v5728 = vpop.permute.xlu0 %5727
    %v5729 = vlaneseq
    %v5730 = vshrl.u32 %v5729, 7
    %v5731 = vsub.s32 0, %v5730
    %v5732 = vrot.slane %v5311, %v5731
    %s5734 = sor.u32 256, 32
    %5735 = vbcast.lane.b32.xlu0 %v5732, %s5734
    %v5736 = vpop.permute.xlu0 %5735
    %v5737 = vlaneseq
    %v5738 = vshrl.u32 %v5737, 7
    %v5739 = vsub.s32 1, %v5738
    %v5740 = vrot.slane %v5311, %v5739
    %s5742 = sor.u32 256, 32
    %5743 = vbcast.lane.b32.xlu0 %v5740, %s5742
    %v5744 = vpop.permute.xlu0 %5743
    %v5745 = vlaneseq
    %v5746 = vshrl.u32 %v5745, 7
    %v5747 = vsub.s32 2, %v5746
    %v5748 = vrot.slane %v5311, %v5747
    %s5750 = sor.u32 256, 32
    %5751 = vbcast.lane.b32.xlu0 %v5748, %s5750
    %v5752 = vpop.permute.xlu0 %5751
    %v5753 = vlaneseq
    %v5754 = vshrl.u32 %v5753, 7
    %v5755 = vsub.s32 3, %v5754
    %v5756 = vrot.slane %v5311, %v5755
    %s5758 = sor.u32 256, 32
    %5759 = vbcast.lane.b32.xlu0 %v5756, %s5758
    %v5760 = vpop.permute.xlu0 %5759
    %v5761 = vlaneseq
    %v5762 = vshrl.u32 %v5761, 7
    %v5763 = vsub.s32 4, %v5762
    %v5764 = vrot.slane %v5311, %v5763
    %s5766 = sor.u32 256, 32
    %5767 = vbcast.lane.b32.xlu0 %v5764, %s5766
    %v5768 = vpop.permute.xlu0 %5767
    %v5769 = vlaneseq
    %v5770 = vshrl.u32 %v5769, 7
    %v5771 = vsub.s32 5, %v5770
    %v5772 = vrot.slane %v5311, %v5771
    %s5774 = sor.u32 256, 32
    %5775 = vbcast.lane.b32.xlu0 %v5772, %s5774
    %v5776 = vpop.permute.xlu0 %5775
    %v5777 = vlaneseq
    %v5778 = vshrl.u32 %v5777, 7
    %v5779 = vsub.s32 6, %v5778
    %v5780 = vrot.slane %v5311, %v5779
    %s5782 = sor.u32 256, 32
    %5783 = vbcast.lane.b32.xlu0 %v5780, %s5782
    %v5784 = vpop.permute.xlu0 %5783
    %v5785 = vlaneseq
    %v5786 = vshrl.u32 %v5785, 7
    %v5787 = vsub.s32 7, %v5786
    %v5788 = vrot.slane %v5311, %v5787
    %s5790 = sor.u32 256, 32
    %5791 = vbcast.lane.b32.xlu0 %v5788, %s5790
    %v5792 = vpop.permute.xlu0 %5791
    %v5793 = vlaneseq
    %v5794 = vshrl.u32 %v5793, 7
    %v5795 = vsub.s32 0, %v5794
    %v5796 = vrot.slane %v5316, %v5795
    %s5798 = sor.u32 256, 32
    %5799 = vbcast.lane.b32.xlu0 %v5796, %s5798
    %v5800 = vpop.permute.xlu0 %5799
    %v5801 = vlaneseq
    %v5802 = vshrl.u32 %v5801, 7
    %v5803 = vsub.s32 1, %v5802
    %v5804 = vrot.slane %v5316, %v5803
    %s5806 = sor.u32 256, 32
    %5807 = vbcast.lane.b32.xlu0 %v5804, %s5806
    %v5808 = vpop.permute.xlu0 %5807
    %v5809 = vlaneseq
    %v5810 = vshrl.u32 %v5809, 7
    %v5811 = vsub.s32 2, %v5810
    %v5812 = vrot.slane %v5316, %v5811
    %s5814 = sor.u32 256, 32
    %5815 = vbcast.lane.b32.xlu0 %v5812, %s5814
    %v5816 = vpop.permute.xlu0 %5815
    %v5817 = vlaneseq
    %v5818 = vshrl.u32 %v5817, 7
    %v5819 = vsub.s32 3, %v5818
    %v5820 = vrot.slane %v5316, %v5819
    %s5822 = sor.u32 256, 32
    %5823 = vbcast.lane.b32.xlu0 %v5820, %s5822
    %v5824 = vpop.permute.xlu0 %5823
    %v5825 = vmul.f32 %v5377, %v5227
    %v5826 = vmul.f32 %v5378, %v5228
    %v5827 = vmul.f32 %v5379, %v5229
    %v5831 = vcombine.high %v5825, %v5825
    %v5833 = vunpack.c.l.s4 1966171168
    %v5834 = vunpack.c.0.s8 %v5833
    %v5835 = vlaneseq
    %v5836 = vshrl.u32 %v5835, 7
    %v5837 = vsub.s32 %v5834, %v5836
    %v5838 = vrot.slane %v5825, %v5837
    %v5840 = vunpack.c.l.s4 1966171168
    %v5841 = vunpack.c.0.s8 %v5840
    %v5842 = vlaneseq
    %v5843 = vshrl.u32 %v5842, 7
    %v5844 = vsub.s32 %v5841, %v5843
    %v5845 = vrot.slane %v5831, %v5844
    %v5846 = vcombine.high %v5838, %v5838
    %v5847 = vcombine.high %v5845, %v5845
    %v5849 = vunpack.c.l.s4 1966171168
    %v5850 = vunpack.c.0.s8 %v5849
    %v5851 = vlaneseq
    %v5852 = vshrl.u32 %v5851, 7
    %v5853 = vsub.s32 %v5850, %v5852
    %v5854 = vrot.slane %v5838, %v5853
    %v5856 = vunpack.c.l.s4 1966171168
    %v5857 = vunpack.c.0.s8 %v5856
    %v5858 = vlaneseq
    %v5859 = vshrl.u32 %v5858, 7
    %v5860 = vsub.s32 %v5857, %v5859
    %v5861 = vrot.slane %v5845, %v5860
    %v5863 = vunpack.c.l.s4 1966171168
    %v5864 = vunpack.c.0.s8 %v5863
    %v5865 = vlaneseq
    %v5866 = vshrl.u32 %v5865, 7
    %v5867 = vsub.s32 %v5864, %v5866
    %v5868 = vrot.slane %v5846, %v5867
    %v5870 = vunpack.c.l.s4 1966171168
    %v5871 = vunpack.c.0.s8 %v5870
    %v5872 = vlaneseq
    %v5873 = vshrl.u32 %v5872, 7
    %v5874 = vsub.s32 %v5871, %v5873
    %v5875 = vrot.slane %v5847, %v5874
    %v5876 = vcombine.high %v5854, %v5854
    %v5877 = vcombine.high %v5861, %v5861
    %v5878 = vcombine.high %v5868, %v5868
    %v5879 = vcombine.high %v5875, %v5875
    %v5880 = vcombine.high %v5826, %v5826
    %v5882 = vunpack.c.l.s4 1966171168
    %v5883 = vunpack.c.0.s8 %v5882
    %v5884 = vlaneseq
    %v5885 = vshrl.u32 %v5884, 7
    %v5886 = vsub.s32 %v5883, %v5885
    %v5887 = vrot.slane %v5826, %v5886
    %v5889 = vunpack.c.l.s4 1966171168
    %v5890 = vunpack.c.0.s8 %v5889
    %v5891 = vlaneseq
    %v5892 = vshrl.u32 %v5891, 7
    %v5893 = vsub.s32 %v5890, %v5892
    %v5894 = vrot.slane %v5880, %v5893
    %v5895 = vcombine.high %v5887, %v5887
    %v5896 = vcombine.high %v5894, %v5894
    %v5898 = vunpack.c.l.s4 1966171168
    %v5899 = vunpack.c.0.s8 %v5898
    %v5900 = vlaneseq
    %v5901 = vshrl.u32 %v5900, 7
    %v5902 = vsub.s32 %v5899, %v5901
    %v5903 = vrot.slane %v5887, %v5902
    %v5905 = vunpack.c.l.s4 1966171168
    %v5906 = vunpack.c.0.s8 %v5905
    %v5907 = vlaneseq
    %v5908 = vshrl.u32 %v5907, 7
    %v5909 = vsub.s32 %v5906, %v5908
    %v5910 = vrot.slane %v5894, %v5909
    %v5912 = vunpack.c.l.s4 1966171168
    %v5913 = vunpack.c.0.s8 %v5912
    %v5914 = vlaneseq
    %v5915 = vshrl.u32 %v5914, 7
    %v5916 = vsub.s32 %v5913, %v5915
    %v5917 = vrot.slane %v5895, %v5916
    %v5919 = vunpack.c.l.s4 1966171168
    %v5920 = vunpack.c.0.s8 %v5919
    %v5921 = vlaneseq
    %v5922 = vshrl.u32 %v5921, 7
    %v5923 = vsub.s32 %v5920, %v5922
    %v5924 = vrot.slane %v5896, %v5923
    %v5925 = vcombine.high %v5903, %v5903
    %v5926 = vcombine.high %v5910, %v5910
    %v5927 = vcombine.high %v5917, %v5917
    %v5928 = vcombine.high %v5924, %v5924
    %v5930 = vunpack.c.l.s4 1966171168
    %v5931 = vunpack.c.0.s8 %v5930
    %v5932 = vlaneseq
    %v5933 = vshrl.u32 %v5932, 7
    %v5934 = vsub.s32 %v5931, %v5933
    %v5935 = vrot.slane %v5827, %v5934
    %v5936 = vcombine.high %v5935, %v5935
    %v5938 = vunpack.c.l.s4 1966171168
    %v5939 = vunpack.c.0.s8 %v5938
    %v5940 = vlaneseq
    %v5941 = vshrl.u32 %v5940, 7
    %v5942 = vsub.s32 %v5939, %v5941
    %v5943 = vrot.slane %v5935, %v5942
    %v5945 = vunpack.c.l.s4 1966171168
    %v5946 = vunpack.c.0.s8 %v5945
    %v5947 = vlaneseq
    %v5948 = vshrl.u32 %v5947, 7
    %v5949 = vsub.s32 %v5946, %v5948
    %v5950 = vrot.slane %v5936, %v5949
    %v5951 = vcombine.high %v5943, %v5943
    %v5952 = vcombine.high %v5950, %v5950
    %v5953 = vlaneseq
    %v5954 = vshrl.u32 %v5953, 7
    %v5955 = vsub.s32 0, %v5954
    %v5956 = vrot.slane %v5854, %v5955
    %v5957 = vlaneseq
    %v5958 = vshrl.u32 %v5957, 7
    %v5959 = vsub.s32 0, %v5958
    %v5960 = vrot.slane %v5868, %v5959
    %v5961 = vlaneseq
    %v5962 = vshrl.u32 %v5961, 7
    %v5963 = vsub.s32 0, %v5962
    %v5964 = vrot.slane %v5876, %v5963
    %v5965 = vlaneseq
    %v5966 = vshrl.u32 %v5965, 7
    %v5967 = vsub.s32 0, %v5966
    %v5968 = vrot.slane %v5878, %v5967
    %v5969 = vlaneseq
    %v5970 = vshrl.u32 %v5969, 7
    %v5971 = vsub.s32 0, %v5970
    %v5972 = vrot.slane %v5861, %v5971
    %v5973 = vlaneseq
    %v5974 = vshrl.u32 %v5973, 7
    %v5975 = vsub.s32 0, %v5974
    %v5976 = vrot.slane %v5875, %v5975
    %v5977 = vlaneseq
    %v5978 = vshrl.u32 %v5977, 7
    %v5979 = vsub.s32 0, %v5978
    %v5980 = vrot.slane %v5877, %v5979
    %v5981 = vlaneseq
    %v5982 = vshrl.u32 %v5981, 7
    %v5983 = vsub.s32 0, %v5982
    %v5984 = vrot.slane %v5879, %v5983
    %v5985 = vlaneseq
    %v5986 = vshrl.u32 %v5985, 7
    %v5987 = vsub.s32 0, %v5986
    %v5988 = vrot.slane %v5903, %v5987
    %v5989 = vlaneseq
    %v5990 = vshrl.u32 %v5989, 7
    %v5991 = vsub.s32 0, %v5990
    %v5992 = vrot.slane %v5917, %v5991
    %v5993 = vlaneseq
    %v5994 = vshrl.u32 %v5993, 7
    %v5995 = vsub.s32 0, %v5994
    %v5996 = vrot.slane %v5925, %v5995
    %v5997 = vlaneseq
    %v5998 = vshrl.u32 %v5997, 7
    %v5999 = vsub.s32 0, %v5998
    %v6000 = vrot.slane %v5927, %v5999
    %v6001 = vlaneseq
    %v6002 = vshrl.u32 %v6001, 7
    %v6003 = vsub.s32 0, %v6002
    %v6004 = vrot.slane %v5910, %v6003
    %v6005 = vlaneseq
    %v6006 = vshrl.u32 %v6005, 7
    %v6007 = vsub.s32 0, %v6006
    %v6008 = vrot.slane %v5924, %v6007
    %v6009 = vlaneseq
    %v6010 = vshrl.u32 %v6009, 7
    %v6011 = vsub.s32 0, %v6010
    %v6012 = vrot.slane %v5926, %v6011
    %v6013 = vlaneseq
    %v6014 = vshrl.u32 %v6013, 7
    %v6015 = vsub.s32 0, %v6014
    %v6016 = vrot.slane %v5928, %v6015
    %v6017 = vlaneseq
    %v6018 = vshrl.u32 %v6017, 7
    %v6019 = vsub.s32 0, %v6018
    %v6020 = vrot.slane %v5943, %v6019
    %v6021 = vlaneseq
    %v6022 = vshrl.u32 %v6021, 7
    %v6023 = vsub.s32 0, %v6022
    %v6024 = vrot.slane %v5950, %v6023
    %v6025 = vlaneseq
    %v6026 = vshrl.u32 %v6025, 7
    %v6027 = vsub.s32 0, %v6026
    %v6028 = vrot.slane %v5951, %v6027
    %v6029 = vlaneseq
    %v6030 = vshrl.u32 %v6029, 7
    %v6031 = vsub.s32 0, %v6030
    %v6032 = vrot.slane %v5952, %v6031
    %v6053 = vmul.f32 %v5672, %v5956
    %v6054 = vmul.f32 %v5680, %v5960
    %v6055 = vmul.f32 %v5688, %v5964
    %v6056 = vmul.f32 %v5696, %v5968
    %v6057 = vmul.f32 %v5704, %v5972
    %v6058 = vmul.f32 %v5712, %v5976
    %v6059 = vmul.f32 %v5720, %v5980
    %v6060 = vmul.f32 %v5728, %v5984
    %v6061 = vmul.f32 %v5736, %v5988
    %v6062 = vmul.f32 %v5744, %v5992
    %v6063 = vmul.f32 %v5752, %v5996
    %v6064 = vmul.f32 %v5760, %v6000
    %v6065 = vmul.f32 %v5768, %v6004
    %v6066 = vmul.f32 %v5776, %v6008
    %v6067 = vmul.f32 %v5784, %v6012
    %v6068 = vmul.f32 %v5792, %v6016
    %v6069 = vmul.f32 %v5800, %v6020
    %v6070 = vmul.f32 %v5808, %v6024
    %v6071 = vmul.f32 %v5816, %v6028
    %v6072 = vmul.f32 %v5824, %v6032
    %v6073 = vmul.f32 %v5662, 0.0
    %v6074 = vmul.f32 %v5664, 0.0
    %v6075 = vadd.f32 %v6073, %v6071
    %v6076 = vadd.f32 %v6074, %v6072
    %s6078 = sor.u32 256, 40
    %6079 = vbcast.lane.b32.xlu0 %v5812, %s6078
    %v6080 = vpop.permute.xlu0 %6079
    %s6082 = sor.u32 256, 40
    %6083 = vbcast.lane.b32.xlu0 %v5820, %s6082
    %v6084 = vpop.permute.xlu0 %6083
    %v6085 = vmul.f32 %v6075, %v6080
    %v6086 = vmul.f32 %v6076, %v6084
    %v6087 = vsel %vm359, %v6085, 0.0
    %v6088 = vrot.slane %v6087, 4
    %v6089 = vadd.f32 %v6087, %v6088
    %v6090 = vrot.slane %v6089, 2
    %v6091 = vadd.f32 %v6089, %v6090
    %v6092 = vrot.slane %v6091, 1
    %v6093 = vadd.f32 %v6091, %v6092
    %v6094 = vsel %vm359, %v6086, 0.0
    %v6095 = vrot.slane %v6094, 4
    %v6096 = vadd.f32 %v6094, %v6095
    %v6097 = vrot.slane %v6096, 2
    %v6098 = vadd.f32 %v6096, %v6097
    %v6099 = vrot.slane %v6098, 1
    %v6100 = vadd.f32 %v6098, %v6099
    %v6103 = vsel %vm1467, %v6100, %v6093
    %6105 = vst.msk [vmem:[#allocation2 + $0x12] sm:$0x3] %vm1470, %v6103
    %v6106 = vmul.f32 %v5658, %v6075
    %v6107 = vmul.f32 %v5660, %v6076
    %v6108 = vadd.f32 %v6106, %v6069
    %v6109 = vadd.f32 %v6107, %v6070
    %s6111 = sor.u32 256, 40
    %6112 = vbcast.lane.b32.xlu0 %v5796, %s6111
    %v6113 = vpop.permute.xlu0 %6112
    %s6115 = sor.u32 256, 40
    %6116 = vbcast.lane.b32.xlu0 %v5804, %s6115
    %v6117 = vpop.permute.xlu0 %6116
    %v6118 = vmul.f32 %v6108, %v6113
    %v6119 = vmul.f32 %v6109, %v6117
    %v6120 = vsel %vm359, %v6118, 0.0
    %v6121 = vrot.slane %v6120, 4
    %v6122 = vadd.f32 %v6120, %v6121
    %v6123 = vrot.slane %v6122, 2
    %v6124 = vadd.f32 %v6122, %v6123
    %v6125 = vrot.slane %v6124, 1
    %v6126 = vadd.f32 %v6124, %v6125
    %v6127 = vsel %vm359, %v6119, 0.0
    %v6128 = vrot.slane %v6127, 4
    %v6129 = vadd.f32 %v6127, %v6128
    %v6130 = vrot.slane %v6129, 2
    %v6131 = vadd.f32 %v6129, %v6130
    %v6132 = vrot.slane %v6131, 1
    %v6133 = vadd.f32 %v6131, %v6132
    %v6136 = vsel %vm1467, %v6133, %v6126
    %6138 = vst.msk [vmem:[#allocation2 + $0x10] sm:$0x3] %vm1470, %v6136
    %v6139 = vmul.f32 %v5654, %v6108
    %v6140 = vmul.f32 %v5656, %v6109
    %v6141 = vadd.f32 %v6139, %v6067
    %v6142 = vadd.f32 %v6140, %v6068
    %s6144 = sor.u32 256, 40
    %6145 = vbcast.lane.b32.xlu0 %v5780, %s6144
    %v6146 = vpop.permute.xlu0 %6145
    %s6148 = sor.u32 256, 40
    %6149 = vbcast.lane.b32.xlu0 %v5788, %s6148
    %v6150 = vpop.permute.xlu0 %6149
    %v6151 = vmul.f32 %v6141, %v6146
    %v6152 = vmul.f32 %v6142, %v6150
    %v6153 = vsel %vm359, %v6151, 0.0
    %v6154 = vrot.slane %v6153, 4
    %v6155 = vadd.f32 %v6153, %v6154
    %v6156 = vrot.slane %v6155, 2
    %v6157 = vadd.f32 %v6155, %v6156
    %v6158 = vrot.slane %v6157, 1
    %v6159 = vadd.f32 %v6157, %v6158
    %v6160 = vsel %vm359, %v6152, 0.0
    %v6161 = vrot.slane %v6160, 4
    %v6162 = vadd.f32 %v6160, %v6161
    %v6163 = vrot.slane %v6162, 2
    %v6164 = vadd.f32 %v6162, %v6163
    %v6165 = vrot.slane %v6164, 1
    %v6166 = vadd.f32 %v6164, %v6165
    %v6169 = vsel %vm1467, %v6166, %v6159
    %6171 = vst.msk [vmem:[#allocation2 + $0xe] sm:$0x3] %vm1470, %v6169
    %v6172 = vmul.f32 %v5650, %v6141
    %v6173 = vmul.f32 %v5652, %v6142
    %v6174 = vadd.f32 %v6172, %v6065
    %v6175 = vadd.f32 %v6173, %v6066
    %s6177 = sor.u32 256, 40
    %6178 = vbcast.lane.b32.xlu0 %v5764, %s6177
    %v6179 = vpop.permute.xlu0 %6178
    %s6181 = sor.u32 256, 40
    %6182 = vbcast.lane.b32.xlu0 %v5772, %s6181
    %v6183 = vpop.permute.xlu0 %6182
    %v6184 = vmul.f32 %v6174, %v6179
    %v6185 = vmul.f32 %v6175, %v6183
    %v6186 = vsel %vm359, %v6184, 0.0
    %v6187 = vrot.slane %v6186, 4
    %v6188 = vadd.f32 %v6186, %v6187
    %v6189 = vrot.slane %v6188, 2
    %v6190 = vadd.f32 %v6188, %v6189
    %v6191 = vrot.slane %v6190, 1
    %v6192 = vadd.f32 %v6190, %v6191
    %v6193 = vsel %vm359, %v6185, 0.0
    %v6194 = vrot.slane %v6193, 4
    %v6195 = vadd.f32 %v6193, %v6194
    %v6196 = vrot.slane %v6195, 2
    %v6197 = vadd.f32 %v6195, %v6196
    %v6198 = vrot.slane %v6197, 1
    %v6199 = vadd.f32 %v6197, %v6198
    %v6202 = vsel %vm1467, %v6199, %v6192
    %6204 = vst.msk [vmem:[#allocation2 + $0xc] sm:$0x3] %vm1470, %v6202
    %v6205 = vmul.f32 %v5646, %v6174
    %v6206 = vmul.f32 %v5648, %v6175
    %v6207 = vadd.f32 %v6205, %v6063
    %v6208 = vadd.f32 %v6206, %v6064
    %s6210 = sor.u32 256, 40
    %6211 = vbcast.lane.b32.xlu0 %v5748, %s6210
    %v6212 = vpop.permute.xlu0 %6211
    %s6214 = sor.u32 256, 40
    %6215 = vbcast.lane.b32.xlu0 %v5756, %s6214
    %v6216 = vpop.permute.xlu0 %6215
    %v6217 = vmul.f32 %v6207, %v6212
    %v6218 = vmul.f32 %v6208, %v6216
    %v6219 = vsel %vm359, %v6217, 0.0
    %v6220 = vrot.slane %v6219, 4
    %v6221 = vadd.f32 %v6219, %v6220
    %v6222 = vrot.slane %v6221, 2
    %v6223 = vadd.f32 %v6221, %v6222
    %v6224 = vrot.slane %v6223, 1
    %v6225 = vadd.f32 %v6223, %v6224
    %v6226 = vsel %vm359, %v6218, 0.0
    %v6227 = vrot.slane %v6226, 4
    %v6228 = vadd.f32 %v6226, %v6227
    %v6229 = vrot.slane %v6228, 2
    %v6230 = vadd.f32 %v6228, %v6229
    %v6231 = vrot.slane %v6230, 1
    %v6232 = vadd.f32 %v6230, %v6231
    %v6235 = vsel %vm1467, %v6232, %v6225
    %6237 = vst.msk [vmem:[#allocation2 + $0xa] sm:$0x3] %vm1470, %v6235
    %v6238 = vmul.f32 %v5642, %v6207
    %v6239 = vmul.f32 %v5644, %v6208
    %v6240 = vadd.f32 %v6238, %v6061
    %v6241 = vadd.f32 %v6239, %v6062
    %s6243 = sor.u32 256, 40
    %6244 = vbcast.lane.b32.xlu0 %v5732, %s6243
    %v6245 = vpop.permute.xlu0 %6244
    %s6247 = sor.u32 256, 40
    %6248 = vbcast.lane.b32.xlu0 %v5740, %s6247
    %v6249 = vpop.permute.xlu0 %6248
    %v6250 = vmul.f32 %v6240, %v6245
    %v6251 = vmul.f32 %v6241, %v6249
    %v6252 = vsel %vm359, %v6250, 0.0
    %v6253 = vrot.slane %v6252, 4
    %v6254 = vadd.f32 %v6252, %v6253
    %v6255 = vrot.slane %v6254, 2
    %v6256 = vadd.f32 %v6254, %v6255
    %v6257 = vrot.slane %v6256, 1
    %v6258 = vadd.f32 %v6256, %v6257
    %v6259 = vsel %vm359, %v6251, 0.0
    %v6260 = vrot.slane %v6259, 4
    %v6261 = vadd.f32 %v6259, %v6260
    %v6262 = vrot.slane %v6261, 2
    %v6263 = vadd.f32 %v6261, %v6262
    %v6264 = vrot.slane %v6263, 1
    %v6265 = vadd.f32 %v6263, %v6264
    %v6268 = vsel %vm1467, %v6265, %v6258
    %6270 = vst.msk [vmem:[#allocation2 + $0x8] sm:$0x3] %vm1470, %v6268
    %v6271 = vmul.f32 %v5638, %v6240
    %v6272 = vmul.f32 %v5640, %v6241
    %v6273 = vadd.f32 %v6271, %v6059
    %v6274 = vadd.f32 %v6272, %v6060
    %s6276 = sor.u32 256, 40
    %6277 = vbcast.lane.b32.xlu0 %v5716, %s6276
    %v6278 = vpop.permute.xlu0 %6277
    %s6280 = sor.u32 256, 40
    %6281 = vbcast.lane.b32.xlu0 %v5724, %s6280
    %v6282 = vpop.permute.xlu0 %6281
    %v6283 = vmul.f32 %v6273, %v6278
    %v6284 = vmul.f32 %v6274, %v6282
    %v6285 = vsel %vm359, %v6283, 0.0
    %v6286 = vrot.slane %v6285, 4
    %v6287 = vadd.f32 %v6285, %v6286
    %v6288 = vrot.slane %v6287, 2
    %v6289 = vadd.f32 %v6287, %v6288
    %v6290 = vrot.slane %v6289, 1
    %v6291 = vadd.f32 %v6289, %v6290
    %v6292 = vsel %vm359, %v6284, 0.0
    %v6293 = vrot.slane %v6292, 4
    %v6294 = vadd.f32 %v6292, %v6293
    %v6295 = vrot.slane %v6294, 2
    %v6296 = vadd.f32 %v6294, %v6295
    %v6297 = vrot.slane %v6296, 1
    %v6298 = vadd.f32 %v6296, %v6297
    %v6301 = vsel %vm1467, %v6298, %v6291
    %6303 = vst.msk [vmem:[#allocation2 + $0x6] sm:$0x3] %vm1470, %v6301
    %v6304 = vmul.f32 %v5634, %v6273
    %v6305 = vmul.f32 %v5636, %v6274
    %v6306 = vadd.f32 %v6304, %v6057
    %v6307 = vadd.f32 %v6305, %v6058
    %s6309 = sor.u32 256, 40
    %6310 = vbcast.lane.b32.xlu0 %v5700, %s6309
    %v6311 = vpop.permute.xlu0 %6310
    %s6313 = sor.u32 256, 40
    %6314 = vbcast.lane.b32.xlu0 %v5708, %s6313
    %v6315 = vpop.permute.xlu0 %6314
    %v6316 = vmul.f32 %v6306, %v6311
    %v6317 = vmul.f32 %v6307, %v6315
    %v6318 = vsel %vm359, %v6316, 0.0
    %v6319 = vrot.slane %v6318, 4
    %v6320 = vadd.f32 %v6318, %v6319
    %v6321 = vrot.slane %v6320, 2
    %v6322 = vadd.f32 %v6320, %v6321
    %v6323 = vrot.slane %v6322, 1
    %v6324 = vadd.f32 %v6322, %v6323
    %v6325 = vsel %vm359, %v6317, 0.0
    %v6326 = vrot.slane %v6325, 4
    %v6327 = vadd.f32 %v6325, %v6326
    %v6328 = vrot.slane %v6327, 2
    %v6329 = vadd.f32 %v6327, %v6328
    %v6330 = vrot.slane %v6329, 1
    %v6331 = vadd.f32 %v6329, %v6330
    %v6334 = vsel %vm1467, %v6331, %v6324
    %6336 = vst.msk [vmem:[#allocation2 + $0x4] sm:$0x3] %vm1470, %v6334
    %v6337 = vmul.f32 %v5630, %v6306
    %v6338 = vmul.f32 %v5632, %v6307
    %v6339 = vadd.f32 %v6337, %v6055
    %v6340 = vadd.f32 %v6338, %v6056
    %s6342 = sor.u32 256, 40
    %6343 = vbcast.lane.b32.xlu0 %v5684, %s6342
    %v6344 = vpop.permute.xlu0 %6343
    %s6346 = sor.u32 256, 40
    %6347 = vbcast.lane.b32.xlu0 %v5692, %s6346
    %v6348 = vpop.permute.xlu0 %6347
    %v6349 = vmul.f32 %v6339, %v6344
    %v6350 = vmul.f32 %v6340, %v6348
    %v6351 = vsel %vm359, %v6349, 0.0
    %v6352 = vrot.slane %v6351, 4
    %v6353 = vadd.f32 %v6351, %v6352
    %v6354 = vrot.slane %v6353, 2
    %v6355 = vadd.f32 %v6353, %v6354
    %v6356 = vrot.slane %v6355, 1
    %v6357 = vadd.f32 %v6355, %v6356
    %v6358 = vsel %vm359, %v6350, 0.0
    %v6359 = vrot.slane %v6358, 4
    %v6360 = vadd.f32 %v6358, %v6359
    %v6361 = vrot.slane %v6360, 2
    %v6362 = vadd.f32 %v6360, %v6361
    %v6363 = vrot.slane %v6362, 1
    %v6364 = vadd.f32 %v6362, %v6363
    %v6367 = vsel %vm1467, %v6364, %v6357
    %6369 = vst.msk [vmem:[#allocation2 + $0x2] sm:$0x3] %vm1470, %v6367
    %v6370 = vmul.f32 %v5626, %v6339
    %v6371 = vmul.f32 %v5628, %v6340
    %v6372 = vadd.f32 %v6370, %v6053
    %v6373 = vadd.f32 %v6371, %v6054
    %s6375 = sor.u32 256, 40
    %6376 = vbcast.lane.b32.xlu0 %v5668, %s6375
    %v6377 = vpop.permute.xlu0 %6376
    %s6379 = sor.u32 256, 40
    %6380 = vbcast.lane.b32.xlu0 %v5676, %s6379
    %v6381 = vpop.permute.xlu0 %6380
    %v6382 = vmul.f32 %v6372, %v6377
    %v6383 = vmul.f32 %v6373, %v6381
    %v6384 = vsel %vm359, %v6382, 0.0
    %v6385 = vrot.slane %v6384, 4
    %v6386 = vadd.f32 %v6384, %v6385
    %v6387 = vrot.slane %v6386, 2
    %v6388 = vadd.f32 %v6386, %v6387
    %v6389 = vrot.slane %v6388, 1
    %v6390 = vadd.f32 %v6388, %v6389
    %v6391 = vsel %vm359, %v6383, 0.0
    %v6392 = vrot.slane %v6391, 4
    %v6393 = vadd.f32 %v6391, %v6392
    %v6394 = vrot.slane %v6393, 2
    %v6395 = vadd.f32 %v6393, %v6394
    %v6396 = vrot.slane %v6395, 1
    %v6397 = vadd.f32 %v6395, %v6396
    %v6400 = vsel %vm1467, %v6397, %v6390
    %6402 = vst.msk [vmem:[#allocation2] sm:$0x3] %vm1470, %v6400
    %v6403 = vld [vmem:[#allocation2] sm:$0xff]
    %v6404 = vld [vmem:[#allocation2 + $0x8] sm:$0xff]
    %v6405 = vld [vmem:[#allocation2 + $0x10] sm:$0xf]
    %v6406 = vlaneseq
    %v6407 = vshrl.u32 %v6406, 7
    %v6408 = vsub.s32 4, %v6407
    %v6409 = vrot.slane %v5076, %v6408
    %v6410 = vmul.f32 %v6409, %v5227
    %v6411 = vmul.f32 %v6409, %v5228
    %v6412 = vmul.f32 %v6409, %v5229
    %v6413 = vadd.f32 %v6403, %v6410
    %v6414 = vadd.f32 %v6404, %v6411
    %v6415 = vadd.f32 %v6405, %v6412
    %6416 = vrot.lane.b32.xlu0 %v5050, 32
    %v6417 = vpop.permute.xlu0 %6416
    %6418 = vrot.lane.b32.xlu0 %v5051, 32
    %v6419 = vpop.permute.xlu0 %6418
    %6420 = vrot.lane.b32.xlu0 %v5052, 32
    %v6421 = vpop.permute.xlu0 %6420
    %v6425 = vmul.f32 %v6413, %v6417
    %v6426 = vmul.f32 %v6414, %v6419
    %v6427 = vmul.f32 %v6415, %v6421
    %6431 = vrot.lane.b32.xlu0 %v6425, 32
    %v6432 = vpop.permute.xlu0 %6431
    %6433 = vrot.lane.b32.xlu0 %v6426, 32
    %v6434 = vpop.permute.xlu0 %6433
    %6435 = vrot.lane.b32.xlu0 %v6427, 32
    %v6436 = vpop.permute.xlu0 %6435
    %v6440 = vsel %vm359, %v5065, %v6432
    %v6441 = vsel %vm359, %v5066, %v6434
    %v6442 = vsel %vm359, %v5067, %v6436
    %s6443 = scalar_lea.vmem [#allocation17], 64
    %v6444 = vld [vmem:[%s6443] sm:$0xff]
    %v6445 = vld [vmem:[%s6443 + $0x8] sm:$0xff]
    %v6446 = vld [vmem:[%s6443 + $0x10] sm:$0xff]
    %v6447 = vld [vmem:[%s6443 + $0x18] sm:$0xff]
    %v6448 = vld [vmem:[%s6443 + $0x20] sm:$0xff]
    %v6449 = vld [vmem:[%s6443 + $0x28] sm:$0xff]
    %v6450 = vld [vmem:[%s6443 + $0x30] sm:$0xff]
    %v6451 = vld [vmem:[%s6443 + $0x38] sm:$0xff]
    %v6453 = vsel %vm3210, %v6440, 0
    %v6456 = vsel %vm3210, %v6441, 0
    %v6459 = vsel %vm3210, %v6442, 0
    %6461 = vmatprep.subr.mxu0 0.0
    %6462 = vmatpush1.msra.mxu0 %v6444
    %6463 = vmatprep.subr.mxu0 0.0
    %6464 = vmatpush1.msra.mxu0 %v6445
    %6465 = vmatprep.subr.mxu0 0.0
    %6466 = vmatpush1.msra.mxu0 %v6446
    %6467 = vmatprep.subr.mxu0 0.0
    %6468 = vmatpush1.msra.mxu0 %v6447
    %6469 = vmatprep.subr.mxu0 0.0
    %6470 = vmatpush1.msra.mxu0 %v6448
    %6471 = vmatprep.subr.mxu0 0.0
    %6472 = vmatpush1.msra.mxu0 %v6449
    %6473 = vmatprep.subr.mxu0 0.0
    %6474 = vmatpush1.msra.mxu0 %v6450
    %6475 = vmatprep.subr.mxu0 0.0
    %6476 = vmatpush1.msra.mxu0 %v6451
    %6477 = vmatprep.subr.mxu0 0.0
    %6478 = vmatpush1.msra.mxu0 0.0
    %6479 = vmatprep.subr.mxu0 0.0
    %6480 = vmatpush1.msra.mxu0 0.0
    %6481 = vmatprep.subr.mxu0 0.0
    %6482 = vmatpush1.msra.mxu0 0.0
    %6483 = vmatprep.subr.mxu0 0.0
    %6484 = vmatpush1.msra.mxu0 0.0
    %6485 = vmatprep.subr.mxu0 0.0
    %6486 = vmatpush1.msra.mxu0 0.0
    %6487 = vmatprep.subr.mxu0 0.0
    %6488 = vmatpush1.msra.mxu0 0.0
    %6489 = vmatprep.subr.mxu0 0.0
    %6490 = vmatpush1.msra.mxu0 0.0
    %6491 = vmatprep.subr.mxu0 0.0
    %6492 = vmatpush1.msra.mxu0 0.0
    %6493 = vmatprep.subr.mxu0 0.0
    %6494 = vmatpush1.msra.mxu0 0.0
    %6495 = vmatprep.subr.mxu0 0.0
    %6496 = vmatpush1.msra.mxu0 0.0
    %6497 = vmatprep.subr.mxu0 0.0
    %6498 = vmatpush1.msra.mxu0 0.0
    %6499 = vmatprep.subr.mxu0 0.0
    %6500 = vmatpush1.msra.mxu0 0.0
    %6501 = vmatprep.subr.mxu0 0.0
    %6502 = vmatpush1.msra.mxu0 0.0
    %6503 = vmatprep.subr.mxu0 0.0
    %6504 = vmatpush1.msra.mxu0 0.0
    %6505 = vmatprep.subr.mxu0 0.0
    %6506 = vmatpush1.msra.mxu0 0.0
    %6507 = vmatprep.subr.mxu0 0.0
    %6508 = vmatpush1.msra.mxu0 0.0
    %6509 = vmatprep.subr.mxu0 0.0
    %6510 = vmatpush1.msra.mxu0 0.0
    %6511 = vmatprep.subr.mxu0 0.0
    %6512 = vmatpush1.msra.mxu0 0.0
    %6513 = vmatprep.subr.mxu0 0.0
    %6514 = vmatpush1.msra.mxu0 0.0
    %6515 = vmatprep.subr.mxu0 0.0
    %6516 = vmatpush1.msra.mxu0 0.0
    %6517 = vmatprep.subr.mxu0 0.0
    %6518 = vmatpush1.msra.mxu0 0.0
    %6519 = vmatprep.subr.mxu0 0.0
    %6520 = vmatpush1.msra.mxu0 0.0
    %6521 = vmatprep.subr.mxu0 0.0
    %6522 = vmatpush1.msra.mxu0 0.0
    %6523 = vmatprep.subr.mxu0 0.0
    %6524 = vmatpush1.msra.mxu0 0.0
    %6525 = vmatprep.mubr.f32.mxu0 0.0
    %6526 = vmatmul.mubr.f32.gmra.mrb[0].mxu0 %v6453
    %v6527 = vpop.f32.mrb[0].mxu0
    %v6528 = vadd.f32 0.0, %v6527
    %v6529 = vpop.f32.mrb[0].mxu0
    %6530 = vmatprep.mubr.f32.mxu0 0.0
    %6531 = vmatmul.mubr.f32.gmra.mrb[0].mxu0 %v6456
    %v6532 = vpop.f32.mrb[0].mxu0
    %v6533 = vadd.f32 0.0, %v6532
    %v6534 = vpop.f32.mrb[0].mxu0
    %6535 = vmatprep.mubr.f32.mxu0 0.0
    %6536 = vmatmul.mubr.f32.gmra.mrb[0].mxu0 %v6459
    %v6537 = vpop.f32.mrb[0].mxu0
    %v6538 = vadd.f32 0.0, %v6537
    %v6539 = vpop.f32.mrb[0].mxu0
    %6540 = vdwg.mxu0
    %s6541 = scalar_lea.vmem [#allocation23], 8
    %v6542 = vld [vmem:[%s6541] sm:$0x1f]
    %v6543 = vadd.f32 %v3612, %v6528
    %v6544 = vadd.f32 %v3613, %v6533
    %v6545 = vadd.f32 %v3614, %v6538
    %v6546 = vsel %vm359, %v6543, 0.0
    %6547 = vadd.xlane.f32.xlu0 %v6546
    %v6548 = vpop.xlane.xlu0 %6547
    %v6549 = vsel %vm359, %v6544, 0.0
    %6550 = vadd.xlane.f32.xlu0 %v6549
    %v6551 = vpop.xlane.xlu0 %6550
    %v6552 = vsel %vm3310, %v6545, 0.0
    %6553 = vadd.xlane.f32.xlu0 %v6552
    %v6554 = vpop.xlane.xlu0 %6553
    %v6555 = vmul.f32 %v6548, %v3314
    %v6556 = vmul.f32 %v6551, %v3314
    %v6557 = vmul.f32 %v6554, %v3314
    %v6558 = vsub.f32 %v6543, %v6555
    %v6559 = vsub.f32 %v6544, %v6556
    %v6560 = vsub.f32 %v6545, %v6557
    %v6561 = vmul.f32 %v6558, %v6558
    %v6562 = vmul.f32 %v6559, %v6559
    %v6563 = vmul.f32 %v6560, %v6560
    %v6564 = vsel %vm359, %v6561, 0.0
    %6565 = vadd.xlane.f32.xlu0 %v6564
    %v6566 = vpop.xlane.xlu0 %6565
    %v6567 = vsel %vm359, %v6562, 0.0
    %6568 = vadd.xlane.f32.xlu0 %v6567
    %v6569 = vpop.xlane.xlu0 %6568
    %v6570 = vsel %vm3310, %v6563, 0.0
    %6571 = vadd.xlane.f32.xlu0 %v6570
    %v6572 = vpop.xlane.xlu0 %6571
    %v6573 = vmul.f32 %v6566, %v3314
    %v6574 = vmul.f32 %v6569, %v3314
    %v6575 = vmul.f32 %v6572, %v3314
    %v6576 = vadd.f32 %v6573, 1e-05
    %v6577 = vadd.f32 %v6574, 1e-05
    %v6578 = vadd.f32 %v6575, 1e-05
    %v6579 = vrsqrt.pop %v6576
    %v6580 = vrsqrt.pop %v6577
    %v6581 = vrsqrt.pop %v6578
    %v6582 = vmul.f32 %v6558, %v6579
    %v6583 = vmul.f32 %v6559, %v6580
    %v6584 = vmul.f32 %v6560, %v6581
    %v6585 = vlaneseq
    %v6586 = vshrl.u32 %v6585, 7
    %v6587 = vsub.s32 0, %v6586
    %v6588 = vrot.slane %v6542, %v6587
    %v6589 = vmul.f32 %v6582, %v6588
    %v6590 = vmul.f32 %v6583, %v6588
    %v6591 = vmul.f32 %v6584, %v6588
    %v6592 = vlaneseq
    %v6593 = vshrl.u32 %v6592, 7
    %v6594 = vsub.s32 1, %v6593
    %v6595 = vrot.slane %v6542, %v6594
    %v6596 = vadd.f32 %v6589, %v6595
    %v6597 = vadd.f32 %v6590, %v6595
    %v6598 = vadd.f32 %v6591, %v6595
    %s6599 = scalar_lea.vmem [#allocation20], 32
    %v6600 = vld [vmem:[%s6599] sm:$0xff]
    %v6601 = vld [vmem:[%s6599 + $0x8] sm:$0xff]
    %v6602 = vld [vmem:[%s6599 + $0x10] sm:$0xff]
    %v6603 = vld [vmem:[%s6599 + $0x18] sm:$0xff]
    %s6604 = scalar_lea.vmem [#allocation24], 1
    %v6605 = vld [vmem:[%s6604] sm:$0x1]
    %v6607 = vlaneseq
    %v6608 = vshrl.u32 %v6607, 7
    %v6609 = vsub.s32 0, %v6608
    %v6610 = vrot.slane %v6605, %v6609
    %v6613 = vsel %vm359, %v6596, 0
    %v6616 = vsel %vm359, %v6597, 0
    %v6619 = vsel %vm359, %v6598, 0
    %6621 = vmatprep.subr.mxu0 0.0
    %6622 = vmatpush1.msra.mxu0 %v6600
    %6623 = vmatprep.subr.mxu0 0.0
    %6624 = vmatpush1.msra.mxu0 %v6601
    %6625 = vmatprep.subr.mxu0 0.0
    %6626 = vmatpush1.msra.mxu0 %v6602
    %6627 = vmatprep.subr.mxu0 0.0
    %6628 = vmatpush1.msra.mxu0 %v6603
    %6629 = vmatprep.subr.mxu0 0.0
    %6630 = vmatpush1.msra.mxu0 0.0
    %6631 = vmatprep.subr.mxu0 0.0
    %6632 = vmatpush1.msra.mxu0 0.0
    %6633 = vmatprep.subr.mxu0 0.0
    %6634 = vmatpush1.msra.mxu0 0.0
    %6635 = vmatprep.subr.mxu0 0.0
    %6636 = vmatpush1.msra.mxu0 0.0
    %6637 = vmatprep.subr.mxu0 0.0
    %6638 = vmatpush1.msra.mxu0 0.0
    %6639 = vmatprep.subr.mxu0 0.0
    %6640 = vmatpush1.msra.mxu0 0.0
    %6641 = vmatprep.subr.mxu0 0.0
    %6642 = vmatpush1.msra.mxu0 0.0
    %6643 = vmatprep.subr.mxu0 0.0
    %6644 = vmatpush1.msra.mxu0 0.0
    %6645 = vmatprep.subr.mxu0 0.0
    %6646 = vmatpush1.msra.mxu0 0.0
    %6647 = vmatprep.subr.mxu0 0.0
    %6648 = vmatpush1.msra.mxu0 0.0
    %6649 = vmatprep.subr.mxu0 0.0
    %6650 = vmatpush1.msra.mxu0 0.0
    %6651 = vmatprep.subr.mxu0 0.0
    %6652 = vmatpush1.msra.mxu0 0.0
    %6653 = vmatprep.subr.mxu0 0.0
    %6654 = vmatpush1.msra.mxu0 0.0
    %6655 = vmatprep.subr.mxu0 0.0
    %6656 = vmatpush1.msra.mxu0 0.0
    %6657 = vmatprep.subr.mxu0 0.0
    %6658 = vmatpush1.msra.mxu0 0.0
    %6659 = vmatprep.subr.mxu0 0.0
    %6660 = vmatpush1.msra.mxu0 0.0
    %6661 = vmatprep.subr.mxu0 0.0
    %6662 = vmatpush1.msra.mxu0 0.0
    %6663 = vmatprep.subr.mxu0 0.0
    %6664 = vmatpush1.msra.mxu0 0.0
    %6665 = vmatprep.subr.mxu0 0.0
    %6666 = vmatpush1.msra.mxu0 0.0
    %6667 = vmatprep.subr.mxu0 0.0
    %6668 = vmatpush1.msra.mxu0 0.0
    %6669 = vmatprep.subr.mxu0 0.0
    %6670 = vmatpush1.msra.mxu0 0.0
    %6671 = vmatprep.subr.mxu0 0.0
    %6672 = vmatpush1.msra.mxu0 0.0
    %6673 = vmatprep.subr.mxu0 0.0
    %6674 = vmatpush1.msra.mxu0 0.0
    %6675 = vmatprep.subr.mxu0 0.0
    %6676 = vmatpush1.msra.mxu0 0.0
    %6677 = vmatprep.subr.mxu0 0.0
    %6678 = vmatpush1.msra.mxu0 0.0
    %6679 = vmatprep.subr.mxu0 0.0
    %6680 = vmatpush1.msra.mxu0 0.0
    %6681 = vmatprep.subr.mxu0 0.0
    %6682 = vmatpush1.msra.mxu0 0.0
    %6683 = vmatprep.subr.mxu0 0.0
    %6684 = vmatpush1.msra.mxu0 0.0
    %6685 = vmatprep.mubr.f32.mxu0 0.0
    %6686 = vmatmul.mubr.f32.gmra.mrb[0].mxu0 %v6613
    %v6687 = vpop.f32.mrb[0].mxu0
    %v6688 = vadd.f32 %v6610, %v6687
    %v6689 = vpop.f32.mrb[0].mxu0
    %6690 = vmatprep.mubr.f32.mxu0 0.0
    %6691 = vmatmul.mubr.f32.gmra.mrb[0].mxu0 %v6616
    %v6692 = vpop.f32.mrb[0].mxu0
    %v6693 = vadd.f32 %v6610, %v6692
    %v6694 = vpop.f32.mrb[0].mxu0
    %6695 = vmatprep.mubr.f32.mxu0 0.0
    %6696 = vmatmul.mubr.f32.gmra.mrb[0].mxu0 %v6619
    %v6697 = vpop.f32.mrb[0].mxu0
    %v6698 = vadd.f32 %v6610, %v6697
    %v6699 = vpop.f32.mrb[0].mxu0
    %6700 = vdwg.mxu0
    %v6701 = vmax.f32 %v6688, 0.0
    %v6702 = vmax.f32 %v6693, 0.0
    %v6703 = vmax.f32 %v6698, 0.0
    %s6704 = scalar_lea.vmem [#allocation21], 32
    %v6705 = vld [vmem:[%s6704] sm:$0xff]
    %v6706 = vld [vmem:[%s6704 + $0x8] sm:$0xff]
    %v6707 = vld [vmem:[%s6704 + $0x10] sm:$0xff]
    %v6708 = vld [vmem:[%s6704 + $0x18] sm:$0xff]
    %v6709 = vlaneseq
    %v6710 = vshrl.u32 %v6709, 7
    %v6711 = vsub.s32 4, %v6710
    %v6712 = vrot.slane %v6542, %v6711
    %v6714 = vsel %vm359, %v6701, 0
    %v6717 = vsel %vm359, %v6702, 0
    %v6720 = vsel %vm359, %v6703, 0
    %6722 = vmatprep.subr.mxu0 0.0
    %6723 = vmatpush1.msra.mxu0 %v6705
    %6724 = vmatprep.subr.mxu0 0.0
    %6725 = vmatpush1.msra.mxu0 %v6706
    %6726 = vmatprep.subr.mxu0 0.0
    %6727 = vmatpush1.msra.mxu0 %v6707
    %6728 = vmatprep.subr.mxu0 0.0
    %6729 = vmatpush1.msra.mxu0 %v6708
    %6730 = vmatprep.subr.mxu0 0.0
    %6731 = vmatpush1.msra.mxu0 0.0
    %6732 = vmatprep.subr.mxu0 0.0
    %6733 = vmatpush1.msra.mxu0 0.0
    %6734 = vmatprep.subr.mxu0 0.0
    %6735 = vmatpush1.msra.mxu0 0.0
    %6736 = vmatprep.subr.mxu0 0.0
    %6737 = vmatpush1.msra.mxu0 0.0
    %6738 = vmatprep.subr.mxu0 0.0
    %6739 = vmatpush1.msra.mxu0 0.0
    %6740 = vmatprep.subr.mxu0 0.0
    %6741 = vmatpush1.msra.mxu0 0.0
    %6742 = vmatprep.subr.mxu0 0.0
    %6743 = vmatpush1.msra.mxu0 0.0
    %6744 = vmatprep.subr.mxu0 0.0
    %6745 = vmatpush1.msra.mxu0 0.0
    %6746 = vmatprep.subr.mxu0 0.0
    %6747 = vmatpush1.msra.mxu0 0.0
    %6748 = vmatprep.subr.mxu0 0.0
    %6749 = vmatpush1.msra.mxu0 0.0
    %6750 = vmatprep.subr.mxu0 0.0
    %6751 = vmatpush1.msra.mxu0 0.0
    %6752 = vmatprep.subr.mxu0 0.0
    %6753 = vmatpush1.msra.mxu0 0.0
    %6754 = vmatprep.subr.mxu0 0.0
    %6755 = vmatpush1.msra.mxu0 0.0
    %6756 = vmatprep.subr.mxu0 0.0
    %6757 = vmatpush1.msra.mxu0 0.0
    %6758 = vmatprep.subr.mxu0 0.0
    %6759 = vmatpush1.msra.mxu0 0.0
    %6760 = vmatprep.subr.mxu0 0.0
    %6761 = vmatpush1.msra.mxu0 0.0
    %6762 = vmatprep.subr.mxu0 0.0
    %6763 = vmatpush1.msra.mxu0 0.0
    %6764 = vmatprep.subr.mxu0 0.0
    %6765 = vmatpush1.msra.mxu0 0.0
    %6766 = vmatprep.subr.mxu0 0.0
    %6767 = vmatpush1.msra.mxu0 0.0
    %6768 = vmatprep.subr.mxu0 0.0
    %6769 = vmatpush1.msra.mxu0 0.0
    %6770 = vmatprep.subr.mxu0 0.0
    %6771 = vmatpush1.msra.mxu0 0.0
    %6772 = vmatprep.subr.mxu0 0.0
    %6773 = vmatpush1.msra.mxu0 0.0
    %6774 = vmatprep.subr.mxu0 0.0
    %6775 = vmatpush1.msra.mxu0 0.0
    %6776 = vmatprep.subr.mxu0 0.0
    %6777 = vmatpush1.msra.mxu0 0.0
    %6778 = vmatprep.subr.mxu0 0.0
    %6779 = vmatpush1.msra.mxu0 0.0
    %6780 = vmatprep.subr.mxu0 0.0
    %6781 = vmatpush1.msra.mxu0 0.0
    %6782 = vmatprep.subr.mxu0 0.0
    %6783 = vmatpush1.msra.mxu0 0.0
    %6784 = vmatprep.subr.mxu0 0.0
    %6785 = vmatpush1.msra.mxu0 0.0
    %6786 = vmatprep.mubr.f32.mxu0 0.0
    %6787 = vmatmul.mubr.f32.gmra.mrb[0].mxu0 %v6714
    %v6788 = vpop.f32.mrb[0].mxu0
    %v6789 = vadd.f32 %v6712, %v6788
    %v6790 = vpop.f32.mrb[0].mxu0
    %6791 = vmatprep.mubr.f32.mxu0 0.0
    %6792 = vmatmul.mubr.f32.gmra.mrb[0].mxu0 %v6717
    %v6793 = vpop.f32.mrb[0].mxu0
    %v6794 = vadd.f32 %v6712, %v6793
    %v6795 = vpop.f32.mrb[0].mxu0
    %6796 = vmatprep.mubr.f32.mxu0 0.0
    %6797 = vmatmul.mubr.f32.gmra.mrb[0].mxu0 %v6720
    %v6798 = vpop.f32.mrb[0].mxu0
    %v6799 = vadd.f32 %v6712, %v6798
    %v6800 = vpop.f32.mrb[0].mxu0
    %6801 = vdwg.mxu0
    %v6802 = vadd.f32 %v6596, %v6789
    %v6803 = vadd.f32 %v6597, %v6794
    %v6804 = vadd.f32 %v6598, %v6799
    %v6805 = vsel %vm359, %v6802, 0.0
    %6806 = vadd.xlane.f32.xlu0 %v6805
    %v6807 = vpop.xlane.xlu0 %6806
    %v6808 = vsel %vm359, %v6803, 0.0
    %6809 = vadd.xlane.f32.xlu0 %v6808
    %v6810 = vpop.xlane.xlu0 %6809
    %v6811 = vsel %vm3310, %v6804, 0.0
    %6812 = vadd.xlane.f32.xlu0 %v6811
    %v6813 = vpop.xlane.xlu0 %6812
    %v6814 = vmul.f32 %v6807, %v3314
    %v6815 = vmul.f32 %v6810, %v3314
    %v6816 = vmul.f32 %v6813, %v3314
    %v6817 = vsub.f32 %v6802, %v6814
    %v6818 = vsub.f32 %v6803, %v6815
    %v6819 = vsub.f32 %v6804, %v6816
    %v6820 = vmul.f32 %v6817, %v6817
    %v6821 = vmul.f32 %v6818, %v6818
    %v6822 = vmul.f32 %v6819, %v6819
    %v6823 = vsel %vm359, %v6820, 0.0
    %6824 = vadd.xlane.f32.xlu0 %v6823
    %v6825 = vpop.xlane.xlu0 %6824
    %v6826 = vsel %vm359, %v6821, 0.0
    %6827 = vadd.xlane.f32.xlu0 %v6826
    %v6828 = vpop.xlane.xlu0 %6827
    %v6829 = vsel %vm3310, %v6822, 0.0
    %6830 = vadd.xlane.f32.xlu0 %v6829
    %v6831 = vpop.xlane.xlu0 %6830
    %v6832 = vmul.f32 %v6825, %v3314
    %v6833 = vmul.f32 %v6828, %v3314
    %v6834 = vmul.f32 %v6831, %v3314
    %v6835 = vadd.f32 %v6832, 1e-05
    %v6836 = vadd.f32 %v6833, 1e-05
    %v6837 = vadd.f32 %v6834, 1e-05
    %v6838 = vrsqrt.pop %v6835
    %v6839 = vrsqrt.pop %v6836
    %v6840 = vrsqrt.pop %v6837
    %v6841 = vmul.f32 %v6817, %v6838
    %v6842 = vmul.f32 %v6818, %v6839
    %v6843 = vmul.f32 %v6819, %v6840
    %v6844 = vlaneseq
    %v6845 = vshrl.u32 %v6844, 7
    %v6846 = vsub.s32 2, %v6845
    %v6847 = vrot.slane %v6542, %v6846
    %v6848 = vmul.f32 %v6841, %v6847
    %v6849 = vmul.f32 %v6842, %v6847
    %v6850 = vmul.f32 %v6843, %v6847
    %v6851 = vlaneseq
    %v6852 = vshrl.u32 %v6851, 7
    %v6853 = vsub.s32 3, %v6852
    %v6854 = vrot.slane %v6542, %v6853
    %v6855 = vadd.f32 %v6848, %v6854
    %v6856 = vadd.f32 %v6849, %v6854
    %v6857 = vadd.f32 %v6850, %v6854
    %v6858 = vsel %vm359, %v6855, 0.0
    %6859 = vadd.xlane.f32.xlu0 %v6858
    %v6860 = vpop.xlane.xlu0 %6859
    %v6861 = vsel %vm359, %v6856, 0.0
    %6862 = vadd.xlane.f32.xlu0 %v6861
    %v6863 = vpop.xlane.xlu0 %6862
    %v6864 = vsel %vm3310, %v6857, 0.0
    %6865 = vadd.xlane.f32.xlu0 %v6864
    %v6866 = vpop.xlane.xlu0 %6865
    %v6867 = vmul.f32 %v6860, %v3314
    %v6868 = vmul.f32 %v6863, %v3314
    %v6869 = vmul.f32 %v6866, %v3314
    %v6870 = vsub.f32 %v6855, %v6867
    %v6871 = vsub.f32 %v6856, %v6868
    %v6872 = vsub.f32 %v6857, %v6869
    %v6873 = vmul.f32 %v6870, %v6870
    %v6874 = vmul.f32 %v6871, %v6871
    %v6875 = vmul.f32 %v6872, %v6872
    %v6876 = vsel %vm359, %v6873, 0.0
    %6877 = vadd.xlane.f32.xlu0 %v6876
    %v6878 = vpop.xlane.xlu0 %6877
    %v6879 = vsel %vm359, %v6874, 0.0
    %6880 = vadd.xlane.f32.xlu0 %v6879
    %v6881 = vpop.xlane.xlu0 %6880
    %v6882 = vsel %vm3310, %v6875, 0.0
    %6883 = vadd.xlane.f32.xlu0 %v6882
    %v6884 = vpop.xlane.xlu0 %6883
    %v6885 = vmul.f32 %v6878, %v3314
    %v6886 = vmul.f32 %v6881, %v3314
    %v6887 = vmul.f32 %v6884, %v3314
    %v6888 = vadd.f32 %v6885, 1e-05
    %v6889 = vadd.f32 %v6886, 1e-05
    %v6890 = vadd.f32 %v6887, 1e-05
    %v6891 = vrsqrt.pop %v6888
    %v6892 = vrsqrt.pop %v6889
    %v6893 = vrsqrt.pop %v6890
    %v6894 = vmul.f32 %v6870, %v6891
    %v6895 = vmul.f32 %v6871, %v6892
    %v6896 = vmul.f32 %v6872, %v6893
    %v6897 = vlaneseq
    %v6898 = vshrl.u32 %v6897, 7
    %v6899 = vsub.s32 1, %v6898
    %v6900 = vrot.slane %v256, %v6899
    %v6901 = vmul.f32 %v6894, %v6900
    %v6902 = vmul.f32 %v6895, %v6900
    %v6903 = vmul.f32 %v6896, %v6900
    %v6904 = vlaneseq
    %v6905 = vshrl.u32 %v6904, 7
    %v6906 = vsub.s32 2, %v6905
    %v6907 = vrot.slane %v256, %v6906
    %v6908 = vadd.f32 %v6901, %v6907
    %v6909 = vadd.f32 %v6902, %v6907
    %v6910 = vadd.f32 %v6903, %v6907
    %v6911 = vld [vmem:[#allocation9] sm:$0xff]
    %v6912 = vld [vmem:[#allocation9 + $0x8] sm:$0xff]
    %v6913 = vld [vmem:[#allocation9 + $0x10] sm:$0xff]
    %v6914 = vld [vmem:[#allocation9 + $0x18] sm:$0xff]
    %v6915 = vld [vmem:[#allocation11] sm:$0x1]
    %v6917 = vlaneseq
    %v6918 = vshrl.u32 %v6917, 7
    %v6919 = vsub.s32 0, %v6918
    %v6920 = vrot.slane %v6915, %v6919
    %v6923 = vsel %vm359, %v6908, 0
    %v6926 = vsel %vm359, %v6909, 0
    %v6929 = vsel %vm359, %v6910, 0
    %6931 = vmatprep.subr.mxu0 0.0
    %6932 = vmatpush1.msra.mxu0 %v6911
    %6933 = vmatprep.subr.mxu0 0.0
    %6934 = vmatpush1.msra.mxu0 %v6912
    %6935 = vmatprep.subr.mxu0 0.0
    %6936 = vmatpush1.msra.mxu0 %v6913
    %6937 = vmatprep.subr.mxu0 0.0
    %6938 = vmatpush1.msra.mxu0 %v6914
    %6939 = vmatprep.subr.mxu0 0.0
    %6940 = vmatpush1.msra.mxu0 0.0
    %6941 = vmatprep.subr.mxu0 0.0
    %6942 = vmatpush1.msra.mxu0 0.0
    %6943 = vmatprep.subr.mxu0 0.0
    %6944 = vmatpush1.msra.mxu0 0.0
    %6945 = vmatprep.subr.mxu0 0.0
    %6946 = vmatpush1.msra.mxu0 0.0
    %6947 = vmatprep.subr.mxu0 0.0
    %6948 = vmatpush1.msra.mxu0 0.0
    %6949 = vmatprep.subr.mxu0 0.0
    %6950 = vmatpush1.msra.mxu0 0.0
    %6951 = vmatprep.subr.mxu0 0.0
    %6952 = vmatpush1.msra.mxu0 0.0
    %6953 = vmatprep.subr.mxu0 0.0
    %6954 = vmatpush1.msra.mxu0 0.0
    %6955 = vmatprep.subr.mxu0 0.0
    %6956 = vmatpush1.msra.mxu0 0.0
    %6957 = vmatprep.subr.mxu0 0.0
    %6958 = vmatpush1.msra.mxu0 0.0
    %6959 = vmatprep.subr.mxu0 0.0
    %6960 = vmatpush1.msra.mxu0 0.0
    %6961 = vmatprep.subr.mxu0 0.0
    %6962 = vmatpush1.msra.mxu0 0.0
    %6963 = vmatprep.subr.mxu0 0.0
    %6964 = vmatpush1.msra.mxu0 0.0
    %6965 = vmatprep.subr.mxu0 0.0
    %6966 = vmatpush1.msra.mxu0 0.0
    %6967 = vmatprep.subr.mxu0 0.0
    %6968 = vmatpush1.msra.mxu0 0.0
    %6969 = vmatprep.subr.mxu0 0.0
    %6970 = vmatpush1.msra.mxu0 0.0
    %6971 = vmatprep.subr.mxu0 0.0
    %6972 = vmatpush1.msra.mxu0 0.0
    %6973 = vmatprep.subr.mxu0 0.0
    %6974 = vmatpush1.msra.mxu0 0.0
    %6975 = vmatprep.subr.mxu0 0.0
    %6976 = vmatpush1.msra.mxu0 0.0
    %6977 = vmatprep.subr.mxu0 0.0
    %6978 = vmatpush1.msra.mxu0 0.0
    %6979 = vmatprep.subr.mxu0 0.0
    %6980 = vmatpush1.msra.mxu0 0.0
    %6981 = vmatprep.subr.mxu0 0.0
    %6982 = vmatpush1.msra.mxu0 0.0
    %6983 = vmatprep.subr.mxu0 0.0
    %6984 = vmatpush1.msra.mxu0 0.0
    %6985 = vmatprep.subr.mxu0 0.0
    %6986 = vmatpush1.msra.mxu0 0.0
    %6987 = vmatprep.subr.mxu0 0.0
    %6988 = vmatpush1.msra.mxu0 0.0
    %6989 = vmatprep.subr.mxu0 0.0
    %6990 = vmatpush1.msra.mxu0 0.0
    %6991 = vmatprep.subr.mxu0 0.0
    %6992 = vmatpush1.msra.mxu0 0.0
    %6993 = vmatprep.subr.mxu0 0.0
    %6994 = vmatpush1.msra.mxu0 0.0
    %6995 = vmatprep.mubr.f32.mxu0 0.0
    %6996 = vmatmul.mubr.f32.gmra.mrb[0].mxu0 %v6923
    %v6997 = vpop.f32.mrb[0].mxu0
    %v6998 = vadd.f32 %v6920, %v6997
    %v6999 = vpop.f32.mrb[0].mxu0
    %7000 = vmatprep.mubr.f32.mxu0 0.0
    %7001 = vmatmul.mubr.f32.gmra.mrb[0].mxu0 %v6926
    %v7002 = vpop.f32.mrb[0].mxu0
    %v7003 = vadd.f32 %v6920, %v7002
    %v7004 = vpop.f32.mrb[0].mxu0
    %7005 = vmatprep.mubr.f32.mxu0 0.0
    %7006 = vmatmul.mubr.f32.gmra.mrb[0].mxu0 %v6929
    %v7007 = vpop.f32.mrb[0].mxu0
    %v7008 = vadd.f32 %v6920, %v7007
    %v7009 = vpop.f32.mrb[0].mxu0
    %7010 = vdwg.mxu0
    %vm7011 = vcmask 31744
    %7012 = vst.msk [vmem:[#allocation26] sm:$0xff] %vm7011, %v6998
    %7013 = vst.msk [vmem:[#allocation26 + $0x8] sm:$0xff] %vm7011, %v7003
    %vm7014 = vcmask 27648
    %7015 = vst.msk [vmem:[#allocation26 + $0x10] sm:$0xf] %vm7014, %v7008
    // Predicated region
    $region114: #{model_forward.1} parent=1 // pred_check
      _
    $region115: #{model_forward.1} parent=1 // pred_check_branch
      %7017 = sbr.rel (0) target = $region117
    $region116: #{model_forward.1} parent=1 // pred_region
      %s7019 = ssub.s32 384, 384
      %7020 = vsyncadd [#allocation5], %s7019
      %s7021 = sshll.u32 [#allocation26], 4
      %s7022 = int_to_ptr.vmem [resolvable:$true] %s7021
      %7027 = dma.vmem_to_hbm [thread:$0]  %s7022, 384, %s14, [#allocation5], 128, 128, 8
    $region117: #{model_forward.1} parent=1 // pred_fallthru
      _
    // Predicated region
    $region118: #{model_forward.1} parent=1 // pred_check
      _
    $region119: #{model_forward.1} parent=1 // pred_check_branch
      %7029 = sbr.rel (0) target = $region121
    $region120: #{model_forward.1} parent=1 // pred_region
      %7030 = dma.done [#allocation5], 384
    $region121: #{model_forward.1} parent=1 // pred_fallthru
      _
    %7031 = vsyncpa [#allocation4], 1
    %7032 = vsyncpa [#allocation7], 1
    %7033 = vsyncpa [#allocation10], 1
    %7034 = vsyncpa [#allocation13], 1
    %7035 = vsyncpa [#allocation16], 1
    %7036 = vsyncpa [#allocation19], 1
    %7037 = vsyncpa [#allocation22], 1
    %7038 = vsyncpa [#allocation25], 1
    %7039 = vsyncpa [#allocation5], 1

</llo_original>
